<compile_context>
chip_gen: v6e
topology: v6e:2x2x1
jax: 0.10.0
libtpu: 0.0.40
codegen_flags: <defaults>
</compile_context>

<pallas_src>
import jax
import jax.numpy as jnp
from jax import lax
from jax.experimental import pallas as pl
from jax.experimental.pallas import tpu as pltpu

# ----------------------------- model hyperparams -----------------------------
BATCH       = 2
IN_CH       = 3
SPATIAL     = 16          # H = W
QUANT_DIM   = 16          # encoder output channels (must equal SPATIAL, see assert)
N_PARTS     = 2
CODE_DIM    = QUANT_DIM // N_PARTS
N_EMBED     = 64          # synthetic codebook (module default 1024)
DEC_CH      = 32          # decoder output channels
NUM_CLASSES = 10
COMMITMENT  = 1.0
PAD_W       = 32          # decoder scratch width: interior parked at cols 8..23
                          # so the interior store is sublane-8-aligned

# The raw NCHW -> (B,H,W,C) `.view()` scramble is a clean half-row regrouping
# only when H == W == QUANT_DIM; the fused kernel relies on that.
assert SPATIAL == QUANT_DIM and QUANT_DIM == N_PARTS * CODE_DIM and N_PARTS == 2


# ------------------------------ fused Pallas kernel ---------------------------
def _fused_forward_kernel(patch27_ref, enc_w_ref, enc_b_ref,
                          cb_t_ref, cb_bias_ref, cb_pad_ref,
                          dec_w_ref, dec_b_ref, pool_ref,
                          cls_w_ref, cls_b_ref,
                          logits_ref, commit_ref,
                          dpad_ref, pat_ref):
    B, H, W, Cq = BATCH, SPATIAL, SPATIAL, QUANT_DIM
    K, d = N_EMBED, CODE_DIM
    N = B * H * W
    f32, bf16 = jnp.float32, jnp.bfloat16

    # ---------------- encoder: one im2col matmul + bias + ReLU ----------------
    # (N,27) patch slab built in the wrapper; single bf16 MXU matmul, f32 acc.
    enc_out = jnp.maximum(
        jnp.dot(patch27_ref[...].astype(bf16), enc_w_ref[...].astype(bf16),
                preferred_element_type=f32) + enc_b_ref[...], 0.0)      # (N, Cq), rows (b,h,w)

    # -------- reference's raw X.view((B,H,W,C)) of the NCHW tensor ------------
    # With H == W == Cq this is zr[(b,h,c), w] = enc_out[(b,h,w), c]:
    # one batched 16x16 minor-dim transpose (XLU), no per-row Python loop.
    zr = jnp.swapaxes(enc_out.reshape(B * H, W, Cq), 1, 2).reshape(N, Cq)   # (N, Cq) f32

    # -------------- vector quantization: per-part score argmax ----------------
    # argmin_k ||z - c_k||^2  ==  argmax_k (z . c_k - 0.5*||c_k||^2).
    # No (N,2K) distance slab / iota / select; first-occurrence tie-break.
    colk = lax.broadcasted_iota(jnp.int32, (N, K), 1)
    zq = jnp.zeros((N, Cq), f32)
    for p in range(N_PARTS):
        z_p = zr[:, p * d:(p + 1) * d]                                   # (N, d)
        score = jnp.dot(z_p, cb_t_ref[...],
                        preferred_element_type=f32) + cb_bias_ref[...]   # (N, K)
        m = jnp.max(score, axis=1, keepdims=True)
        idx = jnp.min(jnp.where(score == m, colk, K), axis=1, keepdims=True)
        one_hot = (colk == idx).astype(f32)                              # (N, K)
        # cb_pad[p] is the codebook embedded in columns p*d:(p+1)*d of (K, Cq);
        # adding the two part lookups avoids any lane-concatenate.
        zq = zq + jnp.dot(one_hot, cb_pad_ref[p], preferred_element_type=f32)

    # commitment = sum over parts of mse(zq_p.detach(), z_p): exact, in VMEM.
    diff = zq - zr
    commit_ref[0] = jnp.sum(diff * diff) * (COMMITMENT / float(N * d))
    # TODO(synk): EMA codebook update (decay) is a training-time side effect and
    # indices are not returned by forward(); both intentionally omitted.

    # ------ raw .view((B,C,H,W)) back + zero halo for the decoder conv --------
    # dpad[b, 1+h, 8+w, c] = zq[(b,h,c), w]; one batched transpose + one store.
    zq_t = jnp.swapaxes(zq.reshape(B * H, Cq, W), 1, 2)                  # (B*H, W, Cq)
    # Only the halo the taps read (rows 0 / H+1, cols 7 / 8+W) needs zeroing;
    # cols 0..6 and 9+W..PAD_W-1 are never read, interior is fully overwritten.
    dpad_ref[:, 0:1, :, :] = jnp.zeros((B, 1, PAD_W, Cq), f32)
    dpad_ref[:, H + 1:H + 2, :, :] = jnp.zeros((B, 1, PAD_W, Cq), f32)
    dpad_ref[:, 1:H + 1, 7:8, :] = jnp.zeros((B, H, 1, Cq), f32)
    dpad_ref[:, 1:H + 1, 8 + W:9 + W, :] = jnp.zeros((B, H, 1, Cq), f32)
    dpad_ref[:, 1:H + 1, 8:8 + W, :] = zq_t.reshape(B, H, W, Cq)
    # TODO(synk): a fully lane-dense (B, H+2, PAD_W*Cq) scratch would unmask the
    # tap loads but needs lane<->sublane reshapes; kept NHWC-tiled for robustness.

    # ---------------- decoder: 3x3 conv (pad 1) as ONE matmul -----------------
    # 9 taps are copied into a lane-contiguous (N, 9*Cq) patch slab, then a
    # single (N,144)@(144,32) bf16 matmul (f32 acc) replaces 9 K=16 matmuls.
    # NOTE: tap columns 7 and 9 (dx=0,2) are intentionally sublane-unaligned;
    # the 8-aligned offset belongs to the interior *store*, do not "fix" it.
    for t in range(9):
        dy, dx = divmod(t, 3)
        pat_ref[:, t * Cq:(t + 1) * Cq] = \
            dpad_ref[:, dy:dy + H, 7 + dx:7 + dx + W, :].reshape(N, Cq)
    dec_out = jnp.maximum(
        jnp.dot(pat_ref[...].astype(bf16), dec_w_ref[...].astype(bf16),
                preferred_element_type=f32) + dec_b_ref[...], 0.0)       # (N, DEC_CH)

    # --------- adaptive_avg_pool2d(.,1) + classifier, both on the MXU ---------
    pooled = jnp.dot(pool_ref[...].astype(bf16), dec_out.astype(bf16),
                     preferred_element_type=f32)                         # (B, DEC_CH)
    logits_ref[...] = (jnp.dot(pooled.astype(bf16), cls_w_ref[...].astype(bf16),
                               preferred_element_type=f32) + cls_b_ref[...])


# --------------------------------- JAX wrapper --------------------------------
def mobilenet_xx_forward(x_nchw, params):
    B, _, H, W = x_nchw.shape
    Cq, K, d = QUANT_DIM, N_EMBED, CODE_DIM
    N = B * H * W

    # encoder im2col slab (N, 9*Cin): tiny one-time XLA work, lane-contiguous.
    x_pad = jnp.pad(jnp.transpose(x_nchw, (0, 2, 3, 1)),
                    ((0, 0), (1, 1), (1, 1), (0, 0)))
    patches = jnp.concatenate(
        [x_pad[:, dy:dy + H, dx:dx + W, :] for dy in range(3) for dx in range(3)],
        axis=-1).reshape(N, 9 * IN_CH)
    enc_w27 = params['enc_w'].reshape(9 * IN_CH, Cq)                     # rows (tap, cin)

    # VQ score matmul operands: cb^T, bias -0.5*||c||^2, and per-part padded
    # codebooks (codebook embedded in cols p*d:(p+1)*d of a (K, Cq) matrix).
    cb = params['codebook']                                              # (K, d) f32
    cb_t = cb.T                                                          # (d, K)
    cb_bias = (-0.5 * jnp.sum(cb * cb, axis=1))[None, :]                 # (1, K)
    zpad = jnp.zeros_like(cb)
    cb_pad = jnp.stack([jnp.concatenate([cb, zpad], axis=1),
                        jnp.concatenate([zpad, cb], axis=1)], axis=0)    # (2, K, Cq)

    dec_w144 = params['dec_w'].reshape(9 * Cq, DEC_CH)                   # rows (tap, c)
    pool = jnp.repeat(jnp.eye(B, dtype=jnp.float32), H * W, axis=1) / (H * W)  # (B, N)

    vmem = pl.BlockSpec(memory_space=pltpu.MemorySpace.VMEM)
    smem = pl.BlockSpec(memory_space=pltpu.MemorySpace.SMEM)

    logits, commit = pl.pallas_call(
        _fused_forward_kernel,
        out_shape=(jax.ShapeDtypeStruct((B, NUM_CLASSES), jnp.float32),
                   jax.ShapeDtypeStruct((1,), jnp.float32)),
        in_specs=[vmem] * 11,
        out_specs=(vmem, smem),
        scratch_shapes=[
            pltpu.VMEM((B, H + 2, PAD_W, Cq), jnp.float32),   # padded decoder input
            pltpu.VMEM((N, 9 * Cq), jnp.float32),             # decoder im2col slab
        ],
        # TODO(synk): at larger B/H/W tile M=B*H*W with a ("parallel",) grid
        # (v7x dual TensorCore), emit per-tile partial commit sums, and set
        # vmem_limit_bytes (v7x has only 64 MiB VMEM); unnecessary at this size.
    )(patches, enc_w27, params['enc_b'], cb_t, cb_bias, cb_pad,
      dec_w144, params['dec_b'], pool, params['cls_w'], params['cls_b'])
    return logits, commit[0]


def init_params(key):
    ks = jax.random.split(key, 8)
    return {
        'enc_w': 0.1 * jax.random.normal(ks[0], (9, IN_CH, QUANT_DIM), jnp.float32),
        'enc_b': 0.1 * jax.random.normal(ks[1], (1, QUANT_DIM), jnp.float32),
        'codebook': jax.random.normal(ks[2], (N_EMBED, CODE_DIM), jnp.float32),
        'dec_w': 0.1 * jax.random.normal(ks[3], (9, QUANT_DIM, DEC_CH), jnp.float32),
        'dec_b': 0.1 * jax.random.normal(ks[4], (1, DEC_CH), jnp.float32),
        'cls_w': 0.1 * jax.random.normal(ks[5], (DEC_CH, NUM_CLASSES), jnp.float32),
        'cls_b': 0.1 * jax.random.normal(ks[6], (1, NUM_CLASSES), jnp.float32),
    }


if __name__ == "__main__":
    key = jax.random.PRNGKey(0)
    params = init_params(key)
    x = jax.random.normal(jax.random.split(key, 2)[1],
                          (BATCH, IN_CH, SPATIAL, SPATIAL), jnp.float32)  # NCHW input

    fwd = jax.jit(mobilenet_xx_forward)
    logits, commit_loss = fwd(x, params)
    jax.block_until_ready((logits, commit_loss))

    assert logits.shape == (BATCH, NUM_CLASSES)
    assert commit_loss.shape == ()
    assert bool(jnp.all(jnp.isfinite(logits))) and bool(jnp.isfinite(commit_loss))
    print("KERNEL_OK")
</pallas_src>

<mosaic_0001>
module attributes {stable_mosaic.version = 11 : i64} {
  func.func @_fused_forward_kernel(%arg0: memref<512x27xf32, #tpu.memory_space<vmem>>, %arg1: memref<27x16xf32, #tpu.memory_space<vmem>>, %arg2: memref<1x16xf32, #tpu.memory_space<vmem>>, %arg3: memref<8x64xf32, #tpu.memory_space<vmem>>, %arg4: memref<1x64xf32, #tpu.memory_space<vmem>>, %arg5: memref<2x64x16xf32, #tpu.memory_space<vmem>>, %arg6: memref<144x32xf32, #tpu.memory_space<vmem>>, %arg7: memref<1x32xf32, #tpu.memory_space<vmem>>, %arg8: memref<2x512xf32, #tpu.memory_space<vmem>>, %arg9: memref<32x10xf32, #tpu.memory_space<vmem>>, %arg10: memref<1x10xf32, #tpu.memory_space<vmem>>, %arg11: memref<2x10xf32, #tpu.memory_space<vmem>>, %arg12: memref<1xf32, #tpu.memory_space<smem>>, %arg13: memref<2x18x32x16xf32, #tpu.memory_space<vmem>>, %arg14: memref<512x144xf32, #tpu.memory_space<vmem>>) attributes {dimension_semantics = [], scalar_prefetch = 0 : i64, scratch_operands = 2 : i64, tpu.core_type = #tpu.core_type<tc>} {
    %c0 = arith.constant 0 : index
    %c0_0 = arith.constant 0 : index
    %0 = vector.load %arg0[%c0, %c0_0] : memref<512x27xf32, #tpu.memory_space<vmem>>, vector<512x27xf32>
    %1 = arith.truncf %0 : vector<512x27xf32> to vector<512x27xbf16>
    %c0_1 = arith.constant 0 : index
    %c0_2 = arith.constant 0 : index
    %2 = vector.load %arg1[%c0_1, %c0_2] : memref<27x16xf32, #tpu.memory_space<vmem>>, vector<27x16xf32>
    %3 = arith.truncf %2 : vector<27x16xf32> to vector<27x16xbf16>
    %cst = arith.constant dense<0.000000e+00> : vector<512x16xf32>
    %4 = tpu.matmul %1, %3, %cst {dimension_numbers = #tpu.dot_dimension_numbers<[1], [0], [0], [1], [0, 0, 1, 1], [], []>} : vector<512x27xbf16>, vector<27x16xbf16>, vector<512x16xf32> -> vector<512x16xf32>
    %c0_3 = arith.constant 0 : index
    %c0_4 = arith.constant 0 : index
    %5 = vector.load %arg2[%c0_3, %c0_4] : memref<1x16xf32, #tpu.memory_space<vmem>>, vector<1x16xf32>
    %6 = vector.broadcast %5 : vector<1x16xf32> to vector<512x16xf32>
    %7 = arith.addf %4, %6 : vector<512x16xf32>
    %cst_5 = arith.constant 0.000000e+00 : f32
    %8 = vector.broadcast %cst_5 : f32 to vector<512x16xf32>
    %9 = arith.maximumf %7, %8 : vector<512x16xf32>
    %10 = vector.shape_cast %9 : vector<512x16xf32> to vector<32x16x16xf32>
    %11 = tpu.transpose %10, [0, 2, 1] : vector<32x16x16xf32> -> vector<32x16x16xf32>
    %12 = vector.shape_cast %11 : vector<32x16x16xf32> to vector<512x16xf32>
    %13 = tpu.iota {dimensions = array<i32: 1>} : vector<512x64xi32>
    %cst_6 = arith.constant 0.000000e+00 : f32
    %14 = vector.broadcast %cst_6 : f32 to vector<512x16xf32>
    %15 = vector.extract_strided_slice %12 {offsets = [0, 0], sizes = [512, 8], strides = [1, 1]} : vector<512x16xf32> to vector<512x8xf32>
    %c0_7 = arith.constant 0 : index
    %c0_8 = arith.constant 0 : index
    %16 = vector.load %arg3[%c0_7, %c0_8] : memref<8x64xf32, #tpu.memory_space<vmem>>, vector<8x64xf32>
    %cst_9 = arith.constant dense<0.000000e+00> : vector<512x64xf32>
    %17 = tpu.matmul %15, %16, %cst_9 {dimension_numbers = #tpu.dot_dimension_numbers<[1], [0], [0], [1], [0, 0, 1, 1], [], []>} : vector<512x8xf32>, vector<8x64xf32>, vector<512x64xf32> -> vector<512x64xf32>
    %c0_10 = arith.constant 0 : index
    %c0_11 = arith.constant 0 : index
    %18 = vector.load %arg4[%c0_10, %c0_11] : memref<1x64xf32, #tpu.memory_space<vmem>>, vector<1x64xf32>
    %19 = vector.broadcast %18 : vector<1x64xf32> to vector<512x64xf32>
    %20 = arith.addf %17, %19 : vector<512x64xf32>
    %cst_12 = arith.constant dense<0xFF800000> : vector<512xf32>
    %21 = vector.multi_reduction <maximumf>, %20, %cst_12 [1] : vector<512x64xf32> to vector<512xf32>
    %22 = vector.shape_cast %21 : vector<512xf32> to vector<512x1xf32>
    %23 = vector.broadcast %22 : vector<512x1xf32> to vector<512x64xf32>
    %24 = arith.cmpf oeq, %20, %23 : vector<512x64xf32>
    %c64_i32 = arith.constant 64 : i32
    %25 = vector.broadcast %c64_i32 : i32 to vector<512x64xi32>
    %26 = arith.select %24, %13, %25 : vector<512x64xi1>, vector<512x64xi32>
    %cst_13 = arith.constant dense<2147483647> : vector<512xi32>
    %27 = vector.multi_reduction <minsi>, %26, %cst_13 [1] : vector<512x64xi32> to vector<512xi32>
    %28 = vector.shape_cast %27 : vector<512xi32> to vector<512x1xi32>
    %29 = vector.broadcast %28 : vector<512x1xi32> to vector<512x64xi32>
    %30 = arith.cmpi eq, %13, %29 : vector<512x64xi32>
    %31 = arith.extui %30 : vector<512x64xi1> to vector<512x64xi32>
    %32 = arith.sitofp %31 : vector<512x64xi32> to vector<512x64xf32>
    %c0_14 = arith.constant 0 : index
    %c0_15 = arith.constant 0 : index
    %c0_16 = arith.constant 0 : index
    %33 = vector.load %arg5[%c0_14, %c0_15, %c0_16] : memref<2x64x16xf32, #tpu.memory_space<vmem>>, vector<1x64x16xf32>
    %34 = vector.shape_cast %33 : vector<1x64x16xf32> to vector<64x16xf32>
    %cst_17 = arith.constant dense<0.000000e+00> : vector<512x16xf32>
    %35 = tpu.matmul %32, %34, %cst_17 {dimension_numbers = #tpu.dot_dimension_numbers<[1], [0], [0], [1], [0, 0, 1, 1], [], []>} : vector<512x64xf32>, vector<64x16xf32>, vector<512x16xf32> -> vector<512x16xf32>
    %36 = arith.addf %14, %35 : vector<512x16xf32>
    %37 = vector.extract_strided_slice %12 {offsets = [0, 8], sizes = [512, 8], strides = [1, 1]} : vector<512x16xf32> to vector<512x8xf32>
    %c0_18 = arith.constant 0 : index
    %c0_19 = arith.constant 0 : index
    %38 = vector.load %arg3[%c0_18, %c0_19] : memref<8x64xf32, #tpu.memory_space<vmem>>, vector<8x64xf32>
    %cst_20 = arith.constant dense<0.000000e+00> : vector<512x64xf32>
    %39 = tpu.matmul %37, %38, %cst_20 {dimension_numbers = #tpu.dot_dimension_numbers<[1], [0], [0], [1], [0, 0, 1, 1], [], []>} : vector<512x8xf32>, vector<8x64xf32>, vector<512x64xf32> -> vector<512x64xf32>
    %c0_21 = arith.constant 0 : index
    %c0_22 = arith.constant 0 : index
    %40 = vector.load %arg4[%c0_21, %c0_22] : memref<1x64xf32, #tpu.memory_space<vmem>>, vector<1x64xf32>
    %41 = vector.broadcast %40 : vector<1x64xf32> to vector<512x64xf32>
    %42 = arith.addf %39, %41 : vector<512x64xf32>
    %cst_23 = arith.constant dense<0xFF800000> : vector<512xf32>
    %43 = vector.multi_reduction <maximumf>, %42, %cst_23 [1] : vector<512x64xf32> to vector<512xf32>
    %44 = vector.shape_cast %43 : vector<512xf32> to vector<512x1xf32>
    %45 = vector.broadcast %44 : vector<512x1xf32> to vector<512x64xf32>
    %46 = arith.cmpf oeq, %42, %45 : vector<512x64xf32>
    %c64_i32_24 = arith.constant 64 : i32
    %47 = vector.broadcast %c64_i32_24 : i32 to vector<512x64xi32>
    %48 = arith.select %46, %13, %47 : vector<512x64xi1>, vector<512x64xi32>
    %cst_25 = arith.constant dense<2147483647> : vector<512xi32>
    %49 = vector.multi_reduction <minsi>, %48, %cst_25 [1] : vector<512x64xi32> to vector<512xi32>
    %50 = vector.shape_cast %49 : vector<512xi32> to vector<512x1xi32>
    %51 = vector.broadcast %50 : vector<512x1xi32> to vector<512x64xi32>
    %52 = arith.cmpi eq, %13, %51 : vector<512x64xi32>
    %53 = arith.extui %52 : vector<512x64xi1> to vector<512x64xi32>
    %54 = arith.sitofp %53 : vector<512x64xi32> to vector<512x64xf32>
    %c1 = arith.constant 1 : index
    %c0_26 = arith.constant 0 : index
    %c0_27 = arith.constant 0 : index
    %55 = vector.load %arg5[%c1, %c0_26, %c0_27] : memref<2x64x16xf32, #tpu.memory_space<vmem>>, vector<1x64x16xf32>
    %56 = vector.shape_cast %55 : vector<1x64x16xf32> to vector<64x16xf32>
    %cst_28 = arith.constant dense<0.000000e+00> : vector<512x16xf32>
    %57 = tpu.matmul %54, %56, %cst_28 {dimension_numbers = #tpu.dot_dimension_numbers<[1], [0], [0], [1], [0, 0, 1, 1], [], []>} : vector<512x64xf32>, vector<64x16xf32>, vector<512x16xf32> -> vector<512x16xf32>
    %58 = arith.addf %36, %57 : vector<512x16xf32>
    %59 = arith.subf %58, %12 : vector<512x16xf32>
    %60 = arith.mulf %59, %59 : vector<512x16xf32>
    %61 = vector.shape_cast %60 : vector<512x16xf32> to vector<1x512x16xf32>
    %cst_29 = arith.constant dense<0.000000e+00> : vector<1xf32>
    %62 = vector.multi_reduction <add>, %61, %cst_29 [1, 2] : vector<1x512x16xf32> to vector<1xf32>
    %63 = vector.shape_cast %62 : vector<1xf32> to vector<1x1x1xf32>
    %64 = vector.extract %63[0, 0, 0] : f32 from vector<1x1x1xf32>
    %cst_30 = arith.constant 2.44140625E-4 : f32
    %65 = arith.mulf %64, %cst_30 : f32
    %c0_31 = arith.constant 0 : index
    %66 = memref.load %arg12[%c0_31] : memref<1xf32, #tpu.memory_space<smem>>
    memref.store %65, %arg12[%c0_31] : memref<1xf32, #tpu.memory_space<smem>>
    %67 = vector.shape_cast %58 : vector<512x16xf32> to vector<32x16x16xf32>
    %68 = tpu.transpose %67, [0, 2, 1] : vector<32x16x16xf32> -> vector<32x16x16xf32>
    %cst_32 = arith.constant 0.000000e+00 : f32
    %69 = vector.broadcast %cst_32 : f32 to vector<2x1x32x16xf32>
    %c0_33 = arith.constant 0 : index
    %c0_34 = arith.constant 0 : index
    %c0_35 = arith.constant 0 : index
    %c0_36 = arith.constant 0 : index
    %70 = vector.load %arg13[%c0_33, %c0_34, %c0_35, %c0_36] : memref<2x18x32x16xf32, #tpu.memory_space<vmem>>, vector<2x1x32x16xf32>
    tpu.vector_store %arg13[%c0_33, %c0_34, %c0_35, %c0_36], %69 {strides = array<i32>} : memref<2x18x32x16xf32, #tpu.memory_space<vmem>>, vector<2x1x32x16xf32>,
    %cst_37 = arith.constant 0.000000e+00 : f32
    %71 = vector.broadcast %cst_37 : f32 to vector<2x1x32x16xf32>
    %c0_38 = arith.constant 0 : index
    %c17 = arith.constant 17 : index
    %c0_39 = arith.constant 0 : index
    %c0_40 = arith.constant 0 : index
    %72 = vector.load %arg13[%c0_38, %c17, %c0_39, %c0_40] : memref<2x18x32x16xf32, #tpu.memory_space<vmem>>, vector<2x1x32x16xf32>
    tpu.vector_store %arg13[%c0_38, %c17, %c0_39, %c0_40], %71 {strides = array<i32>} : memref<2x18x32x16xf32, #tpu.memory_space<vmem>>, vector<2x1x32x16xf32>,
    %cst_41 = arith.constant 0.000000e+00 : f32
    %73 = vector.broadcast %cst_41 : f32 to vector<2x16x1x16xf32>
    %c0_42 = arith.constant 0 : index
    %c1_43 = arith.constant 1 : index
    %c7 = arith.constant 7 : index
    %c0_44 = arith.constant 0 : index
    %74 = vector.load %arg13[%c0_42, %c1_43, %c7, %c0_44] : memref<2x18x32x16xf32, #tpu.memory_space<vmem>>, vector<2x16x1x16xf32>
    tpu.vector_store %arg13[%c0_42, %c1_43, %c7, %c0_44], %73 {strides = array<i32>} : memref<2x18x32x16xf32, #tpu.memory_space<vmem>>, vector<2x16x1x16xf32>,
    %cst_45 = arith.constant 0.000000e+00 : f32
    %75 = vector.broadcast %cst_45 : f32 to vector<2x16x1x16xf32>
    %c0_46 = arith.constant 0 : index
    %c1_47 = arith.constant 1 : index
    %c24 = arith.constant 24 : index
    %c0_48 = arith.constant 0 : index
    %76 = vector.load %arg13[%c0_46, %c1_47, %c24, %c0_48] : memref<2x18x32x16xf32, #tpu.memory_space<vmem>>, vector<2x16x1x16xf32>
    tpu.vector_store %arg13[%c0_46, %c1_47, %c24, %c0_48], %75 {strides = array<i32>} : memref<2x18x32x16xf32, #tpu.memory_space<vmem>>, vector<2x16x1x16xf32>,
    %77 = vector.shape_cast %68 : vector<32x16x16xf32> to vector<2x16x16x16xf32>
    %c0_49 = arith.constant 0 : index
    %c1_50 = arith.constant 1 : index
    %c8 = arith.constant 8 : index
    %c0_51 = arith.constant 0 : index
    %78 = vector.load %arg13[%c0_49, %c1_50, %c8, %c0_51] : memref<2x18x32x16xf32, #tpu.memory_space<vmem>>, vector<2x16x16x16xf32>
    tpu.vector_store %arg13[%c0_49, %c1_50, %c8, %c0_51], %77 {strides = array<i32>} : memref<2x18x32x16xf32, #tpu.memory_space<vmem>>, vector<2x16x16x16xf32>,
    %c0_52 = arith.constant 0 : index
    %c0_53 = arith.constant 0 : index
    %c7_54 = arith.constant 7 : index
    %c0_55 = arith.constant 0 : index
    %79 = vector.load %arg13[%c0_52, %c0_53, %c7_54, %c0_55] : memref<2x18x32x16xf32, #tpu.memory_space<vmem>>, vector<2x16x16x16xf32>
    %80 = vector.shape_cast %79 : vector<2x16x16x16xf32> to vector<512x16xf32>
    %c0_56 = arith.constant 0 : index
    %c0_57 = arith.constant 0 : index
    %81 = vector.load %arg14[%c0_56, %c0_57] : memref<512x144xf32, #tpu.memory_space<vmem>>, vector<512x16xf32>
    tpu.vector_store %arg14[%c0_56, %c0_57], %80 {strides = array<i32>} : memref<512x144xf32, #tpu.memory_space<vmem>>, vector<512x16xf32>,
    %c0_58 = arith.constant 0 : index
    %c0_59 = arith.constant 0 : index
    %c8_60 = arith.constant 8 : index
    %c0_61 = arith.constant 0 : index
    %82 = vector.load %arg13[%c0_58, %c0_59, %c8_60, %c0_61] : memref<2x18x32x16xf32, #tpu.memory_space<vmem>>, vector<2x16x16x16xf32>
    %83 = vector.shape_cast %82 : vector<2x16x16x16xf32> to vector<512x16xf32>
    %c0_62 = arith.constant 0 : index
    %c16 = arith.constant 16 : index
    %84 = vector.load %arg14[%c0_62, %c16] : memref<512x144xf32, #tpu.memory_space<vmem>>, vector<512x16xf32>
    tpu.vector_store %arg14[%c0_62, %c16], %83 {strides = array<i32>} : memref<512x144xf32, #tpu.memory_space<vmem>>, vector<512x16xf32>,
    %c0_63 = arith.constant 0 : index
    %c0_64 = arith.constant 0 : index
    %c9 = arith.constant 9 : index
    %c0_65 = arith.constant 0 : index
    %85 = vector.load %arg13[%c0_63, %c0_64, %c9, %c0_65] : memref<2x18x32x16xf32, #tpu.memory_space<vmem>>, vector<2x16x16x16xf32>
    %86 = vector.shape_cast %85 : vector<2x16x16x16xf32> to vector<512x16xf32>
    %c0_66 = arith.constant 0 : index
    %c32 = arith.constant 32 : index
    %87 = vector.load %arg14[%c0_66, %c32] : memref<512x144xf32, #tpu.memory_space<vmem>>, vector<512x16xf32>
    tpu.vector_store %arg14[%c0_66, %c32], %86 {strides = array<i32>} : memref<512x144xf32, #tpu.memory_space<vmem>>, vector<512x16xf32>,
    %c0_67 = arith.constant 0 : index
    %c1_68 = arith.constant 1 : index
    %c7_69 = arith.constant 7 : index
    %c0_70 = arith.constant 0 : index
    %88 = vector.load %arg13[%c0_67, %c1_68, %c7_69, %c0_70] : memref<2x18x32x16xf32, #tpu.memory_space<vmem>>, vector<2x16x16x16xf32>
    %89 = vector.shape_cast %88 : vector<2x16x16x16xf32> to vector<512x16xf32>
    %c0_71 = arith.constant 0 : index
    %c48 = arith.constant 48 : index
    %90 = vector.load %arg14[%c0_71, %c48] : memref<512x144xf32, #tpu.memory_space<vmem>>, vector<512x16xf32>
    tpu.vector_store %arg14[%c0_71, %c48], %89 {strides = array<i32>} : memref<512x144xf32, #tpu.memory_space<vmem>>, vector<512x16xf32>,
    %c0_72 = arith.constant 0 : index
    %c1_73 = arith.constant 1 : index
    %c8_74 = arith.constant 8 : index
    %c0_75 = arith.constant 0 : index
    %91 = vector.load %arg13[%c0_72, %c1_73, %c8_74, %c0_75] : memref<2x18x32x16xf32, #tpu.memory_space<vmem>>, vector<2x16x16x16xf32>
    %92 = vector.shape_cast %91 : vector<2x16x16x16xf32> to vector<512x16xf32>
    %c0_76 = arith.constant 0 : index
    %c64 = arith.constant 64 : index
    %93 = vector.load %arg14[%c0_76, %c64] : memref<512x144xf32, #tpu.memory_space<vmem>>, vector<512x16xf32>
    tpu.vector_store %arg14[%c0_76, %c64], %92 {strides = array<i32>} : memref<512x144xf32, #tpu.memory_space<vmem>>, vector<512x16xf32>,
    %c0_77 = arith.constant 0 : index
    %c1_78 = arith.constant 1 : index
    %c9_79 = arith.constant 9 : index
    %c0_80 = arith.constant 0 : index
    %94 = vector.load %arg13[%c0_77, %c1_78, %c9_79, %c0_80] : memref<2x18x32x16xf32, #tpu.memory_space<vmem>>, vector<2x16x16x16xf32>
    %95 = vector.shape_cast %94 : vector<2x16x16x16xf32> to vector<512x16xf32>
    %c0_81 = arith.constant 0 : index
    %c80 = arith.constant 80 : index
    %96 = vector.load %arg14[%c0_81, %c80] : memref<512x144xf32, #tpu.memory_space<vmem>>, vector<512x16xf32>
    tpu.vector_store %arg14[%c0_81, %c80], %95 {strides = array<i32>} : memref<512x144xf32, #tpu.memory_space<vmem>>, vector<512x16xf32>,
    %c0_82 = arith.constant 0 : index
    %c2 = arith.constant 2 : index
    %c7_83 = arith.constant 7 : index
    %c0_84 = arith.constant 0 : index
    %97 = vector.load %arg13[%c0_82, %c2, %c7_83, %c0_84] : memref<2x18x32x16xf32, #tpu.memory_space<vmem>>, vector<2x16x16x16xf32>
    %98 = vector.shape_cast %97 : vector<2x16x16x16xf32> to vector<512x16xf32>
    %c0_85 = arith.constant 0 : index
    %c96 = arith.constant 96 : index
    %99 = vector.load %arg14[%c0_85, %c96] : memref<512x144xf32, #tpu.memory_space<vmem>>, vector<512x16xf32>
    tpu.vector_store %arg14[%c0_85, %c96], %98 {strides = array<i32>} : memref<512x144xf32, #tpu.memory_space<vmem>>, vector<512x16xf32>,
    %c0_86 = arith.constant 0 : index
    %c2_87 = arith.constant 2 : index
    %c8_88 = arith.constant 8 : index
    %c0_89 = arith.constant 0 : index
    %100 = vector.load %arg13[%c0_86, %c2_87, %c8_88, %c0_89] : memref<2x18x32x16xf32, #tpu.memory_space<vmem>>, vector<2x16x16x16xf32>
    %101 = vector.shape_cast %100 : vector<2x16x16x16xf32> to vector<512x16xf32>
    %c0_90 = arith.constant 0 : index
    %c112 = arith.constant 112 : index
    %102 = vector.load %arg14[%c0_90, %c112] : memref<512x144xf32, #tpu.memory_space<vmem>>, vector<512x16xf32>
    tpu.vector_store %arg14[%c0_90, %c112], %101 {strides = array<i32>} : memref<512x144xf32, #tpu.memory_space<vmem>>, vector<512x16xf32>,
    %c0_91 = arith.constant 0 : index
    %c2_92 = arith.constant 2 : index
    %c9_93 = arith.constant 9 : index
    %c0_94 = arith.constant 0 : index
    %103 = vector.load %arg13[%c0_91, %c2_92, %c9_93, %c0_94] : memref<2x18x32x16xf32, #tpu.memory_space<vmem>>, vector<2x16x16x16xf32>
    %104 = vector.shape_cast %103 : vector<2x16x16x16xf32> to vector<512x16xf32>
    %c0_95 = arith.constant 0 : index
    %c128 = arith.constant 128 : index
    %105 = vector.load %arg14[%c0_95, %c128] : memref<512x144xf32, #tpu.memory_space<vmem>>, vector<512x16xf32>
    tpu.vector_store %arg14[%c0_95, %c128], %104 {strides = array<i32>} : memref<512x144xf32, #tpu.memory_space<vmem>>, vector<512x16xf32>,
    %c0_96 = arith.constant 0 : index
    %c0_97 = arith.constant 0 : index
    %106 = vector.load %arg14[%c0_96, %c0_97] : memref<512x144xf32, #tpu.memory_space<vmem>>, vector<512x144xf32>
    %107 = arith.truncf %106 : vector<512x144xf32> to vector<512x144xbf16>
    %c0_98 = arith.constant 0 : index
    %c0_99 = arith.constant 0 : index
    %108 = vector.load %arg6[%c0_98, %c0_99] : memref<144x32xf32, #tpu.memory_space<vmem>>, vector<144x32xf32>
    %109 = arith.truncf %108 : vector<144x32xf32> to vector<144x32xbf16>
    %cst_100 = arith.constant dense<0.000000e+00> : vector<512x32xf32>
    %110 = tpu.matmul %107, %109, %cst_100 {dimension_numbers = #tpu.dot_dimension_numbers<[1], [0], [0], [1], [0, 0, 1, 1], [], []>} : vector<512x144xbf16>, vector<144x32xbf16>, vector<512x32xf32> -> vector<512x32xf32>
    %c0_101 = arith.constant 0 : index
    %c0_102 = arith.constant 0 : index
    %111 = vector.load %arg7[%c0_101, %c0_102] : memref<1x32xf32, #tpu.memory_space<vmem>>, vector<1x32xf32>
    %112 = vector.broadcast %111 : vector<1x32xf32> to vector<512x32xf32>
    %113 = arith.addf %110, %112 : vector<512x32xf32>
    %cst_103 = arith.constant 0.000000e+00 : f32
    %114 = vector.broadcast %cst_103 : f32 to vector<512x32xf32>
    %115 = arith.maximumf %113, %114 : vector<512x32xf32>
    %c0_104 = arith.constant 0 : index
    %c0_105 = arith.constant 0 : index
    %116 = vector.load %arg8[%c0_104, %c0_105] : memref<2x512xf32, #tpu.memory_space<vmem>>, vector<2x512xf32>
    %117 = arith.truncf %116 : vector<2x512xf32> to vector<2x512xbf16>
    %118 = arith.truncf %115 : vector<512x32xf32> to vector<512x32xbf16>
    %cst_106 = arith.constant dense<0.000000e+00> : vector<2x32xf32>
    %119 = tpu.matmul %117, %118, %cst_106 {dimension_numbers = #tpu.dot_dimension_numbers<[1], [0], [0], [1], [0, 0, 1, 1], [], []>} : vector<2x512xbf16>, vector<512x32xbf16>, vector<2x32xf32> -> vector<2x32xf32>
    %120 = arith.truncf %119 : vector<2x32xf32> to vector<2x32xbf16>
    %c0_107 = arith.constant 0 : index
    %c0_108 = arith.constant 0 : index
    %121 = vector.load %arg9[%c0_107, %c0_108] : memref<32x10xf32, #tpu.memory_space<vmem>>, vector<32x10xf32>
    %122 = arith.truncf %121 : vector<32x10xf32> to vector<32x10xbf16>
    %cst_109 = arith.constant dense<0.000000e+00> : vector<2x10xf32>
    %123 = tpu.matmul %120, %122, %cst_109 {dimension_numbers = #tpu.dot_dimension_numbers<[1], [0], [0], [1], [0, 0, 1, 1], [], []>} : vector<2x32xbf16>, vector<32x10xbf16>, vector<2x10xf32> -> vector<2x10xf32>
    %c0_110 = arith.constant 0 : index
    %c0_111 = arith.constant 0 : index
    %124 = vector.load %arg10[%c0_110, %c0_111] : memref<1x10xf32, #tpu.memory_space<vmem>>, vector<1x10xf32>
    %125 = vector.broadcast %124 : vector<1x10xf32> to vector<2x10xf32>
    %126 = arith.addf %123, %125 : vector<2x10xf32>
    %c0_112 = arith.constant 0 : index
    %c0_113 = arith.constant 0 : index
    %127 = vector.load %arg11[%c0_112, %c0_113] : memref<2x10xf32, #tpu.memory_space<vmem>>, vector<2x10xf32>
    tpu.vector_store %arg11[%c0_112, %c0_113], %126 {strides = array<i32>} : memref<2x10xf32, #tpu.memory_space<vmem>>, vector<2x10xf32>,
    return
  }
}

</mosaic_0001>

<llo_original>
// kernel: mobilenet_xx_forward.1
$region0: #{mobilenet_xx_forward.1}
  #allocation0 [shape = 'u32[]', space=smem, size = 0x4, offset = 0x4, fixed_abs, tag = 'smem constant byte address 0x4 - core index']
  #allocation1 [shape = 'u32[144,128]{1,0:T(1,128)}', space=vmem, size = 0x12000, scoped, tag = 'internal scratch']
  #allocation2 [shape = 'f32[2,18,32,16]{3,2,1,0:T(8,128)}', space=vmem, size = 0x90000, scoped, tag = 'scratch operand']
  #allocation3 [shape = 'f32[512,144]{1,0:T(8,128)}', space=vmem, size = 0x80000, scoped, tag = 'scratch operand']
  %s0 = inlined_call_operand.vmem [shape: f32[512,27], index: 0, kind: input, shape index: {}]
  %s1 = inlined_call_operand.vmem [shape: f32[27,16], index: 1, kind: input, shape index: {}]
  %s2 = inlined_call_operand.vmem [shape: f32[1,16], index: 2, kind: input, shape index: {}]
  %s3 = inlined_call_operand.vmem [shape: f32[8,64], index: 3, kind: input, shape index: {}]
  %s4 = inlined_call_operand.vmem [shape: f32[1,64], index: 4, kind: input, shape index: {}]
  %s5 = inlined_call_operand.vmem [shape: f32[2,64,16], index: 5, kind: input, shape index: {}]
  %s6 = inlined_call_operand.vmem [shape: f32[144,32], index: 6, kind: input, shape index: {}]
  %s7 = inlined_call_operand.vmem [shape: f32[1,32], index: 7, kind: input, shape index: {}]
  %s8 = inlined_call_operand.vmem [shape: f32[2,512], index: 8, kind: input, shape index: {}]
  %s9 = inlined_call_operand.vmem [shape: f32[32,10], index: 9, kind: input, shape index: {}]
  %s10 = inlined_call_operand.vmem [shape: f32[1,10], index: 10, kind: input, shape index: {}]
  %s11 = inlined_call_operand.hbm [shape: f32[2,10], index: 11, kind: output, shape index: {0}]
  %s12 = inlined_call_operand.hbm [shape: f32[1], index: 12, kind: output, shape index: {1}]
  %13 = xla_tuple %s11, %s12
  %s14 = sld [smem:[#allocation0]]
  $region62: #{mobilenet_xx_forward.1} parent=0
    _
  %s16 = ssub.s32 1, %s14
  %s17 = scalar_select 0, %s16, %s14
  $region1: #{mobilenet_xx_forward.1} parent=0
    #allocation4 [shape = 'u8[1024]{0}', space=vmem, size = 0x400, scoped, tag = 'output window, operand 0, single buffered']
    #allocation5 [shape = 's32[1]{0}', space=sflag, size = 0x4, scoped, tag = 'scoped memory for mobilenet_xx_forward.1']
    #allocation6 [shape = 's32[1]{0}', space=sflag, size = 0x4, scoped, tag = 'scoped memory for mobilenet_xx_forward.1']
    #allocation7 [shape = 'u8[512]{0}', space=smem, size = 0x200, scoped, tag = 'output window, operand 1, single buffered']
    %18 = vsyncpa [#allocation5], 0
    %19 = vsyncpa [#allocation6], 0
    // Predicated region
    $region2: #{mobilenet_xx_forward.1} parent=1 // pred_check
      _
    $region3: #{mobilenet_xx_forward.1} parent=1 // pred_check_branch
      %21 = sbr.rel (0) target = $region5
    $region4: #{mobilenet_xx_forward.1} parent=1 // pred_region
      _
    $region5: #{mobilenet_xx_forward.1} parent=1 // pred_fallthru
      _
    // Predicated region
    $region6: #{mobilenet_xx_forward.1} parent=1 // pred_check
      _
    $region7: #{mobilenet_xx_forward.1} parent=1 // pred_check_branch
      %23 = sbr.rel (0) target = $region9
    $region8: #{mobilenet_xx_forward.1} parent=1 // pred_region
      _
    $region9: #{mobilenet_xx_forward.1} parent=1 // pred_fallthru
      _
    // Predicated region
    $region10: #{mobilenet_xx_forward.1} parent=1 // pred_check
      _
    $region11: #{mobilenet_xx_forward.1} parent=1 // pred_check_branch
      %25 = sbr.rel (0) target = $region13
    $region12: #{mobilenet_xx_forward.1} parent=1 // pred_region
      _
    $region13: #{mobilenet_xx_forward.1} parent=1 // pred_fallthru
      _
    // Predicated region
    $region14: #{mobilenet_xx_forward.1} parent=1 // pred_check
      _
    $region15: #{mobilenet_xx_forward.1} parent=1 // pred_check_branch
      %27 = sbr.rel (0) target = $region17
    $region16: #{mobilenet_xx_forward.1} parent=1 // pred_region
      _
    $region17: #{mobilenet_xx_forward.1} parent=1 // pred_fallthru
      _
    // Predicated region
    $region18: #{mobilenet_xx_forward.1} parent=1 // pred_check
      _
    $region19: #{mobilenet_xx_forward.1} parent=1 // pred_check_branch
      %29 = sbr.rel (0) target = $region21
    $region20: #{mobilenet_xx_forward.1} parent=1 // pred_region
      _
    $region21: #{mobilenet_xx_forward.1} parent=1 // pred_fallthru
      _
    // Predicated region
    $region22: #{mobilenet_xx_forward.1} parent=1 // pred_check
      _
    $region23: #{mobilenet_xx_forward.1} parent=1 // pred_check_branch
      %31 = sbr.rel (0) target = $region25
    $region24: #{mobilenet_xx_forward.1} parent=1 // pred_region
      _
    $region25: #{mobilenet_xx_forward.1} parent=1 // pred_fallthru
      _
    // Predicated region
    $region26: #{mobilenet_xx_forward.1} parent=1 // pred_check
      _
    $region27: #{mobilenet_xx_forward.1} parent=1 // pred_check_branch
      %33 = sbr.rel (0) target = $region29
    $region28: #{mobilenet_xx_forward.1} parent=1 // pred_region
      _
    $region29: #{mobilenet_xx_forward.1} parent=1 // pred_fallthru
      _
    // Predicated region
    $region30: #{mobilenet_xx_forward.1} parent=1 // pred_check
      _
    $region31: #{mobilenet_xx_forward.1} parent=1 // pred_check_branch
      %35 = sbr.rel (0) target = $region33
    $region32: #{mobilenet_xx_forward.1} parent=1 // pred_region
      _
    $region33: #{mobilenet_xx_forward.1} parent=1 // pred_fallthru
      _
    // Predicated region
    $region34: #{mobilenet_xx_forward.1} parent=1 // pred_check
      _
    $region35: #{mobilenet_xx_forward.1} parent=1 // pred_check_branch
      %37 = sbr.rel (0) target = $region37
    $region36: #{mobilenet_xx_forward.1} parent=1 // pred_region
      _
    $region37: #{mobilenet_xx_forward.1} parent=1 // pred_fallthru
      _
    // Predicated region
    $region38: #{mobilenet_xx_forward.1} parent=1 // pred_check
      _
    $region39: #{mobilenet_xx_forward.1} parent=1 // pred_check_branch
      %39 = sbr.rel (0) target = $region41
    $region40: #{mobilenet_xx_forward.1} parent=1 // pred_region
      _
    $region41: #{mobilenet_xx_forward.1} parent=1 // pred_fallthru
      _
    // Predicated region
    $region42: #{mobilenet_xx_forward.1} parent=1 // pred_check
      _
    $region43: #{mobilenet_xx_forward.1} parent=1 // pred_check_branch
      %41 = sbr.rel (0) target = $region45
    $region44: #{mobilenet_xx_forward.1} parent=1 // pred_region
      _
    $region45: #{mobilenet_xx_forward.1} parent=1 // pred_fallthru
      _
    %v43 = vld [vmem:[%s0] sm:$0xff]
    %v44 = vld [vmem:[%s0 + $0x8] sm:$0xff]
    %v45 = vld [vmem:[%s0 + $0x10] sm:$0xff]
    %v46 = vld [vmem:[%s0 + $0x18] sm:$0xff]
    %v47 = vld [vmem:[%s0 + $0x20] sm:$0xff]
    %v48 = vld [vmem:[%s0 + $0x28] sm:$0xff]
    %v49 = vld [vmem:[%s0 + $0x30] sm:$0xff]
    %v50 = vld [vmem:[%s0 + $0x38] sm:$0xff]
    %v51 = vld [vmem:[%s0 + $0x40] sm:$0xff]
    %v52 = vld [vmem:[%s0 + $0x48] sm:$0xff]
    %v53 = vld [vmem:[%s0 + $0x50] sm:$0xff]
    %v54 = vld [vmem:[%s0 + $0x58] sm:$0xff]
    %v55 = vld [vmem:[%s0 + $0x60] sm:$0xff]
    %v56 = vld [vmem:[%s0 + $0x68] sm:$0xff]
    %v57 = vld [vmem:[%s0 + $0x70] sm:$0xff]
    %v58 = vld [vmem:[%s0 + $0x78] sm:$0xff]
    %v59 = vld [vmem:[%s0 + $0x80] sm:$0xff]
    %v60 = vld [vmem:[%s0 + $0x88] sm:$0xff]
    %v61 = vld [vmem:[%s0 + $0x90] sm:$0xff]
    %v62 = vld [vmem:[%s0 + $0x98] sm:$0xff]
    %v63 = vld [vmem:[%s0 + $0xa0] sm:$0xff]
    %v64 = vld [vmem:[%s0 + $0xa8] sm:$0xff]
    %v65 = vld [vmem:[%s0 + $0xb0] sm:$0xff]
    %v66 = vld [vmem:[%s0 + $0xb8] sm:$0xff]
    %v67 = vld [vmem:[%s0 + $0xc0] sm:$0xff]
    %v68 = vld [vmem:[%s0 + $0xc8] sm:$0xff]
    %v69 = vld [vmem:[%s0 + $0xd0] sm:$0xff]
    %v70 = vld [vmem:[%s0 + $0xd8] sm:$0xff]
    %v71 = vld [vmem:[%s0 + $0xe0] sm:$0xff]
    %v72 = vld [vmem:[%s0 + $0xe8] sm:$0xff]
    %v73 = vld [vmem:[%s0 + $0xf0] sm:$0xff]
    %v74 = vld [vmem:[%s0 + $0xf8] sm:$0xff]
    %v75 = vld [vmem:[%s0 + $0x100] sm:$0xff]
    %v76 = vld [vmem:[%s0 + $0x108] sm:$0xff]
    %v77 = vld [vmem:[%s0 + $0x110] sm:$0xff]
    %v78 = vld [vmem:[%s0 + $0x118] sm:$0xff]
    %v79 = vld [vmem:[%s0 + $0x120] sm:$0xff]
    %v80 = vld [vmem:[%s0 + $0x128] sm:$0xff]
    %v81 = vld [vmem:[%s0 + $0x130] sm:$0xff]
    %v82 = vld [vmem:[%s0 + $0x138] sm:$0xff]
    %v83 = vld [vmem:[%s0 + $0x140] sm:$0xff]
    %v84 = vld [vmem:[%s0 + $0x148] sm:$0xff]
    %v85 = vld [vmem:[%s0 + $0x150] sm:$0xff]
    %v86 = vld [vmem:[%s0 + $0x158] sm:$0xff]
    %v87 = vld [vmem:[%s0 + $0x160] sm:$0xff]
    %v88 = vld [vmem:[%s0 + $0x168] sm:$0xff]
    %v89 = vld [vmem:[%s0 + $0x170] sm:$0xff]
    %v90 = vld [vmem:[%s0 + $0x178] sm:$0xff]
    %v91 = vld [vmem:[%s0 + $0x180] sm:$0xff]
    %v92 = vld [vmem:[%s0 + $0x188] sm:$0xff]
    %v93 = vld [vmem:[%s0 + $0x190] sm:$0xff]
    %v94 = vld [vmem:[%s0 + $0x198] sm:$0xff]
    %v95 = vld [vmem:[%s0 + $0x1a0] sm:$0xff]
    %v96 = vld [vmem:[%s0 + $0x1a8] sm:$0xff]
    %v97 = vld [vmem:[%s0 + $0x1b0] sm:$0xff]
    %v98 = vld [vmem:[%s0 + $0x1b8] sm:$0xff]
    %v99 = vld [vmem:[%s0 + $0x1c0] sm:$0xff]
    %v100 = vld [vmem:[%s0 + $0x1c8] sm:$0xff]
    %v101 = vld [vmem:[%s0 + $0x1d0] sm:$0xff]
    %v102 = vld [vmem:[%s0 + $0x1d8] sm:$0xff]
    %v103 = vld [vmem:[%s0 + $0x1e0] sm:$0xff]
    %v104 = vld [vmem:[%s0 + $0x1e8] sm:$0xff]
    %v105 = vld [vmem:[%s0 + $0x1f0] sm:$0xff]
    %v106 = vld [vmem:[%s0 + $0x1f8] sm:$0xff]
    %v107 = vpack.c.bf16 %v44, %v43
    %v108 = vpack.c.bf16 %v46, %v45
    %v109 = vpack.c.bf16 %v48, %v47
    %v110 = vpack.c.bf16 %v50, %v49
    %v111 = vpack.c.bf16 %v52, %v51
    %v112 = vpack.c.bf16 %v54, %v53
    %v113 = vpack.c.bf16 %v56, %v55
    %v114 = vpack.c.bf16 %v58, %v57
    %v115 = vpack.c.bf16 %v60, %v59
    %v116 = vpack.c.bf16 %v62, %v61
    %v117 = vpack.c.bf16 %v64, %v63
    %v118 = vpack.c.bf16 %v66, %v65
    %v119 = vpack.c.bf16 %v68, %v67
    %v120 = vpack.c.bf16 %v70, %v69
    %v121 = vpack.c.bf16 %v72, %v71
    %v122 = vpack.c.bf16 %v74, %v73
    %v123 = vpack.c.bf16 %v76, %v75
    %v124 = vpack.c.bf16 %v78, %v77
    %v125 = vpack.c.bf16 %v80, %v79
    %v126 = vpack.c.bf16 %v82, %v81
    %v127 = vpack.c.bf16 %v84, %v83
    %v128 = vpack.c.bf16 %v86, %v85
    %v129 = vpack.c.bf16 %v88, %v87
    %v130 = vpack.c.bf16 %v90, %v89
    %v131 = vpack.c.bf16 %v92, %v91
    %v132 = vpack.c.bf16 %v94, %v93
    %v133 = vpack.c.bf16 %v96, %v95
    %v134 = vpack.c.bf16 %v98, %v97
    %v135 = vpack.c.bf16 %v100, %v99
    %v136 = vpack.c.bf16 %v102, %v101
    %v137 = vpack.c.bf16 %v104, %v103
    %v138 = vpack.c.bf16 %v106, %v105
    %v139 = vld [vmem:[%s1] sm:$0xff]
    %v140 = vld [vmem:[%s1 + $0x8] sm:$0xff]
    %v141 = vld [vmem:[%s1 + $0x10] sm:$0xff]
    %v142 = vld [vmem:[%s1 + $0x18] sm:$0x7]
    %v143 = vpack.c.bf16 %v140, %v139
    %v144 = vpack.c.bf16 %v142, %v141
    %v145 = vld [vmem:[%s2] sm:$0x1]
    %v147 = vlaneseq
    %v148 = vshrl.u32 %v147, 7
    %v149 = vsub.s32 0, %v148
    %v150 = vrot.slane %v145, %v149
    %vm152 = vcmask 220160
    %v154 = vsel %vm152, %v107, 0
    %v157 = vsel %vm152, %v108, 0
    %v160 = vsel %vm152, %v109, 0
    %v163 = vsel %vm152, %v110, 0
    %v166 = vsel %vm152, %v111, 0
    %v169 = vsel %vm152, %v112, 0
    %v172 = vsel %vm152, %v113, 0
    %v175 = vsel %vm152, %v114, 0
    %v178 = vsel %vm152, %v115, 0
    %v181 = vsel %vm152, %v116, 0
    %v184 = vsel %vm152, %v117, 0
    %v187 = vsel %vm152, %v118, 0
    %v190 = vsel %vm152, %v119, 0
    %v193 = vsel %vm152, %v120, 0
    %v196 = vsel %vm152, %v121, 0
    %v199 = vsel %vm152, %v122, 0
    %v202 = vsel %vm152, %v123, 0
    %v205 = vsel %vm152, %v124, 0
    %v208 = vsel %vm152, %v125, 0
    %v211 = vsel %vm152, %v126, 0
    %v214 = vsel %vm152, %v127, 0
    %v217 = vsel %vm152, %v128, 0
    %v220 = vsel %vm152, %v129, 0
    %v223 = vsel %vm152, %v130, 0
    %v226 = vsel %vm152, %v131, 0
    %v229 = vsel %vm152, %v132, 0
    %v232 = vsel %vm152, %v133, 0
    %v235 = vsel %vm152, %v134, 0
    %v238 = vsel %vm152, %v135, 0
    %v241 = vsel %vm152, %v136, 0
    %v244 = vsel %vm152, %v137, 0
    %v247 = vsel %vm152, %v138, 0
    %vm249 = vcmask 1044480
    %vm250 = vcmask 1045504
    %v251 = vsel %vm249, 4294967295, 65535
    %v252 = vsel %vm250, %v251, 0
    %v254 = vand.u32 %v144, %v252
    %256 = vmatprep.subr.bf16.mxu0 0
    %257 = vmatpush1.bf16.msra.mxu0 0
    %258 = vmatprep.subr.bf16.mxu0 0
    %259 = vmatpush1.bf16.msra.mxu0 0
    %260 = vmatprep.subr.bf16.mxu0 0
    %261 = vmatpush1.bf16.msra.mxu0 0
    %262 = vmatprep.subr.bf16.mxu0 0
    %263 = vmatpush1.bf16.msra.mxu0 0
    %264 = vmatprep.subr.bf16.mxu0 0
    %265 = vmatpush1.bf16.msra.mxu0 0
    %266 = vmatprep.subr.bf16.mxu0 0
    %267 = vmatpush1.bf16.msra.mxu0 0
    %268 = vmatprep.subr.bf16.mxu0 0
    %269 = vmatpush1.bf16.msra.mxu0 %v254
    %270 = vmatprep.subr.bf16.mxu0 0
    %271 = vmatpush1.bf16.msra.mxu0 %v143
    %272 = vmatprep.subr.bf16.mxu0 0
    %273 = vmatpush2.bf16.msra.mxu0 0
    %274 = vmatprep.subr.bf16.mxu0 0
    %275 = vmatpush2.bf16.msra.mxu0 0
    %276 = vmatprep.subr.bf16.mxu0 0
    %277 = vmatpush2.bf16.msra.mxu0 0
    %278 = vmatprep.subr.bf16.mxu0 0
    %279 = vmatpush2.bf16.msra.mxu0 0
    %280 = vmatprep.subr.bf16.mxu0 0
    %281 = vmatpush2.bf16.msra.mxu0 0
    %282 = vmatprep.subr.bf16.mxu0 0
    %283 = vmatpush2.bf16.msra.mxu0 0
    %284 = vmatprep.subr.bf16.mxu0 0
    %285 = vmatpush2.bf16.msra.mxu0 0
    %286 = vmatprep.subr.bf16.mxu0 0
    %287 = vmatpush2.bf16.msra.mxu0 0
    %288 = vmatprep.mubr.bf16.mxu0 0
    %289 = vmatmul.mubr.bf16.gmra.mxu0 %v154
    %v290 = vpop.f32.mrf.mxu0
    %v291 = vadd.f32 %v150, %v290
    %v292 = vpop.f32.mrf.mxu0
    %v293 = vpop.f32.mrf.mxu0
    %v294 = vadd.f32 %v150, %v293
    %v295 = vpop.f32.mrf.mxu0
    %296 = vmatprep.mubr.bf16.mxu0 0
    %297 = vmatmul.mubr.bf16.gmra.mxu0 %v157
    %v298 = vpop.f32.mrf.mxu0
    %v299 = vadd.f32 %v150, %v298
    %v300 = vpop.f32.mrf.mxu0
    %v301 = vpop.f32.mrf.mxu0
    %v302 = vadd.f32 %v150, %v301
    %v303 = vpop.f32.mrf.mxu0
    %304 = vmatprep.mubr.bf16.mxu0 0
    %305 = vmatmul.mubr.bf16.gmra.mxu0 %v160
    %v306 = vpop.f32.mrf.mxu0
    %v307 = vadd.f32 %v150, %v306
    %v308 = vpop.f32.mrf.mxu0
    %v309 = vpop.f32.mrf.mxu0
    %v310 = vadd.f32 %v150, %v309
    %v311 = vpop.f32.mrf.mxu0
    %312 = vmatprep.mubr.bf16.mxu0 0
    %313 = vmatmul.mubr.bf16.gmra.mxu0 %v163
    %v314 = vpop.f32.mrf.mxu0
    %v315 = vadd.f32 %v150, %v314
    %v316 = vpop.f32.mrf.mxu0
    %v317 = vpop.f32.mrf.mxu0
    %v318 = vadd.f32 %v150, %v317
    %v319 = vpop.f32.mrf.mxu0
    %320 = vmatprep.mubr.bf16.mxu0 0
    %321 = vmatmul.mubr.bf16.gmra.mxu0 %v166
    %v322 = vpop.f32.mrf.mxu0
    %v323 = vadd.f32 %v150, %v322
    %v324 = vpop.f32.mrf.mxu0
    %v325 = vpop.f32.mrf.mxu0
    %v326 = vadd.f32 %v150, %v325
    %v327 = vpop.f32.mrf.mxu0
    %328 = vmatprep.mubr.bf16.mxu0 0
    %329 = vmatmul.mubr.bf16.gmra.mxu0 %v169
    %v330 = vpop.f32.mrf.mxu0
    %v331 = vadd.f32 %v150, %v330
    %v332 = vpop.f32.mrf.mxu0
    %v333 = vpop.f32.mrf.mxu0
    %v334 = vadd.f32 %v150, %v333
    %v335 = vpop.f32.mrf.mxu0
    %336 = vmatprep.mubr.bf16.mxu0 0
    %337 = vmatmul.mubr.bf16.gmra.mxu0 %v172
    %v338 = vpop.f32.mrf.mxu0
    %v339 = vadd.f32 %v150, %v338
    %v340 = vpop.f32.mrf.mxu0
    %v341 = vpop.f32.mrf.mxu0
    %v342 = vadd.f32 %v150, %v341
    %v343 = vpop.f32.mrf.mxu0
    %344 = vmatprep.mubr.bf16.mxu0 0
    %345 = vmatmul.mubr.bf16.gmra.mxu0 %v175
    %v346 = vpop.f32.mrf.mxu0
    %v347 = vadd.f32 %v150, %v346
    %v348 = vpop.f32.mrf.mxu0
    %v349 = vpop.f32.mrf.mxu0
    %v350 = vadd.f32 %v150, %v349
    %v351 = vpop.f32.mrf.mxu0
    %352 = vmatprep.mubr.bf16.mxu0 0
    %353 = vmatmul.mubr.bf16.gmra.mxu0 %v178
    %v354 = vpop.f32.mrf.mxu0
    %v355 = vadd.f32 %v150, %v354
    %v356 = vpop.f32.mrf.mxu0
    %v357 = vpop.f32.mrf.mxu0
    %v358 = vadd.f32 %v150, %v357
    %v359 = vpop.f32.mrf.mxu0
    %360 = vmatprep.mubr.bf16.mxu0 0
    %361 = vmatmul.mubr.bf16.gmra.mxu0 %v181
    %v362 = vpop.f32.mrf.mxu0
    %v363 = vadd.f32 %v150, %v362
    %v364 = vpop.f32.mrf.mxu0
    %v365 = vpop.f32.mrf.mxu0
    %v366 = vadd.f32 %v150, %v365
    %v367 = vpop.f32.mrf.mxu0
    %368 = vmatprep.mubr.bf16.mxu0 0
    %369 = vmatmul.mubr.bf16.gmra.mxu0 %v184
    %v370 = vpop.f32.mrf.mxu0
    %v371 = vadd.f32 %v150, %v370
    %v372 = vpop.f32.mrf.mxu0
    %v373 = vpop.f32.mrf.mxu0
    %v374 = vadd.f32 %v150, %v373
    %v375 = vpop.f32.mrf.mxu0
    %376 = vmatprep.mubr.bf16.mxu0 0
    %377 = vmatmul.mubr.bf16.gmra.mxu0 %v187
    %v378 = vpop.f32.mrf.mxu0
    %v379 = vadd.f32 %v150, %v378
    %v380 = vpop.f32.mrf.mxu0
    %v381 = vpop.f32.mrf.mxu0
    %v382 = vadd.f32 %v150, %v381
    %v383 = vpop.f32.mrf.mxu0
    %384 = vmatprep.mubr.bf16.mxu0 0
    %385 = vmatmul.mubr.bf16.gmra.mxu0 %v190
    %v386 = vpop.f32.mrf.mxu0
    %v387 = vadd.f32 %v150, %v386
    %v388 = vpop.f32.mrf.mxu0
    %v389 = vpop.f32.mrf.mxu0
    %v390 = vadd.f32 %v150, %v389
    %v391 = vpop.f32.mrf.mxu0
    %392 = vmatprep.mubr.bf16.mxu0 0
    %393 = vmatmul.mubr.bf16.gmra.mxu0 %v193
    %v394 = vpop.f32.mrf.mxu0
    %v395 = vadd.f32 %v150, %v394
    %v396 = vpop.f32.mrf.mxu0
    %v397 = vpop.f32.mrf.mxu0
    %v398 = vadd.f32 %v150, %v397
    %v399 = vpop.f32.mrf.mxu0
    %400 = vmatprep.mubr.bf16.mxu0 0
    %401 = vmatmul.mubr.bf16.gmra.mxu0 %v196
    %v402 = vpop.f32.mrf.mxu0
    %v403 = vadd.f32 %v150, %v402
    %v404 = vpop.f32.mrf.mxu0
    %v405 = vpop.f32.mrf.mxu0
    %v406 = vadd.f32 %v150, %v405
    %v407 = vpop.f32.mrf.mxu0
    %408 = vmatprep.mubr.bf16.mxu0 0
    %409 = vmatmul.mubr.bf16.gmra.mxu0 %v199
    %v410 = vpop.f32.mrf.mxu0
    %v411 = vadd.f32 %v150, %v410
    %v412 = vpop.f32.mrf.mxu0
    %v413 = vpop.f32.mrf.mxu0
    %v414 = vadd.f32 %v150, %v413
    %v415 = vpop.f32.mrf.mxu0
    %416 = vmatprep.mubr.bf16.mxu0 0
    %417 = vmatmul.mubr.bf16.gmra.mxu0 %v202
    %v418 = vpop.f32.mrf.mxu0
    %v419 = vadd.f32 %v150, %v418
    %v420 = vpop.f32.mrf.mxu0
    %v421 = vpop.f32.mrf.mxu0
    %v422 = vadd.f32 %v150, %v421
    %v423 = vpop.f32.mrf.mxu0
    %424 = vmatprep.mubr.bf16.mxu0 0
    %425 = vmatmul.mubr.bf16.gmra.mxu0 %v205
    %v426 = vpop.f32.mrf.mxu0
    %v427 = vadd.f32 %v150, %v426
    %v428 = vpop.f32.mrf.mxu0
    %v429 = vpop.f32.mrf.mxu0
    %v430 = vadd.f32 %v150, %v429
    %v431 = vpop.f32.mrf.mxu0
    %432 = vmatprep.mubr.bf16.mxu0 0
    %433 = vmatmul.mubr.bf16.gmra.mxu0 %v208
    %v434 = vpop.f32.mrf.mxu0
    %v435 = vadd.f32 %v150, %v434
    %v436 = vpop.f32.mrf.mxu0
    %v437 = vpop.f32.mrf.mxu0
    %v438 = vadd.f32 %v150, %v437
    %v439 = vpop.f32.mrf.mxu0
    %440 = vmatprep.mubr.bf16.mxu0 0
    %441 = vmatmul.mubr.bf16.gmra.mxu0 %v211
    %v442 = vpop.f32.mrf.mxu0
    %v443 = vadd.f32 %v150, %v442
    %v444 = vpop.f32.mrf.mxu0
    %v445 = vpop.f32.mrf.mxu0
    %v446 = vadd.f32 %v150, %v445
    %v447 = vpop.f32.mrf.mxu0
    %448 = vmatprep.mubr.bf16.mxu0 0
    %449 = vmatmul.mubr.bf16.gmra.mxu0 %v214
    %v450 = vpop.f32.mrf.mxu0
    %v451 = vadd.f32 %v150, %v450
    %v452 = vpop.f32.mrf.mxu0
    %v453 = vpop.f32.mrf.mxu0
    %v454 = vadd.f32 %v150, %v453
    %v455 = vpop.f32.mrf.mxu0
    %456 = vmatprep.mubr.bf16.mxu0 0
    %457 = vmatmul.mubr.bf16.gmra.mxu0 %v217
    %v458 = vpop.f32.mrf.mxu0
    %v459 = vadd.f32 %v150, %v458
    %v460 = vpop.f32.mrf.mxu0
    %v461 = vpop.f32.mrf.mxu0
    %v462 = vadd.f32 %v150, %v461
    %v463 = vpop.f32.mrf.mxu0
    %464 = vmatprep.mubr.bf16.mxu0 0
    %465 = vmatmul.mubr.bf16.gmra.mxu0 %v220
    %v466 = vpop.f32.mrf.mxu0
    %v467 = vadd.f32 %v150, %v466
    %v468 = vpop.f32.mrf.mxu0
    %v469 = vpop.f32.mrf.mxu0
    %v470 = vadd.f32 %v150, %v469
    %v471 = vpop.f32.mrf.mxu0
    %472 = vmatprep.mubr.bf16.mxu0 0
    %473 = vmatmul.mubr.bf16.gmra.mxu0 %v223
    %v474 = vpop.f32.mrf.mxu0
    %v475 = vadd.f32 %v150, %v474
    %v476 = vpop.f32.mrf.mxu0
    %v477 = vpop.f32.mrf.mxu0
    %v478 = vadd.f32 %v150, %v477
    %v479 = vpop.f32.mrf.mxu0
    %480 = vmatprep.mubr.bf16.mxu0 0
    %481 = vmatmul.mubr.bf16.gmra.mxu0 %v226
    %v482 = vpop.f32.mrf.mxu0
    %v483 = vadd.f32 %v150, %v482
    %v484 = vpop.f32.mrf.mxu0
    %v485 = vpop.f32.mrf.mxu0
    %v486 = vadd.f32 %v150, %v485
    %v487 = vpop.f32.mrf.mxu0
    %488 = vmatprep.mubr.bf16.mxu0 0
    %489 = vmatmul.mubr.bf16.gmra.mxu0 %v229
    %v490 = vpop.f32.mrf.mxu0
    %v491 = vadd.f32 %v150, %v490
    %v492 = vpop.f32.mrf.mxu0
    %v493 = vpop.f32.mrf.mxu0
    %v494 = vadd.f32 %v150, %v493
    %v495 = vpop.f32.mrf.mxu0
    %496 = vmatprep.mubr.bf16.mxu0 0
    %497 = vmatmul.mubr.bf16.gmra.mxu0 %v232
    %v498 = vpop.f32.mrf.mxu0
    %v499 = vadd.f32 %v150, %v498
    %v500 = vpop.f32.mrf.mxu0
    %v501 = vpop.f32.mrf.mxu0
    %v502 = vadd.f32 %v150, %v501
    %v503 = vpop.f32.mrf.mxu0
    %504 = vmatprep.mubr.bf16.mxu0 0
    %505 = vmatmul.mubr.bf16.gmra.mxu0 %v235
    %v506 = vpop.f32.mrf.mxu0
    %v507 = vadd.f32 %v150, %v506
    %v508 = vpop.f32.mrf.mxu0
    %v509 = vpop.f32.mrf.mxu0
    %v510 = vadd.f32 %v150, %v509
    %v511 = vpop.f32.mrf.mxu0
    %512 = vmatprep.mubr.bf16.mxu0 0
    %513 = vmatmul.mubr.bf16.gmra.mxu0 %v238
    %v514 = vpop.f32.mrf.mxu0
    %v515 = vadd.f32 %v150, %v514
    %v516 = vpop.f32.mrf.mxu0
    %v517 = vpop.f32.mrf.mxu0
    %v518 = vadd.f32 %v150, %v517
    %v519 = vpop.f32.mrf.mxu0
    %520 = vmatprep.mubr.bf16.mxu0 0
    %521 = vmatmul.mubr.bf16.gmra.mxu0 %v241
    %v522 = vpop.f32.mrf.mxu0
    %v523 = vadd.f32 %v150, %v522
    %v524 = vpop.f32.mrf.mxu0
    %v525 = vpop.f32.mrf.mxu0
    %v526 = vadd.f32 %v150, %v525
    %v527 = vpop.f32.mrf.mxu0
    %528 = vmatprep.mubr.bf16.mxu0 0
    %529 = vmatmul.mubr.bf16.gmra.mxu0 %v244
    %v530 = vpop.f32.mrf.mxu0
    %v531 = vadd.f32 %v150, %v530
    %v532 = vpop.f32.mrf.mxu0
    %v533 = vpop.f32.mrf.mxu0
    %v534 = vadd.f32 %v150, %v533
    %v535 = vpop.f32.mrf.mxu0
    %536 = vmatprep.mubr.bf16.mxu0 0
    %537 = vmatmul.mubr.bf16.gmra.mxu0 %v247
    %v538 = vpop.f32.mrf.mxu0
    %v539 = vadd.f32 %v150, %v538
    %v540 = vpop.f32.mrf.mxu0
    %v541 = vpop.f32.mrf.mxu0
    %v542 = vadd.f32 %v150, %v541
    %v543 = vpop.f32.mrf.mxu0
    %544 = vdwg.mxu0
    %v545 = vmax.f32 %v291, 0.0
    %v546 = vmax.f32 %v294, 0.0
    %v547 = vmax.f32 %v299, 0.0
    %v548 = vmax.f32 %v302, 0.0
    %v549 = vmax.f32 %v307, 0.0
    %v550 = vmax.f32 %v310, 0.0
    %v551 = vmax.f32 %v315, 0.0
    %v552 = vmax.f32 %v318, 0.0
    %v553 = vmax.f32 %v323, 0.0
    %v554 = vmax.f32 %v326, 0.0
    %v555 = vmax.f32 %v331, 0.0
    %v556 = vmax.f32 %v334, 0.0
    %v557 = vmax.f32 %v339, 0.0
    %v558 = vmax.f32 %v342, 0.0
    %v559 = vmax.f32 %v347, 0.0
    %v560 = vmax.f32 %v350, 0.0
    %v561 = vmax.f32 %v355, 0.0
    %v562 = vmax.f32 %v358, 0.0
    %v563 = vmax.f32 %v363, 0.0
    %v564 = vmax.f32 %v366, 0.0
    %v565 = vmax.f32 %v371, 0.0
    %v566 = vmax.f32 %v374, 0.0
    %v567 = vmax.f32 %v379, 0.0
    %v568 = vmax.f32 %v382, 0.0
    %v569 = vmax.f32 %v387, 0.0
    %v570 = vmax.f32 %v390, 0.0
    %v571 = vmax.f32 %v395, 0.0
    %v572 = vmax.f32 %v398, 0.0
    %v573 = vmax.f32 %v403, 0.0
    %v574 = vmax.f32 %v406, 0.0
    %v575 = vmax.f32 %v411, 0.0
    %v576 = vmax.f32 %v414, 0.0
    %v577 = vmax.f32 %v419, 0.0
    %v578 = vmax.f32 %v422, 0.0
    %v579 = vmax.f32 %v427, 0.0
    %v580 = vmax.f32 %v430, 0.0
    %v581 = vmax.f32 %v435, 0.0
    %v582 = vmax.f32 %v438, 0.0
    %v583 = vmax.f32 %v443, 0.0
    %v584 = vmax.f32 %v446, 0.0
    %v585 = vmax.f32 %v451, 0.0
    %v586 = vmax.f32 %v454, 0.0
    %v587 = vmax.f32 %v459, 0.0
    %v588 = vmax.f32 %v462, 0.0
    %v589 = vmax.f32 %v467, 0.0
    %v590 = vmax.f32 %v470, 0.0
    %v591 = vmax.f32 %v475, 0.0
    %v592 = vmax.f32 %v478, 0.0
    %v593 = vmax.f32 %v483, 0.0
    %v594 = vmax.f32 %v486, 0.0
    %v595 = vmax.f32 %v491, 0.0
    %v596 = vmax.f32 %v494, 0.0
    %v597 = vmax.f32 %v499, 0.0
    %v598 = vmax.f32 %v502, 0.0
    %v599 = vmax.f32 %v507, 0.0
    %v600 = vmax.f32 %v510, 0.0
    %v601 = vmax.f32 %v515, 0.0
    %v602 = vmax.f32 %v518, 0.0
    %v603 = vmax.f32 %v523, 0.0
    %v604 = vmax.f32 %v526, 0.0
    %v605 = vmax.f32 %v531, 0.0
    %v606 = vmax.f32 %v534, 0.0
    %v607 = vmax.f32 %v539, 0.0
    %v608 = vmax.f32 %v542, 0.0
    %609 = vxpose.xlu0.b32.start [1/16] %v545, 128
    %610 = vxpose.xlu0.b32.cont [2/16] %v546, 128
    %611 = vxpose.xlu0.b32.cont [3/16] 0.0, 128
    %612 = vxpose.xlu0.b32.cont [4/16] 0.0, 128
    %613 = vxpose.xlu0.b32.cont [5/16] 0.0, 128
    %614 = vxpose.xlu0.b32.cont [6/16] 0.0, 128
    %615 = vxpose.xlu0.b32.cont [7/16] 0.0, 128
    %616 = vxpose.xlu0.b32.cont [8/16] 0.0, 128
    %617 = vxpose.xlu0.b32.cont [9/16] 0.0, 128
    %618 = vxpose.xlu0.b32.cont [10/16] 0.0, 128
    %619 = vxpose.xlu0.b32.cont [11/16] 0.0, 128
    %620 = vxpose.xlu0.b32.cont [12/16] 0.0, 128
    %621 = vxpose.xlu0.b32.cont [13/16] 0.0, 128
    %622 = vxpose.xlu0.b32.cont [14/16] 0.0, 128
    %623 = vxpose.xlu0.b32.cont [15/16] 0.0, 128
    %624 = vxpose.xlu0.b32.end [16/16] 0.0, 128
    %v625 = vpop.trf.xlu0
    %v626 = vpop.trf.xlu0
    %v627 = vpop.trf.xlu0
    %v628 = vpop.trf.xlu0
    %v629 = vpop.trf.xlu0
    %v630 = vpop.trf.xlu0
    %v631 = vpop.trf.xlu0
    %v632 = vpop.trf.xlu0
    %v633 = vpop.trf.xlu0
    %v634 = vpop.trf.xlu0
    %v635 = vpop.trf.xlu0
    %v636 = vpop.trf.xlu0
    %v637 = vpop.trf.xlu0
    %v638 = vpop.trf.xlu0
    %v639 = vpop.trf.xlu0
    %v640 = vpop.trf.xlu0
    %641 = vxpose.xlu0.b32.start [1/16] %v547, 128
    %642 = vxpose.xlu0.b32.cont [2/16] %v548, 128
    %643 = vxpose.xlu0.b32.cont [3/16] 0.0, 128
    %644 = vxpose.xlu0.b32.cont [4/16] 0.0, 128
    %645 = vxpose.xlu0.b32.cont [5/16] 0.0, 128
    %646 = vxpose.xlu0.b32.cont [6/16] 0.0, 128
    %647 = vxpose.xlu0.b32.cont [7/16] 0.0, 128
    %648 = vxpose.xlu0.b32.cont [8/16] 0.0, 128
    %649 = vxpose.xlu0.b32.cont [9/16] 0.0, 128
    %650 = vxpose.xlu0.b32.cont [10/16] 0.0, 128
    %651 = vxpose.xlu0.b32.cont [11/16] 0.0, 128
    %652 = vxpose.xlu0.b32.cont [12/16] 0.0, 128
    %653 = vxpose.xlu0.b32.cont [13/16] 0.0, 128
    %654 = vxpose.xlu0.b32.cont [14/16] 0.0, 128
    %655 = vxpose.xlu0.b32.cont [15/16] 0.0, 128
    %656 = vxpose.xlu0.b32.end [16/16] 0.0, 128
    %v657 = vpop.trf.xlu0
    %v658 = vpop.trf.xlu0
    %v659 = vpop.trf.xlu0
    %v660 = vpop.trf.xlu0
    %v661 = vpop.trf.xlu0
    %v662 = vpop.trf.xlu0
    %v663 = vpop.trf.xlu0
    %v664 = vpop.trf.xlu0
    %v665 = vpop.trf.xlu0
    %v666 = vpop.trf.xlu0
    %v667 = vpop.trf.xlu0
    %v668 = vpop.trf.xlu0
    %v669 = vpop.trf.xlu0
    %v670 = vpop.trf.xlu0
    %v671 = vpop.trf.xlu0
    %v672 = vpop.trf.xlu0
    %673 = vxpose.xlu0.b32.start [1/16] %v549, 128
    %674 = vxpose.xlu0.b32.cont [2/16] %v550, 128
    %675 = vxpose.xlu0.b32.cont [3/16] 0.0, 128
    %676 = vxpose.xlu0.b32.cont [4/16] 0.0, 128
    %677 = vxpose.xlu0.b32.cont [5/16] 0.0, 128
    %678 = vxpose.xlu0.b32.cont [6/16] 0.0, 128
    %679 = vxpose.xlu0.b32.cont [7/16] 0.0, 128
    %680 = vxpose.xlu0.b32.cont [8/16] 0.0, 128
    %681 = vxpose.xlu0.b32.cont [9/16] 0.0, 128
    %682 = vxpose.xlu0.b32.cont [10/16] 0.0, 128
    %683 = vxpose.xlu0.b32.cont [11/16] 0.0, 128
    %684 = vxpose.xlu0.b32.cont [12/16] 0.0, 128
    %685 = vxpose.xlu0.b32.cont [13/16] 0.0, 128
    %686 = vxpose.xlu0.b32.cont [14/16] 0.0, 128
    %687 = vxpose.xlu0.b32.cont [15/16] 0.0, 128
    %688 = vxpose.xlu0.b32.end [16/16] 0.0, 128
    %v689 = vpop.trf.xlu0
    %v690 = vpop.trf.xlu0
    %v691 = vpop.trf.xlu0
    %v692 = vpop.trf.xlu0
    %v693 = vpop.trf.xlu0
    %v694 = vpop.trf.xlu0
    %v695 = vpop.trf.xlu0
    %v696 = vpop.trf.xlu0
    %v697 = vpop.trf.xlu0
    %v698 = vpop.trf.xlu0
    %v699 = vpop.trf.xlu0
    %v700 = vpop.trf.xlu0
    %v701 = vpop.trf.xlu0
    %v702 = vpop.trf.xlu0
    %v703 = vpop.trf.xlu0
    %v704 = vpop.trf.xlu0
    %705 = vxpose.xlu0.b32.start [1/16] %v551, 128
    %706 = vxpose.xlu0.b32.cont [2/16] %v552, 128
    %707 = vxpose.xlu0.b32.cont [3/16] 0.0, 128
    %708 = vxpose.xlu0.b32.cont [4/16] 0.0, 128
    %709 = vxpose.xlu0.b32.cont [5/16] 0.0, 128
    %710 = vxpose.xlu0.b32.cont [6/16] 0.0, 128
    %711 = vxpose.xlu0.b32.cont [7/16] 0.0, 128
    %712 = vxpose.xlu0.b32.cont [8/16] 0.0, 128
    %713 = vxpose.xlu0.b32.cont [9/16] 0.0, 128
    %714 = vxpose.xlu0.b32.cont [10/16] 0.0, 128
    %715 = vxpose.xlu0.b32.cont [11/16] 0.0, 128
    %716 = vxpose.xlu0.b32.cont [12/16] 0.0, 128
    %717 = vxpose.xlu0.b32.cont [13/16] 0.0, 128
    %718 = vxpose.xlu0.b32.cont [14/16] 0.0, 128
    %719 = vxpose.xlu0.b32.cont [15/16] 0.0, 128
    %720 = vxpose.xlu0.b32.end [16/16] 0.0, 128
    %v721 = vpop.trf.xlu0
    %v722 = vpop.trf.xlu0
    %v723 = vpop.trf.xlu0
    %v724 = vpop.trf.xlu0
    %v725 = vpop.trf.xlu0
    %v726 = vpop.trf.xlu0
    %v727 = vpop.trf.xlu0
    %v728 = vpop.trf.xlu0
    %v729 = vpop.trf.xlu0
    %v730 = vpop.trf.xlu0
    %v731 = vpop.trf.xlu0
    %v732 = vpop.trf.xlu0
    %v733 = vpop.trf.xlu0
    %v734 = vpop.trf.xlu0
    %v735 = vpop.trf.xlu0
    %v736 = vpop.trf.xlu0
    %737 = vxpose.xlu0.b32.start [1/16] %v553, 128
    %738 = vxpose.xlu0.b32.cont [2/16] %v554, 128
    %739 = vxpose.xlu0.b32.cont [3/16] 0.0, 128
    %740 = vxpose.xlu0.b32.cont [4/16] 0.0, 128
    %741 = vxpose.xlu0.b32.cont [5/16] 0.0, 128
    %742 = vxpose.xlu0.b32.cont [6/16] 0.0, 128
    %743 = vxpose.xlu0.b32.cont [7/16] 0.0, 128
    %744 = vxpose.xlu0.b32.cont [8/16] 0.0, 128
    %745 = vxpose.xlu0.b32.cont [9/16] 0.0, 128
    %746 = vxpose.xlu0.b32.cont [10/16] 0.0, 128
    %747 = vxpose.xlu0.b32.cont [11/16] 0.0, 128
    %748 = vxpose.xlu0.b32.cont [12/16] 0.0, 128
    %749 = vxpose.xlu0.b32.cont [13/16] 0.0, 128
    %750 = vxpose.xlu0.b32.cont [14/16] 0.0, 128
    %751 = vxpose.xlu0.b32.cont [15/16] 0.0, 128
    %752 = vxpose.xlu0.b32.end [16/16] 0.0, 128
    %v753 = vpop.trf.xlu0
    %v754 = vpop.trf.xlu0
    %v755 = vpop.trf.xlu0
    %v756 = vpop.trf.xlu0
    %v757 = vpop.trf.xlu0
    %v758 = vpop.trf.xlu0
    %v759 = vpop.trf.xlu0
    %v760 = vpop.trf.xlu0
    %v761 = vpop.trf.xlu0
    %v762 = vpop.trf.xlu0
    %v763 = vpop.trf.xlu0
    %v764 = vpop.trf.xlu0
    %v765 = vpop.trf.xlu0
    %v766 = vpop.trf.xlu0
    %v767 = vpop.trf.xlu0
    %v768 = vpop.trf.xlu0
    %769 = vxpose.xlu0.b32.start [1/16] %v555, 128
    %770 = vxpose.xlu0.b32.cont [2/16] %v556, 128
    %771 = vxpose.xlu0.b32.cont [3/16] 0.0, 128
    %772 = vxpose.xlu0.b32.cont [4/16] 0.0, 128
    %773 = vxpose.xlu0.b32.cont [5/16] 0.0, 128
    %774 = vxpose.xlu0.b32.cont [6/16] 0.0, 128
    %775 = vxpose.xlu0.b32.cont [7/16] 0.0, 128
    %776 = vxpose.xlu0.b32.cont [8/16] 0.0, 128
    %777 = vxpose.xlu0.b32.cont [9/16] 0.0, 128
    %778 = vxpose.xlu0.b32.cont [10/16] 0.0, 128
    %779 = vxpose.xlu0.b32.cont [11/16] 0.0, 128
    %780 = vxpose.xlu0.b32.cont [12/16] 0.0, 128
    %781 = vxpose.xlu0.b32.cont [13/16] 0.0, 128
    %782 = vxpose.xlu0.b32.cont [14/16] 0.0, 128
    %783 = vxpose.xlu0.b32.cont [15/16] 0.0, 128
    %784 = vxpose.xlu0.b32.end [16/16] 0.0, 128
    %v785 = vpop.trf.xlu0
    %v786 = vpop.trf.xlu0
    %v787 = vpop.trf.xlu0
    %v788 = vpop.trf.xlu0
    %v789 = vpop.trf.xlu0
    %v790 = vpop.trf.xlu0
    %v791 = vpop.trf.xlu0
    %v792 = vpop.trf.xlu0
    %v793 = vpop.trf.xlu0
    %v794 = vpop.trf.xlu0
    %v795 = vpop.trf.xlu0
    %v796 = vpop.trf.xlu0
    %v797 = vpop.trf.xlu0
    %v798 = vpop.trf.xlu0
    %v799 = vpop.trf.xlu0
    %v800 = vpop.trf.xlu0
    %801 = vxpose.xlu0.b32.start [1/16] %v557, 128
    %802 = vxpose.xlu0.b32.cont [2/16] %v558, 128
    %803 = vxpose.xlu0.b32.cont [3/16] 0.0, 128
    %804 = vxpose.xlu0.b32.cont [4/16] 0.0, 128
    %805 = vxpose.xlu0.b32.cont [5/16] 0.0, 128
    %806 = vxpose.xlu0.b32.cont [6/16] 0.0, 128
    %807 = vxpose.xlu0.b32.cont [7/16] 0.0, 128
    %808 = vxpose.xlu0.b32.cont [8/16] 0.0, 128
    %809 = vxpose.xlu0.b32.cont [9/16] 0.0, 128
    %810 = vxpose.xlu0.b32.cont [10/16] 0.0, 128
    %811 = vxpose.xlu0.b32.cont [11/16] 0.0, 128
    %812 = vxpose.xlu0.b32.cont [12/16] 0.0, 128
    %813 = vxpose.xlu0.b32.cont [13/16] 0.0, 128
    %814 = vxpose.xlu0.b32.cont [14/16] 0.0, 128
    %815 = vxpose.xlu0.b32.cont [15/16] 0.0, 128
    %816 = vxpose.xlu0.b32.end [16/16] 0.0, 128
    %v817 = vpop.trf.xlu0
    %v818 = vpop.trf.xlu0
    %v819 = vpop.trf.xlu0
    %v820 = vpop.trf.xlu0
    %v821 = vpop.trf.xlu0
    %v822 = vpop.trf.xlu0
    %v823 = vpop.trf.xlu0
    %v824 = vpop.trf.xlu0
    %v825 = vpop.trf.xlu0
    %v826 = vpop.trf.xlu0
    %v827 = vpop.trf.xlu0
    %v828 = vpop.trf.xlu0
    %v829 = vpop.trf.xlu0
    %v830 = vpop.trf.xlu0
    %v831 = vpop.trf.xlu0
    %v832 = vpop.trf.xlu0
    %833 = vxpose.xlu0.b32.start [1/16] %v559, 128
    %834 = vxpose.xlu0.b32.cont [2/16] %v560, 128
    %835 = vxpose.xlu0.b32.cont [3/16] 0.0, 128
    %836 = vxpose.xlu0.b32.cont [4/16] 0.0, 128
    %837 = vxpose.xlu0.b32.cont [5/16] 0.0, 128
    %838 = vxpose.xlu0.b32.cont [6/16] 0.0, 128
    %839 = vxpose.xlu0.b32.cont [7/16] 0.0, 128
    %840 = vxpose.xlu0.b32.cont [8/16] 0.0, 128
    %841 = vxpose.xlu0.b32.cont [9/16] 0.0, 128
    %842 = vxpose.xlu0.b32.cont [10/16] 0.0, 128
    %843 = vxpose.xlu0.b32.cont [11/16] 0.0, 128
    %844 = vxpose.xlu0.b32.cont [12/16] 0.0, 128
    %845 = vxpose.xlu0.b32.cont [13/16] 0.0, 128
    %846 = vxpose.xlu0.b32.cont [14/16] 0.0, 128
    %847 = vxpose.xlu0.b32.cont [15/16] 0.0, 128
    %848 = vxpose.xlu0.b32.end [16/16] 0.0, 128
    %v849 = vpop.trf.xlu0
    %v850 = vpop.trf.xlu0
    %v851 = vpop.trf.xlu0
    %v852 = vpop.trf.xlu0
    %v853 = vpop.trf.xlu0
    %v854 = vpop.trf.xlu0
    %v855 = vpop.trf.xlu0
    %v856 = vpop.trf.xlu0
    %v857 = vpop.trf.xlu0
    %v858 = vpop.trf.xlu0
    %v859 = vpop.trf.xlu0
    %v860 = vpop.trf.xlu0
    %v861 = vpop.trf.xlu0
    %v862 = vpop.trf.xlu0
    %v863 = vpop.trf.xlu0
    %v864 = vpop.trf.xlu0
    %865 = vxpose.xlu0.b32.start [1/16] %v561, 128
    %866 = vxpose.xlu0.b32.cont [2/16] %v562, 128
    %867 = vxpose.xlu0.b32.cont [3/16] 0.0, 128
    %868 = vxpose.xlu0.b32.cont [4/16] 0.0, 128
    %869 = vxpose.xlu0.b32.cont [5/16] 0.0, 128
    %870 = vxpose.xlu0.b32.cont [6/16] 0.0, 128
    %871 = vxpose.xlu0.b32.cont [7/16] 0.0, 128
    %872 = vxpose.xlu0.b32.cont [8/16] 0.0, 128
    %873 = vxpose.xlu0.b32.cont [9/16] 0.0, 128
    %874 = vxpose.xlu0.b32.cont [10/16] 0.0, 128
    %875 = vxpose.xlu0.b32.cont [11/16] 0.0, 128
    %876 = vxpose.xlu0.b32.cont [12/16] 0.0, 128
    %877 = vxpose.xlu0.b32.cont [13/16] 0.0, 128
    %878 = vxpose.xlu0.b32.cont [14/16] 0.0, 128
    %879 = vxpose.xlu0.b32.cont [15/16] 0.0, 128
    %880 = vxpose.xlu0.b32.end [16/16] 0.0, 128
    %v881 = vpop.trf.xlu0
    %v882 = vpop.trf.xlu0
    %v883 = vpop.trf.xlu0
    %v884 = vpop.trf.xlu0
    %v885 = vpop.trf.xlu0
    %v886 = vpop.trf.xlu0
    %v887 = vpop.trf.xlu0
    %v888 = vpop.trf.xlu0
    %v889 = vpop.trf.xlu0
    %v890 = vpop.trf.xlu0
    %v891 = vpop.trf.xlu0
    %v892 = vpop.trf.xlu0
    %v893 = vpop.trf.xlu0
    %v894 = vpop.trf.xlu0
    %v895 = vpop.trf.xlu0
    %v896 = vpop.trf.xlu0
    %897 = vxpose.xlu0.b32.start [1/16] %v563, 128
    %898 = vxpose.xlu0.b32.cont [2/16] %v564, 128
    %899 = vxpose.xlu0.b32.cont [3/16] 0.0, 128
    %900 = vxpose.xlu0.b32.cont [4/16] 0.0, 128
    %901 = vxpose.xlu0.b32.cont [5/16] 0.0, 128
    %902 = vxpose.xlu0.b32.cont [6/16] 0.0, 128
    %903 = vxpose.xlu0.b32.cont [7/16] 0.0, 128
    %904 = vxpose.xlu0.b32.cont [8/16] 0.0, 128
    %905 = vxpose.xlu0.b32.cont [9/16] 0.0, 128
    %906 = vxpose.xlu0.b32.cont [10/16] 0.0, 128
    %907 = vxpose.xlu0.b32.cont [11/16] 0.0, 128
    %908 = vxpose.xlu0.b32.cont [12/16] 0.0, 128
    %909 = vxpose.xlu0.b32.cont [13/16] 0.0, 128
    %910 = vxpose.xlu0.b32.cont [14/16] 0.0, 128
    %911 = vxpose.xlu0.b32.cont [15/16] 0.0, 128
    %912 = vxpose.xlu0.b32.end [16/16] 0.0, 128
    %v913 = vpop.trf.xlu0
    %v914 = vpop.trf.xlu0
    %v915 = vpop.trf.xlu0
    %v916 = vpop.trf.xlu0
    %v917 = vpop.trf.xlu0
    %v918 = vpop.trf.xlu0
    %v919 = vpop.trf.xlu0
    %v920 = vpop.trf.xlu0
    %v921 = vpop.trf.xlu0
    %v922 = vpop.trf.xlu0
    %v923 = vpop.trf.xlu0
    %v924 = vpop.trf.xlu0
    %v925 = vpop.trf.xlu0
    %v926 = vpop.trf.xlu0
    %v927 = vpop.trf.xlu0
    %v928 = vpop.trf.xlu0
    %929 = vxpose.xlu0.b32.start [1/16] %v565, 128
    %930 = vxpose.xlu0.b32.cont [2/16] %v566, 128
    %931 = vxpose.xlu0.b32.cont [3/16] 0.0, 128
    %932 = vxpose.xlu0.b32.cont [4/16] 0.0, 128
    %933 = vxpose.xlu0.b32.cont [5/16] 0.0, 128
    %934 = vxpose.xlu0.b32.cont [6/16] 0.0, 128
    %935 = vxpose.xlu0.b32.cont [7/16] 0.0, 128
    %936 = vxpose.xlu0.b32.cont [8/16] 0.0, 128
    %937 = vxpose.xlu0.b32.cont [9/16] 0.0, 128
    %938 = vxpose.xlu0.b32.cont [10/16] 0.0, 128
    %939 = vxpose.xlu0.b32.cont [11/16] 0.0, 128
    %940 = vxpose.xlu0.b32.cont [12/16] 0.0, 128
    %941 = vxpose.xlu0.b32.cont [13/16] 0.0, 128
    %942 = vxpose.xlu0.b32.cont [14/16] 0.0, 128
    %943 = vxpose.xlu0.b32.cont [15/16] 0.0, 128
    %944 = vxpose.xlu0.b32.end [16/16] 0.0, 128
    %v945 = vpop.trf.xlu0
    %v946 = vpop.trf.xlu0
    %v947 = vpop.trf.xlu0
    %v948 = vpop.trf.xlu0
    %v949 = vpop.trf.xlu0
    %v950 = vpop.trf.xlu0
    %v951 = vpop.trf.xlu0
    %v952 = vpop.trf.xlu0
    %v953 = vpop.trf.xlu0
    %v954 = vpop.trf.xlu0
    %v955 = vpop.trf.xlu0
    %v956 = vpop.trf.xlu0
    %v957 = vpop.trf.xlu0
    %v958 = vpop.trf.xlu0
    %v959 = vpop.trf.xlu0
    %v960 = vpop.trf.xlu0
    %961 = vxpose.xlu0.b32.start [1/16] %v567, 128
    %962 = vxpose.xlu0.b32.cont [2/16] %v568, 128
    %963 = vxpose.xlu0.b32.cont [3/16] 0.0, 128
    %964 = vxpose.xlu0.b32.cont [4/16] 0.0, 128
    %965 = vxpose.xlu0.b32.cont [5/16] 0.0, 128
    %966 = vxpose.xlu0.b32.cont [6/16] 0.0, 128
    %967 = vxpose.xlu0.b32.cont [7/16] 0.0, 128
    %968 = vxpose.xlu0.b32.cont [8/16] 0.0, 128
    %969 = vxpose.xlu0.b32.cont [9/16] 0.0, 128
    %970 = vxpose.xlu0.b32.cont [10/16] 0.0, 128
    %971 = vxpose.xlu0.b32.cont [11/16] 0.0, 128
    %972 = vxpose.xlu0.b32.cont [12/16] 0.0, 128
    %973 = vxpose.xlu0.b32.cont [13/16] 0.0, 128
    %974 = vxpose.xlu0.b32.cont [14/16] 0.0, 128
    %975 = vxpose.xlu0.b32.cont [15/16] 0.0, 128
    %976 = vxpose.xlu0.b32.end [16/16] 0.0, 128
    %v977 = vpop.trf.xlu0
    %v978 = vpop.trf.xlu0
    %v979 = vpop.trf.xlu0
    %v980 = vpop.trf.xlu0
    %v981 = vpop.trf.xlu0
    %v982 = vpop.trf.xlu0
    %v983 = vpop.trf.xlu0
    %v984 = vpop.trf.xlu0
    %v985 = vpop.trf.xlu0
    %v986 = vpop.trf.xlu0
    %v987 = vpop.trf.xlu0
    %v988 = vpop.trf.xlu0
    %v989 = vpop.trf.xlu0
    %v990 = vpop.trf.xlu0
    %v991 = vpop.trf.xlu0
    %v992 = vpop.trf.xlu0
    %993 = vxpose.xlu0.b32.start [1/16] %v569, 128
    %994 = vxpose.xlu0.b32.cont [2/16] %v570, 128
    %995 = vxpose.xlu0.b32.cont [3/16] 0.0, 128
    %996 = vxpose.xlu0.b32.cont [4/16] 0.0, 128
    %997 = vxpose.xlu0.b32.cont [5/16] 0.0, 128
    %998 = vxpose.xlu0.b32.cont [6/16] 0.0, 128
    %999 = vxpose.xlu0.b32.cont [7/16] 0.0, 128
    %1000 = vxpose.xlu0.b32.cont [8/16] 0.0, 128
    %1001 = vxpose.xlu0.b32.cont [9/16] 0.0, 128
    %1002 = vxpose.xlu0.b32.cont [10/16] 0.0, 128
    %1003 = vxpose.xlu0.b32.cont [11/16] 0.0, 128
    %1004 = vxpose.xlu0.b32.cont [12/16] 0.0, 128
    %1005 = vxpose.xlu0.b32.cont [13/16] 0.0, 128
    %1006 = vxpose.xlu0.b32.cont [14/16] 0.0, 128
    %1007 = vxpose.xlu0.b32.cont [15/16] 0.0, 128
    %1008 = vxpose.xlu0.b32.end [16/16] 0.0, 128
    %v1009 = vpop.trf.xlu0
    %v1010 = vpop.trf.xlu0
    %v1011 = vpop.trf.xlu0
    %v1012 = vpop.trf.xlu0
    %v1013 = vpop.trf.xlu0
    %v1014 = vpop.trf.xlu0
    %v1015 = vpop.trf.xlu0
    %v1016 = vpop.trf.xlu0
    %v1017 = vpop.trf.xlu0
    %v1018 = vpop.trf.xlu0
    %v1019 = vpop.trf.xlu0
    %v1020 = vpop.trf.xlu0
    %v1021 = vpop.trf.xlu0
    %v1022 = vpop.trf.xlu0
    %v1023 = vpop.trf.xlu0
    %v1024 = vpop.trf.xlu0
    %1025 = vxpose.xlu0.b32.start [1/16] %v571, 128
    %1026 = vxpose.xlu0.b32.cont [2/16] %v572, 128
    %1027 = vxpose.xlu0.b32.cont [3/16] 0.0, 128
    %1028 = vxpose.xlu0.b32.cont [4/16] 0.0, 128
    %1029 = vxpose.xlu0.b32.cont [5/16] 0.0, 128
    %1030 = vxpose.xlu0.b32.cont [6/16] 0.0, 128
    %1031 = vxpose.xlu0.b32.cont [7/16] 0.0, 128
    %1032 = vxpose.xlu0.b32.cont [8/16] 0.0, 128
    %1033 = vxpose.xlu0.b32.cont [9/16] 0.0, 128
    %1034 = vxpose.xlu0.b32.cont [10/16] 0.0, 128
    %1035 = vxpose.xlu0.b32.cont [11/16] 0.0, 128
    %1036 = vxpose.xlu0.b32.cont [12/16] 0.0, 128
    %1037 = vxpose.xlu0.b32.cont [13/16] 0.0, 128
    %1038 = vxpose.xlu0.b32.cont [14/16] 0.0, 128
    %1039 = vxpose.xlu0.b32.cont [15/16] 0.0, 128
    %1040 = vxpose.xlu0.b32.end [16/16] 0.0, 128
    %v1041 = vpop.trf.xlu0
    %v1042 = vpop.trf.xlu0
    %v1043 = vpop.trf.xlu0
    %v1044 = vpop.trf.xlu0
    %v1045 = vpop.trf.xlu0
    %v1046 = vpop.trf.xlu0
    %v1047 = vpop.trf.xlu0
    %v1048 = vpop.trf.xlu0
    %v1049 = vpop.trf.xlu0
    %v1050 = vpop.trf.xlu0
    %v1051 = vpop.trf.xlu0
    %v1052 = vpop.trf.xlu0
    %v1053 = vpop.trf.xlu0
    %v1054 = vpop.trf.xlu0
    %v1055 = vpop.trf.xlu0
    %v1056 = vpop.trf.xlu0
    %1057 = vxpose.xlu0.b32.start [1/16] %v573, 128
    %1058 = vxpose.xlu0.b32.cont [2/16] %v574, 128
    %1059 = vxpose.xlu0.b32.cont [3/16] 0.0, 128
    %1060 = vxpose.xlu0.b32.cont [4/16] 0.0, 128
    %1061 = vxpose.xlu0.b32.cont [5/16] 0.0, 128
    %1062 = vxpose.xlu0.b32.cont [6/16] 0.0, 128
    %1063 = vxpose.xlu0.b32.cont [7/16] 0.0, 128
    %1064 = vxpose.xlu0.b32.cont [8/16] 0.0, 128
    %1065 = vxpose.xlu0.b32.cont [9/16] 0.0, 128
    %1066 = vxpose.xlu0.b32.cont [10/16] 0.0, 128
    %1067 = vxpose.xlu0.b32.cont [11/16] 0.0, 128
    %1068 = vxpose.xlu0.b32.cont [12/16] 0.0, 128
    %1069 = vxpose.xlu0.b32.cont [13/16] 0.0, 128
    %1070 = vxpose.xlu0.b32.cont [14/16] 0.0, 128
    %1071 = vxpose.xlu0.b32.cont [15/16] 0.0, 128
    %1072 = vxpose.xlu0.b32.end [16/16] 0.0, 128
    %v1073 = vpop.trf.xlu0
    %v1074 = vpop.trf.xlu0
    %v1075 = vpop.trf.xlu0
    %v1076 = vpop.trf.xlu0
    %v1077 = vpop.trf.xlu0
    %v1078 = vpop.trf.xlu0
    %v1079 = vpop.trf.xlu0
    %v1080 = vpop.trf.xlu0
    %v1081 = vpop.trf.xlu0
    %v1082 = vpop.trf.xlu0
    %v1083 = vpop.trf.xlu0
    %v1084 = vpop.trf.xlu0
    %v1085 = vpop.trf.xlu0
    %v1086 = vpop.trf.xlu0
    %v1087 = vpop.trf.xlu0
    %v1088 = vpop.trf.xlu0
    %1089 = vxpose.xlu0.b32.start [1/16] %v575, 128
    %1090 = vxpose.xlu0.b32.cont [2/16] %v576, 128
    %1091 = vxpose.xlu0.b32.cont [3/16] 0.0, 128
    %1092 = vxpose.xlu0.b32.cont [4/16] 0.0, 128
    %1093 = vxpose.xlu0.b32.cont [5/16] 0.0, 128
    %1094 = vxpose.xlu0.b32.cont [6/16] 0.0, 128
    %1095 = vxpose.xlu0.b32.cont [7/16] 0.0, 128
    %1096 = vxpose.xlu0.b32.cont [8/16] 0.0, 128
    %1097 = vxpose.xlu0.b32.cont [9/16] 0.0, 128
    %1098 = vxpose.xlu0.b32.cont [10/16] 0.0, 128
    %1099 = vxpose.xlu0.b32.cont [11/16] 0.0, 128
    %1100 = vxpose.xlu0.b32.cont [12/16] 0.0, 128
    %1101 = vxpose.xlu0.b32.cont [13/16] 0.0, 128
    %1102 = vxpose.xlu0.b32.cont [14/16] 0.0, 128
    %1103 = vxpose.xlu0.b32.cont [15/16] 0.0, 128
    %1104 = vxpose.xlu0.b32.end [16/16] 0.0, 128
    %v1105 = vpop.trf.xlu0
    %v1106 = vpop.trf.xlu0
    %v1107 = vpop.trf.xlu0
    %v1108 = vpop.trf.xlu0
    %v1109 = vpop.trf.xlu0
    %v1110 = vpop.trf.xlu0
    %v1111 = vpop.trf.xlu0
    %v1112 = vpop.trf.xlu0
    %v1113 = vpop.trf.xlu0
    %v1114 = vpop.trf.xlu0
    %v1115 = vpop.trf.xlu0
    %v1116 = vpop.trf.xlu0
    %v1117 = vpop.trf.xlu0
    %v1118 = vpop.trf.xlu0
    %v1119 = vpop.trf.xlu0
    %v1120 = vpop.trf.xlu0
    %1121 = vxpose.xlu0.b32.start [1/16] %v577, 128
    %1122 = vxpose.xlu0.b32.cont [2/16] %v578, 128
    %1123 = vxpose.xlu0.b32.cont [3/16] 0.0, 128
    %1124 = vxpose.xlu0.b32.cont [4/16] 0.0, 128
    %1125 = vxpose.xlu0.b32.cont [5/16] 0.0, 128
    %1126 = vxpose.xlu0.b32.cont [6/16] 0.0, 128
    %1127 = vxpose.xlu0.b32.cont [7/16] 0.0, 128
    %1128 = vxpose.xlu0.b32.cont [8/16] 0.0, 128
    %1129 = vxpose.xlu0.b32.cont [9/16] 0.0, 128
    %1130 = vxpose.xlu0.b32.cont [10/16] 0.0, 128
    %1131 = vxpose.xlu0.b32.cont [11/16] 0.0, 128
    %1132 = vxpose.xlu0.b32.cont [12/16] 0.0, 128
    %1133 = vxpose.xlu0.b32.cont [13/16] 0.0, 128
    %1134 = vxpose.xlu0.b32.cont [14/16] 0.0, 128
    %1135 = vxpose.xlu0.b32.cont [15/16] 0.0, 128
    %1136 = vxpose.xlu0.b32.end [16/16] 0.0, 128
    %v1137 = vpop.trf.xlu0
    %v1138 = vpop.trf.xlu0
    %v1139 = vpop.trf.xlu0
    %v1140 = vpop.trf.xlu0
    %v1141 = vpop.trf.xlu0
    %v1142 = vpop.trf.xlu0
    %v1143 = vpop.trf.xlu0
    %v1144 = vpop.trf.xlu0
    %v1145 = vpop.trf.xlu0
    %v1146 = vpop.trf.xlu0
    %v1147 = vpop.trf.xlu0
    %v1148 = vpop.trf.xlu0
    %v1149 = vpop.trf.xlu0
    %v1150 = vpop.trf.xlu0
    %v1151 = vpop.trf.xlu0
    %v1152 = vpop.trf.xlu0
    %1153 = vxpose.xlu0.b32.start [1/16] %v579, 128
    %1154 = vxpose.xlu0.b32.cont [2/16] %v580, 128
    %1155 = vxpose.xlu0.b32.cont [3/16] 0.0, 128
    %1156 = vxpose.xlu0.b32.cont [4/16] 0.0, 128
    %1157 = vxpose.xlu0.b32.cont [5/16] 0.0, 128
    %1158 = vxpose.xlu0.b32.cont [6/16] 0.0, 128
    %1159 = vxpose.xlu0.b32.cont [7/16] 0.0, 128
    %1160 = vxpose.xlu0.b32.cont [8/16] 0.0, 128
    %1161 = vxpose.xlu0.b32.cont [9/16] 0.0, 128
    %1162 = vxpose.xlu0.b32.cont [10/16] 0.0, 128
    %1163 = vxpose.xlu0.b32.cont [11/16] 0.0, 128
    %1164 = vxpose.xlu0.b32.cont [12/16] 0.0, 128
    %1165 = vxpose.xlu0.b32.cont [13/16] 0.0, 128
    %1166 = vxpose.xlu0.b32.cont [14/16] 0.0, 128
    %1167 = vxpose.xlu0.b32.cont [15/16] 0.0, 128
    %1168 = vxpose.xlu0.b32.end [16/16] 0.0, 128
    %v1169 = vpop.trf.xlu0
    %v1170 = vpop.trf.xlu0
    %v1171 = vpop.trf.xlu0
    %v1172 = vpop.trf.xlu0
    %v1173 = vpop.trf.xlu0
    %v1174 = vpop.trf.xlu0
    %v1175 = vpop.trf.xlu0
    %v1176 = vpop.trf.xlu0
    %v1177 = vpop.trf.xlu0
    %v1178 = vpop.trf.xlu0
    %v1179 = vpop.trf.xlu0
    %v1180 = vpop.trf.xlu0
    %v1181 = vpop.trf.xlu0
    %v1182 = vpop.trf.xlu0
    %v1183 = vpop.trf.xlu0
    %v1184 = vpop.trf.xlu0
    %1185 = vxpose.xlu0.b32.start [1/16] %v581, 128
    %1186 = vxpose.xlu0.b32.cont [2/16] %v582, 128
    %1187 = vxpose.xlu0.b32.cont [3/16] 0.0, 128
    %1188 = vxpose.xlu0.b32.cont [4/16] 0.0, 128
    %1189 = vxpose.xlu0.b32.cont [5/16] 0.0, 128
    %1190 = vxpose.xlu0.b32.cont [6/16] 0.0, 128
    %1191 = vxpose.xlu0.b32.cont [7/16] 0.0, 128
    %1192 = vxpose.xlu0.b32.cont [8/16] 0.0, 128
    %1193 = vxpose.xlu0.b32.cont [9/16] 0.0, 128
    %1194 = vxpose.xlu0.b32.cont [10/16] 0.0, 128
    %1195 = vxpose.xlu0.b32.cont [11/16] 0.0, 128
    %1196 = vxpose.xlu0.b32.cont [12/16] 0.0, 128
    %1197 = vxpose.xlu0.b32.cont [13/16] 0.0, 128
    %1198 = vxpose.xlu0.b32.cont [14/16] 0.0, 128
    %1199 = vxpose.xlu0.b32.cont [15/16] 0.0, 128
    %1200 = vxpose.xlu0.b32.end [16/16] 0.0, 128
    %v1201 = vpop.trf.xlu0
    %v1202 = vpop.trf.xlu0
    %v1203 = vpop.trf.xlu0
    %v1204 = vpop.trf.xlu0
    %v1205 = vpop.trf.xlu0
    %v1206 = vpop.trf.xlu0
    %v1207 = vpop.trf.xlu0
    %v1208 = vpop.trf.xlu0
    %v1209 = vpop.trf.xlu0
    %v1210 = vpop.trf.xlu0
    %v1211 = vpop.trf.xlu0
    %v1212 = vpop.trf.xlu0
    %v1213 = vpop.trf.xlu0
    %v1214 = vpop.trf.xlu0
    %v1215 = vpop.trf.xlu0
    %v1216 = vpop.trf.xlu0
    %1217 = vxpose.xlu0.b32.start [1/16] %v583, 128
    %1218 = vxpose.xlu0.b32.cont [2/16] %v584, 128
    %1219 = vxpose.xlu0.b32.cont [3/16] 0.0, 128
    %1220 = vxpose.xlu0.b32.cont [4/16] 0.0, 128
    %1221 = vxpose.xlu0.b32.cont [5/16] 0.0, 128
    %1222 = vxpose.xlu0.b32.cont [6/16] 0.0, 128
    %1223 = vxpose.xlu0.b32.cont [7/16] 0.0, 128
    %1224 = vxpose.xlu0.b32.cont [8/16] 0.0, 128
    %1225 = vxpose.xlu0.b32.cont [9/16] 0.0, 128
    %1226 = vxpose.xlu0.b32.cont [10/16] 0.0, 128
    %1227 = vxpose.xlu0.b32.cont [11/16] 0.0, 128
    %1228 = vxpose.xlu0.b32.cont [12/16] 0.0, 128
    %1229 = vxpose.xlu0.b32.cont [13/16] 0.0, 128
    %1230 = vxpose.xlu0.b32.cont [14/16] 0.0, 128
    %1231 = vxpose.xlu0.b32.cont [15/16] 0.0, 128
    %1232 = vxpose.xlu0.b32.end [16/16] 0.0, 128
    %v1233 = vpop.trf.xlu0
    %v1234 = vpop.trf.xlu0
    %v1235 = vpop.trf.xlu0
    %v1236 = vpop.trf.xlu0
    %v1237 = vpop.trf.xlu0
    %v1238 = vpop.trf.xlu0
    %v1239 = vpop.trf.xlu0
    %v1240 = vpop.trf.xlu0
    %v1241 = vpop.trf.xlu0
    %v1242 = vpop.trf.xlu0
    %v1243 = vpop.trf.xlu0
    %v1244 = vpop.trf.xlu0
    %v1245 = vpop.trf.xlu0
    %v1246 = vpop.trf.xlu0
    %v1247 = vpop.trf.xlu0
    %v1248 = vpop.trf.xlu0
    %1249 = vxpose.xlu0.b32.start [1/16] %v585, 128
    %1250 = vxpose.xlu0.b32.cont [2/16] %v586, 128
    %1251 = vxpose.xlu0.b32.cont [3/16] 0.0, 128
    %1252 = vxpose.xlu0.b32.cont [4/16] 0.0, 128
    %1253 = vxpose.xlu0.b32.cont [5/16] 0.0, 128
    %1254 = vxpose.xlu0.b32.cont [6/16] 0.0, 128
    %1255 = vxpose.xlu0.b32.cont [7/16] 0.0, 128
    %1256 = vxpose.xlu0.b32.cont [8/16] 0.0, 128
    %1257 = vxpose.xlu0.b32.cont [9/16] 0.0, 128
    %1258 = vxpose.xlu0.b32.cont [10/16] 0.0, 128
    %1259 = vxpose.xlu0.b32.cont [11/16] 0.0, 128
    %1260 = vxpose.xlu0.b32.cont [12/16] 0.0, 128
    %1261 = vxpose.xlu0.b32.cont [13/16] 0.0, 128
    %1262 = vxpose.xlu0.b32.cont [14/16] 0.0, 128
    %1263 = vxpose.xlu0.b32.cont [15/16] 0.0, 128
    %1264 = vxpose.xlu0.b32.end [16/16] 0.0, 128
    %v1265 = vpop.trf.xlu0
    %v1266 = vpop.trf.xlu0
    %v1267 = vpop.trf.xlu0
    %v1268 = vpop.trf.xlu0
    %v1269 = vpop.trf.xlu0
    %v1270 = vpop.trf.xlu0
    %v1271 = vpop.trf.xlu0
    %v1272 = vpop.trf.xlu0
    %v1273 = vpop.trf.xlu0
    %v1274 = vpop.trf.xlu0
    %v1275 = vpop.trf.xlu0
    %v1276 = vpop.trf.xlu0
    %v1277 = vpop.trf.xlu0
    %v1278 = vpop.trf.xlu0
    %v1279 = vpop.trf.xlu0
    %v1280 = vpop.trf.xlu0
    %1281 = vxpose.xlu0.b32.start [1/16] %v587, 128
    %1282 = vxpose.xlu0.b32.cont [2/16] %v588, 128
    %1283 = vxpose.xlu0.b32.cont [3/16] 0.0, 128
    %1284 = vxpose.xlu0.b32.cont [4/16] 0.0, 128
    %1285 = vxpose.xlu0.b32.cont [5/16] 0.0, 128
    %1286 = vxpose.xlu0.b32.cont [6/16] 0.0, 128
    %1287 = vxpose.xlu0.b32.cont [7/16] 0.0, 128
    %1288 = vxpose.xlu0.b32.cont [8/16] 0.0, 128
    %1289 = vxpose.xlu0.b32.cont [9/16] 0.0, 128
    %1290 = vxpose.xlu0.b32.cont [10/16] 0.0, 128
    %1291 = vxpose.xlu0.b32.cont [11/16] 0.0, 128
    %1292 = vxpose.xlu0.b32.cont [12/16] 0.0, 128
    %1293 = vxpose.xlu0.b32.cont [13/16] 0.0, 128
    %1294 = vxpose.xlu0.b32.cont [14/16] 0.0, 128
    %1295 = vxpose.xlu0.b32.cont [15/16] 0.0, 128
    %1296 = vxpose.xlu0.b32.end [16/16] 0.0, 128
    %v1297 = vpop.trf.xlu0
    %v1298 = vpop.trf.xlu0
    %v1299 = vpop.trf.xlu0
    %v1300 = vpop.trf.xlu0
    %v1301 = vpop.trf.xlu0
    %v1302 = vpop.trf.xlu0
    %v1303 = vpop.trf.xlu0
    %v1304 = vpop.trf.xlu0
    %v1305 = vpop.trf.xlu0
    %v1306 = vpop.trf.xlu0
    %v1307 = vpop.trf.xlu0
    %v1308 = vpop.trf.xlu0
    %v1309 = vpop.trf.xlu0
    %v1310 = vpop.trf.xlu0
    %v1311 = vpop.trf.xlu0
    %v1312 = vpop.trf.xlu0
    %1313 = vxpose.xlu0.b32.start [1/16] %v589, 128
    %1314 = vxpose.xlu0.b32.cont [2/16] %v590, 128
    %1315 = vxpose.xlu0.b32.cont [3/16] 0.0, 128
    %1316 = vxpose.xlu0.b32.cont [4/16] 0.0, 128
    %1317 = vxpose.xlu0.b32.cont [5/16] 0.0, 128
    %1318 = vxpose.xlu0.b32.cont [6/16] 0.0, 128
    %1319 = vxpose.xlu0.b32.cont [7/16] 0.0, 128
    %1320 = vxpose.xlu0.b32.cont [8/16] 0.0, 128
    %1321 = vxpose.xlu0.b32.cont [9/16] 0.0, 128
    %1322 = vxpose.xlu0.b32.cont [10/16] 0.0, 128
    %1323 = vxpose.xlu0.b32.cont [11/16] 0.0, 128
    %1324 = vxpose.xlu0.b32.cont [12/16] 0.0, 128
    %1325 = vxpose.xlu0.b32.cont [13/16] 0.0, 128
    %1326 = vxpose.xlu0.b32.cont [14/16] 0.0, 128
    %1327 = vxpose.xlu0.b32.cont [15/16] 0.0, 128
    %1328 = vxpose.xlu0.b32.end [16/16] 0.0, 128
    %v1329 = vpop.trf.xlu0
    %v1330 = vpop.trf.xlu0
    %v1331 = vpop.trf.xlu0
    %v1332 = vpop.trf.xlu0
    %v1333 = vpop.trf.xlu0
    %v1334 = vpop.trf.xlu0
    %v1335 = vpop.trf.xlu0
    %v1336 = vpop.trf.xlu0
    %v1337 = vpop.trf.xlu0
    %v1338 = vpop.trf.xlu0
    %v1339 = vpop.trf.xlu0
    %v1340 = vpop.trf.xlu0
    %v1341 = vpop.trf.xlu0
    %v1342 = vpop.trf.xlu0
    %v1343 = vpop.trf.xlu0
    %v1344 = vpop.trf.xlu0
    %1345 = vxpose.xlu0.b32.start [1/16] %v591, 128
    %1346 = vxpose.xlu0.b32.cont [2/16] %v592, 128
    %1347 = vxpose.xlu0.b32.cont [3/16] 0.0, 128
    %1348 = vxpose.xlu0.b32.cont [4/16] 0.0, 128
    %1349 = vxpose.xlu0.b32.cont [5/16] 0.0, 128
    %1350 = vxpose.xlu0.b32.cont [6/16] 0.0, 128
    %1351 = vxpose.xlu0.b32.cont [7/16] 0.0, 128
    %1352 = vxpose.xlu0.b32.cont [8/16] 0.0, 128
    %1353 = vxpose.xlu0.b32.cont [9/16] 0.0, 128
    %1354 = vxpose.xlu0.b32.cont [10/16] 0.0, 128
    %1355 = vxpose.xlu0.b32.cont [11/16] 0.0, 128
    %1356 = vxpose.xlu0.b32.cont [12/16] 0.0, 128
    %1357 = vxpose.xlu0.b32.cont [13/16] 0.0, 128
    %1358 = vxpose.xlu0.b32.cont [14/16] 0.0, 128
    %1359 = vxpose.xlu0.b32.cont [15/16] 0.0, 128
    %1360 = vxpose.xlu0.b32.end [16/16] 0.0, 128
    %v1361 = vpop.trf.xlu0
    %v1362 = vpop.trf.xlu0
    %v1363 = vpop.trf.xlu0
    %v1364 = vpop.trf.xlu0
    %v1365 = vpop.trf.xlu0
    %v1366 = vpop.trf.xlu0
    %v1367 = vpop.trf.xlu0
    %v1368 = vpop.trf.xlu0
    %v1369 = vpop.trf.xlu0
    %v1370 = vpop.trf.xlu0
    %v1371 = vpop.trf.xlu0
    %v1372 = vpop.trf.xlu0
    %v1373 = vpop.trf.xlu0
    %v1374 = vpop.trf.xlu0
    %v1375 = vpop.trf.xlu0
    %v1376 = vpop.trf.xlu0
    %1377 = vxpose.xlu0.b32.start [1/16] %v593, 128
    %1378 = vxpose.xlu0.b32.cont [2/16] %v594, 128
    %1379 = vxpose.xlu0.b32.cont [3/16] 0.0, 128
    %1380 = vxpose.xlu0.b32.cont [4/16] 0.0, 128
    %1381 = vxpose.xlu0.b32.cont [5/16] 0.0, 128
    %1382 = vxpose.xlu0.b32.cont [6/16] 0.0, 128
    %1383 = vxpose.xlu0.b32.cont [7/16] 0.0, 128
    %1384 = vxpose.xlu0.b32.cont [8/16] 0.0, 128
    %1385 = vxpose.xlu0.b32.cont [9/16] 0.0, 128
    %1386 = vxpose.xlu0.b32.cont [10/16] 0.0, 128
    %1387 = vxpose.xlu0.b32.cont [11/16] 0.0, 128
    %1388 = vxpose.xlu0.b32.cont [12/16] 0.0, 128
    %1389 = vxpose.xlu0.b32.cont [13/16] 0.0, 128
    %1390 = vxpose.xlu0.b32.cont [14/16] 0.0, 128
    %1391 = vxpose.xlu0.b32.cont [15/16] 0.0, 128
    %1392 = vxpose.xlu0.b32.end [16/16] 0.0, 128
    %v1393 = vpop.trf.xlu0
    %v1394 = vpop.trf.xlu0
    %v1395 = vpop.trf.xlu0
    %v1396 = vpop.trf.xlu0
    %v1397 = vpop.trf.xlu0
    %v1398 = vpop.trf.xlu0
    %v1399 = vpop.trf.xlu0
    %v1400 = vpop.trf.xlu0
    %v1401 = vpop.trf.xlu0
    %v1402 = vpop.trf.xlu0
    %v1403 = vpop.trf.xlu0
    %v1404 = vpop.trf.xlu0
    %v1405 = vpop.trf.xlu0
    %v1406 = vpop.trf.xlu0
    %v1407 = vpop.trf.xlu0
    %v1408 = vpop.trf.xlu0
    %1409 = vxpose.xlu0.b32.start [1/16] %v595, 128
    %1410 = vxpose.xlu0.b32.cont [2/16] %v596, 128
    %1411 = vxpose.xlu0.b32.cont [3/16] 0.0, 128
    %1412 = vxpose.xlu0.b32.cont [4/16] 0.0, 128
    %1413 = vxpose.xlu0.b32.cont [5/16] 0.0, 128
    %1414 = vxpose.xlu0.b32.cont [6/16] 0.0, 128
    %1415 = vxpose.xlu0.b32.cont [7/16] 0.0, 128
    %1416 = vxpose.xlu0.b32.cont [8/16] 0.0, 128
    %1417 = vxpose.xlu0.b32.cont [9/16] 0.0, 128
    %1418 = vxpose.xlu0.b32.cont [10/16] 0.0, 128
    %1419 = vxpose.xlu0.b32.cont [11/16] 0.0, 128
    %1420 = vxpose.xlu0.b32.cont [12/16] 0.0, 128
    %1421 = vxpose.xlu0.b32.cont [13/16] 0.0, 128
    %1422 = vxpose.xlu0.b32.cont [14/16] 0.0, 128
    %1423 = vxpose.xlu0.b32.cont [15/16] 0.0, 128
    %1424 = vxpose.xlu0.b32.end [16/16] 0.0, 128
    %v1425 = vpop.trf.xlu0
    %v1426 = vpop.trf.xlu0
    %v1427 = vpop.trf.xlu0
    %v1428 = vpop.trf.xlu0
    %v1429 = vpop.trf.xlu0
    %v1430 = vpop.trf.xlu0
    %v1431 = vpop.trf.xlu0
    %v1432 = vpop.trf.xlu0
    %v1433 = vpop.trf.xlu0
    %v1434 = vpop.trf.xlu0
    %v1435 = vpop.trf.xlu0
    %v1436 = vpop.trf.xlu0
    %v1437 = vpop.trf.xlu0
    %v1438 = vpop.trf.xlu0
    %v1439 = vpop.trf.xlu0
    %v1440 = vpop.trf.xlu0
    %1441 = vxpose.xlu0.b32.start [1/16] %v597, 128
    %1442 = vxpose.xlu0.b32.cont [2/16] %v598, 128
    %1443 = vxpose.xlu0.b32.cont [3/16] 0.0, 128
    %1444 = vxpose.xlu0.b32.cont [4/16] 0.0, 128
    %1445 = vxpose.xlu0.b32.cont [5/16] 0.0, 128
    %1446 = vxpose.xlu0.b32.cont [6/16] 0.0, 128
    %1447 = vxpose.xlu0.b32.cont [7/16] 0.0, 128
    %1448 = vxpose.xlu0.b32.cont [8/16] 0.0, 128
    %1449 = vxpose.xlu0.b32.cont [9/16] 0.0, 128
    %1450 = vxpose.xlu0.b32.cont [10/16] 0.0, 128
    %1451 = vxpose.xlu0.b32.cont [11/16] 0.0, 128
    %1452 = vxpose.xlu0.b32.cont [12/16] 0.0, 128
    %1453 = vxpose.xlu0.b32.cont [13/16] 0.0, 128
    %1454 = vxpose.xlu0.b32.cont [14/16] 0.0, 128
    %1455 = vxpose.xlu0.b32.cont [15/16] 0.0, 128
    %1456 = vxpose.xlu0.b32.end [16/16] 0.0, 128
    %v1457 = vpop.trf.xlu0
    %v1458 = vpop.trf.xlu0
    %v1459 = vpop.trf.xlu0
    %v1460 = vpop.trf.xlu0
    %v1461 = vpop.trf.xlu0
    %v1462 = vpop.trf.xlu0
    %v1463 = vpop.trf.xlu0
    %v1464 = vpop.trf.xlu0
    %v1465 = vpop.trf.xlu0
    %v1466 = vpop.trf.xlu0
    %v1467 = vpop.trf.xlu0
    %v1468 = vpop.trf.xlu0
    %v1469 = vpop.trf.xlu0
    %v1470 = vpop.trf.xlu0
    %v1471 = vpop.trf.xlu0
    %v1472 = vpop.trf.xlu0
    %1473 = vxpose.xlu0.b32.start [1/16] %v599, 128
    %1474 = vxpose.xlu0.b32.cont [2/16] %v600, 128
    %1475 = vxpose.xlu0.b32.cont [3/16] 0.0, 128
    %1476 = vxpose.xlu0.b32.cont [4/16] 0.0, 128
    %1477 = vxpose.xlu0.b32.cont [5/16] 0.0, 128
    %1478 = vxpose.xlu0.b32.cont [6/16] 0.0, 128
    %1479 = vxpose.xlu0.b32.cont [7/16] 0.0, 128
    %1480 = vxpose.xlu0.b32.cont [8/16] 0.0, 128
    %1481 = vxpose.xlu0.b32.cont [9/16] 0.0, 128
    %1482 = vxpose.xlu0.b32.cont [10/16] 0.0, 128
    %1483 = vxpose.xlu0.b32.cont [11/16] 0.0, 128
    %1484 = vxpose.xlu0.b32.cont [12/16] 0.0, 128
    %1485 = vxpose.xlu0.b32.cont [13/16] 0.0, 128
    %1486 = vxpose.xlu0.b32.cont [14/16] 0.0, 128
    %1487 = vxpose.xlu0.b32.cont [15/16] 0.0, 128
    %1488 = vxpose.xlu0.b32.end [16/16] 0.0, 128
    %v1489 = vpop.trf.xlu0
    %v1490 = vpop.trf.xlu0
    %v1491 = vpop.trf.xlu0
    %v1492 = vpop.trf.xlu0
    %v1493 = vpop.trf.xlu0
    %v1494 = vpop.trf.xlu0
    %v1495 = vpop.trf.xlu0
    %v1496 = vpop.trf.xlu0
    %v1497 = vpop.trf.xlu0
    %v1498 = vpop.trf.xlu0
    %v1499 = vpop.trf.xlu0
    %v1500 = vpop.trf.xlu0
    %v1501 = vpop.trf.xlu0
    %v1502 = vpop.trf.xlu0
    %v1503 = vpop.trf.xlu0
    %v1504 = vpop.trf.xlu0
    %1505 = vxpose.xlu0.b32.start [1/16] %v601, 128
    %1506 = vxpose.xlu0.b32.cont [2/16] %v602, 128
    %1507 = vxpose.xlu0.b32.cont [3/16] 0.0, 128
    %1508 = vxpose.xlu0.b32.cont [4/16] 0.0, 128
    %1509 = vxpose.xlu0.b32.cont [5/16] 0.0, 128
    %1510 = vxpose.xlu0.b32.cont [6/16] 0.0, 128
    %1511 = vxpose.xlu0.b32.cont [7/16] 0.0, 128
    %1512 = vxpose.xlu0.b32.cont [8/16] 0.0, 128
    %1513 = vxpose.xlu0.b32.cont [9/16] 0.0, 128
    %1514 = vxpose.xlu0.b32.cont [10/16] 0.0, 128
    %1515 = vxpose.xlu0.b32.cont [11/16] 0.0, 128
    %1516 = vxpose.xlu0.b32.cont [12/16] 0.0, 128
    %1517 = vxpose.xlu0.b32.cont [13/16] 0.0, 128
    %1518 = vxpose.xlu0.b32.cont [14/16] 0.0, 128
    %1519 = vxpose.xlu0.b32.cont [15/16] 0.0, 128
    %1520 = vxpose.xlu0.b32.end [16/16] 0.0, 128
    %v1521 = vpop.trf.xlu0
    %v1522 = vpop.trf.xlu0
    %v1523 = vpop.trf.xlu0
    %v1524 = vpop.trf.xlu0
    %v1525 = vpop.trf.xlu0
    %v1526 = vpop.trf.xlu0
    %v1527 = vpop.trf.xlu0
    %v1528 = vpop.trf.xlu0
    %v1529 = vpop.trf.xlu0
    %v1530 = vpop.trf.xlu0
    %v1531 = vpop.trf.xlu0
    %v1532 = vpop.trf.xlu0
    %v1533 = vpop.trf.xlu0
    %v1534 = vpop.trf.xlu0
    %v1535 = vpop.trf.xlu0
    %v1536 = vpop.trf.xlu0
    %1537 = vxpose.xlu0.b32.start [1/16] %v603, 128
    %1538 = vxpose.xlu0.b32.cont [2/16] %v604, 128
    %1539 = vxpose.xlu0.b32.cont [3/16] 0.0, 128
    %1540 = vxpose.xlu0.b32.cont [4/16] 0.0, 128
    %1541 = vxpose.xlu0.b32.cont [5/16] 0.0, 128
    %1542 = vxpose.xlu0.b32.cont [6/16] 0.0, 128
    %1543 = vxpose.xlu0.b32.cont [7/16] 0.0, 128
    %1544 = vxpose.xlu0.b32.cont [8/16] 0.0, 128
    %1545 = vxpose.xlu0.b32.cont [9/16] 0.0, 128
    %1546 = vxpose.xlu0.b32.cont [10/16] 0.0, 128
    %1547 = vxpose.xlu0.b32.cont [11/16] 0.0, 128
    %1548 = vxpose.xlu0.b32.cont [12/16] 0.0, 128
    %1549 = vxpose.xlu0.b32.cont [13/16] 0.0, 128
    %1550 = vxpose.xlu0.b32.cont [14/16] 0.0, 128
    %1551 = vxpose.xlu0.b32.cont [15/16] 0.0, 128
    %1552 = vxpose.xlu0.b32.end [16/16] 0.0, 128
    %v1553 = vpop.trf.xlu0
    %v1554 = vpop.trf.xlu0
    %v1555 = vpop.trf.xlu0
    %v1556 = vpop.trf.xlu0
    %v1557 = vpop.trf.xlu0
    %v1558 = vpop.trf.xlu0
    %v1559 = vpop.trf.xlu0
    %v1560 = vpop.trf.xlu0
    %v1561 = vpop.trf.xlu0
    %v1562 = vpop.trf.xlu0
    %v1563 = vpop.trf.xlu0
    %v1564 = vpop.trf.xlu0
    %v1565 = vpop.trf.xlu0
    %v1566 = vpop.trf.xlu0
    %v1567 = vpop.trf.xlu0
    %v1568 = vpop.trf.xlu0
    %1569 = vxpose.xlu0.b32.start [1/16] %v605, 128
    %1570 = vxpose.xlu0.b32.cont [2/16] %v606, 128
    %1571 = vxpose.xlu0.b32.cont [3/16] 0.0, 128
    %1572 = vxpose.xlu0.b32.cont [4/16] 0.0, 128
    %1573 = vxpose.xlu0.b32.cont [5/16] 0.0, 128
    %1574 = vxpose.xlu0.b32.cont [6/16] 0.0, 128
    %1575 = vxpose.xlu0.b32.cont [7/16] 0.0, 128
    %1576 = vxpose.xlu0.b32.cont [8/16] 0.0, 128
    %1577 = vxpose.xlu0.b32.cont [9/16] 0.0, 128
    %1578 = vxpose.xlu0.b32.cont [10/16] 0.0, 128
    %1579 = vxpose.xlu0.b32.cont [11/16] 0.0, 128
    %1580 = vxpose.xlu0.b32.cont [12/16] 0.0, 128
    %1581 = vxpose.xlu0.b32.cont [13/16] 0.0, 128
    %1582 = vxpose.xlu0.b32.cont [14/16] 0.0, 128
    %1583 = vxpose.xlu0.b32.cont [15/16] 0.0, 128
    %1584 = vxpose.xlu0.b32.end [16/16] 0.0, 128
    %v1585 = vpop.trf.xlu0
    %v1586 = vpop.trf.xlu0
    %v1587 = vpop.trf.xlu0
    %v1588 = vpop.trf.xlu0
    %v1589 = vpop.trf.xlu0
    %v1590 = vpop.trf.xlu0
    %v1591 = vpop.trf.xlu0
    %v1592 = vpop.trf.xlu0
    %v1593 = vpop.trf.xlu0
    %v1594 = vpop.trf.xlu0
    %v1595 = vpop.trf.xlu0
    %v1596 = vpop.trf.xlu0
    %v1597 = vpop.trf.xlu0
    %v1598 = vpop.trf.xlu0
    %v1599 = vpop.trf.xlu0
    %v1600 = vpop.trf.xlu0
    %1601 = vxpose.xlu0.b32.start [1/16] %v607, 128
    %1602 = vxpose.xlu0.b32.cont [2/16] %v608, 128
    %1603 = vxpose.xlu0.b32.cont [3/16] 0.0, 128
    %1604 = vxpose.xlu0.b32.cont [4/16] 0.0, 128
    %1605 = vxpose.xlu0.b32.cont [5/16] 0.0, 128
    %1606 = vxpose.xlu0.b32.cont [6/16] 0.0, 128
    %1607 = vxpose.xlu0.b32.cont [7/16] 0.0, 128
    %1608 = vxpose.xlu0.b32.cont [8/16] 0.0, 128
    %1609 = vxpose.xlu0.b32.cont [9/16] 0.0, 128
    %1610 = vxpose.xlu0.b32.cont [10/16] 0.0, 128
    %1611 = vxpose.xlu0.b32.cont [11/16] 0.0, 128
    %1612 = vxpose.xlu0.b32.cont [12/16] 0.0, 128
    %1613 = vxpose.xlu0.b32.cont [13/16] 0.0, 128
    %1614 = vxpose.xlu0.b32.cont [14/16] 0.0, 128
    %1615 = vxpose.xlu0.b32.cont [15/16] 0.0, 128
    %1616 = vxpose.xlu0.b32.end [16/16] 0.0, 128
    %v1617 = vpop.trf.xlu0
    %v1618 = vpop.trf.xlu0
    %v1619 = vpop.trf.xlu0
    %v1620 = vpop.trf.xlu0
    %v1621 = vpop.trf.xlu0
    %v1622 = vpop.trf.xlu0
    %v1623 = vpop.trf.xlu0
    %v1624 = vpop.trf.xlu0
    %v1625 = vpop.trf.xlu0
    %v1626 = vpop.trf.xlu0
    %v1627 = vpop.trf.xlu0
    %v1628 = vpop.trf.xlu0
    %v1629 = vpop.trf.xlu0
    %v1630 = vpop.trf.xlu0
    %v1631 = vpop.trf.xlu0
    %v1632 = vpop.trf.xlu0
    %v1633 = vlaneseq
    %v1634 = vand.u32 %v1633, 127
    %v1635 = vld [vmem:[%s3] sm:$0xff]
    %v1636 = vld [vmem:[%s4] sm:$0x1]
    %v1638 = vlaneseq
    %v1639 = vshrl.u32 %v1638, 7
    %v1640 = vsub.s32 0, %v1639
    %v1641 = vrot.slane %v1636, %v1640
    %vm1643 = vcmask 64512
    %v1645 = vsel %vm1643, %v625, 0
    %v1648 = vsel %vm1643, %v626, 0
    %v1651 = vsel %vm1643, %v657, 0
    %v1654 = vsel %vm1643, %v658, 0
    %v1657 = vsel %vm1643, %v689, 0
    %v1660 = vsel %vm1643, %v690, 0
    %v1663 = vsel %vm1643, %v721, 0
    %v1666 = vsel %vm1643, %v722, 0
    %v1669 = vsel %vm1643, %v753, 0
    %v1672 = vsel %vm1643, %v754, 0
    %v1675 = vsel %vm1643, %v785, 0
    %v1678 = vsel %vm1643, %v786, 0
    %v1681 = vsel %vm1643, %v817, 0
    %v1684 = vsel %vm1643, %v818, 0
    %v1687 = vsel %vm1643, %v849, 0
    %v1690 = vsel %vm1643, %v850, 0
    %v1693 = vsel %vm1643, %v881, 0
    %v1696 = vsel %vm1643, %v882, 0
    %v1699 = vsel %vm1643, %v913, 0
    %v1702 = vsel %vm1643, %v914, 0
    %v1705 = vsel %vm1643, %v945, 0
    %v1708 = vsel %vm1643, %v946, 0
    %v1711 = vsel %vm1643, %v977, 0
    %v1714 = vsel %vm1643, %v978, 0
    %v1717 = vsel %vm1643, %v1009, 0
    %v1720 = vsel %vm1643, %v1010, 0
    %v1723 = vsel %vm1643, %v1041, 0
    %v1726 = vsel %vm1643, %v1042, 0
    %v1729 = vsel %vm1643, %v1073, 0
    %v1732 = vsel %vm1643, %v1074, 0
    %v1735 = vsel %vm1643, %v1105, 0
    %v1738 = vsel %vm1643, %v1106, 0
    %v1741 = vsel %vm1643, %v1137, 0
    %v1744 = vsel %vm1643, %v1138, 0
    %v1747 = vsel %vm1643, %v1169, 0
    %v1750 = vsel %vm1643, %v1170, 0
    %v1753 = vsel %vm1643, %v1201, 0
    %v1756 = vsel %vm1643, %v1202, 0
    %v1759 = vsel %vm1643, %v1233, 0
    %v1762 = vsel %vm1643, %v1234, 0
    %v1765 = vsel %vm1643, %v1265, 0
    %v1768 = vsel %vm1643, %v1266, 0
    %v1771 = vsel %vm1643, %v1297, 0
    %v1774 = vsel %vm1643, %v1298, 0
    %v1777 = vsel %vm1643, %v1329, 0
    %v1780 = vsel %vm1643, %v1330, 0
    %v1783 = vsel %vm1643, %v1361, 0
    %v1786 = vsel %vm1643, %v1362, 0
    %v1789 = vsel %vm1643, %v1393, 0
    %v1792 = vsel %vm1643, %v1394, 0
    %v1795 = vsel %vm1643, %v1425, 0
    %v1798 = vsel %vm1643, %v1426, 0
    %v1801 = vsel %vm1643, %v1457, 0
    %v1804 = vsel %vm1643, %v1458, 0
    %v1807 = vsel %vm1643, %v1489, 0
    %v1810 = vsel %vm1643, %v1490, 0
    %v1813 = vsel %vm1643, %v1521, 0
    %v1816 = vsel %vm1643, %v1522, 0
    %v1819 = vsel %vm1643, %v1553, 0
    %v1822 = vsel %vm1643, %v1554, 0
    %v1825 = vsel %vm1643, %v1585, 0
    %v1828 = vsel %vm1643, %v1586, 0
    %v1831 = vsel %vm1643, %v1617, 0
    %v1834 = vsel %vm1643, %v1618, 0
    %1836 = vmatprep.subr.mxu0 0.0
    %1837 = vmatpush1.msra.mxu0 0.0
    %1838 = vmatprep.subr.mxu0 0.0
    %1839 = vmatpush1.msra.mxu0 0.0
    %1840 = vmatprep.subr.mxu0 0.0
    %1841 = vmatpush1.msra.mxu0 0.0
    %1842 = vmatprep.subr.mxu0 0.0
    %1843 = vmatpush1.msra.mxu0 0.0
    %1844 = vmatprep.subr.mxu0 0.0
    %1845 = vmatpush1.msra.mxu0 0.0
    %1846 = vmatprep.subr.mxu0 0.0
    %1847 = vmatpush1.msra.mxu0 0.0
    %1848 = vmatprep.subr.mxu0 0.0
    %1849 = vmatpush1.msra.mxu0 0.0
    %1850 = vmatprep.subr.mxu0 0.0
    %1851 = vmatpush1.msra.mxu0 0.0
    %1852 = vmatprep.subr.mxu0 0.0
    %1853 = vmatpush1.msra.mxu0 0.0
    %1854 = vmatprep.subr.mxu0 0.0
    %1855 = vmatpush1.msra.mxu0 0.0
    %1856 = vmatprep.subr.mxu0 0.0
    %1857 = vmatpush1.msra.mxu0 0.0
    %1858 = vmatprep.subr.mxu0 0.0
    %1859 = vmatpush1.msra.mxu0 0.0
    %1860 = vmatprep.subr.mxu0 0.0
    %1861 = vmatpush1.msra.mxu0 0.0
    %1862 = vmatprep.subr.mxu0 0.0
    %1863 = vmatpush1.msra.mxu0 0.0
    %1864 = vmatprep.subr.mxu0 0.0
    %1865 = vmatpush1.msra.mxu0 0.0
    %1866 = vmatprep.subr.mxu0 0.0
    %1867 = vmatpush1.msra.mxu0 %v1635
    %1868 = vmatprep.subr.mxu0 0.0
    %1869 = vmatpush2.msra.mxu0 0.0
    %1870 = vmatprep.subr.mxu0 0.0
    %1871 = vmatpush2.msra.mxu0 0.0
    %1872 = vmatprep.subr.mxu0 0.0
    %1873 = vmatpush2.msra.mxu0 0.0
    %1874 = vmatprep.subr.mxu0 0.0
    %1875 = vmatpush2.msra.mxu0 0.0
    %1876 = vmatprep.subr.mxu0 0.0
    %1877 = vmatpush2.msra.mxu0 0.0
    %1878 = vmatprep.subr.mxu0 0.0
    %1879 = vmatpush2.msra.mxu0 0.0
    %1880 = vmatprep.subr.mxu0 0.0
    %1881 = vmatpush2.msra.mxu0 0.0
    %1882 = vmatprep.subr.mxu0 0.0
    %1883 = vmatpush2.msra.mxu0 0.0
    %1884 = vmatprep.subr.mxu0 0.0
    %1885 = vmatpush2.msra.mxu0 0.0
    %1886 = vmatprep.subr.mxu0 0.0
    %1887 = vmatpush2.msra.mxu0 0.0
    %1888 = vmatprep.subr.mxu0 0.0
    %1889 = vmatpush2.msra.mxu0 0.0
    %1890 = vmatprep.subr.mxu0 0.0
    %1891 = vmatpush2.msra.mxu0 0.0
    %1892 = vmatprep.subr.mxu0 0.0
    %1893 = vmatpush2.msra.mxu0 0.0
    %1894 = vmatprep.subr.mxu0 0.0
    %1895 = vmatpush2.msra.mxu0 0.0
    %1896 = vmatprep.subr.mxu0 0.0
    %1897 = vmatpush2.msra.mxu0 0.0
    %1898 = vmatprep.subr.mxu0 0.0
    %1899 = vmatpush2.msra.mxu0 0.0
    %1900 = vmatprep.mubr.f32.mxu0 0.0
    %1901 = vmatmul.mubr.f32.gmra.mxu0 %v1645
    %v1902 = vpop.f32.mrf.mxu0
    %v1903 = vadd.f32 %v1641, %v1902
    %v1904 = vpop.f32.mrf.mxu0
    %1905 = vmatprep.mubr.f32.mxu0 0.0
    %1906 = vmatmul.mubr.f32.gmra.mxu0 %v1648
    %v1907 = vpop.f32.mrf.mxu0
    %v1908 = vadd.f32 %v1641, %v1907
    %v1909 = vpop.f32.mrf.mxu0
    %1910 = vmatprep.mubr.f32.mxu0 0.0
    %1911 = vmatmul.mubr.f32.gmra.mxu0 %v1651
    %v1912 = vpop.f32.mrf.mxu0
    %v1913 = vadd.f32 %v1641, %v1912
    %v1914 = vpop.f32.mrf.mxu0
    %1915 = vmatprep.mubr.f32.mxu0 0.0
    %1916 = vmatmul.mubr.f32.gmra.mxu0 %v1654
    %v1917 = vpop.f32.mrf.mxu0
    %v1918 = vadd.f32 %v1641, %v1917
    %v1919 = vpop.f32.mrf.mxu0
    %1920 = vmatprep.mubr.f32.mxu0 0.0
    %1921 = vmatmul.mubr.f32.gmra.mxu0 %v1657
    %v1922 = vpop.f32.mrf.mxu0
    %v1923 = vadd.f32 %v1641, %v1922
    %v1924 = vpop.f32.mrf.mxu0
    %1925 = vmatprep.mubr.f32.mxu0 0.0
    %1926 = vmatmul.mubr.f32.gmra.mxu0 %v1660
    %v1927 = vpop.f32.mrf.mxu0
    %v1928 = vadd.f32 %v1641, %v1927
    %v1929 = vpop.f32.mrf.mxu0
    %1930 = vmatprep.mubr.f32.mxu0 0.0
    %1931 = vmatmul.mubr.f32.gmra.mxu0 %v1663
    %v1932 = vpop.f32.mrf.mxu0
    %v1933 = vadd.f32 %v1641, %v1932
    %v1934 = vpop.f32.mrf.mxu0
    %1935 = vmatprep.mubr.f32.mxu0 0.0
    %1936 = vmatmul.mubr.f32.gmra.mxu0 %v1666
    %v1937 = vpop.f32.mrf.mxu0
    %v1938 = vadd.f32 %v1641, %v1937
    %v1939 = vpop.f32.mrf.mxu0
    %1940 = vmatprep.mubr.f32.mxu0 0.0
    %1941 = vmatmul.mubr.f32.gmra.mxu0 %v1669
    %v1942 = vpop.f32.mrf.mxu0
    %v1943 = vadd.f32 %v1641, %v1942
    %v1944 = vpop.f32.mrf.mxu0
    %1945 = vmatprep.mubr.f32.mxu0 0.0
    %1946 = vmatmul.mubr.f32.gmra.mxu0 %v1672
    %v1947 = vpop.f32.mrf.mxu0
    %v1948 = vadd.f32 %v1641, %v1947
    %v1949 = vpop.f32.mrf.mxu0
    %1950 = vmatprep.mubr.f32.mxu0 0.0
    %1951 = vmatmul.mubr.f32.gmra.mxu0 %v1675
    %v1952 = vpop.f32.mrf.mxu0
    %v1953 = vadd.f32 %v1641, %v1952
    %v1954 = vpop.f32.mrf.mxu0
    %1955 = vmatprep.mubr.f32.mxu0 0.0
    %1956 = vmatmul.mubr.f32.gmra.mxu0 %v1678
    %v1957 = vpop.f32.mrf.mxu0
    %v1958 = vadd.f32 %v1641, %v1957
    %v1959 = vpop.f32.mrf.mxu0
    %1960 = vmatprep.mubr.f32.mxu0 0.0
    %1961 = vmatmul.mubr.f32.gmra.mxu0 %v1681
    %v1962 = vpop.f32.mrf.mxu0
    %v1963 = vadd.f32 %v1641, %v1962
    %v1964 = vpop.f32.mrf.mxu0
    %1965 = vmatprep.mubr.f32.mxu0 0.0
    %1966 = vmatmul.mubr.f32.gmra.mxu0 %v1684
    %v1967 = vpop.f32.mrf.mxu0
    %v1968 = vadd.f32 %v1641, %v1967
    %v1969 = vpop.f32.mrf.mxu0
    %1970 = vmatprep.mubr.f32.mxu0 0.0
    %1971 = vmatmul.mubr.f32.gmra.mxu0 %v1687
    %v1972 = vpop.f32.mrf.mxu0
    %v1973 = vadd.f32 %v1641, %v1972
    %v1974 = vpop.f32.mrf.mxu0
    %1975 = vmatprep.mubr.f32.mxu0 0.0
    %1976 = vmatmul.mubr.f32.gmra.mxu0 %v1690
    %v1977 = vpop.f32.mrf.mxu0
    %v1978 = vadd.f32 %v1641, %v1977
    %v1979 = vpop.f32.mrf.mxu0
    %1980 = vmatprep.mubr.f32.mxu0 0.0
    %1981 = vmatmul.mubr.f32.gmra.mxu0 %v1693
    %v1982 = vpop.f32.mrf.mxu0
    %v1983 = vadd.f32 %v1641, %v1982
    %v1984 = vpop.f32.mrf.mxu0
    %1985 = vmatprep.mubr.f32.mxu0 0.0
    %1986 = vmatmul.mubr.f32.gmra.mxu0 %v1696
    %v1987 = vpop.f32.mrf.mxu0
    %v1988 = vadd.f32 %v1641, %v1987
    %v1989 = vpop.f32.mrf.mxu0
    %1990 = vmatprep.mubr.f32.mxu0 0.0
    %1991 = vmatmul.mubr.f32.gmra.mxu0 %v1699
    %v1992 = vpop.f32.mrf.mxu0
    %v1993 = vadd.f32 %v1641, %v1992
    %v1994 = vpop.f32.mrf.mxu0
    %1995 = vmatprep.mubr.f32.mxu0 0.0
    %1996 = vmatmul.mubr.f32.gmra.mxu0 %v1702
    %v1997 = vpop.f32.mrf.mxu0
    %v1998 = vadd.f32 %v1641, %v1997
    %v1999 = vpop.f32.mrf.mxu0
    %2000 = vmatprep.mubr.f32.mxu0 0.0
    %2001 = vmatmul.mubr.f32.gmra.mxu0 %v1705
    %v2002 = vpop.f32.mrf.mxu0
    %v2003 = vadd.f32 %v1641, %v2002
    %v2004 = vpop.f32.mrf.mxu0
    %2005 = vmatprep.mubr.f32.mxu0 0.0
    %2006 = vmatmul.mubr.f32.gmra.mxu0 %v1708
    %v2007 = vpop.f32.mrf.mxu0
    %v2008 = vadd.f32 %v1641, %v2007
    %v2009 = vpop.f32.mrf.mxu0
    %2010 = vmatprep.mubr.f32.mxu0 0.0
    %2011 = vmatmul.mubr.f32.gmra.mxu0 %v1711
    %v2012 = vpop.f32.mrf.mxu0
    %v2013 = vadd.f32 %v1641, %v2012
    %v2014 = vpop.f32.mrf.mxu0
    %2015 = vmatprep.mubr.f32.mxu0 0.0
    %2016 = vmatmul.mubr.f32.gmra.mxu0 %v1714
    %v2017 = vpop.f32.mrf.mxu0
    %v2018 = vadd.f32 %v1641, %v2017
    %v2019 = vpop.f32.mrf.mxu0
    %2020 = vmatprep.mubr.f32.mxu0 0.0
    %2021 = vmatmul.mubr.f32.gmra.mxu0 %v1717
    %v2022 = vpop.f32.mrf.mxu0
    %v2023 = vadd.f32 %v1641, %v2022
    %v2024 = vpop.f32.mrf.mxu0
    %2025 = vmatprep.mubr.f32.mxu0 0.0
    %2026 = vmatmul.mubr.f32.gmra.mxu0 %v1720
    %v2027 = vpop.f32.mrf.mxu0
    %v2028 = vadd.f32 %v1641, %v2027
    %v2029 = vpop.f32.mrf.mxu0
    %2030 = vmatprep.mubr.f32.mxu0 0.0
    %2031 = vmatmul.mubr.f32.gmra.mxu0 %v1723
    %v2032 = vpop.f32.mrf.mxu0
    %v2033 = vadd.f32 %v1641, %v2032
    %v2034 = vpop.f32.mrf.mxu0
    %2035 = vmatprep.mubr.f32.mxu0 0.0
    %2036 = vmatmul.mubr.f32.gmra.mxu0 %v1726
    %v2037 = vpop.f32.mrf.mxu0
    %v2038 = vadd.f32 %v1641, %v2037
    %v2039 = vpop.f32.mrf.mxu0
    %2040 = vmatprep.mubr.f32.mxu0 0.0
    %2041 = vmatmul.mubr.f32.gmra.mxu0 %v1729
    %v2042 = vpop.f32.mrf.mxu0
    %v2043 = vadd.f32 %v1641, %v2042
    %v2044 = vpop.f32.mrf.mxu0
    %2045 = vmatprep.mubr.f32.mxu0 0.0
    %2046 = vmatmul.mubr.f32.gmra.mxu0 %v1732
    %v2047 = vpop.f32.mrf.mxu0
    %v2048 = vadd.f32 %v1641, %v2047
    %v2049 = vpop.f32.mrf.mxu0
    %2050 = vmatprep.mubr.f32.mxu0 0.0
    %2051 = vmatmul.mubr.f32.gmra.mxu0 %v1735
    %v2052 = vpop.f32.mrf.mxu0
    %v2053 = vadd.f32 %v1641, %v2052
    %v2054 = vpop.f32.mrf.mxu0
    %2055 = vmatprep.mubr.f32.mxu0 0.0
    %2056 = vmatmul.mubr.f32.gmra.mxu0 %v1738
    %v2057 = vpop.f32.mrf.mxu0
    %v2058 = vadd.f32 %v1641, %v2057
    %v2059 = vpop.f32.mrf.mxu0
    %2060 = vmatprep.mubr.f32.mxu0 0.0
    %2061 = vmatmul.mubr.f32.gmra.mxu0 %v1741
    %v2062 = vpop.f32.mrf.mxu0
    %v2063 = vadd.f32 %v1641, %v2062
    %v2064 = vpop.f32.mrf.mxu0
    %2065 = vmatprep.mubr.f32.mxu0 0.0
    %2066 = vmatmul.mubr.f32.gmra.mxu0 %v1744
    %v2067 = vpop.f32.mrf.mxu0
    %v2068 = vadd.f32 %v1641, %v2067
    %v2069 = vpop.f32.mrf.mxu0
    %2070 = vmatprep.mubr.f32.mxu0 0.0
    %2071 = vmatmul.mubr.f32.gmra.mxu0 %v1747
    %v2072 = vpop.f32.mrf.mxu0
    %v2073 = vadd.f32 %v1641, %v2072
    %v2074 = vpop.f32.mrf.mxu0
    %2075 = vmatprep.mubr.f32.mxu0 0.0
    %2076 = vmatmul.mubr.f32.gmra.mxu0 %v1750
    %v2077 = vpop.f32.mrf.mxu0
    %v2078 = vadd.f32 %v1641, %v2077
    %v2079 = vpop.f32.mrf.mxu0
    %2080 = vmatprep.mubr.f32.mxu0 0.0
    %2081 = vmatmul.mubr.f32.gmra.mxu0 %v1753
    %v2082 = vpop.f32.mrf.mxu0
    %v2083 = vadd.f32 %v1641, %v2082
    %v2084 = vpop.f32.mrf.mxu0
    %2085 = vmatprep.mubr.f32.mxu0 0.0
    %2086 = vmatmul.mubr.f32.gmra.mxu0 %v1756
    %v2087 = vpop.f32.mrf.mxu0
    %v2088 = vadd.f32 %v1641, %v2087
    %v2089 = vpop.f32.mrf.mxu0
    %2090 = vmatprep.mubr.f32.mxu0 0.0
    %2091 = vmatmul.mubr.f32.gmra.mxu0 %v1759
    %v2092 = vpop.f32.mrf.mxu0
    %v2093 = vadd.f32 %v1641, %v2092
    %v2094 = vpop.f32.mrf.mxu0
    %2095 = vmatprep.mubr.f32.mxu0 0.0
    %2096 = vmatmul.mubr.f32.gmra.mxu0 %v1762
    %v2097 = vpop.f32.mrf.mxu0
    %v2098 = vadd.f32 %v1641, %v2097
    %v2099 = vpop.f32.mrf.mxu0
    %2100 = vmatprep.mubr.f32.mxu0 0.0
    %2101 = vmatmul.mubr.f32.gmra.mxu0 %v1765
    %v2102 = vpop.f32.mrf.mxu0
    %v2103 = vadd.f32 %v1641, %v2102
    %v2104 = vpop.f32.mrf.mxu0
    %2105 = vmatprep.mubr.f32.mxu0 0.0
    %2106 = vmatmul.mubr.f32.gmra.mxu0 %v1768
    %v2107 = vpop.f32.mrf.mxu0
    %v2108 = vadd.f32 %v1641, %v2107
    %v2109 = vpop.f32.mrf.mxu0
    %2110 = vmatprep.mubr.f32.mxu0 0.0
    %2111 = vmatmul.mubr.f32.gmra.mxu0 %v1771
    %v2112 = vpop.f32.mrf.mxu0
    %v2113 = vadd.f32 %v1641, %v2112
    %v2114 = vpop.f32.mrf.mxu0
    %2115 = vmatprep.mubr.f32.mxu0 0.0
    %2116 = vmatmul.mubr.f32.gmra.mxu0 %v1774
    %v2117 = vpop.f32.mrf.mxu0
    %v2118 = vadd.f32 %v1641, %v2117
    %v2119 = vpop.f32.mrf.mxu0
    %2120 = vmatprep.mubr.f32.mxu0 0.0
    %2121 = vmatmul.mubr.f32.gmra.mxu0 %v1777
    %v2122 = vpop.f32.mrf.mxu0
    %v2123 = vadd.f32 %v1641, %v2122
    %v2124 = vpop.f32.mrf.mxu0
    %2125 = vmatprep.mubr.f32.mxu0 0.0
    %2126 = vmatmul.mubr.f32.gmra.mxu0 %v1780
    %v2127 = vpop.f32.mrf.mxu0
    %v2128 = vadd.f32 %v1641, %v2127
    %v2129 = vpop.f32.mrf.mxu0
    %2130 = vmatprep.mubr.f32.mxu0 0.0
    %2131 = vmatmul.mubr.f32.gmra.mxu0 %v1783
    %v2132 = vpop.f32.mrf.mxu0
    %v2133 = vadd.f32 %v1641, %v2132
    %v2134 = vpop.f32.mrf.mxu0
    %2135 = vmatprep.mubr.f32.mxu0 0.0
    %2136 = vmatmul.mubr.f32.gmra.mxu0 %v1786
    %v2137 = vpop.f32.mrf.mxu0
    %v2138 = vadd.f32 %v1641, %v2137
    %v2139 = vpop.f32.mrf.mxu0
    %2140 = vmatprep.mubr.f32.mxu0 0.0
    %2141 = vmatmul.mubr.f32.gmra.mxu0 %v1789
    %v2142 = vpop.f32.mrf.mxu0
    %v2143 = vadd.f32 %v1641, %v2142
    %v2144 = vpop.f32.mrf.mxu0
    %2145 = vmatprep.mubr.f32.mxu0 0.0
    %2146 = vmatmul.mubr.f32.gmra.mxu0 %v1792
    %v2147 = vpop.f32.mrf.mxu0
    %v2148 = vadd.f32 %v1641, %v2147
    %v2149 = vpop.f32.mrf.mxu0
    %2150 = vmatprep.mubr.f32.mxu0 0.0
    %2151 = vmatmul.mubr.f32.gmra.mxu0 %v1795
    %v2152 = vpop.f32.mrf.mxu0
    %v2153 = vadd.f32 %v1641, %v2152
    %v2154 = vpop.f32.mrf.mxu0
    %2155 = vmatprep.mubr.f32.mxu0 0.0
    %2156 = vmatmul.mubr.f32.gmra.mxu0 %v1798
    %v2157 = vpop.f32.mrf.mxu0
    %v2158 = vadd.f32 %v1641, %v2157
    %v2159 = vpop.f32.mrf.mxu0
    %2160 = vmatprep.mubr.f32.mxu0 0.0
    %2161 = vmatmul.mubr.f32.gmra.mxu0 %v1801
    %v2162 = vpop.f32.mrf.mxu0
    %v2163 = vadd.f32 %v1641, %v2162
    %v2164 = vpop.f32.mrf.mxu0
    %2165 = vmatprep.mubr.f32.mxu0 0.0
    %2166 = vmatmul.mubr.f32.gmra.mxu0 %v1804
    %v2167 = vpop.f32.mrf.mxu0
    %v2168 = vadd.f32 %v1641, %v2167
    %v2169 = vpop.f32.mrf.mxu0
    %2170 = vmatprep.mubr.f32.mxu0 0.0
    %2171 = vmatmul.mubr.f32.gmra.mxu0 %v1807
    %v2172 = vpop.f32.mrf.mxu0
    %v2173 = vadd.f32 %v1641, %v2172
    %v2174 = vpop.f32.mrf.mxu0
    %2175 = vmatprep.mubr.f32.mxu0 0.0
    %2176 = vmatmul.mubr.f32.gmra.mxu0 %v1810
    %v2177 = vpop.f32.mrf.mxu0
    %v2178 = vadd.f32 %v1641, %v2177
    %v2179 = vpop.f32.mrf.mxu0
    %2180 = vmatprep.mubr.f32.mxu0 0.0
    %2181 = vmatmul.mubr.f32.gmra.mxu0 %v1813
    %v2182 = vpop.f32.mrf.mxu0
    %v2183 = vadd.f32 %v1641, %v2182
    %v2184 = vpop.f32.mrf.mxu0
    %2185 = vmatprep.mubr.f32.mxu0 0.0
    %2186 = vmatmul.mubr.f32.gmra.mxu0 %v1816
    %v2187 = vpop.f32.mrf.mxu0
    %v2188 = vadd.f32 %v1641, %v2187
    %v2189 = vpop.f32.mrf.mxu0
    %2190 = vmatprep.mubr.f32.mxu0 0.0
    %2191 = vmatmul.mubr.f32.gmra.mxu0 %v1819
    %v2192 = vpop.f32.mrf.mxu0
    %v2193 = vadd.f32 %v1641, %v2192
    %v2194 = vpop.f32.mrf.mxu0
    %2195 = vmatprep.mubr.f32.mxu0 0.0
    %2196 = vmatmul.mubr.f32.gmra.mxu0 %v1822
    %v2197 = vpop.f32.mrf.mxu0
    %v2198 = vadd.f32 %v1641, %v2197
    %v2199 = vpop.f32.mrf.mxu0
    %2200 = vmatprep.mubr.f32.mxu0 0.0
    %2201 = vmatmul.mubr.f32.gmra.mxu0 %v1825
    %v2202 = vpop.f32.mrf.mxu0
    %v2203 = vadd.f32 %v1641, %v2202
    %v2204 = vpop.f32.mrf.mxu0
    %2205 = vmatprep.mubr.f32.mxu0 0.0
    %2206 = vmatmul.mubr.f32.gmra.mxu0 %v1828
    %v2207 = vpop.f32.mrf.mxu0
    %v2208 = vadd.f32 %v1641, %v2207
    %v2209 = vpop.f32.mrf.mxu0
    %2210 = vmatprep.mubr.f32.mxu0 0.0
    %2211 = vmatmul.mubr.f32.gmra.mxu0 %v1831
    %v2212 = vpop.f32.mrf.mxu0
    %v2213 = vadd.f32 %v1641, %v2212
    %v2214 = vpop.f32.mrf.mxu0
    %2215 = vmatprep.mubr.f32.mxu0 0.0
    %2216 = vmatmul.mubr.f32.gmra.mxu0 %v1834
    %v2217 = vpop.f32.mrf.mxu0
    %v2218 = vadd.f32 %v1641, %v2217
    %v2219 = vpop.f32.mrf.mxu0
    %2220 = vdwg.mxu0
    %vm2221 = vcmask 523264
    %v2222 = vsel %vm2221, %v1903, -inf
    %2223 = vmax.xlane.f32.xlu0 %v2222
    %v2224 = vpop.xlane.xlu0 %2223
    %v2225 = vsel %vm2221, %v1908, -inf
    %2226 = vmax.xlane.f32.xlu0 %v2225
    %v2227 = vpop.xlane.xlu0 %2226
    %v2228 = vsel %vm2221, %v1913, -inf
    %2229 = vmax.xlane.f32.xlu0 %v2228
    %v2230 = vpop.xlane.xlu0 %2229
    %v2231 = vsel %vm2221, %v1918, -inf
    %2232 = vmax.xlane.f32.xlu0 %v2231
    %v2233 = vpop.xlane.xlu0 %2232
    %v2234 = vsel %vm2221, %v1923, -inf
    %2235 = vmax.xlane.f32.xlu0 %v2234
    %v2236 = vpop.xlane.xlu0 %2235
    %v2237 = vsel %vm2221, %v1928, -inf
    %2238 = vmax.xlane.f32.xlu0 %v2237
    %v2239 = vpop.xlane.xlu0 %2238
    %v2240 = vsel %vm2221, %v1933, -inf
    %2241 = vmax.xlane.f32.xlu0 %v2240
    %v2242 = vpop.xlane.xlu0 %2241
    %v2243 = vsel %vm2221, %v1938, -inf
    %2244 = vmax.xlane.f32.xlu0 %v2243
    %v2245 = vpop.xlane.xlu0 %2244
    %v2246 = vsel %vm2221, %v1943, -inf
    %2247 = vmax.xlane.f32.xlu0 %v2246
    %v2248 = vpop.xlane.xlu0 %2247
    %v2249 = vsel %vm2221, %v1948, -inf
    %2250 = vmax.xlane.f32.xlu0 %v2249
    %v2251 = vpop.xlane.xlu0 %2250
    %v2252 = vsel %vm2221, %v1953, -inf
    %2253 = vmax.xlane.f32.xlu0 %v2252
    %v2254 = vpop.xlane.xlu0 %2253
    %v2255 = vsel %vm2221, %v1958, -inf
    %2256 = vmax.xlane.f32.xlu0 %v2255
    %v2257 = vpop.xlane.xlu0 %2256
    %v2258 = vsel %vm2221, %v1963, -inf
    %2259 = vmax.xlane.f32.xlu0 %v2258
    %v2260 = vpop.xlane.xlu0 %2259
    %v2261 = vsel %vm2221, %v1968, -inf
    %2262 = vmax.xlane.f32.xlu0 %v2261
    %v2263 = vpop.xlane.xlu0 %2262
    %v2264 = vsel %vm2221, %v1973, -inf
    %2265 = vmax.xlane.f32.xlu0 %v2264
    %v2266 = vpop.xlane.xlu0 %2265
    %v2267 = vsel %vm2221, %v1978, -inf
    %2268 = vmax.xlane.f32.xlu0 %v2267
    %v2269 = vpop.xlane.xlu0 %2268
    %v2270 = vsel %vm2221, %v1983, -inf
    %2271 = vmax.xlane.f32.xlu0 %v2270
    %v2272 = vpop.xlane.xlu0 %2271
    %v2273 = vsel %vm2221, %v1988, -inf
    %2274 = vmax.xlane.f32.xlu0 %v2273
    %v2275 = vpop.xlane.xlu0 %2274
    %v2276 = vsel %vm2221, %v1993, -inf
    %2277 = vmax.xlane.f32.xlu0 %v2276
    %v2278 = vpop.xlane.xlu0 %2277
    %v2279 = vsel %vm2221, %v1998, -inf
    %2280 = vmax.xlane.f32.xlu0 %v2279
    %v2281 = vpop.xlane.xlu0 %2280
    %v2282 = vsel %vm2221, %v2003, -inf
    %2283 = vmax.xlane.f32.xlu0 %v2282
    %v2284 = vpop.xlane.xlu0 %2283
    %v2285 = vsel %vm2221, %v2008, -inf
    %2286 = vmax.xlane.f32.xlu0 %v2285
    %v2287 = vpop.xlane.xlu0 %2286
    %v2288 = vsel %vm2221, %v2013, -inf
    %2289 = vmax.xlane.f32.xlu0 %v2288
    %v2290 = vpop.xlane.xlu0 %2289
    %v2291 = vsel %vm2221, %v2018, -inf
    %2292 = vmax.xlane.f32.xlu0 %v2291
    %v2293 = vpop.xlane.xlu0 %2292
    %v2294 = vsel %vm2221, %v2023, -inf
    %2295 = vmax.xlane.f32.xlu0 %v2294
    %v2296 = vpop.xlane.xlu0 %2295
    %v2297 = vsel %vm2221, %v2028, -inf
    %2298 = vmax.xlane.f32.xlu0 %v2297
    %v2299 = vpop.xlane.xlu0 %2298
    %v2300 = vsel %vm2221, %v2033, -inf
    %2301 = vmax.xlane.f32.xlu0 %v2300
    %v2302 = vpop.xlane.xlu0 %2301
    %v2303 = vsel %vm2221, %v2038, -inf
    %2304 = vmax.xlane.f32.xlu0 %v2303
    %v2305 = vpop.xlane.xlu0 %2304
    %v2306 = vsel %vm2221, %v2043, -inf
    %2307 = vmax.xlane.f32.xlu0 %v2306
    %v2308 = vpop.xlane.xlu0 %2307
    %v2309 = vsel %vm2221, %v2048, -inf
    %2310 = vmax.xlane.f32.xlu0 %v2309
    %v2311 = vpop.xlane.xlu0 %2310
    %v2312 = vsel %vm2221, %v2053, -inf
    %2313 = vmax.xlane.f32.xlu0 %v2312
    %v2314 = vpop.xlane.xlu0 %2313
    %v2315 = vsel %vm2221, %v2058, -inf
    %2316 = vmax.xlane.f32.xlu0 %v2315
    %v2317 = vpop.xlane.xlu0 %2316
    %v2318 = vsel %vm2221, %v2063, -inf
    %2319 = vmax.xlane.f32.xlu0 %v2318
    %v2320 = vpop.xlane.xlu0 %2319
    %v2321 = vsel %vm2221, %v2068, -inf
    %2322 = vmax.xlane.f32.xlu0 %v2321
    %v2323 = vpop.xlane.xlu0 %2322
    %v2324 = vsel %vm2221, %v2073, -inf
    %2325 = vmax.xlane.f32.xlu0 %v2324
    %v2326 = vpop.xlane.xlu0 %2325
    %v2327 = vsel %vm2221, %v2078, -inf
    %2328 = vmax.xlane.f32.xlu0 %v2327
    %v2329 = vpop.xlane.xlu0 %2328
    %v2330 = vsel %vm2221, %v2083, -inf
    %2331 = vmax.xlane.f32.xlu0 %v2330
    %v2332 = vpop.xlane.xlu0 %2331
    %v2333 = vsel %vm2221, %v2088, -inf
    %2334 = vmax.xlane.f32.xlu0 %v2333
    %v2335 = vpop.xlane.xlu0 %2334
    %v2336 = vsel %vm2221, %v2093, -inf
    %2337 = vmax.xlane.f32.xlu0 %v2336
    %v2338 = vpop.xlane.xlu0 %2337
    %v2339 = vsel %vm2221, %v2098, -inf
    %2340 = vmax.xlane.f32.xlu0 %v2339
    %v2341 = vpop.xlane.xlu0 %2340
    %v2342 = vsel %vm2221, %v2103, -inf
    %2343 = vmax.xlane.f32.xlu0 %v2342
    %v2344 = vpop.xlane.xlu0 %2343
    %v2345 = vsel %vm2221, %v2108, -inf
    %2346 = vmax.xlane.f32.xlu0 %v2345
    %v2347 = vpop.xlane.xlu0 %2346
    %v2348 = vsel %vm2221, %v2113, -inf
    %2349 = vmax.xlane.f32.xlu0 %v2348
    %v2350 = vpop.xlane.xlu0 %2349
    %v2351 = vsel %vm2221, %v2118, -inf
    %2352 = vmax.xlane.f32.xlu0 %v2351
    %v2353 = vpop.xlane.xlu0 %2352
    %v2354 = vsel %vm2221, %v2123, -inf
    %2355 = vmax.xlane.f32.xlu0 %v2354
    %v2356 = vpop.xlane.xlu0 %2355
    %v2357 = vsel %vm2221, %v2128, -inf
    %2358 = vmax.xlane.f32.xlu0 %v2357
    %v2359 = vpop.xlane.xlu0 %2358
    %v2360 = vsel %vm2221, %v2133, -inf
    %2361 = vmax.xlane.f32.xlu0 %v2360
    %v2362 = vpop.xlane.xlu0 %2361
    %v2363 = vsel %vm2221, %v2138, -inf
    %2364 = vmax.xlane.f32.xlu0 %v2363
    %v2365 = vpop.xlane.xlu0 %2364
    %v2366 = vsel %vm2221, %v2143, -inf
    %2367 = vmax.xlane.f32.xlu0 %v2366
    %v2368 = vpop.xlane.xlu0 %2367
    %v2369 = vsel %vm2221, %v2148, -inf
    %2370 = vmax.xlane.f32.xlu0 %v2369
    %v2371 = vpop.xlane.xlu0 %2370
    %v2372 = vsel %vm2221, %v2153, -inf
    %2373 = vmax.xlane.f32.xlu0 %v2372
    %v2374 = vpop.xlane.xlu0 %2373
    %v2375 = vsel %vm2221, %v2158, -inf
    %2376 = vmax.xlane.f32.xlu0 %v2375
    %v2377 = vpop.xlane.xlu0 %2376
    %v2378 = vsel %vm2221, %v2163, -inf
    %2379 = vmax.xlane.f32.xlu0 %v2378
    %v2380 = vpop.xlane.xlu0 %2379
    %v2381 = vsel %vm2221, %v2168, -inf
    %2382 = vmax.xlane.f32.xlu0 %v2381
    %v2383 = vpop.xlane.xlu0 %2382
    %v2384 = vsel %vm2221, %v2173, -inf
    %2385 = vmax.xlane.f32.xlu0 %v2384
    %v2386 = vpop.xlane.xlu0 %2385
    %v2387 = vsel %vm2221, %v2178, -inf
    %2388 = vmax.xlane.f32.xlu0 %v2387
    %v2389 = vpop.xlane.xlu0 %2388
    %v2390 = vsel %vm2221, %v2183, -inf
    %2391 = vmax.xlane.f32.xlu0 %v2390
    %v2392 = vpop.xlane.xlu0 %2391
    %v2393 = vsel %vm2221, %v2188, -inf
    %2394 = vmax.xlane.f32.xlu0 %v2393
    %v2395 = vpop.xlane.xlu0 %2394
    %v2396 = vsel %vm2221, %v2193, -inf
    %2397 = vmax.xlane.f32.xlu0 %v2396
    %v2398 = vpop.xlane.xlu0 %2397
    %v2399 = vsel %vm2221, %v2198, -inf
    %2400 = vmax.xlane.f32.xlu0 %v2399
    %v2401 = vpop.xlane.xlu0 %2400
    %v2402 = vsel %vm2221, %v2203, -inf
    %2403 = vmax.xlane.f32.xlu0 %v2402
    %v2404 = vpop.xlane.xlu0 %2403
    %v2405 = vsel %vm2221, %v2208, -inf
    %2406 = vmax.xlane.f32.xlu0 %v2405
    %v2407 = vpop.xlane.xlu0 %2406
    %v2408 = vsel %vm2221, %v2213, -inf
    %2409 = vmax.xlane.f32.xlu0 %v2408
    %v2410 = vpop.xlane.xlu0 %2409
    %v2411 = vsel %vm2221, %v2218, -inf
    %2412 = vmax.xlane.f32.xlu0 %v2411
    %v2413 = vpop.xlane.xlu0 %2412
    %vm2414 = vcmp.eq.f32.partialorder %v1903, %v2224
    %vm2415 = vcmp.eq.f32.partialorder %v1908, %v2227
    %vm2416 = vcmp.eq.f32.partialorder %v1913, %v2230
    %vm2417 = vcmp.eq.f32.partialorder %v1918, %v2233
    %vm2418 = vcmp.eq.f32.partialorder %v1923, %v2236
    %vm2419 = vcmp.eq.f32.partialorder %v1928, %v2239
    %vm2420 = vcmp.eq.f32.partialorder %v1933, %v2242
    %vm2421 = vcmp.eq.f32.partialorder %v1938, %v2245
    %vm2422 = vcmp.eq.f32.partialorder %v1943, %v2248
    %vm2423 = vcmp.eq.f32.partialorder %v1948, %v2251
    %vm2424 = vcmp.eq.f32.partialorder %v1953, %v2254
    %vm2425 = vcmp.eq.f32.partialorder %v1958, %v2257
    %vm2426 = vcmp.eq.f32.partialorder %v1963, %v2260
    %vm2427 = vcmp.eq.f32.partialorder %v1968, %v2263
    %vm2428 = vcmp.eq.f32.partialorder %v1973, %v2266
    %vm2429 = vcmp.eq.f32.partialorder %v1978, %v2269
    %vm2430 = vcmp.eq.f32.partialorder %v1983, %v2272
    %vm2431 = vcmp.eq.f32.partialorder %v1988, %v2275
    %vm2432 = vcmp.eq.f32.partialorder %v1993, %v2278
    %vm2433 = vcmp.eq.f32.partialorder %v1998, %v2281
    %vm2434 = vcmp.eq.f32.partialorder %v2003, %v2284
    %vm2435 = vcmp.eq.f32.partialorder %v2008, %v2287
    %vm2436 = vcmp.eq.f32.partialorder %v2013, %v2290
    %vm2437 = vcmp.eq.f32.partialorder %v2018, %v2293
    %vm2438 = vcmp.eq.f32.partialorder %v2023, %v2296
    %vm2439 = vcmp.eq.f32.partialorder %v2028, %v2299
    %vm2440 = vcmp.eq.f32.partialorder %v2033, %v2302
    %vm2441 = vcmp.eq.f32.partialorder %v2038, %v2305
    %vm2442 = vcmp.eq.f32.partialorder %v2043, %v2308
    %vm2443 = vcmp.eq.f32.partialorder %v2048, %v2311
    %vm2444 = vcmp.eq.f32.partialorder %v2053, %v2314
    %vm2445 = vcmp.eq.f32.partialorder %v2058, %v2317
    %vm2446 = vcmp.eq.f32.partialorder %v2063, %v2320
    %vm2447 = vcmp.eq.f32.partialorder %v2068, %v2323
    %vm2448 = vcmp.eq.f32.partialorder %v2073, %v2326
    %vm2449 = vcmp.eq.f32.partialorder %v2078, %v2329
    %vm2450 = vcmp.eq.f32.partialorder %v2083, %v2332
    %vm2451 = vcmp.eq.f32.partialorder %v2088, %v2335
    %vm2452 = vcmp.eq.f32.partialorder %v2093, %v2338
    %vm2453 = vcmp.eq.f32.partialorder %v2098, %v2341
    %vm2454 = vcmp.eq.f32.partialorder %v2103, %v2344
    %vm2455 = vcmp.eq.f32.partialorder %v2108, %v2347
    %vm2456 = vcmp.eq.f32.partialorder %v2113, %v2350
    %vm2457 = vcmp.eq.f32.partialorder %v2118, %v2353
    %vm2458 = vcmp.eq.f32.partialorder %v2123, %v2356
    %vm2459 = vcmp.eq.f32.partialorder %v2128, %v2359
    %vm2460 = vcmp.eq.f32.partialorder %v2133, %v2362
    %vm2461 = vcmp.eq.f32.partialorder %v2138, %v2365
    %vm2462 = vcmp.eq.f32.partialorder %v2143, %v2368
    %vm2463 = vcmp.eq.f32.partialorder %v2148, %v2371
    %vm2464 = vcmp.eq.f32.partialorder %v2153, %v2374
    %vm2465 = vcmp.eq.f32.partialorder %v2158, %v2377
    %vm2466 = vcmp.eq.f32.partialorder %v2163, %v2380
    %vm2467 = vcmp.eq.f32.partialorder %v2168, %v2383
    %vm2468 = vcmp.eq.f32.partialorder %v2173, %v2386
    %vm2469 = vcmp.eq.f32.partialorder %v2178, %v2389
    %vm2470 = vcmp.eq.f32.partialorder %v2183, %v2392
    %vm2471 = vcmp.eq.f32.partialorder %v2188, %v2395
    %vm2472 = vcmp.eq.f32.partialorder %v2193, %v2398
    %vm2473 = vcmp.eq.f32.partialorder %v2198, %v2401
    %vm2474 = vcmp.eq.f32.partialorder %v2203, %v2404
    %vm2475 = vcmp.eq.f32.partialorder %v2208, %v2407
    %vm2476 = vcmp.eq.f32.partialorder %v2213, %v2410
    %vm2477 = vcmp.eq.f32.partialorder %v2218, %v2413
    %v2478 = vsel %vm2414, %v1634, 64
    %v2479 = vsel %vm2415, %v1634, 64
    %v2480 = vsel %vm2416, %v1634, 64
    %v2481 = vsel %vm2417, %v1634, 64
    %v2482 = vsel %vm2418, %v1634, 64
    %v2483 = vsel %vm2419, %v1634, 64
    %v2484 = vsel %vm2420, %v1634, 64
    %v2485 = vsel %vm2421, %v1634, 64
    %v2486 = vsel %vm2422, %v1634, 64
    %v2487 = vsel %vm2423, %v1634, 64
    %v2488 = vsel %vm2424, %v1634, 64
    %v2489 = vsel %vm2425, %v1634, 64
    %v2490 = vsel %vm2426, %v1634, 64
    %v2491 = vsel %vm2427, %v1634, 64
    %v2492 = vsel %vm2428, %v1634, 64
    %v2493 = vsel %vm2429, %v1634, 64
    %v2494 = vsel %vm2430, %v1634, 64
    %v2495 = vsel %vm2431, %v1634, 64
    %v2496 = vsel %vm2432, %v1634, 64
    %v2497 = vsel %vm2433, %v1634, 64
    %v2498 = vsel %vm2434, %v1634, 64
    %v2499 = vsel %vm2435, %v1634, 64
    %v2500 = vsel %vm2436, %v1634, 64
    %v2501 = vsel %vm2437, %v1634, 64
    %v2502 = vsel %vm2438, %v1634, 64
    %v2503 = vsel %vm2439, %v1634, 64
    %v2504 = vsel %vm2440, %v1634, 64
    %v2505 = vsel %vm2441, %v1634, 64
    %v2506 = vsel %vm2442, %v1634, 64
    %v2507 = vsel %vm2443, %v1634, 64
    %v2508 = vsel %vm2444, %v1634, 64
    %v2509 = vsel %vm2445, %v1634, 64
    %v2510 = vsel %vm2446, %v1634, 64
    %v2511 = vsel %vm2447, %v1634, 64
    %v2512 = vsel %vm2448, %v1634, 64
    %v2513 = vsel %vm2449, %v1634, 64
    %v2514 = vsel %vm2450, %v1634, 64
    %v2515 = vsel %vm2451, %v1634, 64
    %v2516 = vsel %vm2452, %v1634, 64
    %v2517 = vsel %vm2453, %v1634, 64
    %v2518 = vsel %vm2454, %v1634, 64
    %v2519 = vsel %vm2455, %v1634, 64
    %v2520 = vsel %vm2456, %v1634, 64
    %v2521 = vsel %vm2457, %v1634, 64
    %v2522 = vsel %vm2458, %v1634, 64
    %v2523 = vsel %vm2459, %v1634, 64
    %v2524 = vsel %vm2460, %v1634, 64
    %v2525 = vsel %vm2461, %v1634, 64
    %v2526 = vsel %vm2462, %v1634, 64
    %v2527 = vsel %vm2463, %v1634, 64
    %v2528 = vsel %vm2464, %v1634, 64
    %v2529 = vsel %vm2465, %v1634, 64
    %v2530 = vsel %vm2466, %v1634, 64
    %v2531 = vsel %vm2467, %v1634, 64
    %v2532 = vsel %vm2468, %v1634, 64
    %v2533 = vsel %vm2469, %v1634, 64
    %v2534 = vsel %vm2470, %v1634, 64
    %v2535 = vsel %vm2471, %v1634, 64
    %v2536 = vsel %vm2472, %v1634, 64
    %v2537 = vsel %vm2473, %v1634, 64
    %v2538 = vsel %vm2474, %v1634, 64
    %v2539 = vsel %vm2475, %v1634, 64
    %v2540 = vsel %vm2476, %v1634, 64
    %v2541 = vsel %vm2477, %v1634, 64
    %v2542 = vsel %vm2221, %v2478, 2147483647
    %v2543 = vand.u32 %v2542, 65535
    %v2544 = vshra.s32 %v2542, 16
    %v2545 = vcvt.s32.f32 %v2543
    %v2546 = vcvt.s32.f32 %v2544
    %2547 = vmin.xlane.f32.xlu0 %v2546
    %v2548 = vpop.xlane.xlu0 %2547
    %vm2549 = vcmp.eq.f32.partialorder %v2546, %v2548
    %v2550 = vsel %vm2549, %v2545, inf
    %2551 = vmin.xlane.f32.xlu0 %v2550
    %v2552 = vpop.xlane.xlu0 %2551
    %v2553 = vcvt.f32.s32 %v2552
    %v2554 = vcvt.f32.s32 %v2548
    %v2555 = vshll.u32 %v2554, 16
    %v2556 = vadd.s32 %v2555, %v2553
    %v2557 = vsel %vm2221, %v2479, 2147483647
    %v2558 = vand.u32 %v2557, 65535
    %v2559 = vshra.s32 %v2557, 16
    %v2560 = vcvt.s32.f32 %v2558
    %v2561 = vcvt.s32.f32 %v2559
    %2562 = vmin.xlane.f32.xlu0 %v2561
    %v2563 = vpop.xlane.xlu0 %2562
    %vm2564 = vcmp.eq.f32.partialorder %v2561, %v2563
    %v2565 = vsel %vm2564, %v2560, inf
    %2566 = vmin.xlane.f32.xlu0 %v2565
    %v2567 = vpop.xlane.xlu0 %2566
    %v2568 = vcvt.f32.s32 %v2567
    %v2569 = vcvt.f32.s32 %v2563
    %v2570 = vshll.u32 %v2569, 16
    %v2571 = vadd.s32 %v2570, %v2568
    %v2572 = vsel %vm2221, %v2480, 2147483647
    %v2573 = vand.u32 %v2572, 65535
    %v2574 = vshra.s32 %v2572, 16
    %v2575 = vcvt.s32.f32 %v2573
    %v2576 = vcvt.s32.f32 %v2574
    %2577 = vmin.xlane.f32.xlu0 %v2576
    %v2578 = vpop.xlane.xlu0 %2577
    %vm2579 = vcmp.eq.f32.partialorder %v2576, %v2578
    %v2580 = vsel %vm2579, %v2575, inf
    %2581 = vmin.xlane.f32.xlu0 %v2580
    %v2582 = vpop.xlane.xlu0 %2581
    %v2583 = vcvt.f32.s32 %v2582
    %v2584 = vcvt.f32.s32 %v2578
    %v2585 = vshll.u32 %v2584, 16
    %v2586 = vadd.s32 %v2585, %v2583
    %v2587 = vsel %vm2221, %v2481, 2147483647
    %v2588 = vand.u32 %v2587, 65535
    %v2589 = vshra.s32 %v2587, 16
    %v2590 = vcvt.s32.f32 %v2588
    %v2591 = vcvt.s32.f32 %v2589
    %2592 = vmin.xlane.f32.xlu0 %v2591
    %v2593 = vpop.xlane.xlu0 %2592
    %vm2594 = vcmp.eq.f32.partialorder %v2591, %v2593
    %v2595 = vsel %vm2594, %v2590, inf
    %2596 = vmin.xlane.f32.xlu0 %v2595
    %v2597 = vpop.xlane.xlu0 %2596
    %v2598 = vcvt.f32.s32 %v2597
    %v2599 = vcvt.f32.s32 %v2593
    %v2600 = vshll.u32 %v2599, 16
    %v2601 = vadd.s32 %v2600, %v2598
    %v2602 = vsel %vm2221, %v2482, 2147483647
    %v2603 = vand.u32 %v2602, 65535
    %v2604 = vshra.s32 %v2602, 16
    %v2605 = vcvt.s32.f32 %v2603
    %v2606 = vcvt.s32.f32 %v2604
    %2607 = vmin.xlane.f32.xlu0 %v2606
    %v2608 = vpop.xlane.xlu0 %2607
    %vm2609 = vcmp.eq.f32.partialorder %v2606, %v2608
    %v2610 = vsel %vm2609, %v2605, inf
    %2611 = vmin.xlane.f32.xlu0 %v2610
    %v2612 = vpop.xlane.xlu0 %2611
    %v2613 = vcvt.f32.s32 %v2612
    %v2614 = vcvt.f32.s32 %v2608
    %v2615 = vshll.u32 %v2614, 16
    %v2616 = vadd.s32 %v2615, %v2613
    %v2617 = vsel %vm2221, %v2483, 2147483647
    %v2618 = vand.u32 %v2617, 65535
    %v2619 = vshra.s32 %v2617, 16
    %v2620 = vcvt.s32.f32 %v2618
    %v2621 = vcvt.s32.f32 %v2619
    %2622 = vmin.xlane.f32.xlu0 %v2621
    %v2623 = vpop.xlane.xlu0 %2622
    %vm2624 = vcmp.eq.f32.partialorder %v2621, %v2623
    %v2625 = vsel %vm2624, %v2620, inf
    %2626 = vmin.xlane.f32.xlu0 %v2625
    %v2627 = vpop.xlane.xlu0 %2626
    %v2628 = vcvt.f32.s32 %v2627
    %v2629 = vcvt.f32.s32 %v2623
    %v2630 = vshll.u32 %v2629, 16
    %v2631 = vadd.s32 %v2630, %v2628
    %v2632 = vsel %vm2221, %v2484, 2147483647
    %v2633 = vand.u32 %v2632, 65535
    %v2634 = vshra.s32 %v2632, 16
    %v2635 = vcvt.s32.f32 %v2633
    %v2636 = vcvt.s32.f32 %v2634
    %2637 = vmin.xlane.f32.xlu0 %v2636
    %v2638 = vpop.xlane.xlu0 %2637
    %vm2639 = vcmp.eq.f32.partialorder %v2636, %v2638
    %v2640 = vsel %vm2639, %v2635, inf
    %2641 = vmin.xlane.f32.xlu0 %v2640
    %v2642 = vpop.xlane.xlu0 %2641
    %v2643 = vcvt.f32.s32 %v2642
    %v2644 = vcvt.f32.s32 %v2638
    %v2645 = vshll.u32 %v2644, 16
    %v2646 = vadd.s32 %v2645, %v2643
    %v2647 = vsel %vm2221, %v2485, 2147483647
    %v2648 = vand.u32 %v2647, 65535
    %v2649 = vshra.s32 %v2647, 16
    %v2650 = vcvt.s32.f32 %v2648
    %v2651 = vcvt.s32.f32 %v2649
    %2652 = vmin.xlane.f32.xlu0 %v2651
    %v2653 = vpop.xlane.xlu0 %2652
    %vm2654 = vcmp.eq.f32.partialorder %v2651, %v2653
    %v2655 = vsel %vm2654, %v2650, inf
    %2656 = vmin.xlane.f32.xlu0 %v2655
    %v2657 = vpop.xlane.xlu0 %2656
    %v2658 = vcvt.f32.s32 %v2657
    %v2659 = vcvt.f32.s32 %v2653
    %v2660 = vshll.u32 %v2659, 16
    %v2661 = vadd.s32 %v2660, %v2658
    %v2662 = vsel %vm2221, %v2486, 2147483647
    %v2663 = vand.u32 %v2662, 65535
    %v2664 = vshra.s32 %v2662, 16
    %v2665 = vcvt.s32.f32 %v2663
    %v2666 = vcvt.s32.f32 %v2664
    %2667 = vmin.xlane.f32.xlu0 %v2666
    %v2668 = vpop.xlane.xlu0 %2667
    %vm2669 = vcmp.eq.f32.partialorder %v2666, %v2668
    %v2670 = vsel %vm2669, %v2665, inf
    %2671 = vmin.xlane.f32.xlu0 %v2670
    %v2672 = vpop.xlane.xlu0 %2671
    %v2673 = vcvt.f32.s32 %v2672
    %v2674 = vcvt.f32.s32 %v2668
    %v2675 = vshll.u32 %v2674, 16
    %v2676 = vadd.s32 %v2675, %v2673
    %v2677 = vsel %vm2221, %v2487, 2147483647
    %v2678 = vand.u32 %v2677, 65535
    %v2679 = vshra.s32 %v2677, 16
    %v2680 = vcvt.s32.f32 %v2678
    %v2681 = vcvt.s32.f32 %v2679
    %2682 = vmin.xlane.f32.xlu0 %v2681
    %v2683 = vpop.xlane.xlu0 %2682
    %vm2684 = vcmp.eq.f32.partialorder %v2681, %v2683
    %v2685 = vsel %vm2684, %v2680, inf
    %2686 = vmin.xlane.f32.xlu0 %v2685
    %v2687 = vpop.xlane.xlu0 %2686
    %v2688 = vcvt.f32.s32 %v2687
    %v2689 = vcvt.f32.s32 %v2683
    %v2690 = vshll.u32 %v2689, 16
    %v2691 = vadd.s32 %v2690, %v2688
    %v2692 = vsel %vm2221, %v2488, 2147483647
    %v2693 = vand.u32 %v2692, 65535
    %v2694 = vshra.s32 %v2692, 16
    %v2695 = vcvt.s32.f32 %v2693
    %v2696 = vcvt.s32.f32 %v2694
    %2697 = vmin.xlane.f32.xlu0 %v2696
    %v2698 = vpop.xlane.xlu0 %2697
    %vm2699 = vcmp.eq.f32.partialorder %v2696, %v2698
    %v2700 = vsel %vm2699, %v2695, inf
    %2701 = vmin.xlane.f32.xlu0 %v2700
    %v2702 = vpop.xlane.xlu0 %2701
    %v2703 = vcvt.f32.s32 %v2702
    %v2704 = vcvt.f32.s32 %v2698
    %v2705 = vshll.u32 %v2704, 16
    %v2706 = vadd.s32 %v2705, %v2703
    %v2707 = vsel %vm2221, %v2489, 2147483647
    %v2708 = vand.u32 %v2707, 65535
    %v2709 = vshra.s32 %v2707, 16
    %v2710 = vcvt.s32.f32 %v2708
    %v2711 = vcvt.s32.f32 %v2709
    %2712 = vmin.xlane.f32.xlu0 %v2711
    %v2713 = vpop.xlane.xlu0 %2712
    %vm2714 = vcmp.eq.f32.partialorder %v2711, %v2713
    %v2715 = vsel %vm2714, %v2710, inf
    %2716 = vmin.xlane.f32.xlu0 %v2715
    %v2717 = vpop.xlane.xlu0 %2716
    %v2718 = vcvt.f32.s32 %v2717
    %v2719 = vcvt.f32.s32 %v2713
    %v2720 = vshll.u32 %v2719, 16
    %v2721 = vadd.s32 %v2720, %v2718
    %v2722 = vsel %vm2221, %v2490, 2147483647
    %v2723 = vand.u32 %v2722, 65535
    %v2724 = vshra.s32 %v2722, 16
    %v2725 = vcvt.s32.f32 %v2723
    %v2726 = vcvt.s32.f32 %v2724
    %2727 = vmin.xlane.f32.xlu0 %v2726
    %v2728 = vpop.xlane.xlu0 %2727
    %vm2729 = vcmp.eq.f32.partialorder %v2726, %v2728
    %v2730 = vsel %vm2729, %v2725, inf
    %2731 = vmin.xlane.f32.xlu0 %v2730
    %v2732 = vpop.xlane.xlu0 %2731
    %v2733 = vcvt.f32.s32 %v2732
    %v2734 = vcvt.f32.s32 %v2728
    %v2735 = vshll.u32 %v2734, 16
    %v2736 = vadd.s32 %v2735, %v2733
    %v2737 = vsel %vm2221, %v2491, 2147483647
    %v2738 = vand.u32 %v2737, 65535
    %v2739 = vshra.s32 %v2737, 16
    %v2740 = vcvt.s32.f32 %v2738
    %v2741 = vcvt.s32.f32 %v2739
    %2742 = vmin.xlane.f32.xlu0 %v2741
    %v2743 = vpop.xlane.xlu0 %2742
    %vm2744 = vcmp.eq.f32.partialorder %v2741, %v2743
    %v2745 = vsel %vm2744, %v2740, inf
    %2746 = vmin.xlane.f32.xlu0 %v2745
    %v2747 = vpop.xlane.xlu0 %2746
    %v2748 = vcvt.f32.s32 %v2747
    %v2749 = vcvt.f32.s32 %v2743
    %v2750 = vshll.u32 %v2749, 16
    %v2751 = vadd.s32 %v2750, %v2748
    %v2752 = vsel %vm2221, %v2492, 2147483647
    %v2753 = vand.u32 %v2752, 65535
    %v2754 = vshra.s32 %v2752, 16
    %v2755 = vcvt.s32.f32 %v2753
    %v2756 = vcvt.s32.f32 %v2754
    %2757 = vmin.xlane.f32.xlu0 %v2756
    %v2758 = vpop.xlane.xlu0 %2757
    %vm2759 = vcmp.eq.f32.partialorder %v2756, %v2758
    %v2760 = vsel %vm2759, %v2755, inf
    %2761 = vmin.xlane.f32.xlu0 %v2760
    %v2762 = vpop.xlane.xlu0 %2761
    %v2763 = vcvt.f32.s32 %v2762
    %v2764 = vcvt.f32.s32 %v2758
    %v2765 = vshll.u32 %v2764, 16
    %v2766 = vadd.s32 %v2765, %v2763
    %v2767 = vsel %vm2221, %v2493, 2147483647
    %v2768 = vand.u32 %v2767, 65535
    %v2769 = vshra.s32 %v2767, 16
    %v2770 = vcvt.s32.f32 %v2768
    %v2771 = vcvt.s32.f32 %v2769
    %2772 = vmin.xlane.f32.xlu0 %v2771
    %v2773 = vpop.xlane.xlu0 %2772
    %vm2774 = vcmp.eq.f32.partialorder %v2771, %v2773
    %v2775 = vsel %vm2774, %v2770, inf
    %2776 = vmin.xlane.f32.xlu0 %v2775
    %v2777 = vpop.xlane.xlu0 %2776
    %v2778 = vcvt.f32.s32 %v2777
    %v2779 = vcvt.f32.s32 %v2773
    %v2780 = vshll.u32 %v2779, 16
    %v2781 = vadd.s32 %v2780, %v2778
    %v2782 = vsel %vm2221, %v2494, 2147483647
    %v2783 = vand.u32 %v2782, 65535
    %v2784 = vshra.s32 %v2782, 16
    %v2785 = vcvt.s32.f32 %v2783
    %v2786 = vcvt.s32.f32 %v2784
    %2787 = vmin.xlane.f32.xlu0 %v2786
    %v2788 = vpop.xlane.xlu0 %2787
    %vm2789 = vcmp.eq.f32.partialorder %v2786, %v2788
    %v2790 = vsel %vm2789, %v2785, inf
    %2791 = vmin.xlane.f32.xlu0 %v2790
    %v2792 = vpop.xlane.xlu0 %2791
    %v2793 = vcvt.f32.s32 %v2792
    %v2794 = vcvt.f32.s32 %v2788
    %v2795 = vshll.u32 %v2794, 16
    %v2796 = vadd.s32 %v2795, %v2793
    %v2797 = vsel %vm2221, %v2495, 2147483647
    %v2798 = vand.u32 %v2797, 65535
    %v2799 = vshra.s32 %v2797, 16
    %v2800 = vcvt.s32.f32 %v2798
    %v2801 = vcvt.s32.f32 %v2799
    %2802 = vmin.xlane.f32.xlu0 %v2801
    %v2803 = vpop.xlane.xlu0 %2802
    %vm2804 = vcmp.eq.f32.partialorder %v2801, %v2803
    %v2805 = vsel %vm2804, %v2800, inf
    %2806 = vmin.xlane.f32.xlu0 %v2805
    %v2807 = vpop.xlane.xlu0 %2806
    %v2808 = vcvt.f32.s32 %v2807
    %v2809 = vcvt.f32.s32 %v2803
    %v2810 = vshll.u32 %v2809, 16
    %v2811 = vadd.s32 %v2810, %v2808
    %v2812 = vsel %vm2221, %v2496, 2147483647
    %v2813 = vand.u32 %v2812, 65535
    %v2814 = vshra.s32 %v2812, 16
    %v2815 = vcvt.s32.f32 %v2813
    %v2816 = vcvt.s32.f32 %v2814
    %2817 = vmin.xlane.f32.xlu0 %v2816
    %v2818 = vpop.xlane.xlu0 %2817
    %vm2819 = vcmp.eq.f32.partialorder %v2816, %v2818
    %v2820 = vsel %vm2819, %v2815, inf
    %2821 = vmin.xlane.f32.xlu0 %v2820
    %v2822 = vpop.xlane.xlu0 %2821
    %v2823 = vcvt.f32.s32 %v2822
    %v2824 = vcvt.f32.s32 %v2818
    %v2825 = vshll.u32 %v2824, 16
    %v2826 = vadd.s32 %v2825, %v2823
    %v2827 = vsel %vm2221, %v2497, 2147483647
    %v2828 = vand.u32 %v2827, 65535
    %v2829 = vshra.s32 %v2827, 16
    %v2830 = vcvt.s32.f32 %v2828
    %v2831 = vcvt.s32.f32 %v2829
    %2832 = vmin.xlane.f32.xlu0 %v2831
    %v2833 = vpop.xlane.xlu0 %2832
    %vm2834 = vcmp.eq.f32.partialorder %v2831, %v2833
    %v2835 = vsel %vm2834, %v2830, inf
    %2836 = vmin.xlane.f32.xlu0 %v2835
    %v2837 = vpop.xlane.xlu0 %2836
    %v2838 = vcvt.f32.s32 %v2837
    %v2839 = vcvt.f32.s32 %v2833
    %v2840 = vshll.u32 %v2839, 16
    %v2841 = vadd.s32 %v2840, %v2838
    %v2842 = vsel %vm2221, %v2498, 2147483647
    %v2843 = vand.u32 %v2842, 65535
    %v2844 = vshra.s32 %v2842, 16
    %v2845 = vcvt.s32.f32 %v2843
    %v2846 = vcvt.s32.f32 %v2844
    %2847 = vmin.xlane.f32.xlu0 %v2846
    %v2848 = vpop.xlane.xlu0 %2847
    %vm2849 = vcmp.eq.f32.partialorder %v2846, %v2848
    %v2850 = vsel %vm2849, %v2845, inf
    %2851 = vmin.xlane.f32.xlu0 %v2850
    %v2852 = vpop.xlane.xlu0 %2851
    %v2853 = vcvt.f32.s32 %v2852
    %v2854 = vcvt.f32.s32 %v2848
    %v2855 = vshll.u32 %v2854, 16
    %v2856 = vadd.s32 %v2855, %v2853
    %v2857 = vsel %vm2221, %v2499, 2147483647
    %v2858 = vand.u32 %v2857, 65535
    %v2859 = vshra.s32 %v2857, 16
    %v2860 = vcvt.s32.f32 %v2858
    %v2861 = vcvt.s32.f32 %v2859
    %2862 = vmin.xlane.f32.xlu0 %v2861
    %v2863 = vpop.xlane.xlu0 %2862
    %vm2864 = vcmp.eq.f32.partialorder %v2861, %v2863
    %v2865 = vsel %vm2864, %v2860, inf
    %2866 = vmin.xlane.f32.xlu0 %v2865
    %v2867 = vpop.xlane.xlu0 %2866
    %v2868 = vcvt.f32.s32 %v2867
    %v2869 = vcvt.f32.s32 %v2863
    %v2870 = vshll.u32 %v2869, 16
    %v2871 = vadd.s32 %v2870, %v2868
    %v2872 = vsel %vm2221, %v2500, 2147483647
    %v2873 = vand.u32 %v2872, 65535
    %v2874 = vshra.s32 %v2872, 16
    %v2875 = vcvt.s32.f32 %v2873
    %v2876 = vcvt.s32.f32 %v2874
    %2877 = vmin.xlane.f32.xlu0 %v2876
    %v2878 = vpop.xlane.xlu0 %2877
    %vm2879 = vcmp.eq.f32.partialorder %v2876, %v2878
    %v2880 = vsel %vm2879, %v2875, inf
    %2881 = vmin.xlane.f32.xlu0 %v2880
    %v2882 = vpop.xlane.xlu0 %2881
    %v2883 = vcvt.f32.s32 %v2882
    %v2884 = vcvt.f32.s32 %v2878
    %v2885 = vshll.u32 %v2884, 16
    %v2886 = vadd.s32 %v2885, %v2883
    %v2887 = vsel %vm2221, %v2501, 2147483647
    %v2888 = vand.u32 %v2887, 65535
    %v2889 = vshra.s32 %v2887, 16
    %v2890 = vcvt.s32.f32 %v2888
    %v2891 = vcvt.s32.f32 %v2889
    %2892 = vmin.xlane.f32.xlu0 %v2891
    %v2893 = vpop.xlane.xlu0 %2892
    %vm2894 = vcmp.eq.f32.partialorder %v2891, %v2893
    %v2895 = vsel %vm2894, %v2890, inf
    %2896 = vmin.xlane.f32.xlu0 %v2895
    %v2897 = vpop.xlane.xlu0 %2896
    %v2898 = vcvt.f32.s32 %v2897
    %v2899 = vcvt.f32.s32 %v2893
    %v2900 = vshll.u32 %v2899, 16
    %v2901 = vadd.s32 %v2900, %v2898
    %v2902 = vsel %vm2221, %v2502, 2147483647
    %v2903 = vand.u32 %v2902, 65535
    %v2904 = vshra.s32 %v2902, 16
    %v2905 = vcvt.s32.f32 %v2903
    %v2906 = vcvt.s32.f32 %v2904
    %2907 = vmin.xlane.f32.xlu0 %v2906
    %v2908 = vpop.xlane.xlu0 %2907
    %vm2909 = vcmp.eq.f32.partialorder %v2906, %v2908
    %v2910 = vsel %vm2909, %v2905, inf
    %2911 = vmin.xlane.f32.xlu0 %v2910
    %v2912 = vpop.xlane.xlu0 %2911
    %v2913 = vcvt.f32.s32 %v2912
    %v2914 = vcvt.f32.s32 %v2908
    %v2915 = vshll.u32 %v2914, 16
    %v2916 = vadd.s32 %v2915, %v2913
    %v2917 = vsel %vm2221, %v2503, 2147483647
    %v2918 = vand.u32 %v2917, 65535
    %v2919 = vshra.s32 %v2917, 16
    %v2920 = vcvt.s32.f32 %v2918
    %v2921 = vcvt.s32.f32 %v2919
    %2922 = vmin.xlane.f32.xlu0 %v2921
    %v2923 = vpop.xlane.xlu0 %2922
    %vm2924 = vcmp.eq.f32.partialorder %v2921, %v2923
    %v2925 = vsel %vm2924, %v2920, inf
    %2926 = vmin.xlane.f32.xlu0 %v2925
    %v2927 = vpop.xlane.xlu0 %2926
    %v2928 = vcvt.f32.s32 %v2927
    %v2929 = vcvt.f32.s32 %v2923
    %v2930 = vshll.u32 %v2929, 16
    %v2931 = vadd.s32 %v2930, %v2928
    %v2932 = vsel %vm2221, %v2504, 2147483647
    %v2933 = vand.u32 %v2932, 65535
    %v2934 = vshra.s32 %v2932, 16
    %v2935 = vcvt.s32.f32 %v2933
    %v2936 = vcvt.s32.f32 %v2934
    %2937 = vmin.xlane.f32.xlu0 %v2936
    %v2938 = vpop.xlane.xlu0 %2937
    %vm2939 = vcmp.eq.f32.partialorder %v2936, %v2938
    %v2940 = vsel %vm2939, %v2935, inf
    %2941 = vmin.xlane.f32.xlu0 %v2940
    %v2942 = vpop.xlane.xlu0 %2941
    %v2943 = vcvt.f32.s32 %v2942
    %v2944 = vcvt.f32.s32 %v2938
    %v2945 = vshll.u32 %v2944, 16
    %v2946 = vadd.s32 %v2945, %v2943
    %v2947 = vsel %vm2221, %v2505, 2147483647
    %v2948 = vand.u32 %v2947, 65535
    %v2949 = vshra.s32 %v2947, 16
    %v2950 = vcvt.s32.f32 %v2948
    %v2951 = vcvt.s32.f32 %v2949
    %2952 = vmin.xlane.f32.xlu0 %v2951
    %v2953 = vpop.xlane.xlu0 %2952
    %vm2954 = vcmp.eq.f32.partialorder %v2951, %v2953
    %v2955 = vsel %vm2954, %v2950, inf
    %2956 = vmin.xlane.f32.xlu0 %v2955
    %v2957 = vpop.xlane.xlu0 %2956
    %v2958 = vcvt.f32.s32 %v2957
    %v2959 = vcvt.f32.s32 %v2953
    %v2960 = vshll.u32 %v2959, 16
    %v2961 = vadd.s32 %v2960, %v2958
    %v2962 = vsel %vm2221, %v2506, 2147483647
    %v2963 = vand.u32 %v2962, 65535
    %v2964 = vshra.s32 %v2962, 16
    %v2965 = vcvt.s32.f32 %v2963
    %v2966 = vcvt.s32.f32 %v2964
    %2967 = vmin.xlane.f32.xlu0 %v2966
    %v2968 = vpop.xlane.xlu0 %2967
    %vm2969 = vcmp.eq.f32.partialorder %v2966, %v2968
    %v2970 = vsel %vm2969, %v2965, inf
    %2971 = vmin.xlane.f32.xlu0 %v2970
    %v2972 = vpop.xlane.xlu0 %2971
    %v2973 = vcvt.f32.s32 %v2972
    %v2974 = vcvt.f32.s32 %v2968
    %v2975 = vshll.u32 %v2974, 16
    %v2976 = vadd.s32 %v2975, %v2973
    %v2977 = vsel %vm2221, %v2507, 2147483647
    %v2978 = vand.u32 %v2977, 65535
    %v2979 = vshra.s32 %v2977, 16
    %v2980 = vcvt.s32.f32 %v2978
    %v2981 = vcvt.s32.f32 %v2979
    %2982 = vmin.xlane.f32.xlu0 %v2981
    %v2983 = vpop.xlane.xlu0 %2982
    %vm2984 = vcmp.eq.f32.partialorder %v2981, %v2983
    %v2985 = vsel %vm2984, %v2980, inf
    %2986 = vmin.xlane.f32.xlu0 %v2985
    %v2987 = vpop.xlane.xlu0 %2986
    %v2988 = vcvt.f32.s32 %v2987
    %v2989 = vcvt.f32.s32 %v2983
    %v2990 = vshll.u32 %v2989, 16
    %v2991 = vadd.s32 %v2990, %v2988
    %v2992 = vsel %vm2221, %v2508, 2147483647
    %v2993 = vand.u32 %v2992, 65535
    %v2994 = vshra.s32 %v2992, 16
    %v2995 = vcvt.s32.f32 %v2993
    %v2996 = vcvt.s32.f32 %v2994
    %2997 = vmin.xlane.f32.xlu0 %v2996
    %v2998 = vpop.xlane.xlu0 %2997
    %vm2999 = vcmp.eq.f32.partialorder %v2996, %v2998
    %v3000 = vsel %vm2999, %v2995, inf
    %3001 = vmin.xlane.f32.xlu0 %v3000
    %v3002 = vpop.xlane.xlu0 %3001
    %v3003 = vcvt.f32.s32 %v3002
    %v3004 = vcvt.f32.s32 %v2998
    %v3005 = vshll.u32 %v3004, 16
    %v3006 = vadd.s32 %v3005, %v3003
    %v3007 = vsel %vm2221, %v2509, 2147483647
    %v3008 = vand.u32 %v3007, 65535
    %v3009 = vshra.s32 %v3007, 16
    %v3010 = vcvt.s32.f32 %v3008
    %v3011 = vcvt.s32.f32 %v3009
    %3012 = vmin.xlane.f32.xlu0 %v3011
    %v3013 = vpop.xlane.xlu0 %3012
    %vm3014 = vcmp.eq.f32.partialorder %v3011, %v3013
    %v3015 = vsel %vm3014, %v3010, inf
    %3016 = vmin.xlane.f32.xlu0 %v3015
    %v3017 = vpop.xlane.xlu0 %3016
    %v3018 = vcvt.f32.s32 %v3017
    %v3019 = vcvt.f32.s32 %v3013
    %v3020 = vshll.u32 %v3019, 16
    %v3021 = vadd.s32 %v3020, %v3018
    %v3022 = vsel %vm2221, %v2510, 2147483647
    %v3023 = vand.u32 %v3022, 65535
    %v3024 = vshra.s32 %v3022, 16
    %v3025 = vcvt.s32.f32 %v3023
    %v3026 = vcvt.s32.f32 %v3024
    %3027 = vmin.xlane.f32.xlu0 %v3026
    %v3028 = vpop.xlane.xlu0 %3027
    %vm3029 = vcmp.eq.f32.partialorder %v3026, %v3028
    %v3030 = vsel %vm3029, %v3025, inf
    %3031 = vmin.xlane.f32.xlu0 %v3030
    %v3032 = vpop.xlane.xlu0 %3031
    %v3033 = vcvt.f32.s32 %v3032
    %v3034 = vcvt.f32.s32 %v3028
    %v3035 = vshll.u32 %v3034, 16
    %v3036 = vadd.s32 %v3035, %v3033
    %v3037 = vsel %vm2221, %v2511, 2147483647
    %v3038 = vand.u32 %v3037, 65535
    %v3039 = vshra.s32 %v3037, 16
    %v3040 = vcvt.s32.f32 %v3038
    %v3041 = vcvt.s32.f32 %v3039
    %3042 = vmin.xlane.f32.xlu0 %v3041
    %v3043 = vpop.xlane.xlu0 %3042
    %vm3044 = vcmp.eq.f32.partialorder %v3041, %v3043
    %v3045 = vsel %vm3044, %v3040, inf
    %3046 = vmin.xlane.f32.xlu0 %v3045
    %v3047 = vpop.xlane.xlu0 %3046
    %v3048 = vcvt.f32.s32 %v3047
    %v3049 = vcvt.f32.s32 %v3043
    %v3050 = vshll.u32 %v3049, 16
    %v3051 = vadd.s32 %v3050, %v3048
    %v3052 = vsel %vm2221, %v2512, 2147483647
    %v3053 = vand.u32 %v3052, 65535
    %v3054 = vshra.s32 %v3052, 16
    %v3055 = vcvt.s32.f32 %v3053
    %v3056 = vcvt.s32.f32 %v3054
    %3057 = vmin.xlane.f32.xlu0 %v3056
    %v3058 = vpop.xlane.xlu0 %3057
    %vm3059 = vcmp.eq.f32.partialorder %v3056, %v3058
    %v3060 = vsel %vm3059, %v3055, inf
    %3061 = vmin.xlane.f32.xlu0 %v3060
    %v3062 = vpop.xlane.xlu0 %3061
    %v3063 = vcvt.f32.s32 %v3062
    %v3064 = vcvt.f32.s32 %v3058
    %v3065 = vshll.u32 %v3064, 16
    %v3066 = vadd.s32 %v3065, %v3063
    %v3067 = vsel %vm2221, %v2513, 2147483647
    %v3068 = vand.u32 %v3067, 65535
    %v3069 = vshra.s32 %v3067, 16
    %v3070 = vcvt.s32.f32 %v3068
    %v3071 = vcvt.s32.f32 %v3069
    %3072 = vmin.xlane.f32.xlu0 %v3071
    %v3073 = vpop.xlane.xlu0 %3072
    %vm3074 = vcmp.eq.f32.partialorder %v3071, %v3073
    %v3075 = vsel %vm3074, %v3070, inf
    %3076 = vmin.xlane.f32.xlu0 %v3075
    %v3077 = vpop.xlane.xlu0 %3076
    %v3078 = vcvt.f32.s32 %v3077
    %v3079 = vcvt.f32.s32 %v3073
    %v3080 = vshll.u32 %v3079, 16
    %v3081 = vadd.s32 %v3080, %v3078
    %v3082 = vsel %vm2221, %v2514, 2147483647
    %v3083 = vand.u32 %v3082, 65535
    %v3084 = vshra.s32 %v3082, 16
    %v3085 = vcvt.s32.f32 %v3083
    %v3086 = vcvt.s32.f32 %v3084
    %3087 = vmin.xlane.f32.xlu0 %v3086
    %v3088 = vpop.xlane.xlu0 %3087
    %vm3089 = vcmp.eq.f32.partialorder %v3086, %v3088
    %v3090 = vsel %vm3089, %v3085, inf
    %3091 = vmin.xlane.f32.xlu0 %v3090
    %v3092 = vpop.xlane.xlu0 %3091
    %v3093 = vcvt.f32.s32 %v3092
    %v3094 = vcvt.f32.s32 %v3088
    %v3095 = vshll.u32 %v3094, 16
    %v3096 = vadd.s32 %v3095, %v3093
    %v3097 = vsel %vm2221, %v2515, 2147483647
    %v3098 = vand.u32 %v3097, 65535
    %v3099 = vshra.s32 %v3097, 16
    %v3100 = vcvt.s32.f32 %v3098
    %v3101 = vcvt.s32.f32 %v3099
    %3102 = vmin.xlane.f32.xlu0 %v3101
    %v3103 = vpop.xlane.xlu0 %3102
    %vm3104 = vcmp.eq.f32.partialorder %v3101, %v3103
    %v3105 = vsel %vm3104, %v3100, inf
    %3106 = vmin.xlane.f32.xlu0 %v3105
    %v3107 = vpop.xlane.xlu0 %3106
    %v3108 = vcvt.f32.s32 %v3107
    %v3109 = vcvt.f32.s32 %v3103
    %v3110 = vshll.u32 %v3109, 16
    %v3111 = vadd.s32 %v3110, %v3108
    %v3112 = vsel %vm2221, %v2516, 2147483647
    %v3113 = vand.u32 %v3112, 65535
    %v3114 = vshra.s32 %v3112, 16
    %v3115 = vcvt.s32.f32 %v3113
    %v3116 = vcvt.s32.f32 %v3114
    %3117 = vmin.xlane.f32.xlu0 %v3116
    %v3118 = vpop.xlane.xlu0 %3117
    %vm3119 = vcmp.eq.f32.partialorder %v3116, %v3118
    %v3120 = vsel %vm3119, %v3115, inf
    %3121 = vmin.xlane.f32.xlu0 %v3120
    %v3122 = vpop.xlane.xlu0 %3121
    %v3123 = vcvt.f32.s32 %v3122
    %v3124 = vcvt.f32.s32 %v3118
    %v3125 = vshll.u32 %v3124, 16
    %v3126 = vadd.s32 %v3125, %v3123
    %v3127 = vsel %vm2221, %v2517, 2147483647
    %v3128 = vand.u32 %v3127, 65535
    %v3129 = vshra.s32 %v3127, 16
    %v3130 = vcvt.s32.f32 %v3128
    %v3131 = vcvt.s32.f32 %v3129
    %3132 = vmin.xlane.f32.xlu0 %v3131
    %v3133 = vpop.xlane.xlu0 %3132
    %vm3134 = vcmp.eq.f32.partialorder %v3131, %v3133
    %v3135 = vsel %vm3134, %v3130, inf
    %3136 = vmin.xlane.f32.xlu0 %v3135
    %v3137 = vpop.xlane.xlu0 %3136
    %v3138 = vcvt.f32.s32 %v3137
    %v3139 = vcvt.f32.s32 %v3133
    %v3140 = vshll.u32 %v3139, 16
    %v3141 = vadd.s32 %v3140, %v3138
    %v3142 = vsel %vm2221, %v2518, 2147483647
    %v3143 = vand.u32 %v3142, 65535
    %v3144 = vshra.s32 %v3142, 16
    %v3145 = vcvt.s32.f32 %v3143
    %v3146 = vcvt.s32.f32 %v3144
    %3147 = vmin.xlane.f32.xlu0 %v3146
    %v3148 = vpop.xlane.xlu0 %3147
    %vm3149 = vcmp.eq.f32.partialorder %v3146, %v3148
    %v3150 = vsel %vm3149, %v3145, inf
    %3151 = vmin.xlane.f32.xlu0 %v3150
    %v3152 = vpop.xlane.xlu0 %3151
    %v3153 = vcvt.f32.s32 %v3152
    %v3154 = vcvt.f32.s32 %v3148
    %v3155 = vshll.u32 %v3154, 16
    %v3156 = vadd.s32 %v3155, %v3153
    %v3157 = vsel %vm2221, %v2519, 2147483647
    %v3158 = vand.u32 %v3157, 65535
    %v3159 = vshra.s32 %v3157, 16
    %v3160 = vcvt.s32.f32 %v3158
    %v3161 = vcvt.s32.f32 %v3159
    %3162 = vmin.xlane.f32.xlu0 %v3161
    %v3163 = vpop.xlane.xlu0 %3162
    %vm3164 = vcmp.eq.f32.partialorder %v3161, %v3163
    %v3165 = vsel %vm3164, %v3160, inf
    %3166 = vmin.xlane.f32.xlu0 %v3165
    %v3167 = vpop.xlane.xlu0 %3166
    %v3168 = vcvt.f32.s32 %v3167
    %v3169 = vcvt.f32.s32 %v3163
    %v3170 = vshll.u32 %v3169, 16
    %v3171 = vadd.s32 %v3170, %v3168
    %v3172 = vsel %vm2221, %v2520, 2147483647
    %v3173 = vand.u32 %v3172, 65535
    %v3174 = vshra.s32 %v3172, 16
    %v3175 = vcvt.s32.f32 %v3173
    %v3176 = vcvt.s32.f32 %v3174
    %3177 = vmin.xlane.f32.xlu0 %v3176
    %v3178 = vpop.xlane.xlu0 %3177
    %vm3179 = vcmp.eq.f32.partialorder %v3176, %v3178
    %v3180 = vsel %vm3179, %v3175, inf
    %3181 = vmin.xlane.f32.xlu0 %v3180
    %v3182 = vpop.xlane.xlu0 %3181
    %v3183 = vcvt.f32.s32 %v3182
    %v3184 = vcvt.f32.s32 %v3178
    %v3185 = vshll.u32 %v3184, 16
    %v3186 = vadd.s32 %v3185, %v3183
    %v3187 = vsel %vm2221, %v2521, 2147483647
    %v3188 = vand.u32 %v3187, 65535
    %v3189 = vshra.s32 %v3187, 16
    %v3190 = vcvt.s32.f32 %v3188
    %v3191 = vcvt.s32.f32 %v3189
    %3192 = vmin.xlane.f32.xlu0 %v3191
    %v3193 = vpop.xlane.xlu0 %3192
    %vm3194 = vcmp.eq.f32.partialorder %v3191, %v3193
    %v3195 = vsel %vm3194, %v3190, inf
    %3196 = vmin.xlane.f32.xlu0 %v3195
    %v3197 = vpop.xlane.xlu0 %3196
    %v3198 = vcvt.f32.s32 %v3197
    %v3199 = vcvt.f32.s32 %v3193
    %v3200 = vshll.u32 %v3199, 16
    %v3201 = vadd.s32 %v3200, %v3198
    %v3202 = vsel %vm2221, %v2522, 2147483647
    %v3203 = vand.u32 %v3202, 65535
    %v3204 = vshra.s32 %v3202, 16
    %v3205 = vcvt.s32.f32 %v3203
    %v3206 = vcvt.s32.f32 %v3204
    %3207 = vmin.xlane.f32.xlu0 %v3206
    %v3208 = vpop.xlane.xlu0 %3207
    %vm3209 = vcmp.eq.f32.partialorder %v3206, %v3208
    %v3210 = vsel %vm3209, %v3205, inf
    %3211 = vmin.xlane.f32.xlu0 %v3210
    %v3212 = vpop.xlane.xlu0 %3211
    %v3213 = vcvt.f32.s32 %v3212
    %v3214 = vcvt.f32.s32 %v3208
    %v3215 = vshll.u32 %v3214, 16
    %v3216 = vadd.s32 %v3215, %v3213
    %v3217 = vsel %vm2221, %v2523, 2147483647
    %v3218 = vand.u32 %v3217, 65535
    %v3219 = vshra.s32 %v3217, 16
    %v3220 = vcvt.s32.f32 %v3218
    %v3221 = vcvt.s32.f32 %v3219
    %3222 = vmin.xlane.f32.xlu0 %v3221
    %v3223 = vpop.xlane.xlu0 %3222
    %vm3224 = vcmp.eq.f32.partialorder %v3221, %v3223
    %v3225 = vsel %vm3224, %v3220, inf
    %3226 = vmin.xlane.f32.xlu0 %v3225
    %v3227 = vpop.xlane.xlu0 %3226
    %v3228 = vcvt.f32.s32 %v3227
    %v3229 = vcvt.f32.s32 %v3223
    %v3230 = vshll.u32 %v3229, 16
    %v3231 = vadd.s32 %v3230, %v3228
    %v3232 = vsel %vm2221, %v2524, 2147483647
    %v3233 = vand.u32 %v3232, 65535
    %v3234 = vshra.s32 %v3232, 16
    %v3235 = vcvt.s32.f32 %v3233
    %v3236 = vcvt.s32.f32 %v3234
    %3237 = vmin.xlane.f32.xlu0 %v3236
    %v3238 = vpop.xlane.xlu0 %3237
    %vm3239 = vcmp.eq.f32.partialorder %v3236, %v3238
    %v3240 = vsel %vm3239, %v3235, inf
    %3241 = vmin.xlane.f32.xlu0 %v3240
    %v3242 = vpop.xlane.xlu0 %3241
    %v3243 = vcvt.f32.s32 %v3242
    %v3244 = vcvt.f32.s32 %v3238
    %v3245 = vshll.u32 %v3244, 16
    %v3246 = vadd.s32 %v3245, %v3243
    %v3247 = vsel %vm2221, %v2525, 2147483647
    %v3248 = vand.u32 %v3247, 65535
    %v3249 = vshra.s32 %v3247, 16
    %v3250 = vcvt.s32.f32 %v3248
    %v3251 = vcvt.s32.f32 %v3249
    %3252 = vmin.xlane.f32.xlu0 %v3251
    %v3253 = vpop.xlane.xlu0 %3252
    %vm3254 = vcmp.eq.f32.partialorder %v3251, %v3253
    %v3255 = vsel %vm3254, %v3250, inf
    %3256 = vmin.xlane.f32.xlu0 %v3255
    %v3257 = vpop.xlane.xlu0 %3256
    %v3258 = vcvt.f32.s32 %v3257
    %v3259 = vcvt.f32.s32 %v3253
    %v3260 = vshll.u32 %v3259, 16
    %v3261 = vadd.s32 %v3260, %v3258
    %v3262 = vsel %vm2221, %v2526, 2147483647
    %v3263 = vand.u32 %v3262, 65535
    %v3264 = vshra.s32 %v3262, 16
    %v3265 = vcvt.s32.f32 %v3263
    %v3266 = vcvt.s32.f32 %v3264
    %3267 = vmin.xlane.f32.xlu0 %v3266
    %v3268 = vpop.xlane.xlu0 %3267
    %vm3269 = vcmp.eq.f32.partialorder %v3266, %v3268
    %v3270 = vsel %vm3269, %v3265, inf
    %3271 = vmin.xlane.f32.xlu0 %v3270
    %v3272 = vpop.xlane.xlu0 %3271
    %v3273 = vcvt.f32.s32 %v3272
    %v3274 = vcvt.f32.s32 %v3268
    %v3275 = vshll.u32 %v3274, 16
    %v3276 = vadd.s32 %v3275, %v3273
    %v3277 = vsel %vm2221, %v2527, 2147483647
    %v3278 = vand.u32 %v3277, 65535
    %v3279 = vshra.s32 %v3277, 16
    %v3280 = vcvt.s32.f32 %v3278
    %v3281 = vcvt.s32.f32 %v3279
    %3282 = vmin.xlane.f32.xlu0 %v3281
    %v3283 = vpop.xlane.xlu0 %3282
    %vm3284 = vcmp.eq.f32.partialorder %v3281, %v3283
    %v3285 = vsel %vm3284, %v3280, inf
    %3286 = vmin.xlane.f32.xlu0 %v3285
    %v3287 = vpop.xlane.xlu0 %3286
    %v3288 = vcvt.f32.s32 %v3287
    %v3289 = vcvt.f32.s32 %v3283
    %v3290 = vshll.u32 %v3289, 16
    %v3291 = vadd.s32 %v3290, %v3288
    %v3292 = vsel %vm2221, %v2528, 2147483647
    %v3293 = vand.u32 %v3292, 65535
    %v3294 = vshra.s32 %v3292, 16
    %v3295 = vcvt.s32.f32 %v3293
    %v3296 = vcvt.s32.f32 %v3294
    %3297 = vmin.xlane.f32.xlu0 %v3296
    %v3298 = vpop.xlane.xlu0 %3297
    %vm3299 = vcmp.eq.f32.partialorder %v3296, %v3298
    %v3300 = vsel %vm3299, %v3295, inf
    %3301 = vmin.xlane.f32.xlu0 %v3300
    %v3302 = vpop.xlane.xlu0 %3301
    %v3303 = vcvt.f32.s32 %v3302
    %v3304 = vcvt.f32.s32 %v3298
    %v3305 = vshll.u32 %v3304, 16
    %v3306 = vadd.s32 %v3305, %v3303
    %v3307 = vsel %vm2221, %v2529, 2147483647
    %v3308 = vand.u32 %v3307, 65535
    %v3309 = vshra.s32 %v3307, 16
    %v3310 = vcvt.s32.f32 %v3308
    %v3311 = vcvt.s32.f32 %v3309
    %3312 = vmin.xlane.f32.xlu0 %v3311
    %v3313 = vpop.xlane.xlu0 %3312
    %vm3314 = vcmp.eq.f32.partialorder %v3311, %v3313
    %v3315 = vsel %vm3314, %v3310, inf
    %3316 = vmin.xlane.f32.xlu0 %v3315
    %v3317 = vpop.xlane.xlu0 %3316
    %v3318 = vcvt.f32.s32 %v3317
    %v3319 = vcvt.f32.s32 %v3313
    %v3320 = vshll.u32 %v3319, 16
    %v3321 = vadd.s32 %v3320, %v3318
    %v3322 = vsel %vm2221, %v2530, 2147483647
    %v3323 = vand.u32 %v3322, 65535
    %v3324 = vshra.s32 %v3322, 16
    %v3325 = vcvt.s32.f32 %v3323
    %v3326 = vcvt.s32.f32 %v3324
    %3327 = vmin.xlane.f32.xlu0 %v3326
    %v3328 = vpop.xlane.xlu0 %3327
    %vm3329 = vcmp.eq.f32.partialorder %v3326, %v3328
    %v3330 = vsel %vm3329, %v3325, inf
    %3331 = vmin.xlane.f32.xlu0 %v3330
    %v3332 = vpop.xlane.xlu0 %3331
    %v3333 = vcvt.f32.s32 %v3332
    %v3334 = vcvt.f32.s32 %v3328
    %v3335 = vshll.u32 %v3334, 16
    %v3336 = vadd.s32 %v3335, %v3333
    %v3337 = vsel %vm2221, %v2531, 2147483647
    %v3338 = vand.u32 %v3337, 65535
    %v3339 = vshra.s32 %v3337, 16
    %v3340 = vcvt.s32.f32 %v3338
    %v3341 = vcvt.s32.f32 %v3339
    %3342 = vmin.xlane.f32.xlu0 %v3341
    %v3343 = vpop.xlane.xlu0 %3342
    %vm3344 = vcmp.eq.f32.partialorder %v3341, %v3343
    %v3345 = vsel %vm3344, %v3340, inf
    %3346 = vmin.xlane.f32.xlu0 %v3345
    %v3347 = vpop.xlane.xlu0 %3346
    %v3348 = vcvt.f32.s32 %v3347
    %v3349 = vcvt.f32.s32 %v3343
    %v3350 = vshll.u32 %v3349, 16
    %v3351 = vadd.s32 %v3350, %v3348
    %v3352 = vsel %vm2221, %v2532, 2147483647
    %v3353 = vand.u32 %v3352, 65535
    %v3354 = vshra.s32 %v3352, 16
    %v3355 = vcvt.s32.f32 %v3353
    %v3356 = vcvt.s32.f32 %v3354
    %3357 = vmin.xlane.f32.xlu0 %v3356
    %v3358 = vpop.xlane.xlu0 %3357
    %vm3359 = vcmp.eq.f32.partialorder %v3356, %v3358
    %v3360 = vsel %vm3359, %v3355, inf
    %3361 = vmin.xlane.f32.xlu0 %v3360
    %v3362 = vpop.xlane.xlu0 %3361
    %v3363 = vcvt.f32.s32 %v3362
    %v3364 = vcvt.f32.s32 %v3358
    %v3365 = vshll.u32 %v3364, 16
    %v3366 = vadd.s32 %v3365, %v3363
    %v3367 = vsel %vm2221, %v2533, 2147483647
    %v3368 = vand.u32 %v3367, 65535
    %v3369 = vshra.s32 %v3367, 16
    %v3370 = vcvt.s32.f32 %v3368
    %v3371 = vcvt.s32.f32 %v3369
    %3372 = vmin.xlane.f32.xlu0 %v3371
    %v3373 = vpop.xlane.xlu0 %3372
    %vm3374 = vcmp.eq.f32.partialorder %v3371, %v3373
    %v3375 = vsel %vm3374, %v3370, inf
    %3376 = vmin.xlane.f32.xlu0 %v3375
    %v3377 = vpop.xlane.xlu0 %3376
    %v3378 = vcvt.f32.s32 %v3377
    %v3379 = vcvt.f32.s32 %v3373
    %v3380 = vshll.u32 %v3379, 16
    %v3381 = vadd.s32 %v3380, %v3378
    %v3382 = vsel %vm2221, %v2534, 2147483647
    %v3383 = vand.u32 %v3382, 65535
    %v3384 = vshra.s32 %v3382, 16
    %v3385 = vcvt.s32.f32 %v3383
    %v3386 = vcvt.s32.f32 %v3384
    %3387 = vmin.xlane.f32.xlu0 %v3386
    %v3388 = vpop.xlane.xlu0 %3387
    %vm3389 = vcmp.eq.f32.partialorder %v3386, %v3388
    %v3390 = vsel %vm3389, %v3385, inf
    %3391 = vmin.xlane.f32.xlu0 %v3390
    %v3392 = vpop.xlane.xlu0 %3391
    %v3393 = vcvt.f32.s32 %v3392
    %v3394 = vcvt.f32.s32 %v3388
    %v3395 = vshll.u32 %v3394, 16
    %v3396 = vadd.s32 %v3395, %v3393
    %v3397 = vsel %vm2221, %v2535, 2147483647
    %v3398 = vand.u32 %v3397, 65535
    %v3399 = vshra.s32 %v3397, 16
    %v3400 = vcvt.s32.f32 %v3398
    %v3401 = vcvt.s32.f32 %v3399
    %3402 = vmin.xlane.f32.xlu0 %v3401
    %v3403 = vpop.xlane.xlu0 %3402
    %vm3404 = vcmp.eq.f32.partialorder %v3401, %v3403
    %v3405 = vsel %vm3404, %v3400, inf
    %3406 = vmin.xlane.f32.xlu0 %v3405
    %v3407 = vpop.xlane.xlu0 %3406
    %v3408 = vcvt.f32.s32 %v3407
    %v3409 = vcvt.f32.s32 %v3403
    %v3410 = vshll.u32 %v3409, 16
    %v3411 = vadd.s32 %v3410, %v3408
    %v3412 = vsel %vm2221, %v2536, 2147483647
    %v3413 = vand.u32 %v3412, 65535
    %v3414 = vshra.s32 %v3412, 16
    %v3415 = vcvt.s32.f32 %v3413
    %v3416 = vcvt.s32.f32 %v3414
    %3417 = vmin.xlane.f32.xlu0 %v3416
    %v3418 = vpop.xlane.xlu0 %3417
    %vm3419 = vcmp.eq.f32.partialorder %v3416, %v3418
    %v3420 = vsel %vm3419, %v3415, inf
    %3421 = vmin.xlane.f32.xlu0 %v3420
    %v3422 = vpop.xlane.xlu0 %3421
    %v3423 = vcvt.f32.s32 %v3422
    %v3424 = vcvt.f32.s32 %v3418
    %v3425 = vshll.u32 %v3424, 16
    %v3426 = vadd.s32 %v3425, %v3423
    %v3427 = vsel %vm2221, %v2537, 2147483647
    %v3428 = vand.u32 %v3427, 65535
    %v3429 = vshra.s32 %v3427, 16
    %v3430 = vcvt.s32.f32 %v3428
    %v3431 = vcvt.s32.f32 %v3429
    %3432 = vmin.xlane.f32.xlu0 %v3431
    %v3433 = vpop.xlane.xlu0 %3432
    %vm3434 = vcmp.eq.f32.partialorder %v3431, %v3433
    %v3435 = vsel %vm3434, %v3430, inf
    %3436 = vmin.xlane.f32.xlu0 %v3435
    %v3437 = vpop.xlane.xlu0 %3436
    %v3438 = vcvt.f32.s32 %v3437
    %v3439 = vcvt.f32.s32 %v3433
    %v3440 = vshll.u32 %v3439, 16
    %v3441 = vadd.s32 %v3440, %v3438
    %v3442 = vsel %vm2221, %v2538, 2147483647
    %v3443 = vand.u32 %v3442, 65535
    %v3444 = vshra.s32 %v3442, 16
    %v3445 = vcvt.s32.f32 %v3443
    %v3446 = vcvt.s32.f32 %v3444
    %3447 = vmin.xlane.f32.xlu0 %v3446
    %v3448 = vpop.xlane.xlu0 %3447
    %vm3449 = vcmp.eq.f32.partialorder %v3446, %v3448
    %v3450 = vsel %vm3449, %v3445, inf
    %3451 = vmin.xlane.f32.xlu0 %v3450
    %v3452 = vpop.xlane.xlu0 %3451
    %v3453 = vcvt.f32.s32 %v3452
    %v3454 = vcvt.f32.s32 %v3448
    %v3455 = vshll.u32 %v3454, 16
    %v3456 = vadd.s32 %v3455, %v3453
    %v3457 = vsel %vm2221, %v2539, 2147483647
    %v3458 = vand.u32 %v3457, 65535
    %v3459 = vshra.s32 %v3457, 16
    %v3460 = vcvt.s32.f32 %v3458
    %v3461 = vcvt.s32.f32 %v3459
    %3462 = vmin.xlane.f32.xlu0 %v3461
    %v3463 = vpop.xlane.xlu0 %3462
    %vm3464 = vcmp.eq.f32.partialorder %v3461, %v3463
    %v3465 = vsel %vm3464, %v3460, inf
    %3466 = vmin.xlane.f32.xlu0 %v3465
    %v3467 = vpop.xlane.xlu0 %3466
    %v3468 = vcvt.f32.s32 %v3467
    %v3469 = vcvt.f32.s32 %v3463
    %v3470 = vshll.u32 %v3469, 16
    %v3471 = vadd.s32 %v3470, %v3468
    %v3472 = vsel %vm2221, %v2540, 2147483647
    %v3473 = vand.u32 %v3472, 65535
    %v3474 = vshra.s32 %v3472, 16
    %v3475 = vcvt.s32.f32 %v3473
    %v3476 = vcvt.s32.f32 %v3474
    %3477 = vmin.xlane.f32.xlu0 %v3476
    %v3478 = vpop.xlane.xlu0 %3477
    %vm3479 = vcmp.eq.f32.partialorder %v3476, %v3478
    %v3480 = vsel %vm3479, %v3475, inf
    %3481 = vmin.xlane.f32.xlu0 %v3480
    %v3482 = vpop.xlane.xlu0 %3481
    %v3483 = vcvt.f32.s32 %v3482
    %v3484 = vcvt.f32.s32 %v3478
    %v3485 = vshll.u32 %v3484, 16
    %v3486 = vadd.s32 %v3485, %v3483
    %v3487 = vsel %vm2221, %v2541, 2147483647
    %v3488 = vand.u32 %v3487, 65535
    %v3489 = vshra.s32 %v3487, 16
    %v3490 = vcvt.s32.f32 %v3488
    %v3491 = vcvt.s32.f32 %v3489
    %3492 = vmin.xlane.f32.xlu0 %v3491
    %v3493 = vpop.xlane.xlu0 %3492
    %vm3494 = vcmp.eq.f32.partialorder %v3491, %v3493
    %v3495 = vsel %vm3494, %v3490, inf
    %3496 = vmin.xlane.f32.xlu0 %v3495
    %v3497 = vpop.xlane.xlu0 %3496
    %v3498 = vcvt.f32.s32 %v3497
    %v3499 = vcvt.f32.s32 %v3493
    %v3500 = vshll.u32 %v3499, 16
    %v3501 = vadd.s32 %v3500, %v3498
    %vm3502 = vcmp.eq.s32.totalorder %v1634, %v2556
    %vm3503 = vcmp.eq.s32.totalorder %v1634, %v2571
    %vm3504 = vcmp.eq.s32.totalorder %v1634, %v2586
    %vm3505 = vcmp.eq.s32.totalorder %v1634, %v2601
    %vm3506 = vcmp.eq.s32.totalorder %v1634, %v2616
    %vm3507 = vcmp.eq.s32.totalorder %v1634, %v2631
    %vm3508 = vcmp.eq.s32.totalorder %v1634, %v2646
    %vm3509 = vcmp.eq.s32.totalorder %v1634, %v2661
    %vm3510 = vcmp.eq.s32.totalorder %v1634, %v2676
    %vm3511 = vcmp.eq.s32.totalorder %v1634, %v2691
    %vm3512 = vcmp.eq.s32.totalorder %v1634, %v2706
    %vm3513 = vcmp.eq.s32.totalorder %v1634, %v2721
    %vm3514 = vcmp.eq.s32.totalorder %v1634, %v2736
    %vm3515 = vcmp.eq.s32.totalorder %v1634, %v2751
    %vm3516 = vcmp.eq.s32.totalorder %v1634, %v2766
    %vm3517 = vcmp.eq.s32.totalorder %v1634, %v2781
    %vm3518 = vcmp.eq.s32.totalorder %v1634, %v2796
    %vm3519 = vcmp.eq.s32.totalorder %v1634, %v2811
    %vm3520 = vcmp.eq.s32.totalorder %v1634, %v2826
    %vm3521 = vcmp.eq.s32.totalorder %v1634, %v2841
    %vm3522 = vcmp.eq.s32.totalorder %v1634, %v2856
    %vm3523 = vcmp.eq.s32.totalorder %v1634, %v2871
    %vm3524 = vcmp.eq.s32.totalorder %v1634, %v2886
    %vm3525 = vcmp.eq.s32.totalorder %v1634, %v2901
    %vm3526 = vcmp.eq.s32.totalorder %v1634, %v2916
    %vm3527 = vcmp.eq.s32.totalorder %v1634, %v2931
    %vm3528 = vcmp.eq.s32.totalorder %v1634, %v2946
    %vm3529 = vcmp.eq.s32.totalorder %v1634, %v2961
    %vm3530 = vcmp.eq.s32.totalorder %v1634, %v2976
    %vm3531 = vcmp.eq.s32.totalorder %v1634, %v2991
    %vm3532 = vcmp.eq.s32.totalorder %v1634, %v3006
    %vm3533 = vcmp.eq.s32.totalorder %v1634, %v3021
    %vm3534 = vcmp.eq.s32.totalorder %v1634, %v3036
    %vm3535 = vcmp.eq.s32.totalorder %v1634, %v3051
    %vm3536 = vcmp.eq.s32.totalorder %v1634, %v3066
    %vm3537 = vcmp.eq.s32.totalorder %v1634, %v3081
    %vm3538 = vcmp.eq.s32.totalorder %v1634, %v3096
    %vm3539 = vcmp.eq.s32.totalorder %v1634, %v3111
    %vm3540 = vcmp.eq.s32.totalorder %v1634, %v3126
    %vm3541 = vcmp.eq.s32.totalorder %v1634, %v3141
    %vm3542 = vcmp.eq.s32.totalorder %v1634, %v3156
    %vm3543 = vcmp.eq.s32.totalorder %v1634, %v3171
    %vm3544 = vcmp.eq.s32.totalorder %v1634, %v3186
    %vm3545 = vcmp.eq.s32.totalorder %v1634, %v3201
    %vm3546 = vcmp.eq.s32.totalorder %v1634, %v3216
    %vm3547 = vcmp.eq.s32.totalorder %v1634, %v3231
    %vm3548 = vcmp.eq.s32.totalorder %v1634, %v3246
    %vm3549 = vcmp.eq.s32.totalorder %v1634, %v3261
    %vm3550 = vcmp.eq.s32.totalorder %v1634, %v3276
    %vm3551 = vcmp.eq.s32.totalorder %v1634, %v3291
    %vm3552 = vcmp.eq.s32.totalorder %v1634, %v3306
    %vm3553 = vcmp.eq.s32.totalorder %v1634, %v3321
    %vm3554 = vcmp.eq.s32.totalorder %v1634, %v3336
    %vm3555 = vcmp.eq.s32.totalorder %v1634, %v3351
    %vm3556 = vcmp.eq.s32.totalorder %v1634, %v3366
    %vm3557 = vcmp.eq.s32.totalorder %v1634, %v3381
    %vm3558 = vcmp.eq.s32.totalorder %v1634, %v3396
    %vm3559 = vcmp.eq.s32.totalorder %v1634, %v3411
    %vm3560 = vcmp.eq.s32.totalorder %v1634, %v3426
    %vm3561 = vcmp.eq.s32.totalorder %v1634, %v3441
    %vm3562 = vcmp.eq.s32.totalorder %v1634, %v3456
    %vm3563 = vcmp.eq.s32.totalorder %v1634, %v3471
    %vm3564 = vcmp.eq.s32.totalorder %v1634, %v3486
    %vm3565 = vcmp.eq.s32.totalorder %v1634, %v3501
    %v3566 = vsel %vm3502, 1, 0
    %v3567 = vsel %vm3503, 1, 0
    %v3568 = vsel %vm3504, 1, 0
    %v3569 = vsel %vm3505, 1, 0
    %v3570 = vsel %vm3506, 1, 0
    %v3571 = vsel %vm3507, 1, 0
    %v3572 = vsel %vm3508, 1, 0
    %v3573 = vsel %vm3509, 1, 0
    %v3574 = vsel %vm3510, 1, 0
    %v3575 = vsel %vm3511, 1, 0
    %v3576 = vsel %vm3512, 1, 0
    %v3577 = vsel %vm3513, 1, 0
    %v3578 = vsel %vm3514, 1, 0
    %v3579 = vsel %vm3515, 1, 0
    %v3580 = vsel %vm3516, 1, 0
    %v3581 = vsel %vm3517, 1, 0
    %v3582 = vsel %vm3518, 1, 0
    %v3583 = vsel %vm3519, 1, 0
    %v3584 = vsel %vm3520, 1, 0
    %v3585 = vsel %vm3521, 1, 0
    %v3586 = vsel %vm3522, 1, 0
    %v3587 = vsel %vm3523, 1, 0
    %v3588 = vsel %vm3524, 1, 0
    %v3589 = vsel %vm3525, 1, 0
    %v3590 = vsel %vm3526, 1, 0
    %v3591 = vsel %vm3527, 1, 0
    %v3592 = vsel %vm3528, 1, 0
    %v3593 = vsel %vm3529, 1, 0
    %v3594 = vsel %vm3530, 1, 0
    %v3595 = vsel %vm3531, 1, 0
    %v3596 = vsel %vm3532, 1, 0
    %v3597 = vsel %vm3533, 1, 0
    %v3598 = vsel %vm3534, 1, 0
    %v3599 = vsel %vm3535, 1, 0
    %v3600 = vsel %vm3536, 1, 0
    %v3601 = vsel %vm3537, 1, 0
    %v3602 = vsel %vm3538, 1, 0
    %v3603 = vsel %vm3539, 1, 0
    %v3604 = vsel %vm3540, 1, 0
    %v3605 = vsel %vm3541, 1, 0
    %v3606 = vsel %vm3542, 1, 0
    %v3607 = vsel %vm3543, 1, 0
    %v3608 = vsel %vm3544, 1, 0
    %v3609 = vsel %vm3545, 1, 0
    %v3610 = vsel %vm3546, 1, 0
    %v3611 = vsel %vm3547, 1, 0
    %v3612 = vsel %vm3548, 1, 0
    %v3613 = vsel %vm3549, 1, 0
    %v3614 = vsel %vm3550, 1, 0
    %v3615 = vsel %vm3551, 1, 0
    %v3616 = vsel %vm3552, 1, 0
    %v3617 = vsel %vm3553, 1, 0
    %v3618 = vsel %vm3554, 1, 0
    %v3619 = vsel %vm3555, 1, 0
    %v3620 = vsel %vm3556, 1, 0
    %v3621 = vsel %vm3557, 1, 0
    %v3622 = vsel %vm3558, 1, 0
    %v3623 = vsel %vm3559, 1, 0
    %v3624 = vsel %vm3560, 1, 0
    %v3625 = vsel %vm3561, 1, 0
    %v3626 = vsel %vm3562, 1, 0
    %v3627 = vsel %vm3563, 1, 0
    %v3628 = vsel %vm3564, 1, 0
    %v3629 = vsel %vm3565, 1, 0
    %v3630 = vcvt.s32.f32 %v3566
    %v3631 = vcvt.s32.f32 %v3567
    %v3632 = vcvt.s32.f32 %v3568
    %v3633 = vcvt.s32.f32 %v3569
    %v3634 = vcvt.s32.f32 %v3570
    %v3635 = vcvt.s32.f32 %v3571
    %v3636 = vcvt.s32.f32 %v3572
    %v3637 = vcvt.s32.f32 %v3573
    %v3638 = vcvt.s32.f32 %v3574
    %v3639 = vcvt.s32.f32 %v3575
    %v3640 = vcvt.s32.f32 %v3576
    %v3641 = vcvt.s32.f32 %v3577
    %v3642 = vcvt.s32.f32 %v3578
    %v3643 = vcvt.s32.f32 %v3579
    %v3644 = vcvt.s32.f32 %v3580
    %v3645 = vcvt.s32.f32 %v3581
    %v3646 = vcvt.s32.f32 %v3582
    %v3647 = vcvt.s32.f32 %v3583
    %v3648 = vcvt.s32.f32 %v3584
    %v3649 = vcvt.s32.f32 %v3585
    %v3650 = vcvt.s32.f32 %v3586
    %v3651 = vcvt.s32.f32 %v3587
    %v3652 = vcvt.s32.f32 %v3588
    %v3653 = vcvt.s32.f32 %v3589
    %v3654 = vcvt.s32.f32 %v3590
    %v3655 = vcvt.s32.f32 %v3591
    %v3656 = vcvt.s32.f32 %v3592
    %v3657 = vcvt.s32.f32 %v3593
    %v3658 = vcvt.s32.f32 %v3594
    %v3659 = vcvt.s32.f32 %v3595
    %v3660 = vcvt.s32.f32 %v3596
    %v3661 = vcvt.s32.f32 %v3597
    %v3662 = vcvt.s32.f32 %v3598
    %v3663 = vcvt.s32.f32 %v3599
    %v3664 = vcvt.s32.f32 %v3600
    %v3665 = vcvt.s32.f32 %v3601
    %v3666 = vcvt.s32.f32 %v3602
    %v3667 = vcvt.s32.f32 %v3603
    %v3668 = vcvt.s32.f32 %v3604
    %v3669 = vcvt.s32.f32 %v3605
    %v3670 = vcvt.s32.f32 %v3606
    %v3671 = vcvt.s32.f32 %v3607
    %v3672 = vcvt.s32.f32 %v3608
    %v3673 = vcvt.s32.f32 %v3609
    %v3674 = vcvt.s32.f32 %v3610
    %v3675 = vcvt.s32.f32 %v3611
    %v3676 = vcvt.s32.f32 %v3612
    %v3677 = vcvt.s32.f32 %v3613
    %v3678 = vcvt.s32.f32 %v3614
    %v3679 = vcvt.s32.f32 %v3615
    %v3680 = vcvt.s32.f32 %v3616
    %v3681 = vcvt.s32.f32 %v3617
    %v3682 = vcvt.s32.f32 %v3618
    %v3683 = vcvt.s32.f32 %v3619
    %v3684 = vcvt.s32.f32 %v3620
    %v3685 = vcvt.s32.f32 %v3621
    %v3686 = vcvt.s32.f32 %v3622
    %v3687 = vcvt.s32.f32 %v3623
    %v3688 = vcvt.s32.f32 %v3624
    %v3689 = vcvt.s32.f32 %v3625
    %v3690 = vcvt.s32.f32 %v3626
    %v3691 = vcvt.s32.f32 %v3627
    %v3692 = vcvt.s32.f32 %v3628
    %v3693 = vcvt.s32.f32 %v3629
    %v3694 = vld [vmem:[%s5] sm:$0xff]
    %v3695 = vld [vmem:[%s5 + $0x8] sm:$0xff]
    %v3696 = vld [vmem:[%s5 + $0x10] sm:$0xff]
    %v3697 = vld [vmem:[%s5 + $0x18] sm:$0xff]
    %v3698 = vld [vmem:[%s5 + $0x20] sm:$0xff]
    %v3699 = vld [vmem:[%s5 + $0x28] sm:$0xff]
    %v3700 = vld [vmem:[%s5 + $0x30] sm:$0xff]
    %v3701 = vld [vmem:[%s5 + $0x38] sm:$0xff]
    %3702 = vrot.lane.b32.xlu0 %v625, 120
    %v3703 = vpop.permute.xlu0 %3702
    %3704 = vrot.lane.b32.xlu0 %v626, 120
    %v3705 = vpop.permute.xlu0 %3704
    %3706 = vrot.lane.b32.xlu0 %v657, 120
    %v3707 = vpop.permute.xlu0 %3706
    %3708 = vrot.lane.b32.xlu0 %v658, 120
    %v3709 = vpop.permute.xlu0 %3708
    %3710 = vrot.lane.b32.xlu0 %v689, 120
    %v3711 = vpop.permute.xlu0 %3710
    %3712 = vrot.lane.b32.xlu0 %v690, 120
    %v3713 = vpop.permute.xlu0 %3712
    %3714 = vrot.lane.b32.xlu0 %v721, 120
    %v3715 = vpop.permute.xlu0 %3714
    %3716 = vrot.lane.b32.xlu0 %v722, 120
    %v3717 = vpop.permute.xlu0 %3716
    %3718 = vrot.lane.b32.xlu0 %v753, 120
    %v3719 = vpop.permute.xlu0 %3718
    %3720 = vrot.lane.b32.xlu0 %v754, 120
    %v3721 = vpop.permute.xlu0 %3720
    %3722 = vrot.lane.b32.xlu0 %v785, 120
    %v3723 = vpop.permute.xlu0 %3722
    %3724 = vrot.lane.b32.xlu0 %v786, 120
    %v3725 = vpop.permute.xlu0 %3724
    %3726 = vrot.lane.b32.xlu0 %v817, 120
    %v3727 = vpop.permute.xlu0 %3726
    %3728 = vrot.lane.b32.xlu0 %v818, 120
    %v3729 = vpop.permute.xlu0 %3728
    %3730 = vrot.lane.b32.xlu0 %v849, 120
    %v3731 = vpop.permute.xlu0 %3730
    %3732 = vrot.lane.b32.xlu0 %v850, 120
    %v3733 = vpop.permute.xlu0 %3732
    %3734 = vrot.lane.b32.xlu0 %v881, 120
    %v3735 = vpop.permute.xlu0 %3734
    %3736 = vrot.lane.b32.xlu0 %v882, 120
    %v3737 = vpop.permute.xlu0 %3736
    %3738 = vrot.lane.b32.xlu0 %v913, 120
    %v3739 = vpop.permute.xlu0 %3738
    %3740 = vrot.lane.b32.xlu0 %v914, 120
    %v3741 = vpop.permute.xlu0 %3740
    %3742 = vrot.lane.b32.xlu0 %v945, 120
    %v3743 = vpop.permute.xlu0 %3742
    %3744 = vrot.lane.b32.xlu0 %v946, 120
    %v3745 = vpop.permute.xlu0 %3744
    %3746 = vrot.lane.b32.xlu0 %v977, 120
    %v3747 = vpop.permute.xlu0 %3746
    %3748 = vrot.lane.b32.xlu0 %v978, 120
    %v3749 = vpop.permute.xlu0 %3748
    %3750 = vrot.lane.b32.xlu0 %v1009, 120
    %v3751 = vpop.permute.xlu0 %3750
    %3752 = vrot.lane.b32.xlu0 %v1010, 120
    %v3753 = vpop.permute.xlu0 %3752
    %3754 = vrot.lane.b32.xlu0 %v1041, 120
    %v3755 = vpop.permute.xlu0 %3754
    %3756 = vrot.lane.b32.xlu0 %v1042, 120
    %v3757 = vpop.permute.xlu0 %3756
    %3758 = vrot.lane.b32.xlu0 %v1073, 120
    %v3759 = vpop.permute.xlu0 %3758
    %3760 = vrot.lane.b32.xlu0 %v1074, 120
    %v3761 = vpop.permute.xlu0 %3760
    %3762 = vrot.lane.b32.xlu0 %v1105, 120
    %v3763 = vpop.permute.xlu0 %3762
    %3764 = vrot.lane.b32.xlu0 %v1106, 120
    %v3765 = vpop.permute.xlu0 %3764
    %3766 = vrot.lane.b32.xlu0 %v1137, 120
    %v3767 = vpop.permute.xlu0 %3766
    %3768 = vrot.lane.b32.xlu0 %v1138, 120
    %v3769 = vpop.permute.xlu0 %3768
    %3770 = vrot.lane.b32.xlu0 %v1169, 120
    %v3771 = vpop.permute.xlu0 %3770
    %3772 = vrot.lane.b32.xlu0 %v1170, 120
    %v3773 = vpop.permute.xlu0 %3772
    %3774 = vrot.lane.b32.xlu0 %v1201, 120
    %v3775 = vpop.permute.xlu0 %3774
    %3776 = vrot.lane.b32.xlu0 %v1202, 120
    %v3777 = vpop.permute.xlu0 %3776
    %3778 = vrot.lane.b32.xlu0 %v1233, 120
    %v3779 = vpop.permute.xlu0 %3778
    %3780 = vrot.lane.b32.xlu0 %v1234, 120
    %v3781 = vpop.permute.xlu0 %3780
    %3782 = vrot.lane.b32.xlu0 %v1265, 120
    %v3783 = vpop.permute.xlu0 %3782
    %3784 = vrot.lane.b32.xlu0 %v1266, 120
    %v3785 = vpop.permute.xlu0 %3784
    %3786 = vrot.lane.b32.xlu0 %v1297, 120
    %v3787 = vpop.permute.xlu0 %3786
    %3788 = vrot.lane.b32.xlu0 %v1298, 120
    %v3789 = vpop.permute.xlu0 %3788
    %3790 = vrot.lane.b32.xlu0 %v1329, 120
    %v3791 = vpop.permute.xlu0 %3790
    %3792 = vrot.lane.b32.xlu0 %v1330, 120
    %v3793 = vpop.permute.xlu0 %3792
    %3794 = vrot.lane.b32.xlu0 %v1361, 120
    %v3795 = vpop.permute.xlu0 %3794
    %3796 = vrot.lane.b32.xlu0 %v1362, 120
    %v3797 = vpop.permute.xlu0 %3796
    %3798 = vrot.lane.b32.xlu0 %v1393, 120
    %v3799 = vpop.permute.xlu0 %3798
    %3800 = vrot.lane.b32.xlu0 %v1394, 120
    %v3801 = vpop.permute.xlu0 %3800
    %3802 = vrot.lane.b32.xlu0 %v1425, 120
    %v3803 = vpop.permute.xlu0 %3802
    %3804 = vrot.lane.b32.xlu0 %v1426, 120
    %v3805 = vpop.permute.xlu0 %3804
    %3806 = vrot.lane.b32.xlu0 %v1457, 120
    %v3807 = vpop.permute.xlu0 %3806
    %3808 = vrot.lane.b32.xlu0 %v1458, 120
    %v3809 = vpop.permute.xlu0 %3808
    %3810 = vrot.lane.b32.xlu0 %v1489, 120
    %v3811 = vpop.permute.xlu0 %3810
    %3812 = vrot.lane.b32.xlu0 %v1490, 120
    %v3813 = vpop.permute.xlu0 %3812
    %3814 = vrot.lane.b32.xlu0 %v1521, 120
    %v3815 = vpop.permute.xlu0 %3814
    %3816 = vrot.lane.b32.xlu0 %v1522, 120
    %v3817 = vpop.permute.xlu0 %3816
    %3818 = vrot.lane.b32.xlu0 %v1553, 120
    %v3819 = vpop.permute.xlu0 %3818
    %3820 = vrot.lane.b32.xlu0 %v1554, 120
    %v3821 = vpop.permute.xlu0 %3820
    %3822 = vrot.lane.b32.xlu0 %v1585, 120
    %v3823 = vpop.permute.xlu0 %3822
    %3824 = vrot.lane.b32.xlu0 %v1586, 120
    %v3825 = vpop.permute.xlu0 %3824
    %3826 = vrot.lane.b32.xlu0 %v1617, 120
    %v3827 = vpop.permute.xlu0 %3826
    %3828 = vrot.lane.b32.xlu0 %v1618, 120
    %v3829 = vpop.permute.xlu0 %3828
    %v3830 = vsel %vm1643, %v3703, 0
    %v3832 = vsel %vm1643, %v3705, 0
    %v3834 = vsel %vm1643, %v3707, 0
    %v3836 = vsel %vm1643, %v3709, 0
    %v3838 = vsel %vm1643, %v3711, 0
    %v3840 = vsel %vm1643, %v3713, 0
    %v3842 = vsel %vm1643, %v3715, 0
    %v3844 = vsel %vm1643, %v3717, 0
    %v3846 = vsel %vm1643, %v3719, 0
    %v3848 = vsel %vm1643, %v3721, 0
    %v3850 = vsel %vm1643, %v3723, 0
    %v3852 = vsel %vm1643, %v3725, 0
    %v3854 = vsel %vm1643, %v3727, 0
    %v3856 = vsel %vm1643, %v3729, 0
    %v3858 = vsel %vm1643, %v3731, 0
    %v3860 = vsel %vm1643, %v3733, 0
    %v3862 = vsel %vm1643, %v3735, 0
    %v3864 = vsel %vm1643, %v3737, 0
    %v3866 = vsel %vm1643, %v3739, 0
    %v3868 = vsel %vm1643, %v3741, 0
    %v3870 = vsel %vm1643, %v3743, 0
    %v3872 = vsel %vm1643, %v3745, 0
    %v3874 = vsel %vm1643, %v3747, 0
    %v3876 = vsel %vm1643, %v3749, 0
    %v3878 = vsel %vm1643, %v3751, 0
    %v3880 = vsel %vm1643, %v3753, 0
    %v3882 = vsel %vm1643, %v3755, 0
    %v3884 = vsel %vm1643, %v3757, 0
    %v3886 = vsel %vm1643, %v3759, 0
    %v3888 = vsel %vm1643, %v3761, 0
    %v3890 = vsel %vm1643, %v3763, 0
    %v3892 = vsel %vm1643, %v3765, 0
    %v3894 = vsel %vm1643, %v3767, 0
    %v3896 = vsel %vm1643, %v3769, 0
    %v3898 = vsel %vm1643, %v3771, 0
    %v3900 = vsel %vm1643, %v3773, 0
    %v3902 = vsel %vm1643, %v3775, 0
    %v3904 = vsel %vm1643, %v3777, 0
    %v3906 = vsel %vm1643, %v3779, 0
    %v3908 = vsel %vm1643, %v3781, 0
    %v3910 = vsel %vm1643, %v3783, 0
    %v3912 = vsel %vm1643, %v3785, 0
    %v3914 = vsel %vm1643, %v3787, 0
    %v3916 = vsel %vm1643, %v3789, 0
    %v3918 = vsel %vm1643, %v3791, 0
    %v3920 = vsel %vm1643, %v3793, 0
    %v3922 = vsel %vm1643, %v3795, 0
    %v3924 = vsel %vm1643, %v3797, 0
    %v3926 = vsel %vm1643, %v3799, 0
    %v3928 = vsel %vm1643, %v3801, 0
    %v3930 = vsel %vm1643, %v3803, 0
    %v3932 = vsel %vm1643, %v3805, 0
    %v3934 = vsel %vm1643, %v3807, 0
    %v3936 = vsel %vm1643, %v3809, 0
    %v3938 = vsel %vm1643, %v3811, 0
    %v3940 = vsel %vm1643, %v3813, 0
    %v3942 = vsel %vm1643, %v3815, 0
    %v3944 = vsel %vm1643, %v3817, 0
    %v3946 = vsel %vm1643, %v3819, 0
    %v3948 = vsel %vm1643, %v3821, 0
    %v3950 = vsel %vm1643, %v3823, 0
    %v3952 = vsel %vm1643, %v3825, 0
    %v3954 = vsel %vm1643, %v3827, 0
    %v3956 = vsel %vm1643, %v3829, 0
    %3958 = vmatprep.subr.mxu0 0.0
    %3959 = vmatpush1.msra.mxu0 0.0
    %3960 = vmatprep.subr.mxu0 0.0
    %3961 = vmatpush1.msra.mxu0 0.0
    %3962 = vmatprep.subr.mxu0 0.0
    %3963 = vmatpush1.msra.mxu0 0.0
    %3964 = vmatprep.subr.mxu0 0.0
    %3965 = vmatpush1.msra.mxu0 0.0
    %3966 = vmatprep.subr.mxu0 0.0
    %3967 = vmatpush1.msra.mxu0 0.0
    %3968 = vmatprep.subr.mxu0 0.0
    %3969 = vmatpush1.msra.mxu0 0.0
    %3970 = vmatprep.subr.mxu0 0.0
    %3971 = vmatpush1.msra.mxu0 0.0
    %3972 = vmatprep.subr.mxu0 0.0
    %3973 = vmatpush1.msra.mxu0 0.0
    %3974 = vmatprep.subr.mxu0 0.0
    %3975 = vmatpush1.msra.mxu0 0.0
    %3976 = vmatprep.subr.mxu0 0.0
    %3977 = vmatpush1.msra.mxu0 0.0
    %3978 = vmatprep.subr.mxu0 0.0
    %3979 = vmatpush1.msra.mxu0 0.0
    %3980 = vmatprep.subr.mxu0 0.0
    %3981 = vmatpush1.msra.mxu0 0.0
    %3982 = vmatprep.subr.mxu0 0.0
    %3983 = vmatpush1.msra.mxu0 0.0
    %3984 = vmatprep.subr.mxu0 0.0
    %3985 = vmatpush1.msra.mxu0 0.0
    %3986 = vmatprep.subr.mxu0 0.0
    %3987 = vmatpush1.msra.mxu0 0.0
    %3988 = vmatprep.subr.mxu0 0.0
    %3989 = vmatpush1.msra.mxu0 %v1635
    %3990 = vmatprep.subr.mxu0 0.0
    %3991 = vmatpush2.msra.mxu0 0.0
    %3992 = vmatprep.subr.mxu0 0.0
    %3993 = vmatpush2.msra.mxu0 0.0
    %3994 = vmatprep.subr.mxu0 0.0
    %3995 = vmatpush2.msra.mxu0 0.0
    %3996 = vmatprep.subr.mxu0 0.0
    %3997 = vmatpush2.msra.mxu0 0.0
    %3998 = vmatprep.subr.mxu0 0.0
    %3999 = vmatpush2.msra.mxu0 0.0
    %4000 = vmatprep.subr.mxu0 0.0
    %4001 = vmatpush2.msra.mxu0 0.0
    %4002 = vmatprep.subr.mxu0 0.0
    %4003 = vmatpush2.msra.mxu0 0.0
    %4004 = vmatprep.subr.mxu0 0.0
    %4005 = vmatpush2.msra.mxu0 0.0
    %4006 = vmatprep.subr.mxu0 0.0
    %4007 = vmatpush2.msra.mxu0 0.0
    %4008 = vmatprep.subr.mxu0 0.0
    %4009 = vmatpush2.msra.mxu0 0.0
    %4010 = vmatprep.subr.mxu0 0.0
    %4011 = vmatpush2.msra.mxu0 0.0
    %4012 = vmatprep.subr.mxu0 0.0
    %4013 = vmatpush2.msra.mxu0 0.0
    %4014 = vmatprep.subr.mxu0 0.0
    %4015 = vmatpush2.msra.mxu0 0.0
    %4016 = vmatprep.subr.mxu0 0.0
    %4017 = vmatpush2.msra.mxu0 0.0
    %4018 = vmatprep.subr.mxu0 0.0
    %4019 = vmatpush2.msra.mxu0 0.0
    %4020 = vmatprep.subr.mxu0 0.0
    %4021 = vmatpush2.msra.mxu0 0.0
    %4022 = vmatprep.mubr.f32.mxu0 0.0
    %4023 = vmatmul.mubr.f32.gmra.mxu0 %v3830
    %v4024 = vpop.f32.mrf.mxu0
    %v4025 = vadd.f32 %v1641, %v4024
    %v4026 = vpop.f32.mrf.mxu0
    %4027 = vmatprep.mubr.f32.mxu0 0.0
    %4028 = vmatmul.mubr.f32.gmra.mxu0 %v3832
    %v4029 = vpop.f32.mrf.mxu0
    %v4030 = vadd.f32 %v1641, %v4029
    %v4031 = vpop.f32.mrf.mxu0
    %4032 = vmatprep.mubr.f32.mxu0 0.0
    %4033 = vmatmul.mubr.f32.gmra.mxu0 %v3834
    %v4034 = vpop.f32.mrf.mxu0
    %v4035 = vadd.f32 %v1641, %v4034
    %v4036 = vpop.f32.mrf.mxu0
    %4037 = vmatprep.mubr.f32.mxu0 0.0
    %4038 = vmatmul.mubr.f32.gmra.mxu0 %v3836
    %v4039 = vpop.f32.mrf.mxu0
    %v4040 = vadd.f32 %v1641, %v4039
    %v4041 = vpop.f32.mrf.mxu0
    %4042 = vmatprep.mubr.f32.mxu0 0.0
    %4043 = vmatmul.mubr.f32.gmra.mxu0 %v3838
    %v4044 = vpop.f32.mrf.mxu0
    %v4045 = vadd.f32 %v1641, %v4044
    %v4046 = vpop.f32.mrf.mxu0
    %4047 = vmatprep.mubr.f32.mxu0 0.0
    %4048 = vmatmul.mubr.f32.gmra.mxu0 %v3840
    %v4049 = vpop.f32.mrf.mxu0
    %v4050 = vadd.f32 %v1641, %v4049
    %v4051 = vpop.f32.mrf.mxu0
    %4052 = vmatprep.mubr.f32.mxu0 0.0
    %4053 = vmatmul.mubr.f32.gmra.mxu0 %v3842
    %v4054 = vpop.f32.mrf.mxu0
    %v4055 = vadd.f32 %v1641, %v4054
    %v4056 = vpop.f32.mrf.mxu0
    %4057 = vmatprep.mubr.f32.mxu0 0.0
    %4058 = vmatmul.mubr.f32.gmra.mxu0 %v3844
    %v4059 = vpop.f32.mrf.mxu0
    %v4060 = vadd.f32 %v1641, %v4059
    %v4061 = vpop.f32.mrf.mxu0
    %4062 = vmatprep.mubr.f32.mxu0 0.0
    %4063 = vmatmul.mubr.f32.gmra.mxu0 %v3846
    %v4064 = vpop.f32.mrf.mxu0
    %v4065 = vadd.f32 %v1641, %v4064
    %v4066 = vpop.f32.mrf.mxu0
    %4067 = vmatprep.mubr.f32.mxu0 0.0
    %4068 = vmatmul.mubr.f32.gmra.mxu0 %v3848
    %v4069 = vpop.f32.mrf.mxu0
    %v4070 = vadd.f32 %v1641, %v4069
    %v4071 = vpop.f32.mrf.mxu0
    %4072 = vmatprep.mubr.f32.mxu0 0.0
    %4073 = vmatmul.mubr.f32.gmra.mxu0 %v3850
    %v4074 = vpop.f32.mrf.mxu0
    %v4075 = vadd.f32 %v1641, %v4074
    %v4076 = vpop.f32.mrf.mxu0
    %4077 = vmatprep.mubr.f32.mxu0 0.0
    %4078 = vmatmul.mubr.f32.gmra.mxu0 %v3852
    %v4079 = vpop.f32.mrf.mxu0
    %v4080 = vadd.f32 %v1641, %v4079
    %v4081 = vpop.f32.mrf.mxu0
    %4082 = vmatprep.mubr.f32.mxu0 0.0
    %4083 = vmatmul.mubr.f32.gmra.mxu0 %v3854
    %v4084 = vpop.f32.mrf.mxu0
    %v4085 = vadd.f32 %v1641, %v4084
    %v4086 = vpop.f32.mrf.mxu0
    %4087 = vmatprep.mubr.f32.mxu0 0.0
    %4088 = vmatmul.mubr.f32.gmra.mxu0 %v3856
    %v4089 = vpop.f32.mrf.mxu0
    %v4090 = vadd.f32 %v1641, %v4089
    %v4091 = vpop.f32.mrf.mxu0
    %4092 = vmatprep.mubr.f32.mxu0 0.0
    %4093 = vmatmul.mubr.f32.gmra.mxu0 %v3858
    %v4094 = vpop.f32.mrf.mxu0
    %v4095 = vadd.f32 %v1641, %v4094
    %v4096 = vpop.f32.mrf.mxu0
    %4097 = vmatprep.mubr.f32.mxu0 0.0
    %4098 = vmatmul.mubr.f32.gmra.mxu0 %v3860
    %v4099 = vpop.f32.mrf.mxu0
    %v4100 = vadd.f32 %v1641, %v4099
    %v4101 = vpop.f32.mrf.mxu0
    %4102 = vmatprep.mubr.f32.mxu0 0.0
    %4103 = vmatmul.mubr.f32.gmra.mxu0 %v3862
    %v4104 = vpop.f32.mrf.mxu0
    %v4105 = vadd.f32 %v1641, %v4104
    %v4106 = vpop.f32.mrf.mxu0
    %4107 = vmatprep.mubr.f32.mxu0 0.0
    %4108 = vmatmul.mubr.f32.gmra.mxu0 %v3864
    %v4109 = vpop.f32.mrf.mxu0
    %v4110 = vadd.f32 %v1641, %v4109
    %v4111 = vpop.f32.mrf.mxu0
    %4112 = vmatprep.mubr.f32.mxu0 0.0
    %4113 = vmatmul.mubr.f32.gmra.mxu0 %v3866
    %v4114 = vpop.f32.mrf.mxu0
    %v4115 = vadd.f32 %v1641, %v4114
    %v4116 = vpop.f32.mrf.mxu0
    %4117 = vmatprep.mubr.f32.mxu0 0.0
    %4118 = vmatmul.mubr.f32.gmra.mxu0 %v3868
    %v4119 = vpop.f32.mrf.mxu0
    %v4120 = vadd.f32 %v1641, %v4119
    %v4121 = vpop.f32.mrf.mxu0
    %4122 = vmatprep.mubr.f32.mxu0 0.0
    %4123 = vmatmul.mubr.f32.gmra.mxu0 %v3870
    %v4124 = vpop.f32.mrf.mxu0
    %v4125 = vadd.f32 %v1641, %v4124
    %v4126 = vpop.f32.mrf.mxu0
    %4127 = vmatprep.mubr.f32.mxu0 0.0
    %4128 = vmatmul.mubr.f32.gmra.mxu0 %v3872
    %v4129 = vpop.f32.mrf.mxu0
    %v4130 = vadd.f32 %v1641, %v4129
    %v4131 = vpop.f32.mrf.mxu0
    %4132 = vmatprep.mubr.f32.mxu0 0.0
    %4133 = vmatmul.mubr.f32.gmra.mxu0 %v3874
    %v4134 = vpop.f32.mrf.mxu0
    %v4135 = vadd.f32 %v1641, %v4134
    %v4136 = vpop.f32.mrf.mxu0
    %4137 = vmatprep.mubr.f32.mxu0 0.0
    %4138 = vmatmul.mubr.f32.gmra.mxu0 %v3876
    %v4139 = vpop.f32.mrf.mxu0
    %v4140 = vadd.f32 %v1641, %v4139
    %v4141 = vpop.f32.mrf.mxu0
    %4142 = vmatprep.mubr.f32.mxu0 0.0
    %4143 = vmatmul.mubr.f32.gmra.mxu0 %v3878
    %v4144 = vpop.f32.mrf.mxu0
    %v4145 = vadd.f32 %v1641, %v4144
    %v4146 = vpop.f32.mrf.mxu0
    %4147 = vmatprep.mubr.f32.mxu0 0.0
    %4148 = vmatmul.mubr.f32.gmra.mxu0 %v3880
    %v4149 = vpop.f32.mrf.mxu0
    %v4150 = vadd.f32 %v1641, %v4149
    %v4151 = vpop.f32.mrf.mxu0
    %4152 = vmatprep.mubr.f32.mxu0 0.0
    %4153 = vmatmul.mubr.f32.gmra.mxu0 %v3882
    %v4154 = vpop.f32.mrf.mxu0
    %v4155 = vadd.f32 %v1641, %v4154
    %v4156 = vpop.f32.mrf.mxu0
    %4157 = vmatprep.mubr.f32.mxu0 0.0
    %4158 = vmatmul.mubr.f32.gmra.mxu0 %v3884
    %v4159 = vpop.f32.mrf.mxu0
    %v4160 = vadd.f32 %v1641, %v4159
    %v4161 = vpop.f32.mrf.mxu0
    %4162 = vmatprep.mubr.f32.mxu0 0.0
    %4163 = vmatmul.mubr.f32.gmra.mxu0 %v3886
    %v4164 = vpop.f32.mrf.mxu0
    %v4165 = vadd.f32 %v1641, %v4164
    %v4166 = vpop.f32.mrf.mxu0
    %4167 = vmatprep.mubr.f32.mxu0 0.0
    %4168 = vmatmul.mubr.f32.gmra.mxu0 %v3888
    %v4169 = vpop.f32.mrf.mxu0
    %v4170 = vadd.f32 %v1641, %v4169
    %v4171 = vpop.f32.mrf.mxu0
    %4172 = vmatprep.mubr.f32.mxu0 0.0
    %4173 = vmatmul.mubr.f32.gmra.mxu0 %v3890
    %v4174 = vpop.f32.mrf.mxu0
    %v4175 = vadd.f32 %v1641, %v4174
    %v4176 = vpop.f32.mrf.mxu0
    %4177 = vmatprep.mubr.f32.mxu0 0.0
    %4178 = vmatmul.mubr.f32.gmra.mxu0 %v3892
    %v4179 = vpop.f32.mrf.mxu0
    %v4180 = vadd.f32 %v1641, %v4179
    %v4181 = vpop.f32.mrf.mxu0
    %4182 = vmatprep.mubr.f32.mxu0 0.0
    %4183 = vmatmul.mubr.f32.gmra.mxu0 %v3894
    %v4184 = vpop.f32.mrf.mxu0
    %v4185 = vadd.f32 %v1641, %v4184
    %v4186 = vpop.f32.mrf.mxu0
    %4187 = vmatprep.mubr.f32.mxu0 0.0
    %4188 = vmatmul.mubr.f32.gmra.mxu0 %v3896
    %v4189 = vpop.f32.mrf.mxu0
    %v4190 = vadd.f32 %v1641, %v4189
    %v4191 = vpop.f32.mrf.mxu0
    %4192 = vmatprep.mubr.f32.mxu0 0.0
    %4193 = vmatmul.mubr.f32.gmra.mxu0 %v3898
    %v4194 = vpop.f32.mrf.mxu0
    %v4195 = vadd.f32 %v1641, %v4194
    %v4196 = vpop.f32.mrf.mxu0
    %4197 = vmatprep.mubr.f32.mxu0 0.0
    %4198 = vmatmul.mubr.f32.gmra.mxu0 %v3900
    %v4199 = vpop.f32.mrf.mxu0
    %v4200 = vadd.f32 %v1641, %v4199
    %v4201 = vpop.f32.mrf.mxu0
    %4202 = vmatprep.mubr.f32.mxu0 0.0
    %4203 = vmatmul.mubr.f32.gmra.mxu0 %v3902
    %v4204 = vpop.f32.mrf.mxu0
    %v4205 = vadd.f32 %v1641, %v4204
    %v4206 = vpop.f32.mrf.mxu0
    %4207 = vmatprep.mubr.f32.mxu0 0.0
    %4208 = vmatmul.mubr.f32.gmra.mxu0 %v3904
    %v4209 = vpop.f32.mrf.mxu0
    %v4210 = vadd.f32 %v1641, %v4209
    %v4211 = vpop.f32.mrf.mxu0
    %4212 = vmatprep.mubr.f32.mxu0 0.0
    %4213 = vmatmul.mubr.f32.gmra.mxu0 %v3906
    %v4214 = vpop.f32.mrf.mxu0
    %v4215 = vadd.f32 %v1641, %v4214
    %v4216 = vpop.f32.mrf.mxu0
    %4217 = vmatprep.mubr.f32.mxu0 0.0
    %4218 = vmatmul.mubr.f32.gmra.mxu0 %v3908
    %v4219 = vpop.f32.mrf.mxu0
    %v4220 = vadd.f32 %v1641, %v4219
    %v4221 = vpop.f32.mrf.mxu0
    %4222 = vmatprep.mubr.f32.mxu0 0.0
    %4223 = vmatmul.mubr.f32.gmra.mxu0 %v3910
    %v4224 = vpop.f32.mrf.mxu0
    %v4225 = vadd.f32 %v1641, %v4224
    %v4226 = vpop.f32.mrf.mxu0
    %4227 = vmatprep.mubr.f32.mxu0 0.0
    %4228 = vmatmul.mubr.f32.gmra.mxu0 %v3912
    %v4229 = vpop.f32.mrf.mxu0
    %v4230 = vadd.f32 %v1641, %v4229
    %v4231 = vpop.f32.mrf.mxu0
    %4232 = vmatprep.mubr.f32.mxu0 0.0
    %4233 = vmatmul.mubr.f32.gmra.mxu0 %v3914
    %v4234 = vpop.f32.mrf.mxu0
    %v4235 = vadd.f32 %v1641, %v4234
    %v4236 = vpop.f32.mrf.mxu0
    %4237 = vmatprep.mubr.f32.mxu0 0.0
    %4238 = vmatmul.mubr.f32.gmra.mxu0 %v3916
    %v4239 = vpop.f32.mrf.mxu0
    %v4240 = vadd.f32 %v1641, %v4239
    %v4241 = vpop.f32.mrf.mxu0
    %4242 = vmatprep.mubr.f32.mxu0 0.0
    %4243 = vmatmul.mubr.f32.gmra.mxu0 %v3918
    %v4244 = vpop.f32.mrf.mxu0
    %v4245 = vadd.f32 %v1641, %v4244
    %v4246 = vpop.f32.mrf.mxu0
    %4247 = vmatprep.mubr.f32.mxu0 0.0
    %4248 = vmatmul.mubr.f32.gmra.mxu0 %v3920
    %v4249 = vpop.f32.mrf.mxu0
    %v4250 = vadd.f32 %v1641, %v4249
    %v4251 = vpop.f32.mrf.mxu0
    %4252 = vmatprep.mubr.f32.mxu0 0.0
    %4253 = vmatmul.mubr.f32.gmra.mxu0 %v3922
    %v4254 = vpop.f32.mrf.mxu0
    %v4255 = vadd.f32 %v1641, %v4254
    %v4256 = vpop.f32.mrf.mxu0
    %4257 = vmatprep.mubr.f32.mxu0 0.0
    %4258 = vmatmul.mubr.f32.gmra.mxu0 %v3924
    %v4259 = vpop.f32.mrf.mxu0
    %v4260 = vadd.f32 %v1641, %v4259
    %v4261 = vpop.f32.mrf.mxu0
    %4262 = vmatprep.mubr.f32.mxu0 0.0
    %4263 = vmatmul.mubr.f32.gmra.mxu0 %v3926
    %v4264 = vpop.f32.mrf.mxu0
    %v4265 = vadd.f32 %v1641, %v4264
    %v4266 = vpop.f32.mrf.mxu0
    %4267 = vmatprep.mubr.f32.mxu0 0.0
    %4268 = vmatmul.mubr.f32.gmra.mxu0 %v3928
    %v4269 = vpop.f32.mrf.mxu0
    %v4270 = vadd.f32 %v1641, %v4269
    %v4271 = vpop.f32.mrf.mxu0
    %4272 = vmatprep.mubr.f32.mxu0 0.0
    %4273 = vmatmul.mubr.f32.gmra.mxu0 %v3930
    %v4274 = vpop.f32.mrf.mxu0
    %v4275 = vadd.f32 %v1641, %v4274
    %v4276 = vpop.f32.mrf.mxu0
    %4277 = vmatprep.mubr.f32.mxu0 0.0
    %4278 = vmatmul.mubr.f32.gmra.mxu0 %v3932
    %v4279 = vpop.f32.mrf.mxu0
    %v4280 = vadd.f32 %v1641, %v4279
    %v4281 = vpop.f32.mrf.mxu0
    %4282 = vmatprep.mubr.f32.mxu0 0.0
    %4283 = vmatmul.mubr.f32.gmra.mxu0 %v3934
    %v4284 = vpop.f32.mrf.mxu0
    %v4285 = vadd.f32 %v1641, %v4284
    %v4286 = vpop.f32.mrf.mxu0
    %4287 = vmatprep.mubr.f32.mxu0 0.0
    %4288 = vmatmul.mubr.f32.gmra.mxu0 %v3936
    %v4289 = vpop.f32.mrf.mxu0
    %v4290 = vadd.f32 %v1641, %v4289
    %v4291 = vpop.f32.mrf.mxu0
    %4292 = vmatprep.mubr.f32.mxu0 0.0
    %4293 = vmatmul.mubr.f32.gmra.mxu0 %v3938
    %v4294 = vpop.f32.mrf.mxu0
    %v4295 = vadd.f32 %v1641, %v4294
    %v4296 = vpop.f32.mrf.mxu0
    %4297 = vmatprep.mubr.f32.mxu0 0.0
    %4298 = vmatmul.mubr.f32.gmra.mxu0 %v3940
    %v4299 = vpop.f32.mrf.mxu0
    %v4300 = vadd.f32 %v1641, %v4299
    %v4301 = vpop.f32.mrf.mxu0
    %4302 = vmatprep.mubr.f32.mxu0 0.0
    %4303 = vmatmul.mubr.f32.gmra.mxu0 %v3942
    %v4304 = vpop.f32.mrf.mxu0
    %v4305 = vadd.f32 %v1641, %v4304
    %v4306 = vpop.f32.mrf.mxu0
    %4307 = vmatprep.mubr.f32.mxu0 0.0
    %4308 = vmatmul.mubr.f32.gmra.mxu0 %v3944
    %v4309 = vpop.f32.mrf.mxu0
    %v4310 = vadd.f32 %v1641, %v4309
    %v4311 = vpop.f32.mrf.mxu0
    %4312 = vmatprep.mubr.f32.mxu0 0.0
    %4313 = vmatmul.mubr.f32.gmra.mxu0 %v3946
    %v4314 = vpop.f32.mrf.mxu0
    %v4315 = vadd.f32 %v1641, %v4314
    %v4316 = vpop.f32.mrf.mxu0
    %4317 = vmatprep.mubr.f32.mxu0 0.0
    %4318 = vmatmul.mubr.f32.gmra.mxu0 %v3948
    %v4319 = vpop.f32.mrf.mxu0
    %v4320 = vadd.f32 %v1641, %v4319
    %v4321 = vpop.f32.mrf.mxu0
    %4322 = vmatprep.mubr.f32.mxu0 0.0
    %4323 = vmatmul.mubr.f32.gmra.mxu0 %v3950
    %v4324 = vpop.f32.mrf.mxu0
    %v4325 = vadd.f32 %v1641, %v4324
    %v4326 = vpop.f32.mrf.mxu0
    %4327 = vmatprep.mubr.f32.mxu0 0.0
    %4328 = vmatmul.mubr.f32.gmra.mxu0 %v3952
    %v4329 = vpop.f32.mrf.mxu0
    %v4330 = vadd.f32 %v1641, %v4329
    %v4331 = vpop.f32.mrf.mxu0
    %4332 = vmatprep.mubr.f32.mxu0 0.0
    %4333 = vmatmul.mubr.f32.gmra.mxu0 %v3954
    %v4334 = vpop.f32.mrf.mxu0
    %v4335 = vadd.f32 %v1641, %v4334
    %v4336 = vpop.f32.mrf.mxu0
    %4337 = vmatprep.mubr.f32.mxu0 0.0
    %4338 = vmatmul.mubr.f32.gmra.mxu0 %v3956
    %v4339 = vpop.f32.mrf.mxu0
    %v4340 = vadd.f32 %v1641, %v4339
    %v4341 = vpop.f32.mrf.mxu0
    %4342 = vdwg.mxu0
    %v4343 = vsel %vm2221, %v4025, -inf
    %4344 = vmax.xlane.f32.xlu0 %v4343
    %v4345 = vpop.xlane.xlu0 %4344
    %v4346 = vsel %vm2221, %v4030, -inf
    %4347 = vmax.xlane.f32.xlu0 %v4346
    %v4348 = vpop.xlane.xlu0 %4347
    %v4349 = vsel %vm2221, %v4035, -inf
    %4350 = vmax.xlane.f32.xlu0 %v4349
    %v4351 = vpop.xlane.xlu0 %4350
    %v4352 = vsel %vm2221, %v4040, -inf
    %4353 = vmax.xlane.f32.xlu0 %v4352
    %v4354 = vpop.xlane.xlu0 %4353
    %v4355 = vsel %vm2221, %v4045, -inf
    %4356 = vmax.xlane.f32.xlu0 %v4355
    %v4357 = vpop.xlane.xlu0 %4356
    %v4358 = vsel %vm2221, %v4050, -inf
    %4359 = vmax.xlane.f32.xlu0 %v4358
    %v4360 = vpop.xlane.xlu0 %4359
    %v4361 = vsel %vm2221, %v4055, -inf
    %4362 = vmax.xlane.f32.xlu0 %v4361
    %v4363 = vpop.xlane.xlu0 %4362
    %v4364 = vsel %vm2221, %v4060, -inf
    %4365 = vmax.xlane.f32.xlu0 %v4364
    %v4366 = vpop.xlane.xlu0 %4365
    %v4367 = vsel %vm2221, %v4065, -inf
    %4368 = vmax.xlane.f32.xlu0 %v4367
    %v4369 = vpop.xlane.xlu0 %4368
    %v4370 = vsel %vm2221, %v4070, -inf
    %4371 = vmax.xlane.f32.xlu0 %v4370
    %v4372 = vpop.xlane.xlu0 %4371
    %v4373 = vsel %vm2221, %v4075, -inf
    %4374 = vmax.xlane.f32.xlu0 %v4373
    %v4375 = vpop.xlane.xlu0 %4374
    %v4376 = vsel %vm2221, %v4080, -inf
    %4377 = vmax.xlane.f32.xlu0 %v4376
    %v4378 = vpop.xlane.xlu0 %4377
    %v4379 = vsel %vm2221, %v4085, -inf
    %4380 = vmax.xlane.f32.xlu0 %v4379
    %v4381 = vpop.xlane.xlu0 %4380
    %v4382 = vsel %vm2221, %v4090, -inf
    %4383 = vmax.xlane.f32.xlu0 %v4382
    %v4384 = vpop.xlane.xlu0 %4383
    %v4385 = vsel %vm2221, %v4095, -inf
    %4386 = vmax.xlane.f32.xlu0 %v4385
    %v4387 = vpop.xlane.xlu0 %4386
    %v4388 = vsel %vm2221, %v4100, -inf
    %4389 = vmax.xlane.f32.xlu0 %v4388
    %v4390 = vpop.xlane.xlu0 %4389
    %v4391 = vsel %vm2221, %v4105, -inf
    %4392 = vmax.xlane.f32.xlu0 %v4391
    %v4393 = vpop.xlane.xlu0 %4392
    %v4394 = vsel %vm2221, %v4110, -inf
    %4395 = vmax.xlane.f32.xlu0 %v4394
    %v4396 = vpop.xlane.xlu0 %4395
    %v4397 = vsel %vm2221, %v4115, -inf
    %4398 = vmax.xlane.f32.xlu0 %v4397
    %v4399 = vpop.xlane.xlu0 %4398
    %v4400 = vsel %vm2221, %v4120, -inf
    %4401 = vmax.xlane.f32.xlu0 %v4400
    %v4402 = vpop.xlane.xlu0 %4401
    %v4403 = vsel %vm2221, %v4125, -inf
    %4404 = vmax.xlane.f32.xlu0 %v4403
    %v4405 = vpop.xlane.xlu0 %4404
    %v4406 = vsel %vm2221, %v4130, -inf
    %4407 = vmax.xlane.f32.xlu0 %v4406
    %v4408 = vpop.xlane.xlu0 %4407
    %v4409 = vsel %vm2221, %v4135, -inf
    %4410 = vmax.xlane.f32.xlu0 %v4409
    %v4411 = vpop.xlane.xlu0 %4410
    %v4412 = vsel %vm2221, %v4140, -inf
    %4413 = vmax.xlane.f32.xlu0 %v4412
    %v4414 = vpop.xlane.xlu0 %4413
    %v4415 = vsel %vm2221, %v4145, -inf
    %4416 = vmax.xlane.f32.xlu0 %v4415
    %v4417 = vpop.xlane.xlu0 %4416
    %v4418 = vsel %vm2221, %v4150, -inf
    %4419 = vmax.xlane.f32.xlu0 %v4418
    %v4420 = vpop.xlane.xlu0 %4419
    %v4421 = vsel %vm2221, %v4155, -inf
    %4422 = vmax.xlane.f32.xlu0 %v4421
    %v4423 = vpop.xlane.xlu0 %4422
    %v4424 = vsel %vm2221, %v4160, -inf
    %4425 = vmax.xlane.f32.xlu0 %v4424
    %v4426 = vpop.xlane.xlu0 %4425
    %v4427 = vsel %vm2221, %v4165, -inf
    %4428 = vmax.xlane.f32.xlu0 %v4427
    %v4429 = vpop.xlane.xlu0 %4428
    %v4430 = vsel %vm2221, %v4170, -inf
    %4431 = vmax.xlane.f32.xlu0 %v4430
    %v4432 = vpop.xlane.xlu0 %4431
    %v4433 = vsel %vm2221, %v4175, -inf
    %4434 = vmax.xlane.f32.xlu0 %v4433
    %v4435 = vpop.xlane.xlu0 %4434
    %v4436 = vsel %vm2221, %v4180, -inf
    %4437 = vmax.xlane.f32.xlu0 %v4436
    %v4438 = vpop.xlane.xlu0 %4437
    %v4439 = vsel %vm2221, %v4185, -inf
    %4440 = vmax.xlane.f32.xlu0 %v4439
    %v4441 = vpop.xlane.xlu0 %4440
    %v4442 = vsel %vm2221, %v4190, -inf
    %4443 = vmax.xlane.f32.xlu0 %v4442
    %v4444 = vpop.xlane.xlu0 %4443
    %v4445 = vsel %vm2221, %v4195, -inf
    %4446 = vmax.xlane.f32.xlu0 %v4445
    %v4447 = vpop.xlane.xlu0 %4446
    %v4448 = vsel %vm2221, %v4200, -inf
    %4449 = vmax.xlane.f32.xlu0 %v4448
    %v4450 = vpop.xlane.xlu0 %4449
    %v4451 = vsel %vm2221, %v4205, -inf
    %4452 = vmax.xlane.f32.xlu0 %v4451
    %v4453 = vpop.xlane.xlu0 %4452
    %v4454 = vsel %vm2221, %v4210, -inf
    %4455 = vmax.xlane.f32.xlu0 %v4454
    %v4456 = vpop.xlane.xlu0 %4455
    %v4457 = vsel %vm2221, %v4215, -inf
    %4458 = vmax.xlane.f32.xlu0 %v4457
    %v4459 = vpop.xlane.xlu0 %4458
    %v4460 = vsel %vm2221, %v4220, -inf
    %4461 = vmax.xlane.f32.xlu0 %v4460
    %v4462 = vpop.xlane.xlu0 %4461
    %v4463 = vsel %vm2221, %v4225, -inf
    %4464 = vmax.xlane.f32.xlu0 %v4463
    %v4465 = vpop.xlane.xlu0 %4464
    %v4466 = vsel %vm2221, %v4230, -inf
    %4467 = vmax.xlane.f32.xlu0 %v4466
    %v4468 = vpop.xlane.xlu0 %4467
    %v4469 = vsel %vm2221, %v4235, -inf
    %4470 = vmax.xlane.f32.xlu0 %v4469
    %v4471 = vpop.xlane.xlu0 %4470
    %v4472 = vsel %vm2221, %v4240, -inf
    %4473 = vmax.xlane.f32.xlu0 %v4472
    %v4474 = vpop.xlane.xlu0 %4473
    %v4475 = vsel %vm2221, %v4245, -inf
    %4476 = vmax.xlane.f32.xlu0 %v4475
    %v4477 = vpop.xlane.xlu0 %4476
    %v4478 = vsel %vm2221, %v4250, -inf
    %4479 = vmax.xlane.f32.xlu0 %v4478
    %v4480 = vpop.xlane.xlu0 %4479
    %v4481 = vsel %vm2221, %v4255, -inf
    %4482 = vmax.xlane.f32.xlu0 %v4481
    %v4483 = vpop.xlane.xlu0 %4482
    %v4484 = vsel %vm2221, %v4260, -inf
    %4485 = vmax.xlane.f32.xlu0 %v4484
    %v4486 = vpop.xlane.xlu0 %4485
    %v4487 = vsel %vm2221, %v4265, -inf
    %4488 = vmax.xlane.f32.xlu0 %v4487
    %v4489 = vpop.xlane.xlu0 %4488
    %v4490 = vsel %vm2221, %v4270, -inf
    %4491 = vmax.xlane.f32.xlu0 %v4490
    %v4492 = vpop.xlane.xlu0 %4491
    %v4493 = vsel %vm2221, %v4275, -inf
    %4494 = vmax.xlane.f32.xlu0 %v4493
    %v4495 = vpop.xlane.xlu0 %4494
    %v4496 = vsel %vm2221, %v4280, -inf
    %4497 = vmax.xlane.f32.xlu0 %v4496
    %v4498 = vpop.xlane.xlu0 %4497
    %v4499 = vsel %vm2221, %v4285, -inf
    %4500 = vmax.xlane.f32.xlu0 %v4499
    %v4501 = vpop.xlane.xlu0 %4500
    %v4502 = vsel %vm2221, %v4290, -inf
    %4503 = vmax.xlane.f32.xlu0 %v4502
    %v4504 = vpop.xlane.xlu0 %4503
    %v4505 = vsel %vm2221, %v4295, -inf
    %4506 = vmax.xlane.f32.xlu0 %v4505
    %v4507 = vpop.xlane.xlu0 %4506
    %v4508 = vsel %vm2221, %v4300, -inf
    %4509 = vmax.xlane.f32.xlu0 %v4508
    %v4510 = vpop.xlane.xlu0 %4509
    %v4511 = vsel %vm2221, %v4305, -inf
    %4512 = vmax.xlane.f32.xlu0 %v4511
    %v4513 = vpop.xlane.xlu0 %4512
    %v4514 = vsel %vm2221, %v4310, -inf
    %4515 = vmax.xlane.f32.xlu0 %v4514
    %v4516 = vpop.xlane.xlu0 %4515
    %v4517 = vsel %vm2221, %v4315, -inf
    %4518 = vmax.xlane.f32.xlu0 %v4517
    %v4519 = vpop.xlane.xlu0 %4518
    %v4520 = vsel %vm2221, %v4320, -inf
    %4521 = vmax.xlane.f32.xlu0 %v4520
    %v4522 = vpop.xlane.xlu0 %4521
    %v4523 = vsel %vm2221, %v4325, -inf
    %4524 = vmax.xlane.f32.xlu0 %v4523
    %v4525 = vpop.xlane.xlu0 %4524
    %v4526 = vsel %vm2221, %v4330, -inf
    %4527 = vmax.xlane.f32.xlu0 %v4526
    %v4528 = vpop.xlane.xlu0 %4527
    %v4529 = vsel %vm2221, %v4335, -inf
    %4530 = vmax.xlane.f32.xlu0 %v4529
    %v4531 = vpop.xlane.xlu0 %4530
    %v4532 = vsel %vm2221, %v4340, -inf
    %4533 = vmax.xlane.f32.xlu0 %v4532
    %v4534 = vpop.xlane.xlu0 %4533
    %vm4535 = vcmp.eq.f32.partialorder %v4025, %v4345
    %vm4536 = vcmp.eq.f32.partialorder %v4030, %v4348
    %vm4537 = vcmp.eq.f32.partialorder %v4035, %v4351
    %vm4538 = vcmp.eq.f32.partialorder %v4040, %v4354
    %vm4539 = vcmp.eq.f32.partialorder %v4045, %v4357
    %vm4540 = vcmp.eq.f32.partialorder %v4050, %v4360
    %vm4541 = vcmp.eq.f32.partialorder %v4055, %v4363
    %vm4542 = vcmp.eq.f32.partialorder %v4060, %v4366
    %vm4543 = vcmp.eq.f32.partialorder %v4065, %v4369
    %vm4544 = vcmp.eq.f32.partialorder %v4070, %v4372
    %vm4545 = vcmp.eq.f32.partialorder %v4075, %v4375
    %vm4546 = vcmp.eq.f32.partialorder %v4080, %v4378
    %vm4547 = vcmp.eq.f32.partialorder %v4085, %v4381
    %vm4548 = vcmp.eq.f32.partialorder %v4090, %v4384
    %vm4549 = vcmp.eq.f32.partialorder %v4095, %v4387
    %vm4550 = vcmp.eq.f32.partialorder %v4100, %v4390
    %vm4551 = vcmp.eq.f32.partialorder %v4105, %v4393
    %vm4552 = vcmp.eq.f32.partialorder %v4110, %v4396
    %vm4553 = vcmp.eq.f32.partialorder %v4115, %v4399
    %vm4554 = vcmp.eq.f32.partialorder %v4120, %v4402
    %vm4555 = vcmp.eq.f32.partialorder %v4125, %v4405
    %vm4556 = vcmp.eq.f32.partialorder %v4130, %v4408
    %vm4557 = vcmp.eq.f32.partialorder %v4135, %v4411
    %vm4558 = vcmp.eq.f32.partialorder %v4140, %v4414
    %vm4559 = vcmp.eq.f32.partialorder %v4145, %v4417
    %vm4560 = vcmp.eq.f32.partialorder %v4150, %v4420
    %vm4561 = vcmp.eq.f32.partialorder %v4155, %v4423
    %vm4562 = vcmp.eq.f32.partialorder %v4160, %v4426
    %vm4563 = vcmp.eq.f32.partialorder %v4165, %v4429
    %vm4564 = vcmp.eq.f32.partialorder %v4170, %v4432
    %vm4565 = vcmp.eq.f32.partialorder %v4175, %v4435
    %vm4566 = vcmp.eq.f32.partialorder %v4180, %v4438
    %vm4567 = vcmp.eq.f32.partialorder %v4185, %v4441
    %vm4568 = vcmp.eq.f32.partialorder %v4190, %v4444
    %vm4569 = vcmp.eq.f32.partialorder %v4195, %v4447
    %vm4570 = vcmp.eq.f32.partialorder %v4200, %v4450
    %vm4571 = vcmp.eq.f32.partialorder %v4205, %v4453
    %vm4572 = vcmp.eq.f32.partialorder %v4210, %v4456
    %vm4573 = vcmp.eq.f32.partialorder %v4215, %v4459
    %vm4574 = vcmp.eq.f32.partialorder %v4220, %v4462
    %vm4575 = vcmp.eq.f32.partialorder %v4225, %v4465
    %vm4576 = vcmp.eq.f32.partialorder %v4230, %v4468
    %vm4577 = vcmp.eq.f32.partialorder %v4235, %v4471
    %vm4578 = vcmp.eq.f32.partialorder %v4240, %v4474
    %vm4579 = vcmp.eq.f32.partialorder %v4245, %v4477
    %vm4580 = vcmp.eq.f32.partialorder %v4250, %v4480
    %vm4581 = vcmp.eq.f32.partialorder %v4255, %v4483
    %vm4582 = vcmp.eq.f32.partialorder %v4260, %v4486
    %vm4583 = vcmp.eq.f32.partialorder %v4265, %v4489
    %vm4584 = vcmp.eq.f32.partialorder %v4270, %v4492
    %vm4585 = vcmp.eq.f32.partialorder %v4275, %v4495
    %vm4586 = vcmp.eq.f32.partialorder %v4280, %v4498
    %vm4587 = vcmp.eq.f32.partialorder %v4285, %v4501
    %vm4588 = vcmp.eq.f32.partialorder %v4290, %v4504
    %vm4589 = vcmp.eq.f32.partialorder %v4295, %v4507
    %vm4590 = vcmp.eq.f32.partialorder %v4300, %v4510
    %vm4591 = vcmp.eq.f32.partialorder %v4305, %v4513
    %vm4592 = vcmp.eq.f32.partialorder %v4310, %v4516
    %vm4593 = vcmp.eq.f32.partialorder %v4315, %v4519
    %vm4594 = vcmp.eq.f32.partialorder %v4320, %v4522
    %vm4595 = vcmp.eq.f32.partialorder %v4325, %v4525
    %vm4596 = vcmp.eq.f32.partialorder %v4330, %v4528
    %vm4597 = vcmp.eq.f32.partialorder %v4335, %v4531
    %vm4598 = vcmp.eq.f32.partialorder %v4340, %v4534
    %v4599 = vsel %vm4535, %v1634, 64
    %v4600 = vsel %vm4536, %v1634, 64
    %v4601 = vsel %vm4537, %v1634, 64
    %v4602 = vsel %vm4538, %v1634, 64
    %v4603 = vsel %vm4539, %v1634, 64
    %v4604 = vsel %vm4540, %v1634, 64
    %v4605 = vsel %vm4541, %v1634, 64
    %v4606 = vsel %vm4542, %v1634, 64
    %v4607 = vsel %vm4543, %v1634, 64
    %v4608 = vsel %vm4544, %v1634, 64
    %v4609 = vsel %vm4545, %v1634, 64
    %v4610 = vsel %vm4546, %v1634, 64
    %v4611 = vsel %vm4547, %v1634, 64
    %v4612 = vsel %vm4548, %v1634, 64
    %v4613 = vsel %vm4549, %v1634, 64
    %v4614 = vsel %vm4550, %v1634, 64
    %v4615 = vsel %vm4551, %v1634, 64
    %v4616 = vsel %vm4552, %v1634, 64
    %v4617 = vsel %vm4553, %v1634, 64
    %v4618 = vsel %vm4554, %v1634, 64
    %v4619 = vsel %vm4555, %v1634, 64
    %v4620 = vsel %vm4556, %v1634, 64
    %v4621 = vsel %vm4557, %v1634, 64
    %v4622 = vsel %vm4558, %v1634, 64
    %v4623 = vsel %vm4559, %v1634, 64
    %v4624 = vsel %vm4560, %v1634, 64
    %v4625 = vsel %vm4561, %v1634, 64
    %v4626 = vsel %vm4562, %v1634, 64
    %v4627 = vsel %vm4563, %v1634, 64
    %v4628 = vsel %vm4564, %v1634, 64
    %v4629 = vsel %vm4565, %v1634, 64
    %v4630 = vsel %vm4566, %v1634, 64
    %v4631 = vsel %vm4567, %v1634, 64
    %v4632 = vsel %vm4568, %v1634, 64
    %v4633 = vsel %vm4569, %v1634, 64
    %v4634 = vsel %vm4570, %v1634, 64
    %v4635 = vsel %vm4571, %v1634, 64
    %v4636 = vsel %vm4572, %v1634, 64
    %v4637 = vsel %vm4573, %v1634, 64
    %v4638 = vsel %vm4574, %v1634, 64
    %v4639 = vsel %vm4575, %v1634, 64
    %v4640 = vsel %vm4576, %v1634, 64
    %v4641 = vsel %vm4577, %v1634, 64
    %v4642 = vsel %vm4578, %v1634, 64
    %v4643 = vsel %vm4579, %v1634, 64
    %v4644 = vsel %vm4580, %v1634, 64
    %v4645 = vsel %vm4581, %v1634, 64
    %v4646 = vsel %vm4582, %v1634, 64
    %v4647 = vsel %vm4583, %v1634, 64
    %v4648 = vsel %vm4584, %v1634, 64
    %v4649 = vsel %vm4585, %v1634, 64
    %v4650 = vsel %vm4586, %v1634, 64
    %v4651 = vsel %vm4587, %v1634, 64
    %v4652 = vsel %vm4588, %v1634, 64
    %v4653 = vsel %vm4589, %v1634, 64
    %v4654 = vsel %vm4590, %v1634, 64
    %v4655 = vsel %vm4591, %v1634, 64
    %v4656 = vsel %vm4592, %v1634, 64
    %v4657 = vsel %vm4593, %v1634, 64
    %v4658 = vsel %vm4594, %v1634, 64
    %v4659 = vsel %vm4595, %v1634, 64
    %v4660 = vsel %vm4596, %v1634, 64
    %v4661 = vsel %vm4597, %v1634, 64
    %v4662 = vsel %vm4598, %v1634, 64
    %v4663 = vsel %vm2221, %v4599, 2147483647
    %v4664 = vand.u32 %v4663, 65535
    %v4665 = vshra.s32 %v4663, 16
    %v4666 = vcvt.s32.f32 %v4664
    %v4667 = vcvt.s32.f32 %v4665
    %4668 = vmin.xlane.f32.xlu0 %v4667
    %v4669 = vpop.xlane.xlu0 %4668
    %vm4670 = vcmp.eq.f32.partialorder %v4667, %v4669
    %v4671 = vsel %vm4670, %v4666, inf
    %4672 = vmin.xlane.f32.xlu0 %v4671
    %v4673 = vpop.xlane.xlu0 %4672
    %v4674 = vcvt.f32.s32 %v4673
    %v4675 = vcvt.f32.s32 %v4669
    %v4676 = vshll.u32 %v4675, 16
    %v4677 = vadd.s32 %v4676, %v4674
    %v4678 = vsel %vm2221, %v4600, 2147483647
    %v4679 = vand.u32 %v4678, 65535
    %v4680 = vshra.s32 %v4678, 16
    %v4681 = vcvt.s32.f32 %v4679
    %v4682 = vcvt.s32.f32 %v4680
    %4683 = vmin.xlane.f32.xlu0 %v4682
    %v4684 = vpop.xlane.xlu0 %4683
    %vm4685 = vcmp.eq.f32.partialorder %v4682, %v4684
    %v4686 = vsel %vm4685, %v4681, inf
    %4687 = vmin.xlane.f32.xlu0 %v4686
    %v4688 = vpop.xlane.xlu0 %4687
    %v4689 = vcvt.f32.s32 %v4688
    %v4690 = vcvt.f32.s32 %v4684
    %v4691 = vshll.u32 %v4690, 16
    %v4692 = vadd.s32 %v4691, %v4689
    %v4693 = vsel %vm2221, %v4601, 2147483647
    %v4694 = vand.u32 %v4693, 65535
    %v4695 = vshra.s32 %v4693, 16
    %v4696 = vcvt.s32.f32 %v4694
    %v4697 = vcvt.s32.f32 %v4695
    %4698 = vmin.xlane.f32.xlu0 %v4697
    %v4699 = vpop.xlane.xlu0 %4698
    %vm4700 = vcmp.eq.f32.partialorder %v4697, %v4699
    %v4701 = vsel %vm4700, %v4696, inf
    %4702 = vmin.xlane.f32.xlu0 %v4701
    %v4703 = vpop.xlane.xlu0 %4702
    %v4704 = vcvt.f32.s32 %v4703
    %v4705 = vcvt.f32.s32 %v4699
    %v4706 = vshll.u32 %v4705, 16
    %v4707 = vadd.s32 %v4706, %v4704
    %v4708 = vsel %vm2221, %v4602, 2147483647
    %v4709 = vand.u32 %v4708, 65535
    %v4710 = vshra.s32 %v4708, 16
    %v4711 = vcvt.s32.f32 %v4709
    %v4712 = vcvt.s32.f32 %v4710
    %4713 = vmin.xlane.f32.xlu0 %v4712
    %v4714 = vpop.xlane.xlu0 %4713
    %vm4715 = vcmp.eq.f32.partialorder %v4712, %v4714
    %v4716 = vsel %vm4715, %v4711, inf
    %4717 = vmin.xlane.f32.xlu0 %v4716
    %v4718 = vpop.xlane.xlu0 %4717
    %v4719 = vcvt.f32.s32 %v4718
    %v4720 = vcvt.f32.s32 %v4714
    %v4721 = vshll.u32 %v4720, 16
    %v4722 = vadd.s32 %v4721, %v4719
    %v4723 = vsel %vm2221, %v4603, 2147483647
    %v4724 = vand.u32 %v4723, 65535
    %v4725 = vshra.s32 %v4723, 16
    %v4726 = vcvt.s32.f32 %v4724
    %v4727 = vcvt.s32.f32 %v4725
    %4728 = vmin.xlane.f32.xlu0 %v4727
    %v4729 = vpop.xlane.xlu0 %4728
    %vm4730 = vcmp.eq.f32.partialorder %v4727, %v4729
    %v4731 = vsel %vm4730, %v4726, inf
    %4732 = vmin.xlane.f32.xlu0 %v4731
    %v4733 = vpop.xlane.xlu0 %4732
    %v4734 = vcvt.f32.s32 %v4733
    %v4735 = vcvt.f32.s32 %v4729
    %v4736 = vshll.u32 %v4735, 16
    %v4737 = vadd.s32 %v4736, %v4734
    %v4738 = vsel %vm2221, %v4604, 2147483647
    %v4739 = vand.u32 %v4738, 65535
    %v4740 = vshra.s32 %v4738, 16
    %v4741 = vcvt.s32.f32 %v4739
    %v4742 = vcvt.s32.f32 %v4740
    %4743 = vmin.xlane.f32.xlu0 %v4742
    %v4744 = vpop.xlane.xlu0 %4743
    %vm4745 = vcmp.eq.f32.partialorder %v4742, %v4744
    %v4746 = vsel %vm4745, %v4741, inf
    %4747 = vmin.xlane.f32.xlu0 %v4746
    %v4748 = vpop.xlane.xlu0 %4747
    %v4749 = vcvt.f32.s32 %v4748
    %v4750 = vcvt.f32.s32 %v4744
    %v4751 = vshll.u32 %v4750, 16
    %v4752 = vadd.s32 %v4751, %v4749
    %v4753 = vsel %vm2221, %v4605, 2147483647
    %v4754 = vand.u32 %v4753, 65535
    %v4755 = vshra.s32 %v4753, 16
    %v4756 = vcvt.s32.f32 %v4754
    %v4757 = vcvt.s32.f32 %v4755
    %4758 = vmin.xlane.f32.xlu0 %v4757
    %v4759 = vpop.xlane.xlu0 %4758
    %vm4760 = vcmp.eq.f32.partialorder %v4757, %v4759
    %v4761 = vsel %vm4760, %v4756, inf
    %4762 = vmin.xlane.f32.xlu0 %v4761
    %v4763 = vpop.xlane.xlu0 %4762
    %v4764 = vcvt.f32.s32 %v4763
    %v4765 = vcvt.f32.s32 %v4759
    %v4766 = vshll.u32 %v4765, 16
    %v4767 = vadd.s32 %v4766, %v4764
    %v4768 = vsel %vm2221, %v4606, 2147483647
    %v4769 = vand.u32 %v4768, 65535
    %v4770 = vshra.s32 %v4768, 16
    %v4771 = vcvt.s32.f32 %v4769
    %v4772 = vcvt.s32.f32 %v4770
    %4773 = vmin.xlane.f32.xlu0 %v4772
    %v4774 = vpop.xlane.xlu0 %4773
    %vm4775 = vcmp.eq.f32.partialorder %v4772, %v4774
    %v4776 = vsel %vm4775, %v4771, inf
    %4777 = vmin.xlane.f32.xlu0 %v4776
    %v4778 = vpop.xlane.xlu0 %4777
    %v4779 = vcvt.f32.s32 %v4778
    %v4780 = vcvt.f32.s32 %v4774
    %v4781 = vshll.u32 %v4780, 16
    %v4782 = vadd.s32 %v4781, %v4779
    %v4783 = vsel %vm2221, %v4607, 2147483647
    %v4784 = vand.u32 %v4783, 65535
    %v4785 = vshra.s32 %v4783, 16
    %v4786 = vcvt.s32.f32 %v4784
    %v4787 = vcvt.s32.f32 %v4785
    %4788 = vmin.xlane.f32.xlu0 %v4787
    %v4789 = vpop.xlane.xlu0 %4788
    %vm4790 = vcmp.eq.f32.partialorder %v4787, %v4789
    %v4791 = vsel %vm4790, %v4786, inf
    %4792 = vmin.xlane.f32.xlu0 %v4791
    %v4793 = vpop.xlane.xlu0 %4792
    %v4794 = vcvt.f32.s32 %v4793
    %v4795 = vcvt.f32.s32 %v4789
    %v4796 = vshll.u32 %v4795, 16
    %v4797 = vadd.s32 %v4796, %v4794
    %v4798 = vsel %vm2221, %v4608, 2147483647
    %v4799 = vand.u32 %v4798, 65535
    %v4800 = vshra.s32 %v4798, 16
    %v4801 = vcvt.s32.f32 %v4799
    %v4802 = vcvt.s32.f32 %v4800
    %4803 = vmin.xlane.f32.xlu0 %v4802
    %v4804 = vpop.xlane.xlu0 %4803
    %vm4805 = vcmp.eq.f32.partialorder %v4802, %v4804
    %v4806 = vsel %vm4805, %v4801, inf
    %4807 = vmin.xlane.f32.xlu0 %v4806
    %v4808 = vpop.xlane.xlu0 %4807
    %v4809 = vcvt.f32.s32 %v4808
    %v4810 = vcvt.f32.s32 %v4804
    %v4811 = vshll.u32 %v4810, 16
    %v4812 = vadd.s32 %v4811, %v4809
    %v4813 = vsel %vm2221, %v4609, 2147483647
    %v4814 = vand.u32 %v4813, 65535
    %v4815 = vshra.s32 %v4813, 16
    %v4816 = vcvt.s32.f32 %v4814
    %v4817 = vcvt.s32.f32 %v4815
    %4818 = vmin.xlane.f32.xlu0 %v4817
    %v4819 = vpop.xlane.xlu0 %4818
    %vm4820 = vcmp.eq.f32.partialorder %v4817, %v4819
    %v4821 = vsel %vm4820, %v4816, inf
    %4822 = vmin.xlane.f32.xlu0 %v4821
    %v4823 = vpop.xlane.xlu0 %4822
    %v4824 = vcvt.f32.s32 %v4823
    %v4825 = vcvt.f32.s32 %v4819
    %v4826 = vshll.u32 %v4825, 16
    %v4827 = vadd.s32 %v4826, %v4824
    %v4828 = vsel %vm2221, %v4610, 2147483647
    %v4829 = vand.u32 %v4828, 65535
    %v4830 = vshra.s32 %v4828, 16
    %v4831 = vcvt.s32.f32 %v4829
    %v4832 = vcvt.s32.f32 %v4830
    %4833 = vmin.xlane.f32.xlu0 %v4832
    %v4834 = vpop.xlane.xlu0 %4833
    %vm4835 = vcmp.eq.f32.partialorder %v4832, %v4834
    %v4836 = vsel %vm4835, %v4831, inf
    %4837 = vmin.xlane.f32.xlu0 %v4836
    %v4838 = vpop.xlane.xlu0 %4837
    %v4839 = vcvt.f32.s32 %v4838
    %v4840 = vcvt.f32.s32 %v4834
    %v4841 = vshll.u32 %v4840, 16
    %v4842 = vadd.s32 %v4841, %v4839
    %v4843 = vsel %vm2221, %v4611, 2147483647
    %v4844 = vand.u32 %v4843, 65535
    %v4845 = vshra.s32 %v4843, 16
    %v4846 = vcvt.s32.f32 %v4844
    %v4847 = vcvt.s32.f32 %v4845
    %4848 = vmin.xlane.f32.xlu0 %v4847
    %v4849 = vpop.xlane.xlu0 %4848
    %vm4850 = vcmp.eq.f32.partialorder %v4847, %v4849
    %v4851 = vsel %vm4850, %v4846, inf
    %4852 = vmin.xlane.f32.xlu0 %v4851
    %v4853 = vpop.xlane.xlu0 %4852
    %v4854 = vcvt.f32.s32 %v4853
    %v4855 = vcvt.f32.s32 %v4849
    %v4856 = vshll.u32 %v4855, 16
    %v4857 = vadd.s32 %v4856, %v4854
    %v4858 = vsel %vm2221, %v4612, 2147483647
    %v4859 = vand.u32 %v4858, 65535
    %v4860 = vshra.s32 %v4858, 16
    %v4861 = vcvt.s32.f32 %v4859
    %v4862 = vcvt.s32.f32 %v4860
    %4863 = vmin.xlane.f32.xlu0 %v4862
    %v4864 = vpop.xlane.xlu0 %4863
    %vm4865 = vcmp.eq.f32.partialorder %v4862, %v4864
    %v4866 = vsel %vm4865, %v4861, inf
    %4867 = vmin.xlane.f32.xlu0 %v4866
    %v4868 = vpop.xlane.xlu0 %4867
    %v4869 = vcvt.f32.s32 %v4868
    %v4870 = vcvt.f32.s32 %v4864
    %v4871 = vshll.u32 %v4870, 16
    %v4872 = vadd.s32 %v4871, %v4869
    %v4873 = vsel %vm2221, %v4613, 2147483647
    %v4874 = vand.u32 %v4873, 65535
    %v4875 = vshra.s32 %v4873, 16
    %v4876 = vcvt.s32.f32 %v4874
    %v4877 = vcvt.s32.f32 %v4875
    %4878 = vmin.xlane.f32.xlu0 %v4877
    %v4879 = vpop.xlane.xlu0 %4878
    %vm4880 = vcmp.eq.f32.partialorder %v4877, %v4879
    %v4881 = vsel %vm4880, %v4876, inf
    %4882 = vmin.xlane.f32.xlu0 %v4881
    %v4883 = vpop.xlane.xlu0 %4882
    %v4884 = vcvt.f32.s32 %v4883
    %v4885 = vcvt.f32.s32 %v4879
    %v4886 = vshll.u32 %v4885, 16
    %v4887 = vadd.s32 %v4886, %v4884
    %v4888 = vsel %vm2221, %v4614, 2147483647
    %v4889 = vand.u32 %v4888, 65535
    %v4890 = vshra.s32 %v4888, 16
    %v4891 = vcvt.s32.f32 %v4889
    %v4892 = vcvt.s32.f32 %v4890
    %4893 = vmin.xlane.f32.xlu0 %v4892
    %v4894 = vpop.xlane.xlu0 %4893
    %vm4895 = vcmp.eq.f32.partialorder %v4892, %v4894
    %v4896 = vsel %vm4895, %v4891, inf
    %4897 = vmin.xlane.f32.xlu0 %v4896
    %v4898 = vpop.xlane.xlu0 %4897
    %v4899 = vcvt.f32.s32 %v4898
    %v4900 = vcvt.f32.s32 %v4894
    %v4901 = vshll.u32 %v4900, 16
    %v4902 = vadd.s32 %v4901, %v4899
    %v4903 = vsel %vm2221, %v4615, 2147483647
    %v4904 = vand.u32 %v4903, 65535
    %v4905 = vshra.s32 %v4903, 16
    %v4906 = vcvt.s32.f32 %v4904
    %v4907 = vcvt.s32.f32 %v4905
    %4908 = vmin.xlane.f32.xlu0 %v4907
    %v4909 = vpop.xlane.xlu0 %4908
    %vm4910 = vcmp.eq.f32.partialorder %v4907, %v4909
    %v4911 = vsel %vm4910, %v4906, inf
    %4912 = vmin.xlane.f32.xlu0 %v4911
    %v4913 = vpop.xlane.xlu0 %4912
    %v4914 = vcvt.f32.s32 %v4913
    %v4915 = vcvt.f32.s32 %v4909
    %v4916 = vshll.u32 %v4915, 16
    %v4917 = vadd.s32 %v4916, %v4914
    %v4918 = vsel %vm2221, %v4616, 2147483647
    %v4919 = vand.u32 %v4918, 65535
    %v4920 = vshra.s32 %v4918, 16
    %v4921 = vcvt.s32.f32 %v4919
    %v4922 = vcvt.s32.f32 %v4920
    %4923 = vmin.xlane.f32.xlu0 %v4922
    %v4924 = vpop.xlane.xlu0 %4923
    %vm4925 = vcmp.eq.f32.partialorder %v4922, %v4924
    %v4926 = vsel %vm4925, %v4921, inf
    %4927 = vmin.xlane.f32.xlu0 %v4926
    %v4928 = vpop.xlane.xlu0 %4927
    %v4929 = vcvt.f32.s32 %v4928
    %v4930 = vcvt.f32.s32 %v4924
    %v4931 = vshll.u32 %v4930, 16
    %v4932 = vadd.s32 %v4931, %v4929
    %v4933 = vsel %vm2221, %v4617, 2147483647
    %v4934 = vand.u32 %v4933, 65535
    %v4935 = vshra.s32 %v4933, 16
    %v4936 = vcvt.s32.f32 %v4934
    %v4937 = vcvt.s32.f32 %v4935
    %4938 = vmin.xlane.f32.xlu0 %v4937
    %v4939 = vpop.xlane.xlu0 %4938
    %vm4940 = vcmp.eq.f32.partialorder %v4937, %v4939
    %v4941 = vsel %vm4940, %v4936, inf
    %4942 = vmin.xlane.f32.xlu0 %v4941
    %v4943 = vpop.xlane.xlu0 %4942
    %v4944 = vcvt.f32.s32 %v4943
    %v4945 = vcvt.f32.s32 %v4939
    %v4946 = vshll.u32 %v4945, 16
    %v4947 = vadd.s32 %v4946, %v4944
    %v4948 = vsel %vm2221, %v4618, 2147483647
    %v4949 = vand.u32 %v4948, 65535
    %v4950 = vshra.s32 %v4948, 16
    %v4951 = vcvt.s32.f32 %v4949
    %v4952 = vcvt.s32.f32 %v4950
    %4953 = vmin.xlane.f32.xlu0 %v4952
    %v4954 = vpop.xlane.xlu0 %4953
    %vm4955 = vcmp.eq.f32.partialorder %v4952, %v4954
    %v4956 = vsel %vm4955, %v4951, inf
    %4957 = vmin.xlane.f32.xlu0 %v4956
    %v4958 = vpop.xlane.xlu0 %4957
    %v4959 = vcvt.f32.s32 %v4958
    %v4960 = vcvt.f32.s32 %v4954
    %v4961 = vshll.u32 %v4960, 16
    %v4962 = vadd.s32 %v4961, %v4959
    %v4963 = vsel %vm2221, %v4619, 2147483647
    %v4964 = vand.u32 %v4963, 65535
    %v4965 = vshra.s32 %v4963, 16
    %v4966 = vcvt.s32.f32 %v4964
    %v4967 = vcvt.s32.f32 %v4965
    %4968 = vmin.xlane.f32.xlu0 %v4967
    %v4969 = vpop.xlane.xlu0 %4968
    %vm4970 = vcmp.eq.f32.partialorder %v4967, %v4969
    %v4971 = vsel %vm4970, %v4966, inf
    %4972 = vmin.xlane.f32.xlu0 %v4971
    %v4973 = vpop.xlane.xlu0 %4972
    %v4974 = vcvt.f32.s32 %v4973
    %v4975 = vcvt.f32.s32 %v4969
    %v4976 = vshll.u32 %v4975, 16
    %v4977 = vadd.s32 %v4976, %v4974
    %v4978 = vsel %vm2221, %v4620, 2147483647
    %v4979 = vand.u32 %v4978, 65535
    %v4980 = vshra.s32 %v4978, 16
    %v4981 = vcvt.s32.f32 %v4979
    %v4982 = vcvt.s32.f32 %v4980
    %4983 = vmin.xlane.f32.xlu0 %v4982
    %v4984 = vpop.xlane.xlu0 %4983
    %vm4985 = vcmp.eq.f32.partialorder %v4982, %v4984
    %v4986 = vsel %vm4985, %v4981, inf
    %4987 = vmin.xlane.f32.xlu0 %v4986
    %v4988 = vpop.xlane.xlu0 %4987
    %v4989 = vcvt.f32.s32 %v4988
    %v4990 = vcvt.f32.s32 %v4984
    %v4991 = vshll.u32 %v4990, 16
    %v4992 = vadd.s32 %v4991, %v4989
    %v4993 = vsel %vm2221, %v4621, 2147483647
    %v4994 = vand.u32 %v4993, 65535
    %v4995 = vshra.s32 %v4993, 16
    %v4996 = vcvt.s32.f32 %v4994
    %v4997 = vcvt.s32.f32 %v4995
    %4998 = vmin.xlane.f32.xlu0 %v4997
    %v4999 = vpop.xlane.xlu0 %4998
    %vm5000 = vcmp.eq.f32.partialorder %v4997, %v4999
    %v5001 = vsel %vm5000, %v4996, inf
    %5002 = vmin.xlane.f32.xlu0 %v5001
    %v5003 = vpop.xlane.xlu0 %5002
    %v5004 = vcvt.f32.s32 %v5003
    %v5005 = vcvt.f32.s32 %v4999
    %v5006 = vshll.u32 %v5005, 16
    %v5007 = vadd.s32 %v5006, %v5004
    %v5008 = vsel %vm2221, %v4622, 2147483647
    %v5009 = vand.u32 %v5008, 65535
    %v5010 = vshra.s32 %v5008, 16
    %v5011 = vcvt.s32.f32 %v5009
    %v5012 = vcvt.s32.f32 %v5010
    %5013 = vmin.xlane.f32.xlu0 %v5012
    %v5014 = vpop.xlane.xlu0 %5013
    %vm5015 = vcmp.eq.f32.partialorder %v5012, %v5014
    %v5016 = vsel %vm5015, %v5011, inf
    %5017 = vmin.xlane.f32.xlu0 %v5016
    %v5018 = vpop.xlane.xlu0 %5017
    %v5019 = vcvt.f32.s32 %v5018
    %v5020 = vcvt.f32.s32 %v5014
    %v5021 = vshll.u32 %v5020, 16
    %v5022 = vadd.s32 %v5021, %v5019
    %v5023 = vsel %vm2221, %v4623, 2147483647
    %v5024 = vand.u32 %v5023, 65535
    %v5025 = vshra.s32 %v5023, 16
    %v5026 = vcvt.s32.f32 %v5024
    %v5027 = vcvt.s32.f32 %v5025
    %5028 = vmin.xlane.f32.xlu0 %v5027
    %v5029 = vpop.xlane.xlu0 %5028
    %vm5030 = vcmp.eq.f32.partialorder %v5027, %v5029
    %v5031 = vsel %vm5030, %v5026, inf
    %5032 = vmin.xlane.f32.xlu0 %v5031
    %v5033 = vpop.xlane.xlu0 %5032
    %v5034 = vcvt.f32.s32 %v5033
    %v5035 = vcvt.f32.s32 %v5029
    %v5036 = vshll.u32 %v5035, 16
    %v5037 = vadd.s32 %v5036, %v5034
    %v5038 = vsel %vm2221, %v4624, 2147483647
    %v5039 = vand.u32 %v5038, 65535
    %v5040 = vshra.s32 %v5038, 16
    %v5041 = vcvt.s32.f32 %v5039
    %v5042 = vcvt.s32.f32 %v5040
    %5043 = vmin.xlane.f32.xlu0 %v5042
    %v5044 = vpop.xlane.xlu0 %5043
    %vm5045 = vcmp.eq.f32.partialorder %v5042, %v5044
    %v5046 = vsel %vm5045, %v5041, inf
    %5047 = vmin.xlane.f32.xlu0 %v5046
    %v5048 = vpop.xlane.xlu0 %5047
    %v5049 = vcvt.f32.s32 %v5048
    %v5050 = vcvt.f32.s32 %v5044
    %v5051 = vshll.u32 %v5050, 16
    %v5052 = vadd.s32 %v5051, %v5049
    %v5053 = vsel %vm2221, %v4625, 2147483647
    %v5054 = vand.u32 %v5053, 65535
    %v5055 = vshra.s32 %v5053, 16
    %v5056 = vcvt.s32.f32 %v5054
    %v5057 = vcvt.s32.f32 %v5055
    %5058 = vmin.xlane.f32.xlu0 %v5057
    %v5059 = vpop.xlane.xlu0 %5058
    %vm5060 = vcmp.eq.f32.partialorder %v5057, %v5059
    %v5061 = vsel %vm5060, %v5056, inf
    %5062 = vmin.xlane.f32.xlu0 %v5061
    %v5063 = vpop.xlane.xlu0 %5062
    %v5064 = vcvt.f32.s32 %v5063
    %v5065 = vcvt.f32.s32 %v5059
    %v5066 = vshll.u32 %v5065, 16
    %v5067 = vadd.s32 %v5066, %v5064
    %v5068 = vsel %vm2221, %v4626, 2147483647
    %v5069 = vand.u32 %v5068, 65535
    %v5070 = vshra.s32 %v5068, 16
    %v5071 = vcvt.s32.f32 %v5069
    %v5072 = vcvt.s32.f32 %v5070
    %5073 = vmin.xlane.f32.xlu0 %v5072
    %v5074 = vpop.xlane.xlu0 %5073
    %vm5075 = vcmp.eq.f32.partialorder %v5072, %v5074
    %v5076 = vsel %vm5075, %v5071, inf
    %5077 = vmin.xlane.f32.xlu0 %v5076
    %v5078 = vpop.xlane.xlu0 %5077
    %v5079 = vcvt.f32.s32 %v5078
    %v5080 = vcvt.f32.s32 %v5074
    %v5081 = vshll.u32 %v5080, 16
    %v5082 = vadd.s32 %v5081, %v5079
    %v5083 = vsel %vm2221, %v4627, 2147483647
    %v5084 = vand.u32 %v5083, 65535
    %v5085 = vshra.s32 %v5083, 16
    %v5086 = vcvt.s32.f32 %v5084
    %v5087 = vcvt.s32.f32 %v5085
    %5088 = vmin.xlane.f32.xlu0 %v5087
    %v5089 = vpop.xlane.xlu0 %5088
    %vm5090 = vcmp.eq.f32.partialorder %v5087, %v5089
    %v5091 = vsel %vm5090, %v5086, inf
    %5092 = vmin.xlane.f32.xlu0 %v5091
    %v5093 = vpop.xlane.xlu0 %5092
    %v5094 = vcvt.f32.s32 %v5093
    %v5095 = vcvt.f32.s32 %v5089
    %v5096 = vshll.u32 %v5095, 16
    %v5097 = vadd.s32 %v5096, %v5094
    %v5098 = vsel %vm2221, %v4628, 2147483647
    %v5099 = vand.u32 %v5098, 65535
    %v5100 = vshra.s32 %v5098, 16
    %v5101 = vcvt.s32.f32 %v5099
    %v5102 = vcvt.s32.f32 %v5100
    %5103 = vmin.xlane.f32.xlu0 %v5102
    %v5104 = vpop.xlane.xlu0 %5103
    %vm5105 = vcmp.eq.f32.partialorder %v5102, %v5104
    %v5106 = vsel %vm5105, %v5101, inf
    %5107 = vmin.xlane.f32.xlu0 %v5106
    %v5108 = vpop.xlane.xlu0 %5107
    %v5109 = vcvt.f32.s32 %v5108
    %v5110 = vcvt.f32.s32 %v5104
    %v5111 = vshll.u32 %v5110, 16
    %v5112 = vadd.s32 %v5111, %v5109
    %v5113 = vsel %vm2221, %v4629, 2147483647
    %v5114 = vand.u32 %v5113, 65535
    %v5115 = vshra.s32 %v5113, 16
    %v5116 = vcvt.s32.f32 %v5114
    %v5117 = vcvt.s32.f32 %v5115
    %5118 = vmin.xlane.f32.xlu0 %v5117
    %v5119 = vpop.xlane.xlu0 %5118
    %vm5120 = vcmp.eq.f32.partialorder %v5117, %v5119
    %v5121 = vsel %vm5120, %v5116, inf
    %5122 = vmin.xlane.f32.xlu0 %v5121
    %v5123 = vpop.xlane.xlu0 %5122
    %v5124 = vcvt.f32.s32 %v5123
    %v5125 = vcvt.f32.s32 %v5119
    %v5126 = vshll.u32 %v5125, 16
    %v5127 = vadd.s32 %v5126, %v5124
    %v5128 = vsel %vm2221, %v4630, 2147483647
    %v5129 = vand.u32 %v5128, 65535
    %v5130 = vshra.s32 %v5128, 16
    %v5131 = vcvt.s32.f32 %v5129
    %v5132 = vcvt.s32.f32 %v5130
    %5133 = vmin.xlane.f32.xlu0 %v5132
    %v5134 = vpop.xlane.xlu0 %5133
    %vm5135 = vcmp.eq.f32.partialorder %v5132, %v5134
    %v5136 = vsel %vm5135, %v5131, inf
    %5137 = vmin.xlane.f32.xlu0 %v5136
    %v5138 = vpop.xlane.xlu0 %5137
    %v5139 = vcvt.f32.s32 %v5138
    %v5140 = vcvt.f32.s32 %v5134
    %v5141 = vshll.u32 %v5140, 16
    %v5142 = vadd.s32 %v5141, %v5139
    %v5143 = vsel %vm2221, %v4631, 2147483647
    %v5144 = vand.u32 %v5143, 65535
    %v5145 = vshra.s32 %v5143, 16
    %v5146 = vcvt.s32.f32 %v5144
    %v5147 = vcvt.s32.f32 %v5145
    %5148 = vmin.xlane.f32.xlu0 %v5147
    %v5149 = vpop.xlane.xlu0 %5148
    %vm5150 = vcmp.eq.f32.partialorder %v5147, %v5149
    %v5151 = vsel %vm5150, %v5146, inf
    %5152 = vmin.xlane.f32.xlu0 %v5151
    %v5153 = vpop.xlane.xlu0 %5152
    %v5154 = vcvt.f32.s32 %v5153
    %v5155 = vcvt.f32.s32 %v5149
    %v5156 = vshll.u32 %v5155, 16
    %v5157 = vadd.s32 %v5156, %v5154
    %v5158 = vsel %vm2221, %v4632, 2147483647
    %v5159 = vand.u32 %v5158, 65535
    %v5160 = vshra.s32 %v5158, 16
    %v5161 = vcvt.s32.f32 %v5159
    %v5162 = vcvt.s32.f32 %v5160
    %5163 = vmin.xlane.f32.xlu0 %v5162
    %v5164 = vpop.xlane.xlu0 %5163
    %vm5165 = vcmp.eq.f32.partialorder %v5162, %v5164
    %v5166 = vsel %vm5165, %v5161, inf
    %5167 = vmin.xlane.f32.xlu0 %v5166
    %v5168 = vpop.xlane.xlu0 %5167
    %v5169 = vcvt.f32.s32 %v5168
    %v5170 = vcvt.f32.s32 %v5164
    %v5171 = vshll.u32 %v5170, 16
    %v5172 = vadd.s32 %v5171, %v5169
    %v5173 = vsel %vm2221, %v4633, 2147483647
    %v5174 = vand.u32 %v5173, 65535
    %v5175 = vshra.s32 %v5173, 16
    %v5176 = vcvt.s32.f32 %v5174
    %v5177 = vcvt.s32.f32 %v5175
    %5178 = vmin.xlane.f32.xlu0 %v5177
    %v5179 = vpop.xlane.xlu0 %5178
    %vm5180 = vcmp.eq.f32.partialorder %v5177, %v5179
    %v5181 = vsel %vm5180, %v5176, inf
    %5182 = vmin.xlane.f32.xlu0 %v5181
    %v5183 = vpop.xlane.xlu0 %5182
    %v5184 = vcvt.f32.s32 %v5183
    %v5185 = vcvt.f32.s32 %v5179
    %v5186 = vshll.u32 %v5185, 16
    %v5187 = vadd.s32 %v5186, %v5184
    %v5188 = vsel %vm2221, %v4634, 2147483647
    %v5189 = vand.u32 %v5188, 65535
    %v5190 = vshra.s32 %v5188, 16
    %v5191 = vcvt.s32.f32 %v5189
    %v5192 = vcvt.s32.f32 %v5190
    %5193 = vmin.xlane.f32.xlu0 %v5192
    %v5194 = vpop.xlane.xlu0 %5193
    %vm5195 = vcmp.eq.f32.partialorder %v5192, %v5194
    %v5196 = vsel %vm5195, %v5191, inf
    %5197 = vmin.xlane.f32.xlu0 %v5196
    %v5198 = vpop.xlane.xlu0 %5197
    %v5199 = vcvt.f32.s32 %v5198
    %v5200 = vcvt.f32.s32 %v5194
    %v5201 = vshll.u32 %v5200, 16
    %v5202 = vadd.s32 %v5201, %v5199
    %v5203 = vsel %vm2221, %v4635, 2147483647
    %v5204 = vand.u32 %v5203, 65535
    %v5205 = vshra.s32 %v5203, 16
    %v5206 = vcvt.s32.f32 %v5204
    %v5207 = vcvt.s32.f32 %v5205
    %5208 = vmin.xlane.f32.xlu0 %v5207
    %v5209 = vpop.xlane.xlu0 %5208
    %vm5210 = vcmp.eq.f32.partialorder %v5207, %v5209
    %v5211 = vsel %vm5210, %v5206, inf
    %5212 = vmin.xlane.f32.xlu0 %v5211
    %v5213 = vpop.xlane.xlu0 %5212
    %v5214 = vcvt.f32.s32 %v5213
    %v5215 = vcvt.f32.s32 %v5209
    %v5216 = vshll.u32 %v5215, 16
    %v5217 = vadd.s32 %v5216, %v5214
    %v5218 = vsel %vm2221, %v4636, 2147483647
    %v5219 = vand.u32 %v5218, 65535
    %v5220 = vshra.s32 %v5218, 16
    %v5221 = vcvt.s32.f32 %v5219
    %v5222 = vcvt.s32.f32 %v5220
    %5223 = vmin.xlane.f32.xlu0 %v5222
    %v5224 = vpop.xlane.xlu0 %5223
    %vm5225 = vcmp.eq.f32.partialorder %v5222, %v5224
    %v5226 = vsel %vm5225, %v5221, inf
    %5227 = vmin.xlane.f32.xlu0 %v5226
    %v5228 = vpop.xlane.xlu0 %5227
    %v5229 = vcvt.f32.s32 %v5228
    %v5230 = vcvt.f32.s32 %v5224
    %v5231 = vshll.u32 %v5230, 16
    %v5232 = vadd.s32 %v5231, %v5229
    %v5233 = vsel %vm2221, %v4637, 2147483647
    %v5234 = vand.u32 %v5233, 65535
    %v5235 = vshra.s32 %v5233, 16
    %v5236 = vcvt.s32.f32 %v5234
    %v5237 = vcvt.s32.f32 %v5235
    %5238 = vmin.xlane.f32.xlu0 %v5237
    %v5239 = vpop.xlane.xlu0 %5238
    %vm5240 = vcmp.eq.f32.partialorder %v5237, %v5239
    %v5241 = vsel %vm5240, %v5236, inf
    %5242 = vmin.xlane.f32.xlu0 %v5241
    %v5243 = vpop.xlane.xlu0 %5242
    %v5244 = vcvt.f32.s32 %v5243
    %v5245 = vcvt.f32.s32 %v5239
    %v5246 = vshll.u32 %v5245, 16
    %v5247 = vadd.s32 %v5246, %v5244
    %v5248 = vsel %vm2221, %v4638, 2147483647
    %v5249 = vand.u32 %v5248, 65535
    %v5250 = vshra.s32 %v5248, 16
    %v5251 = vcvt.s32.f32 %v5249
    %v5252 = vcvt.s32.f32 %v5250
    %5253 = vmin.xlane.f32.xlu0 %v5252
    %v5254 = vpop.xlane.xlu0 %5253
    %vm5255 = vcmp.eq.f32.partialorder %v5252, %v5254
    %v5256 = vsel %vm5255, %v5251, inf
    %5257 = vmin.xlane.f32.xlu0 %v5256
    %v5258 = vpop.xlane.xlu0 %5257
    %v5259 = vcvt.f32.s32 %v5258
    %v5260 = vcvt.f32.s32 %v5254
    %v5261 = vshll.u32 %v5260, 16
    %v5262 = vadd.s32 %v5261, %v5259
    %v5263 = vsel %vm2221, %v4639, 2147483647
    %v5264 = vand.u32 %v5263, 65535
    %v5265 = vshra.s32 %v5263, 16
    %v5266 = vcvt.s32.f32 %v5264
    %v5267 = vcvt.s32.f32 %v5265
    %5268 = vmin.xlane.f32.xlu0 %v5267
    %v5269 = vpop.xlane.xlu0 %5268
    %vm5270 = vcmp.eq.f32.partialorder %v5267, %v5269
    %v5271 = vsel %vm5270, %v5266, inf
    %5272 = vmin.xlane.f32.xlu0 %v5271
    %v5273 = vpop.xlane.xlu0 %5272
    %v5274 = vcvt.f32.s32 %v5273
    %v5275 = vcvt.f32.s32 %v5269
    %v5276 = vshll.u32 %v5275, 16
    %v5277 = vadd.s32 %v5276, %v5274
    %v5278 = vsel %vm2221, %v4640, 2147483647
    %v5279 = vand.u32 %v5278, 65535
    %v5280 = vshra.s32 %v5278, 16
    %v5281 = vcvt.s32.f32 %v5279
    %v5282 = vcvt.s32.f32 %v5280
    %5283 = vmin.xlane.f32.xlu0 %v5282
    %v5284 = vpop.xlane.xlu0 %5283
    %vm5285 = vcmp.eq.f32.partialorder %v5282, %v5284
    %v5286 = vsel %vm5285, %v5281, inf
    %5287 = vmin.xlane.f32.xlu0 %v5286
    %v5288 = vpop.xlane.xlu0 %5287
    %v5289 = vcvt.f32.s32 %v5288
    %v5290 = vcvt.f32.s32 %v5284
    %v5291 = vshll.u32 %v5290, 16
    %v5292 = vadd.s32 %v5291, %v5289
    %v5293 = vsel %vm2221, %v4641, 2147483647
    %v5294 = vand.u32 %v5293, 65535
    %v5295 = vshra.s32 %v5293, 16
    %v5296 = vcvt.s32.f32 %v5294
    %v5297 = vcvt.s32.f32 %v5295
    %5298 = vmin.xlane.f32.xlu0 %v5297
    %v5299 = vpop.xlane.xlu0 %5298
    %vm5300 = vcmp.eq.f32.partialorder %v5297, %v5299
    %v5301 = vsel %vm5300, %v5296, inf
    %5302 = vmin.xlane.f32.xlu0 %v5301
    %v5303 = vpop.xlane.xlu0 %5302
    %v5304 = vcvt.f32.s32 %v5303
    %v5305 = vcvt.f32.s32 %v5299
    %v5306 = vshll.u32 %v5305, 16
    %v5307 = vadd.s32 %v5306, %v5304
    %v5308 = vsel %vm2221, %v4642, 2147483647
    %v5309 = vand.u32 %v5308, 65535
    %v5310 = vshra.s32 %v5308, 16
    %v5311 = vcvt.s32.f32 %v5309
    %v5312 = vcvt.s32.f32 %v5310
    %5313 = vmin.xlane.f32.xlu0 %v5312
    %v5314 = vpop.xlane.xlu0 %5313
    %vm5315 = vcmp.eq.f32.partialorder %v5312, %v5314
    %v5316 = vsel %vm5315, %v5311, inf
    %5317 = vmin.xlane.f32.xlu0 %v5316
    %v5318 = vpop.xlane.xlu0 %5317
    %v5319 = vcvt.f32.s32 %v5318
    %v5320 = vcvt.f32.s32 %v5314
    %v5321 = vshll.u32 %v5320, 16
    %v5322 = vadd.s32 %v5321, %v5319
    %v5323 = vsel %vm2221, %v4643, 2147483647
    %v5324 = vand.u32 %v5323, 65535
    %v5325 = vshra.s32 %v5323, 16
    %v5326 = vcvt.s32.f32 %v5324
    %v5327 = vcvt.s32.f32 %v5325
    %5328 = vmin.xlane.f32.xlu0 %v5327
    %v5329 = vpop.xlane.xlu0 %5328
    %vm5330 = vcmp.eq.f32.partialorder %v5327, %v5329
    %v5331 = vsel %vm5330, %v5326, inf
    %5332 = vmin.xlane.f32.xlu0 %v5331
    %v5333 = vpop.xlane.xlu0 %5332
    %v5334 = vcvt.f32.s32 %v5333
    %v5335 = vcvt.f32.s32 %v5329
    %v5336 = vshll.u32 %v5335, 16
    %v5337 = vadd.s32 %v5336, %v5334
    %v5338 = vsel %vm2221, %v4644, 2147483647
    %v5339 = vand.u32 %v5338, 65535
    %v5340 = vshra.s32 %v5338, 16
    %v5341 = vcvt.s32.f32 %v5339
    %v5342 = vcvt.s32.f32 %v5340
    %5343 = vmin.xlane.f32.xlu0 %v5342
    %v5344 = vpop.xlane.xlu0 %5343
    %vm5345 = vcmp.eq.f32.partialorder %v5342, %v5344
    %v5346 = vsel %vm5345, %v5341, inf
    %5347 = vmin.xlane.f32.xlu0 %v5346
    %v5348 = vpop.xlane.xlu0 %5347
    %v5349 = vcvt.f32.s32 %v5348
    %v5350 = vcvt.f32.s32 %v5344
    %v5351 = vshll.u32 %v5350, 16
    %v5352 = vadd.s32 %v5351, %v5349
    %v5353 = vsel %vm2221, %v4645, 2147483647
    %v5354 = vand.u32 %v5353, 65535
    %v5355 = vshra.s32 %v5353, 16
    %v5356 = vcvt.s32.f32 %v5354
    %v5357 = vcvt.s32.f32 %v5355
    %5358 = vmin.xlane.f32.xlu0 %v5357
    %v5359 = vpop.xlane.xlu0 %5358
    %vm5360 = vcmp.eq.f32.partialorder %v5357, %v5359
    %v5361 = vsel %vm5360, %v5356, inf
    %5362 = vmin.xlane.f32.xlu0 %v5361
    %v5363 = vpop.xlane.xlu0 %5362
    %v5364 = vcvt.f32.s32 %v5363
    %v5365 = vcvt.f32.s32 %v5359
    %v5366 = vshll.u32 %v5365, 16
    %v5367 = vadd.s32 %v5366, %v5364
    %v5368 = vsel %vm2221, %v4646, 2147483647
    %v5369 = vand.u32 %v5368, 65535
    %v5370 = vshra.s32 %v5368, 16
    %v5371 = vcvt.s32.f32 %v5369
    %v5372 = vcvt.s32.f32 %v5370
    %5373 = vmin.xlane.f32.xlu0 %v5372
    %v5374 = vpop.xlane.xlu0 %5373
    %vm5375 = vcmp.eq.f32.partialorder %v5372, %v5374
    %v5376 = vsel %vm5375, %v5371, inf
    %5377 = vmin.xlane.f32.xlu0 %v5376
    %v5378 = vpop.xlane.xlu0 %5377
    %v5379 = vcvt.f32.s32 %v5378
    %v5380 = vcvt.f32.s32 %v5374
    %v5381 = vshll.u32 %v5380, 16
    %v5382 = vadd.s32 %v5381, %v5379
    %v5383 = vsel %vm2221, %v4647, 2147483647
    %v5384 = vand.u32 %v5383, 65535
    %v5385 = vshra.s32 %v5383, 16
    %v5386 = vcvt.s32.f32 %v5384
    %v5387 = vcvt.s32.f32 %v5385
    %5388 = vmin.xlane.f32.xlu0 %v5387
    %v5389 = vpop.xlane.xlu0 %5388
    %vm5390 = vcmp.eq.f32.partialorder %v5387, %v5389
    %v5391 = vsel %vm5390, %v5386, inf
    %5392 = vmin.xlane.f32.xlu0 %v5391
    %v5393 = vpop.xlane.xlu0 %5392
    %v5394 = vcvt.f32.s32 %v5393
    %v5395 = vcvt.f32.s32 %v5389
    %v5396 = vshll.u32 %v5395, 16
    %v5397 = vadd.s32 %v5396, %v5394
    %v5398 = vsel %vm2221, %v4648, 2147483647
    %v5399 = vand.u32 %v5398, 65535
    %v5400 = vshra.s32 %v5398, 16
    %v5401 = vcvt.s32.f32 %v5399
    %v5402 = vcvt.s32.f32 %v5400
    %5403 = vmin.xlane.f32.xlu0 %v5402
    %v5404 = vpop.xlane.xlu0 %5403
    %vm5405 = vcmp.eq.f32.partialorder %v5402, %v5404
    %v5406 = vsel %vm5405, %v5401, inf
    %5407 = vmin.xlane.f32.xlu0 %v5406
    %v5408 = vpop.xlane.xlu0 %5407
    %v5409 = vcvt.f32.s32 %v5408
    %v5410 = vcvt.f32.s32 %v5404
    %v5411 = vshll.u32 %v5410, 16
    %v5412 = vadd.s32 %v5411, %v5409
    %v5413 = vsel %vm2221, %v4649, 2147483647
    %v5414 = vand.u32 %v5413, 65535
    %v5415 = vshra.s32 %v5413, 16
    %v5416 = vcvt.s32.f32 %v5414
    %v5417 = vcvt.s32.f32 %v5415
    %5418 = vmin.xlane.f32.xlu0 %v5417
    %v5419 = vpop.xlane.xlu0 %5418
    %vm5420 = vcmp.eq.f32.partialorder %v5417, %v5419
    %v5421 = vsel %vm5420, %v5416, inf
    %5422 = vmin.xlane.f32.xlu0 %v5421
    %v5423 = vpop.xlane.xlu0 %5422
    %v5424 = vcvt.f32.s32 %v5423
    %v5425 = vcvt.f32.s32 %v5419
    %v5426 = vshll.u32 %v5425, 16
    %v5427 = vadd.s32 %v5426, %v5424
    %v5428 = vsel %vm2221, %v4650, 2147483647
    %v5429 = vand.u32 %v5428, 65535
    %v5430 = vshra.s32 %v5428, 16
    %v5431 = vcvt.s32.f32 %v5429
    %v5432 = vcvt.s32.f32 %v5430
    %5433 = vmin.xlane.f32.xlu0 %v5432
    %v5434 = vpop.xlane.xlu0 %5433
    %vm5435 = vcmp.eq.f32.partialorder %v5432, %v5434
    %v5436 = vsel %vm5435, %v5431, inf
    %5437 = vmin.xlane.f32.xlu0 %v5436
    %v5438 = vpop.xlane.xlu0 %5437
    %v5439 = vcvt.f32.s32 %v5438
    %v5440 = vcvt.f32.s32 %v5434
    %v5441 = vshll.u32 %v5440, 16
    %v5442 = vadd.s32 %v5441, %v5439
    %v5443 = vsel %vm2221, %v4651, 2147483647
    %v5444 = vand.u32 %v5443, 65535
    %v5445 = vshra.s32 %v5443, 16
    %v5446 = vcvt.s32.f32 %v5444
    %v5447 = vcvt.s32.f32 %v5445
    %5448 = vmin.xlane.f32.xlu0 %v5447
    %v5449 = vpop.xlane.xlu0 %5448
    %vm5450 = vcmp.eq.f32.partialorder %v5447, %v5449
    %v5451 = vsel %vm5450, %v5446, inf
    %5452 = vmin.xlane.f32.xlu0 %v5451
    %v5453 = vpop.xlane.xlu0 %5452
    %v5454 = vcvt.f32.s32 %v5453
    %v5455 = vcvt.f32.s32 %v5449
    %v5456 = vshll.u32 %v5455, 16
    %v5457 = vadd.s32 %v5456, %v5454
    %v5458 = vsel %vm2221, %v4652, 2147483647
    %v5459 = vand.u32 %v5458, 65535
    %v5460 = vshra.s32 %v5458, 16
    %v5461 = vcvt.s32.f32 %v5459
    %v5462 = vcvt.s32.f32 %v5460
    %5463 = vmin.xlane.f32.xlu0 %v5462
    %v5464 = vpop.xlane.xlu0 %5463
    %vm5465 = vcmp.eq.f32.partialorder %v5462, %v5464
    %v5466 = vsel %vm5465, %v5461, inf
    %5467 = vmin.xlane.f32.xlu0 %v5466
    %v5468 = vpop.xlane.xlu0 %5467
    %v5469 = vcvt.f32.s32 %v5468
    %v5470 = vcvt.f32.s32 %v5464
    %v5471 = vshll.u32 %v5470, 16
    %v5472 = vadd.s32 %v5471, %v5469
    %v5473 = vsel %vm2221, %v4653, 2147483647
    %v5474 = vand.u32 %v5473, 65535
    %v5475 = vshra.s32 %v5473, 16
    %v5476 = vcvt.s32.f32 %v5474
    %v5477 = vcvt.s32.f32 %v5475
    %5478 = vmin.xlane.f32.xlu0 %v5477
    %v5479 = vpop.xlane.xlu0 %5478
    %vm5480 = vcmp.eq.f32.partialorder %v5477, %v5479
    %v5481 = vsel %vm5480, %v5476, inf
    %5482 = vmin.xlane.f32.xlu0 %v5481
    %v5483 = vpop.xlane.xlu0 %5482
    %v5484 = vcvt.f32.s32 %v5483
    %v5485 = vcvt.f32.s32 %v5479
    %v5486 = vshll.u32 %v5485, 16
    %v5487 = vadd.s32 %v5486, %v5484
    %v5488 = vsel %vm2221, %v4654, 2147483647
    %v5489 = vand.u32 %v5488, 65535
    %v5490 = vshra.s32 %v5488, 16
    %v5491 = vcvt.s32.f32 %v5489
    %v5492 = vcvt.s32.f32 %v5490
    %5493 = vmin.xlane.f32.xlu0 %v5492
    %v5494 = vpop.xlane.xlu0 %5493
    %vm5495 = vcmp.eq.f32.partialorder %v5492, %v5494
    %v5496 = vsel %vm5495, %v5491, inf
    %5497 = vmin.xlane.f32.xlu0 %v5496
    %v5498 = vpop.xlane.xlu0 %5497
    %v5499 = vcvt.f32.s32 %v5498
    %v5500 = vcvt.f32.s32 %v5494
    %v5501 = vshll.u32 %v5500, 16
    %v5502 = vadd.s32 %v5501, %v5499
    %v5503 = vsel %vm2221, %v4655, 2147483647
    %v5504 = vand.u32 %v5503, 65535
    %v5505 = vshra.s32 %v5503, 16
    %v5506 = vcvt.s32.f32 %v5504
    %v5507 = vcvt.s32.f32 %v5505
    %5508 = vmin.xlane.f32.xlu0 %v5507
    %v5509 = vpop.xlane.xlu0 %5508
    %vm5510 = vcmp.eq.f32.partialorder %v5507, %v5509
    %v5511 = vsel %vm5510, %v5506, inf
    %5512 = vmin.xlane.f32.xlu0 %v5511
    %v5513 = vpop.xlane.xlu0 %5512
    %v5514 = vcvt.f32.s32 %v5513
    %v5515 = vcvt.f32.s32 %v5509
    %v5516 = vshll.u32 %v5515, 16
    %v5517 = vadd.s32 %v5516, %v5514
    %v5518 = vsel %vm2221, %v4656, 2147483647
    %v5519 = vand.u32 %v5518, 65535
    %v5520 = vshra.s32 %v5518, 16
    %v5521 = vcvt.s32.f32 %v5519
    %v5522 = vcvt.s32.f32 %v5520
    %5523 = vmin.xlane.f32.xlu0 %v5522
    %v5524 = vpop.xlane.xlu0 %5523
    %vm5525 = vcmp.eq.f32.partialorder %v5522, %v5524
    %v5526 = vsel %vm5525, %v5521, inf
    %5527 = vmin.xlane.f32.xlu0 %v5526
    %v5528 = vpop.xlane.xlu0 %5527
    %v5529 = vcvt.f32.s32 %v5528
    %v5530 = vcvt.f32.s32 %v5524
    %v5531 = vshll.u32 %v5530, 16
    %v5532 = vadd.s32 %v5531, %v5529
    %v5533 = vsel %vm2221, %v4657, 2147483647
    %v5534 = vand.u32 %v5533, 65535
    %v5535 = vshra.s32 %v5533, 16
    %v5536 = vcvt.s32.f32 %v5534
    %v5537 = vcvt.s32.f32 %v5535
    %5538 = vmin.xlane.f32.xlu0 %v5537
    %v5539 = vpop.xlane.xlu0 %5538
    %vm5540 = vcmp.eq.f32.partialorder %v5537, %v5539
    %v5541 = vsel %vm5540, %v5536, inf
    %5542 = vmin.xlane.f32.xlu0 %v5541
    %v5543 = vpop.xlane.xlu0 %5542
    %v5544 = vcvt.f32.s32 %v5543
    %v5545 = vcvt.f32.s32 %v5539
    %v5546 = vshll.u32 %v5545, 16
    %v5547 = vadd.s32 %v5546, %v5544
    %v5548 = vsel %vm2221, %v4658, 2147483647
    %v5549 = vand.u32 %v5548, 65535
    %v5550 = vshra.s32 %v5548, 16
    %v5551 = vcvt.s32.f32 %v5549
    %v5552 = vcvt.s32.f32 %v5550
    %5553 = vmin.xlane.f32.xlu0 %v5552
    %v5554 = vpop.xlane.xlu0 %5553
    %vm5555 = vcmp.eq.f32.partialorder %v5552, %v5554
    %v5556 = vsel %vm5555, %v5551, inf
    %5557 = vmin.xlane.f32.xlu0 %v5556
    %v5558 = vpop.xlane.xlu0 %5557
    %v5559 = vcvt.f32.s32 %v5558
    %v5560 = vcvt.f32.s32 %v5554
    %v5561 = vshll.u32 %v5560, 16
    %v5562 = vadd.s32 %v5561, %v5559
    %v5563 = vsel %vm2221, %v4659, 2147483647
    %v5564 = vand.u32 %v5563, 65535
    %v5565 = vshra.s32 %v5563, 16
    %v5566 = vcvt.s32.f32 %v5564
    %v5567 = vcvt.s32.f32 %v5565
    %5568 = vmin.xlane.f32.xlu0 %v5567
    %v5569 = vpop.xlane.xlu0 %5568
    %vm5570 = vcmp.eq.f32.partialorder %v5567, %v5569
    %v5571 = vsel %vm5570, %v5566, inf
    %5572 = vmin.xlane.f32.xlu0 %v5571
    %v5573 = vpop.xlane.xlu0 %5572
    %v5574 = vcvt.f32.s32 %v5573
    %v5575 = vcvt.f32.s32 %v5569
    %v5576 = vshll.u32 %v5575, 16
    %v5577 = vadd.s32 %v5576, %v5574
    %v5578 = vsel %vm2221, %v4660, 2147483647
    %v5579 = vand.u32 %v5578, 65535
    %v5580 = vshra.s32 %v5578, 16
    %v5581 = vcvt.s32.f32 %v5579
    %v5582 = vcvt.s32.f32 %v5580
    %5583 = vmin.xlane.f32.xlu0 %v5582
    %v5584 = vpop.xlane.xlu0 %5583
    %vm5585 = vcmp.eq.f32.partialorder %v5582, %v5584
    %v5586 = vsel %vm5585, %v5581, inf
    %5587 = vmin.xlane.f32.xlu0 %v5586
    %v5588 = vpop.xlane.xlu0 %5587
    %v5589 = vcvt.f32.s32 %v5588
    %v5590 = vcvt.f32.s32 %v5584
    %v5591 = vshll.u32 %v5590, 16
    %v5592 = vadd.s32 %v5591, %v5589
    %v5593 = vsel %vm2221, %v4661, 2147483647
    %v5594 = vand.u32 %v5593, 65535
    %v5595 = vshra.s32 %v5593, 16
    %v5596 = vcvt.s32.f32 %v5594
    %v5597 = vcvt.s32.f32 %v5595
    %5598 = vmin.xlane.f32.xlu0 %v5597
    %v5599 = vpop.xlane.xlu0 %5598
    %vm5600 = vcmp.eq.f32.partialorder %v5597, %v5599
    %v5601 = vsel %vm5600, %v5596, inf
    %5602 = vmin.xlane.f32.xlu0 %v5601
    %v5603 = vpop.xlane.xlu0 %5602
    %v5604 = vcvt.f32.s32 %v5603
    %v5605 = vcvt.f32.s32 %v5599
    %v5606 = vshll.u32 %v5605, 16
    %v5607 = vadd.s32 %v5606, %v5604
    %v5608 = vsel %vm2221, %v4662, 2147483647
    %v5609 = vand.u32 %v5608, 65535
    %v5610 = vshra.s32 %v5608, 16
    %v5611 = vcvt.s32.f32 %v5609
    %v5612 = vcvt.s32.f32 %v5610
    %5613 = vmin.xlane.f32.xlu0 %v5612
    %v5614 = vpop.xlane.xlu0 %5613
    %vm5615 = vcmp.eq.f32.partialorder %v5612, %v5614
    %v5616 = vsel %vm5615, %v5611, inf
    %5617 = vmin.xlane.f32.xlu0 %v5616
    %v5618 = vpop.xlane.xlu0 %5617
    %v5619 = vcvt.f32.s32 %v5618
    %v5620 = vcvt.f32.s32 %v5614
    %v5621 = vshll.u32 %v5620, 16
    %v5622 = vadd.s32 %v5621, %v5619
    %vm5623 = vcmp.eq.s32.totalorder %v1634, %v4677
    %vm5624 = vcmp.eq.s32.totalorder %v1634, %v4692
    %vm5625 = vcmp.eq.s32.totalorder %v1634, %v4707
    %vm5626 = vcmp.eq.s32.totalorder %v1634, %v4722
    %vm5627 = vcmp.eq.s32.totalorder %v1634, %v4737
    %vm5628 = vcmp.eq.s32.totalorder %v1634, %v4752
    %vm5629 = vcmp.eq.s32.totalorder %v1634, %v4767
    %vm5630 = vcmp.eq.s32.totalorder %v1634, %v4782
    %vm5631 = vcmp.eq.s32.totalorder %v1634, %v4797
    %vm5632 = vcmp.eq.s32.totalorder %v1634, %v4812
    %vm5633 = vcmp.eq.s32.totalorder %v1634, %v4827
    %vm5634 = vcmp.eq.s32.totalorder %v1634, %v4842
    %vm5635 = vcmp.eq.s32.totalorder %v1634, %v4857
    %vm5636 = vcmp.eq.s32.totalorder %v1634, %v4872
    %vm5637 = vcmp.eq.s32.totalorder %v1634, %v4887
    %vm5638 = vcmp.eq.s32.totalorder %v1634, %v4902
    %vm5639 = vcmp.eq.s32.totalorder %v1634, %v4917
    %vm5640 = vcmp.eq.s32.totalorder %v1634, %v4932
    %vm5641 = vcmp.eq.s32.totalorder %v1634, %v4947
    %vm5642 = vcmp.eq.s32.totalorder %v1634, %v4962
    %vm5643 = vcmp.eq.s32.totalorder %v1634, %v4977
    %vm5644 = vcmp.eq.s32.totalorder %v1634, %v4992
    %vm5645 = vcmp.eq.s32.totalorder %v1634, %v5007
    %vm5646 = vcmp.eq.s32.totalorder %v1634, %v5022
    %vm5647 = vcmp.eq.s32.totalorder %v1634, %v5037
    %vm5648 = vcmp.eq.s32.totalorder %v1634, %v5052
    %vm5649 = vcmp.eq.s32.totalorder %v1634, %v5067
    %vm5650 = vcmp.eq.s32.totalorder %v1634, %v5082
    %vm5651 = vcmp.eq.s32.totalorder %v1634, %v5097
    %vm5652 = vcmp.eq.s32.totalorder %v1634, %v5112
    %vm5653 = vcmp.eq.s32.totalorder %v1634, %v5127
    %vm5654 = vcmp.eq.s32.totalorder %v1634, %v5142
    %vm5655 = vcmp.eq.s32.totalorder %v1634, %v5157
    %vm5656 = vcmp.eq.s32.totalorder %v1634, %v5172
    %vm5657 = vcmp.eq.s32.totalorder %v1634, %v5187
    %vm5658 = vcmp.eq.s32.totalorder %v1634, %v5202
    %vm5659 = vcmp.eq.s32.totalorder %v1634, %v5217
    %vm5660 = vcmp.eq.s32.totalorder %v1634, %v5232
    %vm5661 = vcmp.eq.s32.totalorder %v1634, %v5247
    %vm5662 = vcmp.eq.s32.totalorder %v1634, %v5262
    %vm5663 = vcmp.eq.s32.totalorder %v1634, %v5277
    %vm5664 = vcmp.eq.s32.totalorder %v1634, %v5292
    %vm5665 = vcmp.eq.s32.totalorder %v1634, %v5307
    %vm5666 = vcmp.eq.s32.totalorder %v1634, %v5322
    %vm5667 = vcmp.eq.s32.totalorder %v1634, %v5337
    %vm5668 = vcmp.eq.s32.totalorder %v1634, %v5352
    %vm5669 = vcmp.eq.s32.totalorder %v1634, %v5367
    %vm5670 = vcmp.eq.s32.totalorder %v1634, %v5382
    %vm5671 = vcmp.eq.s32.totalorder %v1634, %v5397
    %vm5672 = vcmp.eq.s32.totalorder %v1634, %v5412
    %vm5673 = vcmp.eq.s32.totalorder %v1634, %v5427
    %vm5674 = vcmp.eq.s32.totalorder %v1634, %v5442
    %vm5675 = vcmp.eq.s32.totalorder %v1634, %v5457
    %vm5676 = vcmp.eq.s32.totalorder %v1634, %v5472
    %vm5677 = vcmp.eq.s32.totalorder %v1634, %v5487
    %vm5678 = vcmp.eq.s32.totalorder %v1634, %v5502
    %vm5679 = vcmp.eq.s32.totalorder %v1634, %v5517
    %vm5680 = vcmp.eq.s32.totalorder %v1634, %v5532
    %vm5681 = vcmp.eq.s32.totalorder %v1634, %v5547
    %vm5682 = vcmp.eq.s32.totalorder %v1634, %v5562
    %vm5683 = vcmp.eq.s32.totalorder %v1634, %v5577
    %vm5684 = vcmp.eq.s32.totalorder %v1634, %v5592
    %vm5685 = vcmp.eq.s32.totalorder %v1634, %v5607
    %vm5686 = vcmp.eq.s32.totalorder %v1634, %v5622
    %v5687 = vsel %vm5623, 1, 0
    %v5688 = vsel %vm5624, 1, 0
    %v5689 = vsel %vm5625, 1, 0
    %v5690 = vsel %vm5626, 1, 0
    %v5691 = vsel %vm5627, 1, 0
    %v5692 = vsel %vm5628, 1, 0
    %v5693 = vsel %vm5629, 1, 0
    %v5694 = vsel %vm5630, 1, 0
    %v5695 = vsel %vm5631, 1, 0
    %v5696 = vsel %vm5632, 1, 0
    %v5697 = vsel %vm5633, 1, 0
    %v5698 = vsel %vm5634, 1, 0
    %v5699 = vsel %vm5635, 1, 0
    %v5700 = vsel %vm5636, 1, 0
    %v5701 = vsel %vm5637, 1, 0
    %v5702 = vsel %vm5638, 1, 0
    %v5703 = vsel %vm5639, 1, 0
    %v5704 = vsel %vm5640, 1, 0
    %v5705 = vsel %vm5641, 1, 0
    %v5706 = vsel %vm5642, 1, 0
    %v5707 = vsel %vm5643, 1, 0
    %v5708 = vsel %vm5644, 1, 0
    %v5709 = vsel %vm5645, 1, 0
    %v5710 = vsel %vm5646, 1, 0
    %v5711 = vsel %vm5647, 1, 0
    %v5712 = vsel %vm5648, 1, 0
    %v5713 = vsel %vm5649, 1, 0
    %v5714 = vsel %vm5650, 1, 0
    %v5715 = vsel %vm5651, 1, 0
    %v5716 = vsel %vm5652, 1, 0
    %v5717 = vsel %vm5653, 1, 0
    %v5718 = vsel %vm5654, 1, 0
    %v5719 = vsel %vm5655, 1, 0
    %v5720 = vsel %vm5656, 1, 0
    %v5721 = vsel %vm5657, 1, 0
    %v5722 = vsel %vm5658, 1, 0
    %v5723 = vsel %vm5659, 1, 0
    %v5724 = vsel %vm5660, 1, 0
    %v5725 = vsel %vm5661, 1, 0
    %v5726 = vsel %vm5662, 1, 0
    %v5727 = vsel %vm5663, 1, 0
    %v5728 = vsel %vm5664, 1, 0
    %v5729 = vsel %vm5665, 1, 0
    %v5730 = vsel %vm5666, 1, 0
    %v5731 = vsel %vm5667, 1, 0
    %v5732 = vsel %vm5668, 1, 0
    %v5733 = vsel %vm5669, 1, 0
    %v5734 = vsel %vm5670, 1, 0
    %v5735 = vsel %vm5671, 1, 0
    %v5736 = vsel %vm5672, 1, 0
    %v5737 = vsel %vm5673, 1, 0
    %v5738 = vsel %vm5674, 1, 0
    %v5739 = vsel %vm5675, 1, 0
    %v5740 = vsel %vm5676, 1, 0
    %v5741 = vsel %vm5677, 1, 0
    %v5742 = vsel %vm5678, 1, 0
    %v5743 = vsel %vm5679, 1, 0
    %v5744 = vsel %vm5680, 1, 0
    %v5745 = vsel %vm5681, 1, 0
    %v5746 = vsel %vm5682, 1, 0
    %v5747 = vsel %vm5683, 1, 0
    %v5748 = vsel %vm5684, 1, 0
    %v5749 = vsel %vm5685, 1, 0
    %v5750 = vsel %vm5686, 1, 0
    %v5751 = vcvt.s32.f32 %v5687
    %v5752 = vcvt.s32.f32 %v5688
    %v5753 = vcvt.s32.f32 %v5689
    %v5754 = vcvt.s32.f32 %v5690
    %v5755 = vcvt.s32.f32 %v5691
    %v5756 = vcvt.s32.f32 %v5692
    %v5757 = vcvt.s32.f32 %v5693
    %v5758 = vcvt.s32.f32 %v5694
    %v5759 = vcvt.s32.f32 %v5695
    %v5760 = vcvt.s32.f32 %v5696
    %v5761 = vcvt.s32.f32 %v5697
    %v5762 = vcvt.s32.f32 %v5698
    %v5763 = vcvt.s32.f32 %v5699
    %v5764 = vcvt.s32.f32 %v5700
    %v5765 = vcvt.s32.f32 %v5701
    %v5766 = vcvt.s32.f32 %v5702
    %v5767 = vcvt.s32.f32 %v5703
    %v5768 = vcvt.s32.f32 %v5704
    %v5769 = vcvt.s32.f32 %v5705
    %v5770 = vcvt.s32.f32 %v5706
    %v5771 = vcvt.s32.f32 %v5707
    %v5772 = vcvt.s32.f32 %v5708
    %v5773 = vcvt.s32.f32 %v5709
    %v5774 = vcvt.s32.f32 %v5710
    %v5775 = vcvt.s32.f32 %v5711
    %v5776 = vcvt.s32.f32 %v5712
    %v5777 = vcvt.s32.f32 %v5713
    %v5778 = vcvt.s32.f32 %v5714
    %v5779 = vcvt.s32.f32 %v5715
    %v5780 = vcvt.s32.f32 %v5716
    %v5781 = vcvt.s32.f32 %v5717
    %v5782 = vcvt.s32.f32 %v5718
    %v5783 = vcvt.s32.f32 %v5719
    %v5784 = vcvt.s32.f32 %v5720
    %v5785 = vcvt.s32.f32 %v5721
    %v5786 = vcvt.s32.f32 %v5722
    %v5787 = vcvt.s32.f32 %v5723
    %v5788 = vcvt.s32.f32 %v5724
    %v5789 = vcvt.s32.f32 %v5725
    %v5790 = vcvt.s32.f32 %v5726
    %v5791 = vcvt.s32.f32 %v5727
    %v5792 = vcvt.s32.f32 %v5728
    %v5793 = vcvt.s32.f32 %v5729
    %v5794 = vcvt.s32.f32 %v5730
    %v5795 = vcvt.s32.f32 %v5731
    %v5796 = vcvt.s32.f32 %v5732
    %v5797 = vcvt.s32.f32 %v5733
    %v5798 = vcvt.s32.f32 %v5734
    %v5799 = vcvt.s32.f32 %v5735
    %v5800 = vcvt.s32.f32 %v5736
    %v5801 = vcvt.s32.f32 %v5737
    %v5802 = vcvt.s32.f32 %v5738
    %v5803 = vcvt.s32.f32 %v5739
    %v5804 = vcvt.s32.f32 %v5740
    %v5805 = vcvt.s32.f32 %v5741
    %v5806 = vcvt.s32.f32 %v5742
    %v5807 = vcvt.s32.f32 %v5743
    %v5808 = vcvt.s32.f32 %v5744
    %v5809 = vcvt.s32.f32 %v5745
    %v5810 = vcvt.s32.f32 %v5746
    %v5811 = vcvt.s32.f32 %v5747
    %v5812 = vcvt.s32.f32 %v5748
    %v5813 = vcvt.s32.f32 %v5749
    %v5814 = vcvt.s32.f32 %v5750
    %s5815 = scalar_lea.vmem %s5, 64
    %v5816 = vld [vmem:[%s5815] sm:$0xff]
    %v5817 = vld [vmem:[%s5815 + $0x8] sm:$0xff]
    %v5818 = vld [vmem:[%s5815 + $0x10] sm:$0xff]
    %v5819 = vld [vmem:[%s5815 + $0x18] sm:$0xff]
    %v5820 = vld [vmem:[%s5815 + $0x20] sm:$0xff]
    %v5821 = vld [vmem:[%s5815 + $0x28] sm:$0xff]
    %v5822 = vld [vmem:[%s5815 + $0x30] sm:$0xff]
    %v5823 = vld [vmem:[%s5815 + $0x38] sm:$0xff]
    %v5825 = vsel %vm2221, %v5751, 0
    %v5828 = vsel %vm2221, %v5752, 0
    %v5831 = vsel %vm2221, %v5753, 0
    %v5834 = vsel %vm2221, %v5754, 0
    %v5837 = vsel %vm2221, %v5755, 0
    %v5840 = vsel %vm2221, %v5756, 0
    %v5843 = vsel %vm2221, %v5757, 0
    %v5846 = vsel %vm2221, %v5758, 0
    %v5849 = vsel %vm2221, %v5759, 0
    %v5852 = vsel %vm2221, %v5760, 0
    %v5855 = vsel %vm2221, %v5761, 0
    %v5858 = vsel %vm2221, %v5762, 0
    %v5861 = vsel %vm2221, %v5763, 0
    %v5864 = vsel %vm2221, %v5764, 0
    %v5867 = vsel %vm2221, %v5765, 0
    %v5870 = vsel %vm2221, %v5766, 0
    %v5873 = vsel %vm2221, %v5767, 0
    %v5876 = vsel %vm2221, %v5768, 0
    %v5879 = vsel %vm2221, %v5769, 0
    %v5882 = vsel %vm2221, %v5770, 0
    %v5885 = vsel %vm2221, %v5771, 0
    %v5888 = vsel %vm2221, %v5772, 0
    %v5891 = vsel %vm2221, %v5773, 0
    %v5894 = vsel %vm2221, %v5774, 0
    %v5897 = vsel %vm2221, %v5775, 0
    %v5900 = vsel %vm2221, %v5776, 0
    %v5903 = vsel %vm2221, %v5777, 0
    %v5906 = vsel %vm2221, %v5778, 0
    %v5909 = vsel %vm2221, %v5779, 0
    %v5912 = vsel %vm2221, %v5780, 0
    %v5915 = vsel %vm2221, %v5781, 0
    %v5918 = vsel %vm2221, %v5782, 0
    %v5921 = vsel %vm2221, %v5783, 0
    %v5924 = vsel %vm2221, %v5784, 0
    %v5927 = vsel %vm2221, %v5785, 0
    %v5930 = vsel %vm2221, %v5786, 0
    %v5933 = vsel %vm2221, %v5787, 0
    %v5936 = vsel %vm2221, %v5788, 0
    %v5939 = vsel %vm2221, %v5789, 0
    %v5942 = vsel %vm2221, %v5790, 0
    %v5945 = vsel %vm2221, %v5791, 0
    %v5948 = vsel %vm2221, %v5792, 0
    %v5951 = vsel %vm2221, %v5793, 0
    %v5954 = vsel %vm2221, %v5794, 0
    %v5957 = vsel %vm2221, %v5795, 0
    %v5960 = vsel %vm2221, %v5796, 0
    %v5963 = vsel %vm2221, %v5797, 0
    %v5966 = vsel %vm2221, %v5798, 0
    %v5969 = vsel %vm2221, %v5799, 0
    %v5972 = vsel %vm2221, %v5800, 0
    %v5975 = vsel %vm2221, %v5801, 0
    %v5978 = vsel %vm2221, %v5802, 0
    %v5981 = vsel %vm2221, %v5803, 0
    %v5984 = vsel %vm2221, %v5804, 0
    %v5987 = vsel %vm2221, %v5805, 0
    %v5990 = vsel %vm2221, %v5806, 0
    %v5993 = vsel %vm2221, %v5807, 0
    %v5996 = vsel %vm2221, %v5808, 0
    %v5999 = vsel %vm2221, %v5809, 0
    %v6002 = vsel %vm2221, %v5810, 0
    %v6005 = vsel %vm2221, %v5811, 0
    %v6008 = vsel %vm2221, %v5812, 0
    %v6011 = vsel %vm2221, %v5813, 0
    %v6014 = vsel %vm2221, %v5814, 0
    %6016 = vmatprep.subr.mxu0 0.0
    %6017 = vmatpush1.msra.mxu0 0.0
    %6018 = vmatprep.subr.mxu0 0.0
    %6019 = vmatpush1.msra.mxu0 0.0
    %6020 = vmatprep.subr.mxu0 0.0
    %6021 = vmatpush1.msra.mxu0 0.0
    %6022 = vmatprep.subr.mxu0 0.0
    %6023 = vmatpush1.msra.mxu0 0.0
    %6024 = vmatprep.subr.mxu0 0.0
    %6025 = vmatpush1.msra.mxu0 0.0
    %6026 = vmatprep.subr.mxu0 0.0
    %6027 = vmatpush1.msra.mxu0 0.0
    %6028 = vmatprep.subr.mxu0 0.0
    %6029 = vmatpush1.msra.mxu0 0.0
    %6030 = vmatprep.subr.mxu0 0.0
    %6031 = vmatpush1.msra.mxu0 0.0
    %6032 = vmatprep.subr.mxu0 0.0
    %6033 = vmatpush1.msra.mxu0 %v5823
    %6034 = vmatprep.subr.mxu0 0.0
    %6035 = vmatpush1.msra.mxu0 %v5822
    %6036 = vmatprep.subr.mxu0 0.0
    %6037 = vmatpush1.msra.mxu0 %v5821
    %6038 = vmatprep.subr.mxu0 0.0
    %6039 = vmatpush1.msra.mxu0 %v5820
    %6040 = vmatprep.subr.mxu0 0.0
    %6041 = vmatpush1.msra.mxu0 %v5819
    %6042 = vmatprep.subr.mxu0 0.0
    %6043 = vmatpush1.msra.mxu0 %v5818
    %6044 = vmatprep.subr.mxu0 0.0
    %6045 = vmatpush1.msra.mxu0 %v5817
    %6046 = vmatprep.subr.mxu0 0.0
    %6047 = vmatpush1.msra.mxu0 %v5816
    %6048 = vmatprep.subr.mxu0 0.0
    %6049 = vmatpush2.msra.mxu0 0.0
    %6050 = vmatprep.subr.mxu0 0.0
    %6051 = vmatpush2.msra.mxu0 0.0
    %6052 = vmatprep.subr.mxu0 0.0
    %6053 = vmatpush2.msra.mxu0 0.0
    %6054 = vmatprep.subr.mxu0 0.0
    %6055 = vmatpush2.msra.mxu0 0.0
    %6056 = vmatprep.subr.mxu0 0.0
    %6057 = vmatpush2.msra.mxu0 0.0
    %6058 = vmatprep.subr.mxu0 0.0
    %6059 = vmatpush2.msra.mxu0 0.0
    %6060 = vmatprep.subr.mxu0 0.0
    %6061 = vmatpush2.msra.mxu0 0.0
    %6062 = vmatprep.subr.mxu0 0.0
    %6063 = vmatpush2.msra.mxu0 0.0
    %6064 = vmatprep.subr.mxu0 0.0
    %6065 = vmatpush2.msra.mxu0 0.0
    %6066 = vmatprep.subr.mxu0 0.0
    %6067 = vmatpush2.msra.mxu0 0.0
    %6068 = vmatprep.subr.mxu0 0.0
    %6069 = vmatpush2.msra.mxu0 0.0
    %6070 = vmatprep.subr.mxu0 0.0
    %6071 = vmatpush2.msra.mxu0 0.0
    %6072 = vmatprep.subr.mxu0 0.0
    %6073 = vmatpush2.msra.mxu0 0.0
    %6074 = vmatprep.subr.mxu0 0.0
    %6075 = vmatpush2.msra.mxu0 0.0
    %6076 = vmatprep.subr.mxu0 0.0
    %6077 = vmatpush2.msra.mxu0 0.0
    %6078 = vmatprep.subr.mxu0 0.0
    %6079 = vmatpush2.msra.mxu0 0.0
    %6080 = vmatprep.mubr.f32.mxu0 0.0
    %6081 = vmatmul.mubr.f32.gmra.mxu0 %v5825
    %v6082 = vpop.f32.mrf.mxu0
    %v6083 = vadd.f32 0.0, %v6082
    %v6084 = vpop.f32.mrf.mxu0
    %6085 = vmatprep.mubr.f32.mxu0 0.0
    %6086 = vmatmul.mubr.f32.gmra.mxu0 %v5828
    %v6087 = vpop.f32.mrf.mxu0
    %v6088 = vadd.f32 0.0, %v6087
    %v6089 = vpop.f32.mrf.mxu0
    %6090 = vmatprep.mubr.f32.mxu0 0.0
    %6091 = vmatmul.mubr.f32.gmra.mxu0 %v5831
    %v6092 = vpop.f32.mrf.mxu0
    %v6093 = vadd.f32 0.0, %v6092
    %v6094 = vpop.f32.mrf.mxu0
    %6095 = vmatprep.mubr.f32.mxu0 0.0
    %6096 = vmatmul.mubr.f32.gmra.mxu0 %v5834
    %v6097 = vpop.f32.mrf.mxu0
    %v6098 = vadd.f32 0.0, %v6097
    %v6099 = vpop.f32.mrf.mxu0
    %6100 = vmatprep.mubr.f32.mxu0 0.0
    %6101 = vmatmul.mubr.f32.gmra.mxu0 %v5837
    %v6102 = vpop.f32.mrf.mxu0
    %v6103 = vadd.f32 0.0, %v6102
    %v6104 = vpop.f32.mrf.mxu0
    %6105 = vmatprep.mubr.f32.mxu0 0.0
    %6106 = vmatmul.mubr.f32.gmra.mxu0 %v5840
    %v6107 = vpop.f32.mrf.mxu0
    %v6108 = vadd.f32 0.0, %v6107
    %v6109 = vpop.f32.mrf.mxu0
    %6110 = vmatprep.mubr.f32.mxu0 0.0
    %6111 = vmatmul.mubr.f32.gmra.mxu0 %v5843
    %v6112 = vpop.f32.mrf.mxu0
    %v6113 = vadd.f32 0.0, %v6112
    %v6114 = vpop.f32.mrf.mxu0
    %6115 = vmatprep.mubr.f32.mxu0 0.0
    %6116 = vmatmul.mubr.f32.gmra.mxu0 %v5846
    %v6117 = vpop.f32.mrf.mxu0
    %v6118 = vadd.f32 0.0, %v6117
    %v6119 = vpop.f32.mrf.mxu0
    %6120 = vmatprep.mubr.f32.mxu0 0.0
    %6121 = vmatmul.mubr.f32.gmra.mxu0 %v5849
    %v6122 = vpop.f32.mrf.mxu0
    %v6123 = vadd.f32 0.0, %v6122
    %v6124 = vpop.f32.mrf.mxu0
    %6125 = vmatprep.mubr.f32.mxu0 0.0
    %6126 = vmatmul.mubr.f32.gmra.mxu0 %v5852
    %v6127 = vpop.f32.mrf.mxu0
    %v6128 = vadd.f32 0.0, %v6127
    %v6129 = vpop.f32.mrf.mxu0
    %6130 = vmatprep.mubr.f32.mxu0 0.0
    %6131 = vmatmul.mubr.f32.gmra.mxu0 %v5855
    %v6132 = vpop.f32.mrf.mxu0
    %v6133 = vadd.f32 0.0, %v6132
    %v6134 = vpop.f32.mrf.mxu0
    %6135 = vmatprep.mubr.f32.mxu0 0.0
    %6136 = vmatmul.mubr.f32.gmra.mxu0 %v5858
    %v6137 = vpop.f32.mrf.mxu0
    %v6138 = vadd.f32 0.0, %v6137
    %v6139 = vpop.f32.mrf.mxu0
    %6140 = vmatprep.mubr.f32.mxu0 0.0
    %6141 = vmatmul.mubr.f32.gmra.mxu0 %v5861
    %v6142 = vpop.f32.mrf.mxu0
    %v6143 = vadd.f32 0.0, %v6142
    %v6144 = vpop.f32.mrf.mxu0
    %6145 = vmatprep.mubr.f32.mxu0 0.0
    %6146 = vmatmul.mubr.f32.gmra.mxu0 %v5864
    %v6147 = vpop.f32.mrf.mxu0
    %v6148 = vadd.f32 0.0, %v6147
    %v6149 = vpop.f32.mrf.mxu0
    %6150 = vmatprep.mubr.f32.mxu0 0.0
    %6151 = vmatmul.mubr.f32.gmra.mxu0 %v5867
    %v6152 = vpop.f32.mrf.mxu0
    %v6153 = vadd.f32 0.0, %v6152
    %v6154 = vpop.f32.mrf.mxu0
    %6155 = vmatprep.mubr.f32.mxu0 0.0
    %6156 = vmatmul.mubr.f32.gmra.mxu0 %v5870
    %v6157 = vpop.f32.mrf.mxu0
    %v6158 = vadd.f32 0.0, %v6157
    %v6159 = vpop.f32.mrf.mxu0
    %6160 = vmatprep.mubr.f32.mxu0 0.0
    %6161 = vmatmul.mubr.f32.gmra.mxu0 %v5873
    %v6162 = vpop.f32.mrf.mxu0
    %v6163 = vadd.f32 0.0, %v6162
    %v6164 = vpop.f32.mrf.mxu0
    %6165 = vmatprep.mubr.f32.mxu0 0.0
    %6166 = vmatmul.mubr.f32.gmra.mxu0 %v5876
    %v6167 = vpop.f32.mrf.mxu0
    %v6168 = vadd.f32 0.0, %v6167
    %v6169 = vpop.f32.mrf.mxu0
    %6170 = vmatprep.mubr.f32.mxu0 0.0
    %6171 = vmatmul.mubr.f32.gmra.mxu0 %v5879
    %v6172 = vpop.f32.mrf.mxu0
    %v6173 = vadd.f32 0.0, %v6172
    %v6174 = vpop.f32.mrf.mxu0
    %6175 = vmatprep.mubr.f32.mxu0 0.0
    %6176 = vmatmul.mubr.f32.gmra.mxu0 %v5882
    %v6177 = vpop.f32.mrf.mxu0
    %v6178 = vadd.f32 0.0, %v6177
    %v6179 = vpop.f32.mrf.mxu0
    %6180 = vmatprep.mubr.f32.mxu0 0.0
    %6181 = vmatmul.mubr.f32.gmra.mxu0 %v5885
    %v6182 = vpop.f32.mrf.mxu0
    %v6183 = vadd.f32 0.0, %v6182
    %v6184 = vpop.f32.mrf.mxu0
    %6185 = vmatprep.mubr.f32.mxu0 0.0
    %6186 = vmatmul.mubr.f32.gmra.mxu0 %v5888
    %v6187 = vpop.f32.mrf.mxu0
    %v6188 = vadd.f32 0.0, %v6187
    %v6189 = vpop.f32.mrf.mxu0
    %6190 = vmatprep.mubr.f32.mxu0 0.0
    %6191 = vmatmul.mubr.f32.gmra.mxu0 %v5891
    %v6192 = vpop.f32.mrf.mxu0
    %v6193 = vadd.f32 0.0, %v6192
    %v6194 = vpop.f32.mrf.mxu0
    %6195 = vmatprep.mubr.f32.mxu0 0.0
    %6196 = vmatmul.mubr.f32.gmra.mxu0 %v5894
    %v6197 = vpop.f32.mrf.mxu0
    %v6198 = vadd.f32 0.0, %v6197
    %v6199 = vpop.f32.mrf.mxu0
    %6200 = vmatprep.mubr.f32.mxu0 0.0
    %6201 = vmatmul.mubr.f32.gmra.mxu0 %v5897
    %v6202 = vpop.f32.mrf.mxu0
    %v6203 = vadd.f32 0.0, %v6202
    %v6204 = vpop.f32.mrf.mxu0
    %6205 = vmatprep.mubr.f32.mxu0 0.0
    %6206 = vmatmul.mubr.f32.gmra.mxu0 %v5900
    %v6207 = vpop.f32.mrf.mxu0
    %v6208 = vadd.f32 0.0, %v6207
    %v6209 = vpop.f32.mrf.mxu0
    %6210 = vmatprep.mubr.f32.mxu0 0.0
    %6211 = vmatmul.mubr.f32.gmra.mxu0 %v5903
    %v6212 = vpop.f32.mrf.mxu0
    %v6213 = vadd.f32 0.0, %v6212
    %v6214 = vpop.f32.mrf.mxu0
    %6215 = vmatprep.mubr.f32.mxu0 0.0
    %6216 = vmatmul.mubr.f32.gmra.mxu0 %v5906
    %v6217 = vpop.f32.mrf.mxu0
    %v6218 = vadd.f32 0.0, %v6217
    %v6219 = vpop.f32.mrf.mxu0
    %6220 = vmatprep.mubr.f32.mxu0 0.0
    %6221 = vmatmul.mubr.f32.gmra.mxu0 %v5909
    %v6222 = vpop.f32.mrf.mxu0
    %v6223 = vadd.f32 0.0, %v6222
    %v6224 = vpop.f32.mrf.mxu0
    %6225 = vmatprep.mubr.f32.mxu0 0.0
    %6226 = vmatmul.mubr.f32.gmra.mxu0 %v5912
    %v6227 = vpop.f32.mrf.mxu0
    %v6228 = vadd.f32 0.0, %v6227
    %v6229 = vpop.f32.mrf.mxu0
    %6230 = vmatprep.mubr.f32.mxu0 0.0
    %6231 = vmatmul.mubr.f32.gmra.mxu0 %v5915
    %v6232 = vpop.f32.mrf.mxu0
    %v6233 = vadd.f32 0.0, %v6232
    %v6234 = vpop.f32.mrf.mxu0
    %6235 = vmatprep.mubr.f32.mxu0 0.0
    %6236 = vmatmul.mubr.f32.gmra.mxu0 %v5918
    %v6237 = vpop.f32.mrf.mxu0
    %v6238 = vadd.f32 0.0, %v6237
    %v6239 = vpop.f32.mrf.mxu0
    %6240 = vmatprep.mubr.f32.mxu0 0.0
    %6241 = vmatmul.mubr.f32.gmra.mxu0 %v5921
    %v6242 = vpop.f32.mrf.mxu0
    %v6243 = vadd.f32 0.0, %v6242
    %v6244 = vpop.f32.mrf.mxu0
    %6245 = vmatprep.mubr.f32.mxu0 0.0
    %6246 = vmatmul.mubr.f32.gmra.mxu0 %v5924
    %v6247 = vpop.f32.mrf.mxu0
    %v6248 = vadd.f32 0.0, %v6247
    %v6249 = vpop.f32.mrf.mxu0
    %6250 = vmatprep.mubr.f32.mxu0 0.0
    %6251 = vmatmul.mubr.f32.gmra.mxu0 %v5927
    %v6252 = vpop.f32.mrf.mxu0
    %v6253 = vadd.f32 0.0, %v6252
    %v6254 = vpop.f32.mrf.mxu0
    %6255 = vmatprep.mubr.f32.mxu0 0.0
    %6256 = vmatmul.mubr.f32.gmra.mxu0 %v5930
    %v6257 = vpop.f32.mrf.mxu0
    %v6258 = vadd.f32 0.0, %v6257
    %v6259 = vpop.f32.mrf.mxu0
    %6260 = vmatprep.mubr.f32.mxu0 0.0
    %6261 = vmatmul.mubr.f32.gmra.mxu0 %v5933
    %v6262 = vpop.f32.mrf.mxu0
    %v6263 = vadd.f32 0.0, %v6262
    %v6264 = vpop.f32.mrf.mxu0
    %6265 = vmatprep.mubr.f32.mxu0 0.0
    %6266 = vmatmul.mubr.f32.gmra.mxu0 %v5936
    %v6267 = vpop.f32.mrf.mxu0
    %v6268 = vadd.f32 0.0, %v6267
    %v6269 = vpop.f32.mrf.mxu0
    %6270 = vmatprep.mubr.f32.mxu0 0.0
    %6271 = vmatmul.mubr.f32.gmra.mxu0 %v5939
    %v6272 = vpop.f32.mrf.mxu0
    %v6273 = vadd.f32 0.0, %v6272
    %v6274 = vpop.f32.mrf.mxu0
    %6275 = vmatprep.mubr.f32.mxu0 0.0
    %6276 = vmatmul.mubr.f32.gmra.mxu0 %v5942
    %v6277 = vpop.f32.mrf.mxu0
    %v6278 = vadd.f32 0.0, %v6277
    %v6279 = vpop.f32.mrf.mxu0
    %6280 = vmatprep.mubr.f32.mxu0 0.0
    %6281 = vmatmul.mubr.f32.gmra.mxu0 %v5945
    %v6282 = vpop.f32.mrf.mxu0
    %v6283 = vadd.f32 0.0, %v6282
    %v6284 = vpop.f32.mrf.mxu0
    %6285 = vmatprep.mubr.f32.mxu0 0.0
    %6286 = vmatmul.mubr.f32.gmra.mxu0 %v5948
    %v6287 = vpop.f32.mrf.mxu0
    %v6288 = vadd.f32 0.0, %v6287
    %v6289 = vpop.f32.mrf.mxu0
    %6290 = vmatprep.mubr.f32.mxu0 0.0
    %6291 = vmatmul.mubr.f32.gmra.mxu0 %v5951
    %v6292 = vpop.f32.mrf.mxu0
    %v6293 = vadd.f32 0.0, %v6292
    %v6294 = vpop.f32.mrf.mxu0
    %6295 = vmatprep.mubr.f32.mxu0 0.0
    %6296 = vmatmul.mubr.f32.gmra.mxu0 %v5954
    %v6297 = vpop.f32.mrf.mxu0
    %v6298 = vadd.f32 0.0, %v6297
    %v6299 = vpop.f32.mrf.mxu0
    %6300 = vmatprep.mubr.f32.mxu0 0.0
    %6301 = vmatmul.mubr.f32.gmra.mxu0 %v5957
    %v6302 = vpop.f32.mrf.mxu0
    %v6303 = vadd.f32 0.0, %v6302
    %v6304 = vpop.f32.mrf.mxu0
    %6305 = vmatprep.mubr.f32.mxu0 0.0
    %6306 = vmatmul.mubr.f32.gmra.mxu0 %v5960
    %v6307 = vpop.f32.mrf.mxu0
    %v6308 = vadd.f32 0.0, %v6307
    %v6309 = vpop.f32.mrf.mxu0
    %6310 = vmatprep.mubr.f32.mxu0 0.0
    %6311 = vmatmul.mubr.f32.gmra.mxu0 %v5963
    %v6312 = vpop.f32.mrf.mxu0
    %v6313 = vadd.f32 0.0, %v6312
    %v6314 = vpop.f32.mrf.mxu0
    %6315 = vmatprep.mubr.f32.mxu0 0.0
    %6316 = vmatmul.mubr.f32.gmra.mxu0 %v5966
    %v6317 = vpop.f32.mrf.mxu0
    %v6318 = vadd.f32 0.0, %v6317
    %v6319 = vpop.f32.mrf.mxu0
    %6320 = vmatprep.mubr.f32.mxu0 0.0
    %6321 = vmatmul.mubr.f32.gmra.mxu0 %v5969
    %v6322 = vpop.f32.mrf.mxu0
    %v6323 = vadd.f32 0.0, %v6322
    %v6324 = vpop.f32.mrf.mxu0
    %6325 = vmatprep.mubr.f32.mxu0 0.0
    %6326 = vmatmul.mubr.f32.gmra.mxu0 %v5972
    %v6327 = vpop.f32.mrf.mxu0
    %v6328 = vadd.f32 0.0, %v6327
    %v6329 = vpop.f32.mrf.mxu0
    %6330 = vmatprep.mubr.f32.mxu0 0.0
    %6331 = vmatmul.mubr.f32.gmra.mxu0 %v5975
    %v6332 = vpop.f32.mrf.mxu0
    %v6333 = vadd.f32 0.0, %v6332
    %v6334 = vpop.f32.mrf.mxu0
    %6335 = vmatprep.mubr.f32.mxu0 0.0
    %6336 = vmatmul.mubr.f32.gmra.mxu0 %v5978
    %v6337 = vpop.f32.mrf.mxu0
    %v6338 = vadd.f32 0.0, %v6337
    %v6339 = vpop.f32.mrf.mxu0
    %6340 = vmatprep.mubr.f32.mxu0 0.0
    %6341 = vmatmul.mubr.f32.gmra.mxu0 %v5981
    %v6342 = vpop.f32.mrf.mxu0
    %v6343 = vadd.f32 0.0, %v6342
    %v6344 = vpop.f32.mrf.mxu0
    %6345 = vmatprep.mubr.f32.mxu0 0.0
    %6346 = vmatmul.mubr.f32.gmra.mxu0 %v5984
    %v6347 = vpop.f32.mrf.mxu0
    %v6348 = vadd.f32 0.0, %v6347
    %v6349 = vpop.f32.mrf.mxu0
    %6350 = vmatprep.mubr.f32.mxu0 0.0
    %6351 = vmatmul.mubr.f32.gmra.mxu0 %v5987
    %v6352 = vpop.f32.mrf.mxu0
    %v6353 = vadd.f32 0.0, %v6352
    %v6354 = vpop.f32.mrf.mxu0
    %6355 = vmatprep.mubr.f32.mxu0 0.0
    %6356 = vmatmul.mubr.f32.gmra.mxu0 %v5990
    %v6357 = vpop.f32.mrf.mxu0
    %v6358 = vadd.f32 0.0, %v6357
    %v6359 = vpop.f32.mrf.mxu0
    %6360 = vmatprep.mubr.f32.mxu0 0.0
    %6361 = vmatmul.mubr.f32.gmra.mxu0 %v5993
    %v6362 = vpop.f32.mrf.mxu0
    %v6363 = vadd.f32 0.0, %v6362
    %v6364 = vpop.f32.mrf.mxu0
    %6365 = vmatprep.mubr.f32.mxu0 0.0
    %6366 = vmatmul.mubr.f32.gmra.mxu0 %v5996
    %v6367 = vpop.f32.mrf.mxu0
    %v6368 = vadd.f32 0.0, %v6367
    %v6369 = vpop.f32.mrf.mxu0
    %6370 = vmatprep.mubr.f32.mxu0 0.0
    %6371 = vmatmul.mubr.f32.gmra.mxu0 %v5999
    %v6372 = vpop.f32.mrf.mxu0
    %v6373 = vadd.f32 0.0, %v6372
    %v6374 = vpop.f32.mrf.mxu0
    %6375 = vmatprep.mubr.f32.mxu0 0.0
    %6376 = vmatmul.mubr.f32.gmra.mxu0 %v6002
    %v6377 = vpop.f32.mrf.mxu0
    %v6378 = vadd.f32 0.0, %v6377
    %v6379 = vpop.f32.mrf.mxu0
    %6380 = vmatprep.mubr.f32.mxu0 0.0
    %6381 = vmatmul.mubr.f32.gmra.mxu0 %v6005
    %v6382 = vpop.f32.mrf.mxu0
    %v6383 = vadd.f32 0.0, %v6382
    %v6384 = vpop.f32.mrf.mxu0
    %6385 = vmatprep.mubr.f32.mxu0 0.0
    %6386 = vmatmul.mubr.f32.gmra.mxu0 %v6008
    %v6387 = vpop.f32.mrf.mxu0
    %v6388 = vadd.f32 0.0, %v6387
    %v6389 = vpop.f32.mrf.mxu0
    %6390 = vmatprep.mubr.f32.mxu0 0.0
    %6391 = vmatmul.mubr.f32.gmra.mxu0 %v6011
    %v6392 = vpop.f32.mrf.mxu0
    %v6393 = vadd.f32 0.0, %v6392
    %v6394 = vpop.f32.mrf.mxu0
    %6395 = vmatprep.mubr.f32.mxu0 0.0
    %6396 = vmatmul.mubr.f32.gmra.mxu0 %v6014
    %v6397 = vpop.f32.mrf.mxu0
    %v6398 = vadd.f32 0.0, %v6397
    %v6399 = vpop.f32.mrf.mxu0
    %6400 = vdwg.mxu0
    %v6402 = vsel %vm2221, %v3630, 0
    %v6405 = vsel %vm2221, %v3631, 0
    %v6408 = vsel %vm2221, %v3632, 0
    %v6411 = vsel %vm2221, %v3633, 0
    %v6414 = vsel %vm2221, %v3634, 0
    %v6417 = vsel %vm2221, %v3635, 0
    %v6420 = vsel %vm2221, %v3636, 0
    %v6423 = vsel %vm2221, %v3637, 0
    %v6426 = vsel %vm2221, %v3638, 0
    %v6429 = vsel %vm2221, %v3639, 0
    %v6432 = vsel %vm2221, %v3640, 0
    %v6435 = vsel %vm2221, %v3641, 0
    %v6438 = vsel %vm2221, %v3642, 0
    %v6441 = vsel %vm2221, %v3643, 0
    %v6444 = vsel %vm2221, %v3644, 0
    %v6447 = vsel %vm2221, %v3645, 0
    %v6450 = vsel %vm2221, %v3646, 0
    %v6453 = vsel %vm2221, %v3647, 0
    %v6456 = vsel %vm2221, %v3648, 0
    %v6459 = vsel %vm2221, %v3649, 0
    %v6462 = vsel %vm2221, %v3650, 0
    %v6465 = vsel %vm2221, %v3651, 0
    %v6468 = vsel %vm2221, %v3652, 0
    %v6471 = vsel %vm2221, %v3653, 0
    %v6474 = vsel %vm2221, %v3654, 0
    %v6477 = vsel %vm2221, %v3655, 0
    %v6480 = vsel %vm2221, %v3656, 0
    %v6483 = vsel %vm2221, %v3657, 0
    %v6486 = vsel %vm2221, %v3658, 0
    %v6489 = vsel %vm2221, %v3659, 0
    %v6492 = vsel %vm2221, %v3660, 0
    %v6495 = vsel %vm2221, %v3661, 0
    %v6498 = vsel %vm2221, %v3662, 0
    %v6501 = vsel %vm2221, %v3663, 0
    %v6504 = vsel %vm2221, %v3664, 0
    %v6507 = vsel %vm2221, %v3665, 0
    %v6510 = vsel %vm2221, %v3666, 0
    %v6513 = vsel %vm2221, %v3667, 0
    %v6516 = vsel %vm2221, %v3668, 0
    %v6519 = vsel %vm2221, %v3669, 0
    %v6522 = vsel %vm2221, %v3670, 0
    %v6525 = vsel %vm2221, %v3671, 0
    %v6528 = vsel %vm2221, %v3672, 0
    %v6531 = vsel %vm2221, %v3673, 0
    %v6534 = vsel %vm2221, %v3674, 0
    %v6537 = vsel %vm2221, %v3675, 0
    %v6540 = vsel %vm2221, %v3676, 0
    %v6543 = vsel %vm2221, %v3677, 0
    %v6546 = vsel %vm2221, %v3678, 0
    %v6549 = vsel %vm2221, %v3679, 0
    %v6552 = vsel %vm2221, %v3680, 0
    %v6555 = vsel %vm2221, %v3681, 0
    %v6558 = vsel %vm2221, %v3682, 0
    %v6561 = vsel %vm2221, %v3683, 0
    %v6564 = vsel %vm2221, %v3684, 0
    %v6567 = vsel %vm2221, %v3685, 0
    %v6570 = vsel %vm2221, %v3686, 0
    %v6573 = vsel %vm2221, %v3687, 0
    %v6576 = vsel %vm2221, %v3688, 0
    %v6579 = vsel %vm2221, %v3689, 0
    %v6582 = vsel %vm2221, %v3690, 0
    %v6585 = vsel %vm2221, %v3691, 0
    %v6588 = vsel %vm2221, %v3692, 0
    %v6591 = vsel %vm2221, %v3693, 0
    %6593 = vmatprep.subr.mxu0 0.0
    %6594 = vmatpush1.msra.mxu0 0.0
    %6595 = vmatprep.subr.mxu0 0.0
    %6596 = vmatpush1.msra.mxu0 0.0
    %6597 = vmatprep.subr.mxu0 0.0
    %6598 = vmatpush1.msra.mxu0 0.0
    %6599 = vmatprep.subr.mxu0 0.0
    %6600 = vmatpush1.msra.mxu0 0.0
    %6601 = vmatprep.subr.mxu0 0.0
    %6602 = vmatpush1.msra.mxu0 0.0
    %6603 = vmatprep.subr.mxu0 0.0
    %6604 = vmatpush1.msra.mxu0 0.0
    %6605 = vmatprep.subr.mxu0 0.0
    %6606 = vmatpush1.msra.mxu0 0.0
    %6607 = vmatprep.subr.mxu0 0.0
    %6608 = vmatpush1.msra.mxu0 0.0
    %6609 = vmatprep.subr.mxu0 0.0
    %6610 = vmatpush1.msra.mxu0 %v3701
    %6611 = vmatprep.subr.mxu0 0.0
    %6612 = vmatpush1.msra.mxu0 %v3700
    %6613 = vmatprep.subr.mxu0 0.0
    %6614 = vmatpush1.msra.mxu0 %v3699
    %6615 = vmatprep.subr.mxu0 0.0
    %6616 = vmatpush1.msra.mxu0 %v3698
    %6617 = vmatprep.subr.mxu0 0.0
    %6618 = vmatpush1.msra.mxu0 %v3697
    %6619 = vmatprep.subr.mxu0 0.0
    %6620 = vmatpush1.msra.mxu0 %v3696
    %6621 = vmatprep.subr.mxu0 0.0
    %6622 = vmatpush1.msra.mxu0 %v3695
    %6623 = vmatprep.subr.mxu0 0.0
    %6624 = vmatpush1.msra.mxu0 %v3694
    %6625 = vmatprep.subr.mxu0 0.0
    %6626 = vmatpush2.msra.mxu0 0.0
    %6627 = vmatprep.subr.mxu0 0.0
    %6628 = vmatpush2.msra.mxu0 0.0
    %6629 = vmatprep.subr.mxu0 0.0
    %6630 = vmatpush2.msra.mxu0 0.0
    %6631 = vmatprep.subr.mxu0 0.0
    %6632 = vmatpush2.msra.mxu0 0.0
    %6633 = vmatprep.subr.mxu0 0.0
    %6634 = vmatpush2.msra.mxu0 0.0
    %6635 = vmatprep.subr.mxu0 0.0
    %6636 = vmatpush2.msra.mxu0 0.0
    %6637 = vmatprep.subr.mxu0 0.0
    %6638 = vmatpush2.msra.mxu0 0.0
    %6639 = vmatprep.subr.mxu0 0.0
    %6640 = vmatpush2.msra.mxu0 0.0
    %6641 = vmatprep.subr.mxu0 0.0
    %6642 = vmatpush2.msra.mxu0 0.0
    %6643 = vmatprep.subr.mxu0 0.0
    %6644 = vmatpush2.msra.mxu0 0.0
    %6645 = vmatprep.subr.mxu0 0.0
    %6646 = vmatpush2.msra.mxu0 0.0
    %6647 = vmatprep.subr.mxu0 0.0
    %6648 = vmatpush2.msra.mxu0 0.0
    %6649 = vmatprep.subr.mxu0 0.0
    %6650 = vmatpush2.msra.mxu0 0.0
    %6651 = vmatprep.subr.mxu0 0.0
    %6652 = vmatpush2.msra.mxu0 0.0
    %6653 = vmatprep.subr.mxu0 0.0
    %6654 = vmatpush2.msra.mxu0 0.0
    %6655 = vmatprep.subr.mxu0 0.0
    %6656 = vmatpush2.msra.mxu0 0.0
    %6657 = vmatprep.mubr.f32.mxu0 0.0
    %6658 = vmatmul.mubr.f32.gmra.mxu0 %v6402
    %v6659 = vpop.f32.mrf.mxu0
    %v6660 = vadd.f32 %v6083, %v6659
    %v6661 = vpop.f32.mrf.mxu0
    %6662 = vmatprep.mubr.f32.mxu0 0.0
    %6663 = vmatmul.mubr.f32.gmra.mxu0 %v6405
    %v6664 = vpop.f32.mrf.mxu0
    %v6665 = vadd.f32 %v6088, %v6664
    %v6666 = vpop.f32.mrf.mxu0
    %6667 = vmatprep.mubr.f32.mxu0 0.0
    %6668 = vmatmul.mubr.f32.gmra.mxu0 %v6408
    %v6669 = vpop.f32.mrf.mxu0
    %v6670 = vadd.f32 %v6093, %v6669
    %v6671 = vpop.f32.mrf.mxu0
    %6672 = vmatprep.mubr.f32.mxu0 0.0
    %6673 = vmatmul.mubr.f32.gmra.mxu0 %v6411
    %v6674 = vpop.f32.mrf.mxu0
    %v6675 = vadd.f32 %v6098, %v6674
    %v6676 = vpop.f32.mrf.mxu0
    %6677 = vmatprep.mubr.f32.mxu0 0.0
    %6678 = vmatmul.mubr.f32.gmra.mxu0 %v6414
    %v6679 = vpop.f32.mrf.mxu0
    %v6680 = vadd.f32 %v6103, %v6679
    %v6681 = vpop.f32.mrf.mxu0
    %6682 = vmatprep.mubr.f32.mxu0 0.0
    %6683 = vmatmul.mubr.f32.gmra.mxu0 %v6417
    %v6684 = vpop.f32.mrf.mxu0
    %v6685 = vadd.f32 %v6108, %v6684
    %v6686 = vpop.f32.mrf.mxu0
    %6687 = vmatprep.mubr.f32.mxu0 0.0
    %6688 = vmatmul.mubr.f32.gmra.mxu0 %v6420
    %v6689 = vpop.f32.mrf.mxu0
    %v6690 = vadd.f32 %v6113, %v6689
    %v6691 = vpop.f32.mrf.mxu0
    %6692 = vmatprep.mubr.f32.mxu0 0.0
    %6693 = vmatmul.mubr.f32.gmra.mxu0 %v6423
    %v6694 = vpop.f32.mrf.mxu0
    %v6695 = vadd.f32 %v6118, %v6694
    %v6696 = vpop.f32.mrf.mxu0
    %6697 = vmatprep.mubr.f32.mxu0 0.0
    %6698 = vmatmul.mubr.f32.gmra.mxu0 %v6426
    %v6699 = vpop.f32.mrf.mxu0
    %v6700 = vadd.f32 %v6123, %v6699
    %v6701 = vpop.f32.mrf.mxu0
    %6702 = vmatprep.mubr.f32.mxu0 0.0
    %6703 = vmatmul.mubr.f32.gmra.mxu0 %v6429
    %v6704 = vpop.f32.mrf.mxu0
    %v6705 = vadd.f32 %v6128, %v6704
    %v6706 = vpop.f32.mrf.mxu0
    %6707 = vmatprep.mubr.f32.mxu0 0.0
    %6708 = vmatmul.mubr.f32.gmra.mxu0 %v6432
    %v6709 = vpop.f32.mrf.mxu0
    %v6710 = vadd.f32 %v6133, %v6709
    %v6711 = vpop.f32.mrf.mxu0
    %6712 = vmatprep.mubr.f32.mxu0 0.0
    %6713 = vmatmul.mubr.f32.gmra.mxu0 %v6435
    %v6714 = vpop.f32.mrf.mxu0
    %v6715 = vadd.f32 %v6138, %v6714
    %v6716 = vpop.f32.mrf.mxu0
    %6717 = vmatprep.mubr.f32.mxu0 0.0
    %6718 = vmatmul.mubr.f32.gmra.mxu0 %v6438
    %v6719 = vpop.f32.mrf.mxu0
    %v6720 = vadd.f32 %v6143, %v6719
    %v6721 = vpop.f32.mrf.mxu0
    %6722 = vmatprep.mubr.f32.mxu0 0.0
    %6723 = vmatmul.mubr.f32.gmra.mxu0 %v6441
    %v6724 = vpop.f32.mrf.mxu0
    %v6725 = vadd.f32 %v6148, %v6724
    %v6726 = vpop.f32.mrf.mxu0
    %6727 = vmatprep.mubr.f32.mxu0 0.0
    %6728 = vmatmul.mubr.f32.gmra.mxu0 %v6444
    %v6729 = vpop.f32.mrf.mxu0
    %v6730 = vadd.f32 %v6153, %v6729
    %v6731 = vpop.f32.mrf.mxu0
    %6732 = vmatprep.mubr.f32.mxu0 0.0
    %6733 = vmatmul.mubr.f32.gmra.mxu0 %v6447
    %v6734 = vpop.f32.mrf.mxu0
    %v6735 = vadd.f32 %v6158, %v6734
    %v6736 = vpop.f32.mrf.mxu0
    %6737 = vmatprep.mubr.f32.mxu0 0.0
    %6738 = vmatmul.mubr.f32.gmra.mxu0 %v6450
    %v6739 = vpop.f32.mrf.mxu0
    %v6740 = vadd.f32 %v6163, %v6739
    %v6741 = vpop.f32.mrf.mxu0
    %6742 = vmatprep.mubr.f32.mxu0 0.0
    %6743 = vmatmul.mubr.f32.gmra.mxu0 %v6453
    %v6744 = vpop.f32.mrf.mxu0
    %v6745 = vadd.f32 %v6168, %v6744
    %v6746 = vpop.f32.mrf.mxu0
    %6747 = vmatprep.mubr.f32.mxu0 0.0
    %6748 = vmatmul.mubr.f32.gmra.mxu0 %v6456
    %v6749 = vpop.f32.mrf.mxu0
    %v6750 = vadd.f32 %v6173, %v6749
    %v6751 = vpop.f32.mrf.mxu0
    %6752 = vmatprep.mubr.f32.mxu0 0.0
    %6753 = vmatmul.mubr.f32.gmra.mxu0 %v6459
    %v6754 = vpop.f32.mrf.mxu0
    %v6755 = vadd.f32 %v6178, %v6754
    %v6756 = vpop.f32.mrf.mxu0
    %6757 = vmatprep.mubr.f32.mxu0 0.0
    %6758 = vmatmul.mubr.f32.gmra.mxu0 %v6462
    %v6759 = vpop.f32.mrf.mxu0
    %v6760 = vadd.f32 %v6183, %v6759
    %v6761 = vpop.f32.mrf.mxu0
    %6762 = vmatprep.mubr.f32.mxu0 0.0
    %6763 = vmatmul.mubr.f32.gmra.mxu0 %v6465
    %v6764 = vpop.f32.mrf.mxu0
    %v6765 = vadd.f32 %v6188, %v6764
    %v6766 = vpop.f32.mrf.mxu0
    %6767 = vmatprep.mubr.f32.mxu0 0.0
    %6768 = vmatmul.mubr.f32.gmra.mxu0 %v6468
    %v6769 = vpop.f32.mrf.mxu0
    %v6770 = vadd.f32 %v6193, %v6769
    %v6771 = vpop.f32.mrf.mxu0
    %6772 = vmatprep.mubr.f32.mxu0 0.0
    %6773 = vmatmul.mubr.f32.gmra.mxu0 %v6471
    %v6774 = vpop.f32.mrf.mxu0
    %v6775 = vadd.f32 %v6198, %v6774
    %v6776 = vpop.f32.mrf.mxu0
    %6777 = vmatprep.mubr.f32.mxu0 0.0
    %6778 = vmatmul.mubr.f32.gmra.mxu0 %v6474
    %v6779 = vpop.f32.mrf.mxu0
    %v6780 = vadd.f32 %v6203, %v6779
    %v6781 = vpop.f32.mrf.mxu0
    %6782 = vmatprep.mubr.f32.mxu0 0.0
    %6783 = vmatmul.mubr.f32.gmra.mxu0 %v6477
    %v6784 = vpop.f32.mrf.mxu0
    %v6785 = vadd.f32 %v6208, %v6784
    %v6786 = vpop.f32.mrf.mxu0
    %6787 = vmatprep.mubr.f32.mxu0 0.0
    %6788 = vmatmul.mubr.f32.gmra.mxu0 %v6480
    %v6789 = vpop.f32.mrf.mxu0
    %v6790 = vadd.f32 %v6213, %v6789
    %v6791 = vpop.f32.mrf.mxu0
    %6792 = vmatprep.mubr.f32.mxu0 0.0
    %6793 = vmatmul.mubr.f32.gmra.mxu0 %v6483
    %v6794 = vpop.f32.mrf.mxu0
    %v6795 = vadd.f32 %v6218, %v6794
    %v6796 = vpop.f32.mrf.mxu0
    %6797 = vmatprep.mubr.f32.mxu0 0.0
    %6798 = vmatmul.mubr.f32.gmra.mxu0 %v6486
    %v6799 = vpop.f32.mrf.mxu0
    %v6800 = vadd.f32 %v6223, %v6799
    %v6801 = vpop.f32.mrf.mxu0
    %6802 = vmatprep.mubr.f32.mxu0 0.0
    %6803 = vmatmul.mubr.f32.gmra.mxu0 %v6489
    %v6804 = vpop.f32.mrf.mxu0
    %v6805 = vadd.f32 %v6228, %v6804
    %v6806 = vpop.f32.mrf.mxu0
    %6807 = vmatprep.mubr.f32.mxu0 0.0
    %6808 = vmatmul.mubr.f32.gmra.mxu0 %v6492
    %v6809 = vpop.f32.mrf.mxu0
    %v6810 = vadd.f32 %v6233, %v6809
    %v6811 = vpop.f32.mrf.mxu0
    %6812 = vmatprep.mubr.f32.mxu0 0.0
    %6813 = vmatmul.mubr.f32.gmra.mxu0 %v6495
    %v6814 = vpop.f32.mrf.mxu0
    %v6815 = vadd.f32 %v6238, %v6814
    %v6816 = vpop.f32.mrf.mxu0
    %6817 = vmatprep.mubr.f32.mxu0 0.0
    %6818 = vmatmul.mubr.f32.gmra.mxu0 %v6498
    %v6819 = vpop.f32.mrf.mxu0
    %v6820 = vadd.f32 %v6243, %v6819
    %v6821 = vpop.f32.mrf.mxu0
    %6822 = vmatprep.mubr.f32.mxu0 0.0
    %6823 = vmatmul.mubr.f32.gmra.mxu0 %v6501
    %v6824 = vpop.f32.mrf.mxu0
    %v6825 = vadd.f32 %v6248, %v6824
    %v6826 = vpop.f32.mrf.mxu0
    %6827 = vmatprep.mubr.f32.mxu0 0.0
    %6828 = vmatmul.mubr.f32.gmra.mxu0 %v6504
    %v6829 = vpop.f32.mrf.mxu0
    %v6830 = vadd.f32 %v6253, %v6829
    %v6831 = vpop.f32.mrf.mxu0
    %6832 = vmatprep.mubr.f32.mxu0 0.0
    %6833 = vmatmul.mubr.f32.gmra.mxu0 %v6507
    %v6834 = vpop.f32.mrf.mxu0
    %v6835 = vadd.f32 %v6258, %v6834
    %v6836 = vpop.f32.mrf.mxu0
    %6837 = vmatprep.mubr.f32.mxu0 0.0
    %6838 = vmatmul.mubr.f32.gmra.mxu0 %v6510
    %v6839 = vpop.f32.mrf.mxu0
    %v6840 = vadd.f32 %v6263, %v6839
    %v6841 = vpop.f32.mrf.mxu0
    %6842 = vmatprep.mubr.f32.mxu0 0.0
    %6843 = vmatmul.mubr.f32.gmra.mxu0 %v6513
    %v6844 = vpop.f32.mrf.mxu0
    %v6845 = vadd.f32 %v6268, %v6844
    %v6846 = vpop.f32.mrf.mxu0
    %6847 = vmatprep.mubr.f32.mxu0 0.0
    %6848 = vmatmul.mubr.f32.gmra.mxu0 %v6516
    %v6849 = vpop.f32.mrf.mxu0
    %v6850 = vadd.f32 %v6273, %v6849
    %v6851 = vpop.f32.mrf.mxu0
    %6852 = vmatprep.mubr.f32.mxu0 0.0
    %6853 = vmatmul.mubr.f32.gmra.mxu0 %v6519
    %v6854 = vpop.f32.mrf.mxu0
    %v6855 = vadd.f32 %v6278, %v6854
    %v6856 = vpop.f32.mrf.mxu0
    %6857 = vmatprep.mubr.f32.mxu0 0.0
    %6858 = vmatmul.mubr.f32.gmra.mxu0 %v6522
    %v6859 = vpop.f32.mrf.mxu0
    %v6860 = vadd.f32 %v6283, %v6859
    %v6861 = vpop.f32.mrf.mxu0
    %6862 = vmatprep.mubr.f32.mxu0 0.0
    %6863 = vmatmul.mubr.f32.gmra.mxu0 %v6525
    %v6864 = vpop.f32.mrf.mxu0
    %v6865 = vadd.f32 %v6288, %v6864
    %v6866 = vpop.f32.mrf.mxu0
    %6867 = vmatprep.mubr.f32.mxu0 0.0
    %6868 = vmatmul.mubr.f32.gmra.mxu0 %v6528
    %v6869 = vpop.f32.mrf.mxu0
    %v6870 = vadd.f32 %v6293, %v6869
    %v6871 = vpop.f32.mrf.mxu0
    %6872 = vmatprep.mubr.f32.mxu0 0.0
    %6873 = vmatmul.mubr.f32.gmra.mxu0 %v6531
    %v6874 = vpop.f32.mrf.mxu0
    %v6875 = vadd.f32 %v6298, %v6874
    %v6876 = vpop.f32.mrf.mxu0
    %6877 = vmatprep.mubr.f32.mxu0 0.0
    %6878 = vmatmul.mubr.f32.gmra.mxu0 %v6534
    %v6879 = vpop.f32.mrf.mxu0
    %v6880 = vadd.f32 %v6303, %v6879
    %v6881 = vpop.f32.mrf.mxu0
    %6882 = vmatprep.mubr.f32.mxu0 0.0
    %6883 = vmatmul.mubr.f32.gmra.mxu0 %v6537
    %v6884 = vpop.f32.mrf.mxu0
    %v6885 = vadd.f32 %v6308, %v6884
    %v6886 = vpop.f32.mrf.mxu0
    %6887 = vmatprep.mubr.f32.mxu0 0.0
    %6888 = vmatmul.mubr.f32.gmra.mxu0 %v6540
    %v6889 = vpop.f32.mrf.mxu0
    %v6890 = vadd.f32 %v6313, %v6889
    %v6891 = vpop.f32.mrf.mxu0
    %6892 = vmatprep.mubr.f32.mxu0 0.0
    %6893 = vmatmul.mubr.f32.gmra.mxu0 %v6543
    %v6894 = vpop.f32.mrf.mxu0
    %v6895 = vadd.f32 %v6318, %v6894
    %v6896 = vpop.f32.mrf.mxu0
    %6897 = vmatprep.mubr.f32.mxu0 0.0
    %6898 = vmatmul.mubr.f32.gmra.mxu0 %v6546
    %v6899 = vpop.f32.mrf.mxu0
    %v6900 = vadd.f32 %v6323, %v6899
    %v6901 = vpop.f32.mrf.mxu0
    %6902 = vmatprep.mubr.f32.mxu0 0.0
    %6903 = vmatmul.mubr.f32.gmra.mxu0 %v6549
    %v6904 = vpop.f32.mrf.mxu0
    %v6905 = vadd.f32 %v6328, %v6904
    %v6906 = vpop.f32.mrf.mxu0
    %6907 = vmatprep.mubr.f32.mxu0 0.0
    %6908 = vmatmul.mubr.f32.gmra.mxu0 %v6552
    %v6909 = vpop.f32.mrf.mxu0
    %v6910 = vadd.f32 %v6333, %v6909
    %v6911 = vpop.f32.mrf.mxu0
    %6912 = vmatprep.mubr.f32.mxu0 0.0
    %6913 = vmatmul.mubr.f32.gmra.mxu0 %v6555
    %v6914 = vpop.f32.mrf.mxu0
    %v6915 = vadd.f32 %v6338, %v6914
    %v6916 = vpop.f32.mrf.mxu0
    %6917 = vmatprep.mubr.f32.mxu0 0.0
    %6918 = vmatmul.mubr.f32.gmra.mxu0 %v6558
    %v6919 = vpop.f32.mrf.mxu0
    %v6920 = vadd.f32 %v6343, %v6919
    %v6921 = vpop.f32.mrf.mxu0
    %6922 = vmatprep.mubr.f32.mxu0 0.0
    %6923 = vmatmul.mubr.f32.gmra.mxu0 %v6561
    %v6924 = vpop.f32.mrf.mxu0
    %v6925 = vadd.f32 %v6348, %v6924
    %v6926 = vpop.f32.mrf.mxu0
    %6927 = vmatprep.mubr.f32.mxu0 0.0
    %6928 = vmatmul.mubr.f32.gmra.mxu0 %v6564
    %v6929 = vpop.f32.mrf.mxu0
    %v6930 = vadd.f32 %v6353, %v6929
    %v6931 = vpop.f32.mrf.mxu0
    %6932 = vmatprep.mubr.f32.mxu0 0.0
    %6933 = vmatmul.mubr.f32.gmra.mxu0 %v6567
    %v6934 = vpop.f32.mrf.mxu0
    %v6935 = vadd.f32 %v6358, %v6934
    %v6936 = vpop.f32.mrf.mxu0
    %6937 = vmatprep.mubr.f32.mxu0 0.0
    %6938 = vmatmul.mubr.f32.gmra.mxu0 %v6570
    %v6939 = vpop.f32.mrf.mxu0
    %v6940 = vadd.f32 %v6363, %v6939
    %v6941 = vpop.f32.mrf.mxu0
    %6942 = vmatprep.mubr.f32.mxu0 0.0
    %6943 = vmatmul.mubr.f32.gmra.mxu0 %v6573
    %v6944 = vpop.f32.mrf.mxu0
    %v6945 = vadd.f32 %v6368, %v6944
    %v6946 = vpop.f32.mrf.mxu0
    %6947 = vmatprep.mubr.f32.mxu0 0.0
    %6948 = vmatmul.mubr.f32.gmra.mxu0 %v6576
    %v6949 = vpop.f32.mrf.mxu0
    %v6950 = vadd.f32 %v6373, %v6949
    %v6951 = vpop.f32.mrf.mxu0
    %6952 = vmatprep.mubr.f32.mxu0 0.0
    %6953 = vmatmul.mubr.f32.gmra.mxu0 %v6579
    %v6954 = vpop.f32.mrf.mxu0
    %v6955 = vadd.f32 %v6378, %v6954
    %v6956 = vpop.f32.mrf.mxu0
    %6957 = vmatprep.mubr.f32.mxu0 0.0
    %6958 = vmatmul.mubr.f32.gmra.mxu0 %v6582
    %v6959 = vpop.f32.mrf.mxu0
    %v6960 = vadd.f32 %v6383, %v6959
    %v6961 = vpop.f32.mrf.mxu0
    %6962 = vmatprep.mubr.f32.mxu0 0.0
    %6963 = vmatmul.mubr.f32.gmra.mxu0 %v6585
    %v6964 = vpop.f32.mrf.mxu0
    %v6965 = vadd.f32 %v6388, %v6964
    %v6966 = vpop.f32.mrf.mxu0
    %6967 = vmatprep.mubr.f32.mxu0 0.0
    %6968 = vmatmul.mubr.f32.gmra.mxu0 %v6588
    %v6969 = vpop.f32.mrf.mxu0
    %v6970 = vadd.f32 %v6393, %v6969
    %v6971 = vpop.f32.mrf.mxu0
    %6972 = vmatprep.mubr.f32.mxu0 0.0
    %6973 = vmatmul.mubr.f32.gmra.mxu0 %v6591
    %v6974 = vpop.f32.mrf.mxu0
    %v6975 = vadd.f32 %v6398, %v6974
    %v6976 = vpop.f32.mrf.mxu0
    %6977 = vdwg.mxu0
    %v6978 = vsub.f32 %v6660, %v625
    %v6979 = vsub.f32 %v6665, %v626
    %v6980 = vsub.f32 %v6670, %v657
    %v6981 = vsub.f32 %v6675, %v658
    %v6982 = vsub.f32 %v6680, %v689
    %v6983 = vsub.f32 %v6685, %v690
    %v6984 = vsub.f32 %v6690, %v721
    %v6985 = vsub.f32 %v6695, %v722
    %v6986 = vsub.f32 %v6700, %v753
    %v6987 = vsub.f32 %v6705, %v754
    %v6988 = vsub.f32 %v6710, %v785
    %v6989 = vsub.f32 %v6715, %v786
    %v6990 = vsub.f32 %v6720, %v817
    %v6991 = vsub.f32 %v6725, %v818
    %v6992 = vsub.f32 %v6730, %v849
    %v6993 = vsub.f32 %v6735, %v850
    %v6994 = vsub.f32 %v6740, %v881
    %v6995 = vsub.f32 %v6745, %v882
    %v6996 = vsub.f32 %v6750, %v913
    %v6997 = vsub.f32 %v6755, %v914
    %v6998 = vsub.f32 %v6760, %v945
    %v6999 = vsub.f32 %v6765, %v946
    %v7000 = vsub.f32 %v6770, %v977
    %v7001 = vsub.f32 %v6775, %v978
    %v7002 = vsub.f32 %v6780, %v1009
    %v7003 = vsub.f32 %v6785, %v1010
    %v7004 = vsub.f32 %v6790, %v1041
    %v7005 = vsub.f32 %v6795, %v1042
    %v7006 = vsub.f32 %v6800, %v1073
    %v7007 = vsub.f32 %v6805, %v1074
    %v7008 = vsub.f32 %v6810, %v1105
    %v7009 = vsub.f32 %v6815, %v1106
    %v7010 = vsub.f32 %v6820, %v1137
    %v7011 = vsub.f32 %v6825, %v1138
    %v7012 = vsub.f32 %v6830, %v1169
    %v7013 = vsub.f32 %v6835, %v1170
    %v7014 = vsub.f32 %v6840, %v1201
    %v7015 = vsub.f32 %v6845, %v1202
    %v7016 = vsub.f32 %v6850, %v1233
    %v7017 = vsub.f32 %v6855, %v1234
    %v7018 = vsub.f32 %v6860, %v1265
    %v7019 = vsub.f32 %v6865, %v1266
    %v7020 = vsub.f32 %v6870, %v1297
    %v7021 = vsub.f32 %v6875, %v1298
    %v7022 = vsub.f32 %v6880, %v1329
    %v7023 = vsub.f32 %v6885, %v1330
    %v7024 = vsub.f32 %v6890, %v1361
    %v7025 = vsub.f32 %v6895, %v1362
    %v7026 = vsub.f32 %v6900, %v1393
    %v7027 = vsub.f32 %v6905, %v1394
    %v7028 = vsub.f32 %v6910, %v1425
    %v7029 = vsub.f32 %v6915, %v1426
    %v7030 = vsub.f32 %v6920, %v1457
    %v7031 = vsub.f32 %v6925, %v1458
    %v7032 = vsub.f32 %v6930, %v1489
    %v7033 = vsub.f32 %v6935, %v1490
    %v7034 = vsub.f32 %v6940, %v1521
    %v7035 = vsub.f32 %v6945, %v1522
    %v7036 = vsub.f32 %v6950, %v1553
    %v7037 = vsub.f32 %v6955, %v1554
    %v7038 = vsub.f32 %v6960, %v1585
    %v7039 = vsub.f32 %v6965, %v1586
    %v7040 = vsub.f32 %v6970, %v1617
    %v7041 = vsub.f32 %v6975, %v1618
    %v7042 = vmul.f32 %v6978, %v6978
    %v7043 = vmul.f32 %v6979, %v6979
    %v7044 = vmul.f32 %v6980, %v6980
    %v7045 = vmul.f32 %v6981, %v6981
    %v7046 = vmul.f32 %v6982, %v6982
    %v7047 = vmul.f32 %v6983, %v6983
    %v7048 = vmul.f32 %v6984, %v6984
    %v7049 = vmul.f32 %v6985, %v6985
    %v7050 = vmul.f32 %v6986, %v6986
    %v7051 = vmul.f32 %v6987, %v6987
    %v7052 = vmul.f32 %v6988, %v6988
    %v7053 = vmul.f32 %v6989, %v6989
    %v7054 = vmul.f32 %v6990, %v6990
    %v7055 = vmul.f32 %v6991, %v6991
    %v7056 = vmul.f32 %v6992, %v6992
    %v7057 = vmul.f32 %v6993, %v6993
    %v7058 = vmul.f32 %v6994, %v6994
    %v7059 = vmul.f32 %v6995, %v6995
    %v7060 = vmul.f32 %v6996, %v6996
    %v7061 = vmul.f32 %v6997, %v6997
    %v7062 = vmul.f32 %v6998, %v6998
    %v7063 = vmul.f32 %v6999, %v6999
    %v7064 = vmul.f32 %v7000, %v7000
    %v7065 = vmul.f32 %v7001, %v7001
    %v7066 = vmul.f32 %v7002, %v7002
    %v7067 = vmul.f32 %v7003, %v7003
    %v7068 = vmul.f32 %v7004, %v7004
    %v7069 = vmul.f32 %v7005, %v7005
    %v7070 = vmul.f32 %v7006, %v7006
    %v7071 = vmul.f32 %v7007, %v7007
    %v7072 = vmul.f32 %v7008, %v7008
    %v7073 = vmul.f32 %v7009, %v7009
    %v7074 = vmul.f32 %v7010, %v7010
    %v7075 = vmul.f32 %v7011, %v7011
    %v7076 = vmul.f32 %v7012, %v7012
    %v7077 = vmul.f32 %v7013, %v7013
    %v7078 = vmul.f32 %v7014, %v7014
    %v7079 = vmul.f32 %v7015, %v7015
    %v7080 = vmul.f32 %v7016, %v7016
    %v7081 = vmul.f32 %v7017, %v7017
    %v7082 = vmul.f32 %v7018, %v7018
    %v7083 = vmul.f32 %v7019, %v7019
    %v7084 = vmul.f32 %v7020, %v7020
    %v7085 = vmul.f32 %v7021, %v7021
    %v7086 = vmul.f32 %v7022, %v7022
    %v7087 = vmul.f32 %v7023, %v7023
    %v7088 = vmul.f32 %v7024, %v7024
    %v7089 = vmul.f32 %v7025, %v7025
    %v7090 = vmul.f32 %v7026, %v7026
    %v7091 = vmul.f32 %v7027, %v7027
    %v7092 = vmul.f32 %v7028, %v7028
    %v7093 = vmul.f32 %v7029, %v7029
    %v7094 = vmul.f32 %v7030, %v7030
    %v7095 = vmul.f32 %v7031, %v7031
    %v7096 = vmul.f32 %v7032, %v7032
    %v7097 = vmul.f32 %v7033, %v7033
    %v7098 = vmul.f32 %v7034, %v7034
    %v7099 = vmul.f32 %v7035, %v7035
    %v7100 = vmul.f32 %v7036, %v7036
    %v7101 = vmul.f32 %v7037, %v7037
    %v7102 = vmul.f32 %v7038, %v7038
    %v7103 = vmul.f32 %v7039, %v7039
    %v7104 = vmul.f32 %v7040, %v7040
    %v7105 = vmul.f32 %v7041, %v7041
    %vm7106 = vcmask 130048
    %v7107 = vsel %vm7106, %v7042, 0.0
    %v7108 = vsel %vm7106, %v7043, 0.0
    %v7109 = vadd.f32 %v7107, %v7108
    %v7110 = vsel %vm7106, %v7044, 0.0
    %v7111 = vadd.f32 %v7109, %v7110
    %v7112 = vsel %vm7106, %v7045, 0.0
    %v7113 = vadd.f32 %v7111, %v7112
    %v7114 = vsel %vm7106, %v7046, 0.0
    %v7115 = vadd.f32 %v7113, %v7114
    %v7116 = vsel %vm7106, %v7047, 0.0
    %v7117 = vadd.f32 %v7115, %v7116
    %v7118 = vsel %vm7106, %v7048, 0.0
    %v7119 = vadd.f32 %v7117, %v7118
    %v7120 = vsel %vm7106, %v7049, 0.0
    %v7121 = vadd.f32 %v7119, %v7120
    %v7122 = vsel %vm7106, %v7050, 0.0
    %v7123 = vadd.f32 %v7121, %v7122
    %v7124 = vsel %vm7106, %v7051, 0.0
    %v7125 = vadd.f32 %v7123, %v7124
    %v7126 = vsel %vm7106, %v7052, 0.0
    %v7127 = vadd.f32 %v7125, %v7126
    %v7128 = vsel %vm7106, %v7053, 0.0
    %v7129 = vadd.f32 %v7127, %v7128
    %v7130 = vsel %vm7106, %v7054, 0.0
    %v7131 = vadd.f32 %v7129, %v7130
    %v7132 = vsel %vm7106, %v7055, 0.0
    %v7133 = vadd.f32 %v7131, %v7132
    %v7134 = vsel %vm7106, %v7056, 0.0
    %v7135 = vadd.f32 %v7133, %v7134
    %v7136 = vsel %vm7106, %v7057, 0.0
    %v7137 = vadd.f32 %v7135, %v7136
    %v7138 = vsel %vm7106, %v7058, 0.0
    %v7139 = vadd.f32 %v7137, %v7138
    %v7140 = vsel %vm7106, %v7059, 0.0
    %v7141 = vadd.f32 %v7139, %v7140
    %v7142 = vsel %vm7106, %v7060, 0.0
    %v7143 = vadd.f32 %v7141, %v7142
    %v7144 = vsel %vm7106, %v7061, 0.0
    %v7145 = vadd.f32 %v7143, %v7144
    %v7146 = vsel %vm7106, %v7062, 0.0
    %v7147 = vadd.f32 %v7145, %v7146
    %v7148 = vsel %vm7106, %v7063, 0.0
    %v7149 = vadd.f32 %v7147, %v7148
    %v7150 = vsel %vm7106, %v7064, 0.0
    %v7151 = vadd.f32 %v7149, %v7150
    %v7152 = vsel %vm7106, %v7065, 0.0
    %v7153 = vadd.f32 %v7151, %v7152
    %v7154 = vsel %vm7106, %v7066, 0.0
    %v7155 = vadd.f32 %v7153, %v7154
    %v7156 = vsel %vm7106, %v7067, 0.0
    %v7157 = vadd.f32 %v7155, %v7156
    %v7158 = vsel %vm7106, %v7068, 0.0
    %v7159 = vadd.f32 %v7157, %v7158
    %v7160 = vsel %vm7106, %v7069, 0.0
    %v7161 = vadd.f32 %v7159, %v7160
    %v7162 = vsel %vm7106, %v7070, 0.0
    %v7163 = vadd.f32 %v7161, %v7162
    %v7164 = vsel %vm7106, %v7071, 0.0
    %v7165 = vadd.f32 %v7163, %v7164
    %v7166 = vsel %vm7106, %v7072, 0.0
    %v7167 = vadd.f32 %v7165, %v7166
    %v7168 = vsel %vm7106, %v7073, 0.0
    %v7169 = vadd.f32 %v7167, %v7168
    %v7170 = vsel %vm7106, %v7074, 0.0
    %v7171 = vadd.f32 %v7169, %v7170
    %v7172 = vsel %vm7106, %v7075, 0.0
    %v7173 = vadd.f32 %v7171, %v7172
    %v7174 = vsel %vm7106, %v7076, 0.0
    %v7175 = vadd.f32 %v7173, %v7174
    %v7176 = vsel %vm7106, %v7077, 0.0
    %v7177 = vadd.f32 %v7175, %v7176
    %v7178 = vsel %vm7106, %v7078, 0.0
    %v7179 = vadd.f32 %v7177, %v7178
    %v7180 = vsel %vm7106, %v7079, 0.0
    %v7181 = vadd.f32 %v7179, %v7180
    %v7182 = vsel %vm7106, %v7080, 0.0
    %v7183 = vadd.f32 %v7181, %v7182
    %v7184 = vsel %vm7106, %v7081, 0.0
    %v7185 = vadd.f32 %v7183, %v7184
    %v7186 = vsel %vm7106, %v7082, 0.0
    %v7187 = vadd.f32 %v7185, %v7186
    %v7188 = vsel %vm7106, %v7083, 0.0
    %v7189 = vadd.f32 %v7187, %v7188
    %v7190 = vsel %vm7106, %v7084, 0.0
    %v7191 = vadd.f32 %v7189, %v7190
    %v7192 = vsel %vm7106, %v7085, 0.0
    %v7193 = vadd.f32 %v7191, %v7192
    %v7194 = vsel %vm7106, %v7086, 0.0
    %v7195 = vadd.f32 %v7193, %v7194
    %v7196 = vsel %vm7106, %v7087, 0.0
    %v7197 = vadd.f32 %v7195, %v7196
    %v7198 = vsel %vm7106, %v7088, 0.0
    %v7199 = vadd.f32 %v7197, %v7198
    %v7200 = vsel %vm7106, %v7089, 0.0
    %v7201 = vadd.f32 %v7199, %v7200
    %v7202 = vsel %vm7106, %v7090, 0.0
    %v7203 = vadd.f32 %v7201, %v7202
    %v7204 = vsel %vm7106, %v7091, 0.0
    %v7205 = vadd.f32 %v7203, %v7204
    %v7206 = vsel %vm7106, %v7092, 0.0
    %v7207 = vadd.f32 %v7205, %v7206
    %v7208 = vsel %vm7106, %v7093, 0.0
    %v7209 = vadd.f32 %v7207, %v7208
    %v7210 = vsel %vm7106, %v7094, 0.0
    %v7211 = vadd.f32 %v7209, %v7210
    %v7212 = vsel %vm7106, %v7095, 0.0
    %v7213 = vadd.f32 %v7211, %v7212
    %v7214 = vsel %vm7106, %v7096, 0.0
    %v7215 = vadd.f32 %v7213, %v7214
    %v7216 = vsel %vm7106, %v7097, 0.0
    %v7217 = vadd.f32 %v7215, %v7216
    %v7218 = vsel %vm7106, %v7098, 0.0
    %v7219 = vadd.f32 %v7217, %v7218
    %v7220 = vsel %vm7106, %v7099, 0.0
    %v7221 = vadd.f32 %v7219, %v7220
    %v7222 = vsel %vm7106, %v7100, 0.0
    %v7223 = vadd.f32 %v7221, %v7222
    %v7224 = vsel %vm7106, %v7101, 0.0
    %v7225 = vadd.f32 %v7223, %v7224
    %v7226 = vsel %vm7106, %v7102, 0.0
    %v7227 = vadd.f32 %v7225, %v7226
    %v7228 = vsel %vm7106, %v7103, 0.0
    %v7229 = vadd.f32 %v7227, %v7228
    %v7230 = vsel %vm7106, %v7104, 0.0
    %v7231 = vadd.f32 %v7229, %v7230
    %v7232 = vsel %vm7106, %v7105, 0.0
    %v7233 = vadd.f32 %v7231, %v7232
    %7234 = vadd.xlane.f32.xlu0 %v7233
    %v7235 = vpop.xlane.xlu0 %7234
    %v7236 = vrot.slane %v7235, 4
    %v7237 = vadd.f32 %v7235, %v7236
    %v7238 = vrot.slane %v7237, 2
    %v7239 = vadd.f32 %v7237, %v7238
    %v7240 = vrot.slane %v7239, 1
    %v7241 = vadd.f32 %v7239, %v7240
    %s7242 = vtos %v7241
    %s7243 = smul.f32 %s7242, 0.00024414063
    %s7244 = scalar_lea.smem [#allocation7], 0
    %7245 = sst [smem:[%s7244]] %s7243
    %7246 = vxpose.xlu0.b32.start [1/16] %v6660, 128
    %7247 = vxpose.xlu0.b32.cont [2/16] %v6665, 128
    %7248 = vxpose.xlu0.b32.cont [3/16] 0.0, 128
    %7249 = vxpose.xlu0.b32.cont [4/16] 0.0, 128
    %7250 = vxpose.xlu0.b32.cont [5/16] 0.0, 128
    %7251 = vxpose.xlu0.b32.cont [6/16] 0.0, 128
    %7252 = vxpose.xlu0.b32.cont [7/16] 0.0, 128
    %7253 = vxpose.xlu0.b32.cont [8/16] 0.0, 128
    %7254 = vxpose.xlu0.b32.cont [9/16] 0.0, 128
    %7255 = vxpose.xlu0.b32.cont [10/16] 0.0, 128
    %7256 = vxpose.xlu0.b32.cont [11/16] 0.0, 128
    %7257 = vxpose.xlu0.b32.cont [12/16] 0.0, 128
    %7258 = vxpose.xlu0.b32.cont [13/16] 0.0, 128
    %7259 = vxpose.xlu0.b32.cont [14/16] 0.0, 128
    %7260 = vxpose.xlu0.b32.cont [15/16] 0.0, 128
    %7261 = vxpose.xlu0.b32.end [16/16] 0.0, 128
    %v7262 = vpop.trf.xlu0
    %v7263 = vpop.trf.xlu0
    %v7264 = vpop.trf.xlu0
    %v7265 = vpop.trf.xlu0
    %v7266 = vpop.trf.xlu0
    %v7267 = vpop.trf.xlu0
    %v7268 = vpop.trf.xlu0
    %v7269 = vpop.trf.xlu0
    %v7270 = vpop.trf.xlu0
    %v7271 = vpop.trf.xlu0
    %v7272 = vpop.trf.xlu0
    %v7273 = vpop.trf.xlu0
    %v7274 = vpop.trf.xlu0
    %v7275 = vpop.trf.xlu0
    %v7276 = vpop.trf.xlu0
    %v7277 = vpop.trf.xlu0
    %7278 = vxpose.xlu0.b32.start [1/16] %v6670, 128
    %7279 = vxpose.xlu0.b32.cont [2/16] %v6675, 128
    %7280 = vxpose.xlu0.b32.cont [3/16] 0.0, 128
    %7281 = vxpose.xlu0.b32.cont [4/16] 0.0, 128
    %7282 = vxpose.xlu0.b32.cont [5/16] 0.0, 128
    %7283 = vxpose.xlu0.b32.cont [6/16] 0.0, 128
    %7284 = vxpose.xlu0.b32.cont [7/16] 0.0, 128
    %7285 = vxpose.xlu0.b32.cont [8/16] 0.0, 128
    %7286 = vxpose.xlu0.b32.cont [9/16] 0.0, 128
    %7287 = vxpose.xlu0.b32.cont [10/16] 0.0, 128
    %7288 = vxpose.xlu0.b32.cont [11/16] 0.0, 128
    %7289 = vxpose.xlu0.b32.cont [12/16] 0.0, 128
    %7290 = vxpose.xlu0.b32.cont [13/16] 0.0, 128
    %7291 = vxpose.xlu0.b32.cont [14/16] 0.0, 128
    %7292 = vxpose.xlu0.b32.cont [15/16] 0.0, 128
    %7293 = vxpose.xlu0.b32.end [16/16] 0.0, 128
    %v7294 = vpop.trf.xlu0
    %v7295 = vpop.trf.xlu0
    %v7296 = vpop.trf.xlu0
    %v7297 = vpop.trf.xlu0
    %v7298 = vpop.trf.xlu0
    %v7299 = vpop.trf.xlu0
    %v7300 = vpop.trf.xlu0
    %v7301 = vpop.trf.xlu0
    %v7302 = vpop.trf.xlu0
    %v7303 = vpop.trf.xlu0
    %v7304 = vpop.trf.xlu0
    %v7305 = vpop.trf.xlu0
    %v7306 = vpop.trf.xlu0
    %v7307 = vpop.trf.xlu0
    %v7308 = vpop.trf.xlu0
    %v7309 = vpop.trf.xlu0
    %7310 = vxpose.xlu0.b32.start [1/16] %v6680, 128
    %7311 = vxpose.xlu0.b32.cont [2/16] %v6685, 128
    %7312 = vxpose.xlu0.b32.cont [3/16] 0.0, 128
    %7313 = vxpose.xlu0.b32.cont [4/16] 0.0, 128
    %7314 = vxpose.xlu0.b32.cont [5/16] 0.0, 128
    %7315 = vxpose.xlu0.b32.cont [6/16] 0.0, 128
    %7316 = vxpose.xlu0.b32.cont [7/16] 0.0, 128
    %7317 = vxpose.xlu0.b32.cont [8/16] 0.0, 128
    %7318 = vxpose.xlu0.b32.cont [9/16] 0.0, 128
    %7319 = vxpose.xlu0.b32.cont [10/16] 0.0, 128
    %7320 = vxpose.xlu0.b32.cont [11/16] 0.0, 128
    %7321 = vxpose.xlu0.b32.cont [12/16] 0.0, 128
    %7322 = vxpose.xlu0.b32.cont [13/16] 0.0, 128
    %7323 = vxpose.xlu0.b32.cont [14/16] 0.0, 128
    %7324 = vxpose.xlu0.b32.cont [15/16] 0.0, 128
    %7325 = vxpose.xlu0.b32.end [16/16] 0.0, 128
    %v7326 = vpop.trf.xlu0
    %v7327 = vpop.trf.xlu0
    %v7328 = vpop.trf.xlu0
    %v7329 = vpop.trf.xlu0
    %v7330 = vpop.trf.xlu0
    %v7331 = vpop.trf.xlu0
    %v7332 = vpop.trf.xlu0
    %v7333 = vpop.trf.xlu0
    %v7334 = vpop.trf.xlu0
    %v7335 = vpop.trf.xlu0
    %v7336 = vpop.trf.xlu0
    %v7337 = vpop.trf.xlu0
    %v7338 = vpop.trf.xlu0
    %v7339 = vpop.trf.xlu0
    %v7340 = vpop.trf.xlu0
    %v7341 = vpop.trf.xlu0
    %7342 = vxpose.xlu0.b32.start [1/16] %v6690, 128
    %7343 = vxpose.xlu0.b32.cont [2/16] %v6695, 128
    %7344 = vxpose.xlu0.b32.cont [3/16] 0.0, 128
    %7345 = vxpose.xlu0.b32.cont [4/16] 0.0, 128
    %7346 = vxpose.xlu0.b32.cont [5/16] 0.0, 128
    %7347 = vxpose.xlu0.b32.cont [6/16] 0.0, 128
    %7348 = vxpose.xlu0.b32.cont [7/16] 0.0, 128
    %7349 = vxpose.xlu0.b32.cont [8/16] 0.0, 128
    %7350 = vxpose.xlu0.b32.cont [9/16] 0.0, 128
    %7351 = vxpose.xlu0.b32.cont [10/16] 0.0, 128
    %7352 = vxpose.xlu0.b32.cont [11/16] 0.0, 128
    %7353 = vxpose.xlu0.b32.cont [12/16] 0.0, 128
    %7354 = vxpose.xlu0.b32.cont [13/16] 0.0, 128
    %7355 = vxpose.xlu0.b32.cont [14/16] 0.0, 128
    %7356 = vxpose.xlu0.b32.cont [15/16] 0.0, 128
    %7357 = vxpose.xlu0.b32.end [16/16] 0.0, 128
    %v7358 = vpop.trf.xlu0
    %v7359 = vpop.trf.xlu0
    %v7360 = vpop.trf.xlu0
    %v7361 = vpop.trf.xlu0
    %v7362 = vpop.trf.xlu0
    %v7363 = vpop.trf.xlu0
    %v7364 = vpop.trf.xlu0
    %v7365 = vpop.trf.xlu0
    %v7366 = vpop.trf.xlu0
    %v7367 = vpop.trf.xlu0
    %v7368 = vpop.trf.xlu0
    %v7369 = vpop.trf.xlu0
    %v7370 = vpop.trf.xlu0
    %v7371 = vpop.trf.xlu0
    %v7372 = vpop.trf.xlu0
    %v7373 = vpop.trf.xlu0
    %7374 = vxpose.xlu0.b32.start [1/16] %v6700, 128
    %7375 = vxpose.xlu0.b32.cont [2/16] %v6705, 128
    %7376 = vxpose.xlu0.b32.cont [3/16] 0.0, 128
    %7377 = vxpose.xlu0.b32.cont [4/16] 0.0, 128
    %7378 = vxpose.xlu0.b32.cont [5/16] 0.0, 128
    %7379 = vxpose.xlu0.b32.cont [6/16] 0.0, 128
    %7380 = vxpose.xlu0.b32.cont [7/16] 0.0, 128
    %7381 = vxpose.xlu0.b32.cont [8/16] 0.0, 128
    %7382 = vxpose.xlu0.b32.cont [9/16] 0.0, 128
    %7383 = vxpose.xlu0.b32.cont [10/16] 0.0, 128
    %7384 = vxpose.xlu0.b32.cont [11/16] 0.0, 128
    %7385 = vxpose.xlu0.b32.cont [12/16] 0.0, 128
    %7386 = vxpose.xlu0.b32.cont [13/16] 0.0, 128
    %7387 = vxpose.xlu0.b32.cont [14/16] 0.0, 128
    %7388 = vxpose.xlu0.b32.cont [15/16] 0.0, 128
    %7389 = vxpose.xlu0.b32.end [16/16] 0.0, 128
    %v7390 = vpop.trf.xlu0
    %v7391 = vpop.trf.xlu0
    %v7392 = vpop.trf.xlu0
    %v7393 = vpop.trf.xlu0
    %v7394 = vpop.trf.xlu0
    %v7395 = vpop.trf.xlu0
    %v7396 = vpop.trf.xlu0
    %v7397 = vpop.trf.xlu0
    %v7398 = vpop.trf.xlu0
    %v7399 = vpop.trf.xlu0
    %v7400 = vpop.trf.xlu0
    %v7401 = vpop.trf.xlu0
    %v7402 = vpop.trf.xlu0
    %v7403 = vpop.trf.xlu0
    %v7404 = vpop.trf.xlu0
    %v7405 = vpop.trf.xlu0
    %7406 = vxpose.xlu0.b32.start [1/16] %v6710, 128
    %7407 = vxpose.xlu0.b32.cont [2/16] %v6715, 128
    %7408 = vxpose.xlu0.b32.cont [3/16] 0.0, 128
    %7409 = vxpose.xlu0.b32.cont [4/16] 0.0, 128
    %7410 = vxpose.xlu0.b32.cont [5/16] 0.0, 128
    %7411 = vxpose.xlu0.b32.cont [6/16] 0.0, 128
    %7412 = vxpose.xlu0.b32.cont [7/16] 0.0, 128
    %7413 = vxpose.xlu0.b32.cont [8/16] 0.0, 128
    %7414 = vxpose.xlu0.b32.cont [9/16] 0.0, 128
    %7415 = vxpose.xlu0.b32.cont [10/16] 0.0, 128
    %7416 = vxpose.xlu0.b32.cont [11/16] 0.0, 128
    %7417 = vxpose.xlu0.b32.cont [12/16] 0.0, 128
    %7418 = vxpose.xlu0.b32.cont [13/16] 0.0, 128
    %7419 = vxpose.xlu0.b32.cont [14/16] 0.0, 128
    %7420 = vxpose.xlu0.b32.cont [15/16] 0.0, 128
    %7421 = vxpose.xlu0.b32.end [16/16] 0.0, 128
    %v7422 = vpop.trf.xlu0
    %v7423 = vpop.trf.xlu0
    %v7424 = vpop.trf.xlu0
    %v7425 = vpop.trf.xlu0
    %v7426 = vpop.trf.xlu0
    %v7427 = vpop.trf.xlu0
    %v7428 = vpop.trf.xlu0
    %v7429 = vpop.trf.xlu0
    %v7430 = vpop.trf.xlu0
    %v7431 = vpop.trf.xlu0
    %v7432 = vpop.trf.xlu0
    %v7433 = vpop.trf.xlu0
    %v7434 = vpop.trf.xlu0
    %v7435 = vpop.trf.xlu0
    %v7436 = vpop.trf.xlu0
    %v7437 = vpop.trf.xlu0
    %7438 = vxpose.xlu0.b32.start [1/16] %v6720, 128
    %7439 = vxpose.xlu0.b32.cont [2/16] %v6725, 128
    %7440 = vxpose.xlu0.b32.cont [3/16] 0.0, 128
    %7441 = vxpose.xlu0.b32.cont [4/16] 0.0, 128
    %7442 = vxpose.xlu0.b32.cont [5/16] 0.0, 128
    %7443 = vxpose.xlu0.b32.cont [6/16] 0.0, 128
    %7444 = vxpose.xlu0.b32.cont [7/16] 0.0, 128
    %7445 = vxpose.xlu0.b32.cont [8/16] 0.0, 128
    %7446 = vxpose.xlu0.b32.cont [9/16] 0.0, 128
    %7447 = vxpose.xlu0.b32.cont [10/16] 0.0, 128
    %7448 = vxpose.xlu0.b32.cont [11/16] 0.0, 128
    %7449 = vxpose.xlu0.b32.cont [12/16] 0.0, 128
    %7450 = vxpose.xlu0.b32.cont [13/16] 0.0, 128
    %7451 = vxpose.xlu0.b32.cont [14/16] 0.0, 128
    %7452 = vxpose.xlu0.b32.cont [15/16] 0.0, 128
    %7453 = vxpose.xlu0.b32.end [16/16] 0.0, 128
    %v7454 = vpop.trf.xlu0
    %v7455 = vpop.trf.xlu0
    %v7456 = vpop.trf.xlu0
    %v7457 = vpop.trf.xlu0
    %v7458 = vpop.trf.xlu0
    %v7459 = vpop.trf.xlu0
    %v7460 = vpop.trf.xlu0
    %v7461 = vpop.trf.xlu0
    %v7462 = vpop.trf.xlu0
    %v7463 = vpop.trf.xlu0
    %v7464 = vpop.trf.xlu0
    %v7465 = vpop.trf.xlu0
    %v7466 = vpop.trf.xlu0
    %v7467 = vpop.trf.xlu0
    %v7468 = vpop.trf.xlu0
    %v7469 = vpop.trf.xlu0
    %7470 = vxpose.xlu0.b32.start [1/16] %v6730, 128
    %7471 = vxpose.xlu0.b32.cont [2/16] %v6735, 128
    %7472 = vxpose.xlu0.b32.cont [3/16] 0.0, 128
    %7473 = vxpose.xlu0.b32.cont [4/16] 0.0, 128
    %7474 = vxpose.xlu0.b32.cont [5/16] 0.0, 128
    %7475 = vxpose.xlu0.b32.cont [6/16] 0.0, 128
    %7476 = vxpose.xlu0.b32.cont [7/16] 0.0, 128
    %7477 = vxpose.xlu0.b32.cont [8/16] 0.0, 128
    %7478 = vxpose.xlu0.b32.cont [9/16] 0.0, 128
    %7479 = vxpose.xlu0.b32.cont [10/16] 0.0, 128
    %7480 = vxpose.xlu0.b32.cont [11/16] 0.0, 128
    %7481 = vxpose.xlu0.b32.cont [12/16] 0.0, 128
    %7482 = vxpose.xlu0.b32.cont [13/16] 0.0, 128
    %7483 = vxpose.xlu0.b32.cont [14/16] 0.0, 128
    %7484 = vxpose.xlu0.b32.cont [15/16] 0.0, 128
    %7485 = vxpose.xlu0.b32.end [16/16] 0.0, 128
    %v7486 = vpop.trf.xlu0
    %v7487 = vpop.trf.xlu0
    %v7488 = vpop.trf.xlu0
    %v7489 = vpop.trf.xlu0
    %v7490 = vpop.trf.xlu0
    %v7491 = vpop.trf.xlu0
    %v7492 = vpop.trf.xlu0
    %v7493 = vpop.trf.xlu0
    %v7494 = vpop.trf.xlu0
    %v7495 = vpop.trf.xlu0
    %v7496 = vpop.trf.xlu0
    %v7497 = vpop.trf.xlu0
    %v7498 = vpop.trf.xlu0
    %v7499 = vpop.trf.xlu0
    %v7500 = vpop.trf.xlu0
    %v7501 = vpop.trf.xlu0
    %7502 = vxpose.xlu0.b32.start [1/16] %v6740, 128
    %7503 = vxpose.xlu0.b32.cont [2/16] %v6745, 128
    %7504 = vxpose.xlu0.b32.cont [3/16] 0.0, 128
    %7505 = vxpose.xlu0.b32.cont [4/16] 0.0, 128
    %7506 = vxpose.xlu0.b32.cont [5/16] 0.0, 128
    %7507 = vxpose.xlu0.b32.cont [6/16] 0.0, 128
    %7508 = vxpose.xlu0.b32.cont [7/16] 0.0, 128
    %7509 = vxpose.xlu0.b32.cont [8/16] 0.0, 128
    %7510 = vxpose.xlu0.b32.cont [9/16] 0.0, 128
    %7511 = vxpose.xlu0.b32.cont [10/16] 0.0, 128
    %7512 = vxpose.xlu0.b32.cont [11/16] 0.0, 128
    %7513 = vxpose.xlu0.b32.cont [12/16] 0.0, 128
    %7514 = vxpose.xlu0.b32.cont [13/16] 0.0, 128
    %7515 = vxpose.xlu0.b32.cont [14/16] 0.0, 128
    %7516 = vxpose.xlu0.b32.cont [15/16] 0.0, 128
    %7517 = vxpose.xlu0.b32.end [16/16] 0.0, 128
    %v7518 = vpop.trf.xlu0
    %v7519 = vpop.trf.xlu0
    %v7520 = vpop.trf.xlu0
    %v7521 = vpop.trf.xlu0
    %v7522 = vpop.trf.xlu0
    %v7523 = vpop.trf.xlu0
    %v7524 = vpop.trf.xlu0
    %v7525 = vpop.trf.xlu0
    %v7526 = vpop.trf.xlu0
    %v7527 = vpop.trf.xlu0
    %v7528 = vpop.trf.xlu0
    %v7529 = vpop.trf.xlu0
    %v7530 = vpop.trf.xlu0
    %v7531 = vpop.trf.xlu0
    %v7532 = vpop.trf.xlu0
    %v7533 = vpop.trf.xlu0
    %7534 = vxpose.xlu0.b32.start [1/16] %v6750, 128
    %7535 = vxpose.xlu0.b32.cont [2/16] %v6755, 128
    %7536 = vxpose.xlu0.b32.cont [3/16] 0.0, 128
    %7537 = vxpose.xlu0.b32.cont [4/16] 0.0, 128
    %7538 = vxpose.xlu0.b32.cont [5/16] 0.0, 128
    %7539 = vxpose.xlu0.b32.cont [6/16] 0.0, 128
    %7540 = vxpose.xlu0.b32.cont [7/16] 0.0, 128
    %7541 = vxpose.xlu0.b32.cont [8/16] 0.0, 128
    %7542 = vxpose.xlu0.b32.cont [9/16] 0.0, 128
    %7543 = vxpose.xlu0.b32.cont [10/16] 0.0, 128
    %7544 = vxpose.xlu0.b32.cont [11/16] 0.0, 128
    %7545 = vxpose.xlu0.b32.cont [12/16] 0.0, 128
    %7546 = vxpose.xlu0.b32.cont [13/16] 0.0, 128
    %7547 = vxpose.xlu0.b32.cont [14/16] 0.0, 128
    %7548 = vxpose.xlu0.b32.cont [15/16] 0.0, 128
    %7549 = vxpose.xlu0.b32.end [16/16] 0.0, 128
    %v7550 = vpop.trf.xlu0
    %v7551 = vpop.trf.xlu0
    %v7552 = vpop.trf.xlu0
    %v7553 = vpop.trf.xlu0
    %v7554 = vpop.trf.xlu0
    %v7555 = vpop.trf.xlu0
    %v7556 = vpop.trf.xlu0
    %v7557 = vpop.trf.xlu0
    %v7558 = vpop.trf.xlu0
    %v7559 = vpop.trf.xlu0
    %v7560 = vpop.trf.xlu0
    %v7561 = vpop.trf.xlu0
    %v7562 = vpop.trf.xlu0
    %v7563 = vpop.trf.xlu0
    %v7564 = vpop.trf.xlu0
    %v7565 = vpop.trf.xlu0
    %7566 = vxpose.xlu0.b32.start [1/16] %v6760, 128
    %7567 = vxpose.xlu0.b32.cont [2/16] %v6765, 128
    %7568 = vxpose.xlu0.b32.cont [3/16] 0.0, 128
    %7569 = vxpose.xlu0.b32.cont [4/16] 0.0, 128
    %7570 = vxpose.xlu0.b32.cont [5/16] 0.0, 128
    %7571 = vxpose.xlu0.b32.cont [6/16] 0.0, 128
    %7572 = vxpose.xlu0.b32.cont [7/16] 0.0, 128
    %7573 = vxpose.xlu0.b32.cont [8/16] 0.0, 128
    %7574 = vxpose.xlu0.b32.cont [9/16] 0.0, 128
    %7575 = vxpose.xlu0.b32.cont [10/16] 0.0, 128
    %7576 = vxpose.xlu0.b32.cont [11/16] 0.0, 128
    %7577 = vxpose.xlu0.b32.cont [12/16] 0.0, 128
    %7578 = vxpose.xlu0.b32.cont [13/16] 0.0, 128
    %7579 = vxpose.xlu0.b32.cont [14/16] 0.0, 128
    %7580 = vxpose.xlu0.b32.cont [15/16] 0.0, 128
    %7581 = vxpose.xlu0.b32.end [16/16] 0.0, 128
    %v7582 = vpop.trf.xlu0
    %v7583 = vpop.trf.xlu0
    %v7584 = vpop.trf.xlu0
    %v7585 = vpop.trf.xlu0
    %v7586 = vpop.trf.xlu0
    %v7587 = vpop.trf.xlu0
    %v7588 = vpop.trf.xlu0
    %v7589 = vpop.trf.xlu0
    %v7590 = vpop.trf.xlu0
    %v7591 = vpop.trf.xlu0
    %v7592 = vpop.trf.xlu0
    %v7593 = vpop.trf.xlu0
    %v7594 = vpop.trf.xlu0
    %v7595 = vpop.trf.xlu0
    %v7596 = vpop.trf.xlu0
    %v7597 = vpop.trf.xlu0
    %7598 = vxpose.xlu0.b32.start [1/16] %v6770, 128
    %7599 = vxpose.xlu0.b32.cont [2/16] %v6775, 128
    %7600 = vxpose.xlu0.b32.cont [3/16] 0.0, 128
    %7601 = vxpose.xlu0.b32.cont [4/16] 0.0, 128
    %7602 = vxpose.xlu0.b32.cont [5/16] 0.0, 128
    %7603 = vxpose.xlu0.b32.cont [6/16] 0.0, 128
    %7604 = vxpose.xlu0.b32.cont [7/16] 0.0, 128
    %7605 = vxpose.xlu0.b32.cont [8/16] 0.0, 128
    %7606 = vxpose.xlu0.b32.cont [9/16] 0.0, 128
    %7607 = vxpose.xlu0.b32.cont [10/16] 0.0, 128
    %7608 = vxpose.xlu0.b32.cont [11/16] 0.0, 128
    %7609 = vxpose.xlu0.b32.cont [12/16] 0.0, 128
    %7610 = vxpose.xlu0.b32.cont [13/16] 0.0, 128
    %7611 = vxpose.xlu0.b32.cont [14/16] 0.0, 128
    %7612 = vxpose.xlu0.b32.cont [15/16] 0.0, 128
    %7613 = vxpose.xlu0.b32.end [16/16] 0.0, 128
    %v7614 = vpop.trf.xlu0
    %v7615 = vpop.trf.xlu0
    %v7616 = vpop.trf.xlu0
    %v7617 = vpop.trf.xlu0
    %v7618 = vpop.trf.xlu0
    %v7619 = vpop.trf.xlu0
    %v7620 = vpop.trf.xlu0
    %v7621 = vpop.trf.xlu0
    %v7622 = vpop.trf.xlu0
    %v7623 = vpop.trf.xlu0
    %v7624 = vpop.trf.xlu0
    %v7625 = vpop.trf.xlu0
    %v7626 = vpop.trf.xlu0
    %v7627 = vpop.trf.xlu0
    %v7628 = vpop.trf.xlu0
    %v7629 = vpop.trf.xlu0
    %7630 = vxpose.xlu0.b32.start [1/16] %v6780, 128
    %7631 = vxpose.xlu0.b32.cont [2/16] %v6785, 128
    %7632 = vxpose.xlu0.b32.cont [3/16] 0.0, 128
    %7633 = vxpose.xlu0.b32.cont [4/16] 0.0, 128
    %7634 = vxpose.xlu0.b32.cont [5/16] 0.0, 128
    %7635 = vxpose.xlu0.b32.cont [6/16] 0.0, 128
    %7636 = vxpose.xlu0.b32.cont [7/16] 0.0, 128
    %7637 = vxpose.xlu0.b32.cont [8/16] 0.0, 128
    %7638 = vxpose.xlu0.b32.cont [9/16] 0.0, 128
    %7639 = vxpose.xlu0.b32.cont [10/16] 0.0, 128
    %7640 = vxpose.xlu0.b32.cont [11/16] 0.0, 128
    %7641 = vxpose.xlu0.b32.cont [12/16] 0.0, 128
    %7642 = vxpose.xlu0.b32.cont [13/16] 0.0, 128
    %7643 = vxpose.xlu0.b32.cont [14/16] 0.0, 128
    %7644 = vxpose.xlu0.b32.cont [15/16] 0.0, 128
    %7645 = vxpose.xlu0.b32.end [16/16] 0.0, 128
    %v7646 = vpop.trf.xlu0
    %v7647 = vpop.trf.xlu0
    %v7648 = vpop.trf.xlu0
    %v7649 = vpop.trf.xlu0
    %v7650 = vpop.trf.xlu0
    %v7651 = vpop.trf.xlu0
    %v7652 = vpop.trf.xlu0
    %v7653 = vpop.trf.xlu0
    %v7654 = vpop.trf.xlu0
    %v7655 = vpop.trf.xlu0
    %v7656 = vpop.trf.xlu0
    %v7657 = vpop.trf.xlu0
    %v7658 = vpop.trf.xlu0
    %v7659 = vpop.trf.xlu0
    %v7660 = vpop.trf.xlu0
    %v7661 = vpop.trf.xlu0
    %7662 = vxpose.xlu0.b32.start [1/16] %v6790, 128
    %7663 = vxpose.xlu0.b32.cont [2/16] %v6795, 128
    %7664 = vxpose.xlu0.b32.cont [3/16] 0.0, 128
    %7665 = vxpose.xlu0.b32.cont [4/16] 0.0, 128
    %7666 = vxpose.xlu0.b32.cont [5/16] 0.0, 128
    %7667 = vxpose.xlu0.b32.cont [6/16] 0.0, 128
    %7668 = vxpose.xlu0.b32.cont [7/16] 0.0, 128
    %7669 = vxpose.xlu0.b32.cont [8/16] 0.0, 128
    %7670 = vxpose.xlu0.b32.cont [9/16] 0.0, 128
    %7671 = vxpose.xlu0.b32.cont [10/16] 0.0, 128
    %7672 = vxpose.xlu0.b32.cont [11/16] 0.0, 128
    %7673 = vxpose.xlu0.b32.cont [12/16] 0.0, 128
    %7674 = vxpose.xlu0.b32.cont [13/16] 0.0, 128
    %7675 = vxpose.xlu0.b32.cont [14/16] 0.0, 128
    %7676 = vxpose.xlu0.b32.cont [15/16] 0.0, 128
    %7677 = vxpose.xlu0.b32.end [16/16] 0.0, 128
    %v7678 = vpop.trf.xlu0
    %v7679 = vpop.trf.xlu0
    %v7680 = vpop.trf.xlu0
    %v7681 = vpop.trf.xlu0
    %v7682 = vpop.trf.xlu0
    %v7683 = vpop.trf.xlu0
    %v7684 = vpop.trf.xlu0
    %v7685 = vpop.trf.xlu0
    %v7686 = vpop.trf.xlu0
    %v7687 = vpop.trf.xlu0
    %v7688 = vpop.trf.xlu0
    %v7689 = vpop.trf.xlu0
    %v7690 = vpop.trf.xlu0
    %v7691 = vpop.trf.xlu0
    %v7692 = vpop.trf.xlu0
    %v7693 = vpop.trf.xlu0
    %7694 = vxpose.xlu0.b32.start [1/16] %v6800, 128
    %7695 = vxpose.xlu0.b32.cont [2/16] %v6805, 128
    %7696 = vxpose.xlu0.b32.cont [3/16] 0.0, 128
    %7697 = vxpose.xlu0.b32.cont [4/16] 0.0, 128
    %7698 = vxpose.xlu0.b32.cont [5/16] 0.0, 128
    %7699 = vxpose.xlu0.b32.cont [6/16] 0.0, 128
    %7700 = vxpose.xlu0.b32.cont [7/16] 0.0, 128
    %7701 = vxpose.xlu0.b32.cont [8/16] 0.0, 128
    %7702 = vxpose.xlu0.b32.cont [9/16] 0.0, 128
    %7703 = vxpose.xlu0.b32.cont [10/16] 0.0, 128
    %7704 = vxpose.xlu0.b32.cont [11/16] 0.0, 128
    %7705 = vxpose.xlu0.b32.cont [12/16] 0.0, 128
    %7706 = vxpose.xlu0.b32.cont [13/16] 0.0, 128
    %7707 = vxpose.xlu0.b32.cont [14/16] 0.0, 128
    %7708 = vxpose.xlu0.b32.cont [15/16] 0.0, 128
    %7709 = vxpose.xlu0.b32.end [16/16] 0.0, 128
    %v7710 = vpop.trf.xlu0
    %v7711 = vpop.trf.xlu0
    %v7712 = vpop.trf.xlu0
    %v7713 = vpop.trf.xlu0
    %v7714 = vpop.trf.xlu0
    %v7715 = vpop.trf.xlu0
    %v7716 = vpop.trf.xlu0
    %v7717 = vpop.trf.xlu0
    %v7718 = vpop.trf.xlu0
    %v7719 = vpop.trf.xlu0
    %v7720 = vpop.trf.xlu0
    %v7721 = vpop.trf.xlu0
    %v7722 = vpop.trf.xlu0
    %v7723 = vpop.trf.xlu0
    %v7724 = vpop.trf.xlu0
    %v7725 = vpop.trf.xlu0
    %7726 = vxpose.xlu0.b32.start [1/16] %v6810, 128
    %7727 = vxpose.xlu0.b32.cont [2/16] %v6815, 128
    %7728 = vxpose.xlu0.b32.cont [3/16] 0.0, 128
    %7729 = vxpose.xlu0.b32.cont [4/16] 0.0, 128
    %7730 = vxpose.xlu0.b32.cont [5/16] 0.0, 128
    %7731 = vxpose.xlu0.b32.cont [6/16] 0.0, 128
    %7732 = vxpose.xlu0.b32.cont [7/16] 0.0, 128
    %7733 = vxpose.xlu0.b32.cont [8/16] 0.0, 128
    %7734 = vxpose.xlu0.b32.cont [9/16] 0.0, 128
    %7735 = vxpose.xlu0.b32.cont [10/16] 0.0, 128
    %7736 = vxpose.xlu0.b32.cont [11/16] 0.0, 128
    %7737 = vxpose.xlu0.b32.cont [12/16] 0.0, 128
    %7738 = vxpose.xlu0.b32.cont [13/16] 0.0, 128
    %7739 = vxpose.xlu0.b32.cont [14/16] 0.0, 128
    %7740 = vxpose.xlu0.b32.cont [15/16] 0.0, 128
    %7741 = vxpose.xlu0.b32.end [16/16] 0.0, 128
    %v7742 = vpop.trf.xlu0
    %v7743 = vpop.trf.xlu0
    %v7744 = vpop.trf.xlu0
    %v7745 = vpop.trf.xlu0
    %v7746 = vpop.trf.xlu0
    %v7747 = vpop.trf.xlu0
    %v7748 = vpop.trf.xlu0
    %v7749 = vpop.trf.xlu0
    %v7750 = vpop.trf.xlu0
    %v7751 = vpop.trf.xlu0
    %v7752 = vpop.trf.xlu0
    %v7753 = vpop.trf.xlu0
    %v7754 = vpop.trf.xlu0
    %v7755 = vpop.trf.xlu0
    %v7756 = vpop.trf.xlu0
    %v7757 = vpop.trf.xlu0
    %7758 = vxpose.xlu0.b32.start [1/16] %v6820, 128
    %7759 = vxpose.xlu0.b32.cont [2/16] %v6825, 128
    %7760 = vxpose.xlu0.b32.cont [3/16] 0.0, 128
    %7761 = vxpose.xlu0.b32.cont [4/16] 0.0, 128
    %7762 = vxpose.xlu0.b32.cont [5/16] 0.0, 128
    %7763 = vxpose.xlu0.b32.cont [6/16] 0.0, 128
    %7764 = vxpose.xlu0.b32.cont [7/16] 0.0, 128
    %7765 = vxpose.xlu0.b32.cont [8/16] 0.0, 128
    %7766 = vxpose.xlu0.b32.cont [9/16] 0.0, 128
    %7767 = vxpose.xlu0.b32.cont [10/16] 0.0, 128
    %7768 = vxpose.xlu0.b32.cont [11/16] 0.0, 128
    %7769 = vxpose.xlu0.b32.cont [12/16] 0.0, 128
    %7770 = vxpose.xlu0.b32.cont [13/16] 0.0, 128
    %7771 = vxpose.xlu0.b32.cont [14/16] 0.0, 128
    %7772 = vxpose.xlu0.b32.cont [15/16] 0.0, 128
    %7773 = vxpose.xlu0.b32.end [16/16] 0.0, 128
    %v7774 = vpop.trf.xlu0
    %v7775 = vpop.trf.xlu0
    %v7776 = vpop.trf.xlu0
    %v7777 = vpop.trf.xlu0
    %v7778 = vpop.trf.xlu0
    %v7779 = vpop.trf.xlu0
    %v7780 = vpop.trf.xlu0
    %v7781 = vpop.trf.xlu0
    %v7782 = vpop.trf.xlu0
    %v7783 = vpop.trf.xlu0
    %v7784 = vpop.trf.xlu0
    %v7785 = vpop.trf.xlu0
    %v7786 = vpop.trf.xlu0
    %v7787 = vpop.trf.xlu0
    %v7788 = vpop.trf.xlu0
    %v7789 = vpop.trf.xlu0
    %7790 = vxpose.xlu0.b32.start [1/16] %v6830, 128
    %7791 = vxpose.xlu0.b32.cont [2/16] %v6835, 128
    %7792 = vxpose.xlu0.b32.cont [3/16] 0.0, 128
    %7793 = vxpose.xlu0.b32.cont [4/16] 0.0, 128
    %7794 = vxpose.xlu0.b32.cont [5/16] 0.0, 128
    %7795 = vxpose.xlu0.b32.cont [6/16] 0.0, 128
    %7796 = vxpose.xlu0.b32.cont [7/16] 0.0, 128
    %7797 = vxpose.xlu0.b32.cont [8/16] 0.0, 128
    %7798 = vxpose.xlu0.b32.cont [9/16] 0.0, 128
    %7799 = vxpose.xlu0.b32.cont [10/16] 0.0, 128
    %7800 = vxpose.xlu0.b32.cont [11/16] 0.0, 128
    %7801 = vxpose.xlu0.b32.cont [12/16] 0.0, 128
    %7802 = vxpose.xlu0.b32.cont [13/16] 0.0, 128
    %7803 = vxpose.xlu0.b32.cont [14/16] 0.0, 128
    %7804 = vxpose.xlu0.b32.cont [15/16] 0.0, 128
    %7805 = vxpose.xlu0.b32.end [16/16] 0.0, 128
    %v7806 = vpop.trf.xlu0
    %v7807 = vpop.trf.xlu0
    %v7808 = vpop.trf.xlu0
    %v7809 = vpop.trf.xlu0
    %v7810 = vpop.trf.xlu0
    %v7811 = vpop.trf.xlu0
    %v7812 = vpop.trf.xlu0
    %v7813 = vpop.trf.xlu0
    %v7814 = vpop.trf.xlu0
    %v7815 = vpop.trf.xlu0
    %v7816 = vpop.trf.xlu0
    %v7817 = vpop.trf.xlu0
    %v7818 = vpop.trf.xlu0
    %v7819 = vpop.trf.xlu0
    %v7820 = vpop.trf.xlu0
    %v7821 = vpop.trf.xlu0
    %7822 = vxpose.xlu0.b32.start [1/16] %v6840, 128
    %7823 = vxpose.xlu0.b32.cont [2/16] %v6845, 128
    %7824 = vxpose.xlu0.b32.cont [3/16] 0.0, 128
    %7825 = vxpose.xlu0.b32.cont [4/16] 0.0, 128
    %7826 = vxpose.xlu0.b32.cont [5/16] 0.0, 128
    %7827 = vxpose.xlu0.b32.cont [6/16] 0.0, 128
    %7828 = vxpose.xlu0.b32.cont [7/16] 0.0, 128
    %7829 = vxpose.xlu0.b32.cont [8/16] 0.0, 128
    %7830 = vxpose.xlu0.b32.cont [9/16] 0.0, 128
    %7831 = vxpose.xlu0.b32.cont [10/16] 0.0, 128
    %7832 = vxpose.xlu0.b32.cont [11/16] 0.0, 128
    %7833 = vxpose.xlu0.b32.cont [12/16] 0.0, 128
    %7834 = vxpose.xlu0.b32.cont [13/16] 0.0, 128
    %7835 = vxpose.xlu0.b32.cont [14/16] 0.0, 128
    %7836 = vxpose.xlu0.b32.cont [15/16] 0.0, 128
    %7837 = vxpose.xlu0.b32.end [16/16] 0.0, 128
    %v7838 = vpop.trf.xlu0
    %v7839 = vpop.trf.xlu0
    %v7840 = vpop.trf.xlu0
    %v7841 = vpop.trf.xlu0
    %v7842 = vpop.trf.xlu0
    %v7843 = vpop.trf.xlu0
    %v7844 = vpop.trf.xlu0
    %v7845 = vpop.trf.xlu0
    %v7846 = vpop.trf.xlu0
    %v7847 = vpop.trf.xlu0
    %v7848 = vpop.trf.xlu0
    %v7849 = vpop.trf.xlu0
    %v7850 = vpop.trf.xlu0
    %v7851 = vpop.trf.xlu0
    %v7852 = vpop.trf.xlu0
    %v7853 = vpop.trf.xlu0
    %7854 = vxpose.xlu0.b32.start [1/16] %v6850, 128
    %7855 = vxpose.xlu0.b32.cont [2/16] %v6855, 128
    %7856 = vxpose.xlu0.b32.cont [3/16] 0.0, 128
    %7857 = vxpose.xlu0.b32.cont [4/16] 0.0, 128
    %7858 = vxpose.xlu0.b32.cont [5/16] 0.0, 128
    %7859 = vxpose.xlu0.b32.cont [6/16] 0.0, 128
    %7860 = vxpose.xlu0.b32.cont [7/16] 0.0, 128
    %7861 = vxpose.xlu0.b32.cont [8/16] 0.0, 128
    %7862 = vxpose.xlu0.b32.cont [9/16] 0.0, 128
    %7863 = vxpose.xlu0.b32.cont [10/16] 0.0, 128
    %7864 = vxpose.xlu0.b32.cont [11/16] 0.0, 128
    %7865 = vxpose.xlu0.b32.cont [12/16] 0.0, 128
    %7866 = vxpose.xlu0.b32.cont [13/16] 0.0, 128
    %7867 = vxpose.xlu0.b32.cont [14/16] 0.0, 128
    %7868 = vxpose.xlu0.b32.cont [15/16] 0.0, 128
    %7869 = vxpose.xlu0.b32.end [16/16] 0.0, 128
    %v7870 = vpop.trf.xlu0
    %v7871 = vpop.trf.xlu0
    %v7872 = vpop.trf.xlu0
    %v7873 = vpop.trf.xlu0
    %v7874 = vpop.trf.xlu0
    %v7875 = vpop.trf.xlu0
    %v7876 = vpop.trf.xlu0
    %v7877 = vpop.trf.xlu0
    %v7878 = vpop.trf.xlu0
    %v7879 = vpop.trf.xlu0
    %v7880 = vpop.trf.xlu0
    %v7881 = vpop.trf.xlu0
    %v7882 = vpop.trf.xlu0
    %v7883 = vpop.trf.xlu0
    %v7884 = vpop.trf.xlu0
    %v7885 = vpop.trf.xlu0
    %7886 = vxpose.xlu0.b32.start [1/16] %v6860, 128
    %7887 = vxpose.xlu0.b32.cont [2/16] %v6865, 128
    %7888 = vxpose.xlu0.b32.cont [3/16] 0.0, 128
    %7889 = vxpose.xlu0.b32.cont [4/16] 0.0, 128
    %7890 = vxpose.xlu0.b32.cont [5/16] 0.0, 128
    %7891 = vxpose.xlu0.b32.cont [6/16] 0.0, 128
    %7892 = vxpose.xlu0.b32.cont [7/16] 0.0, 128
    %7893 = vxpose.xlu0.b32.cont [8/16] 0.0, 128
    %7894 = vxpose.xlu0.b32.cont [9/16] 0.0, 128
    %7895 = vxpose.xlu0.b32.cont [10/16] 0.0, 128
    %7896 = vxpose.xlu0.b32.cont [11/16] 0.0, 128
    %7897 = vxpose.xlu0.b32.cont [12/16] 0.0, 128
    %7898 = vxpose.xlu0.b32.cont [13/16] 0.0, 128
    %7899 = vxpose.xlu0.b32.cont [14/16] 0.0, 128
    %7900 = vxpose.xlu0.b32.cont [15/16] 0.0, 128
    %7901 = vxpose.xlu0.b32.end [16/16] 0.0, 128
    %v7902 = vpop.trf.xlu0
    %v7903 = vpop.trf.xlu0
    %v7904 = vpop.trf.xlu0
    %v7905 = vpop.trf.xlu0
    %v7906 = vpop.trf.xlu0
    %v7907 = vpop.trf.xlu0
    %v7908 = vpop.trf.xlu0
    %v7909 = vpop.trf.xlu0
    %v7910 = vpop.trf.xlu0
    %v7911 = vpop.trf.xlu0
    %v7912 = vpop.trf.xlu0
    %v7913 = vpop.trf.xlu0
    %v7914 = vpop.trf.xlu0
    %v7915 = vpop.trf.xlu0
    %v7916 = vpop.trf.xlu0
    %v7917 = vpop.trf.xlu0
    %7918 = vxpose.xlu0.b32.start [1/16] %v6870, 128
    %7919 = vxpose.xlu0.b32.cont [2/16] %v6875, 128
    %7920 = vxpose.xlu0.b32.cont [3/16] 0.0, 128
    %7921 = vxpose.xlu0.b32.cont [4/16] 0.0, 128
    %7922 = vxpose.xlu0.b32.cont [5/16] 0.0, 128
    %7923 = vxpose.xlu0.b32.cont [6/16] 0.0, 128
    %7924 = vxpose.xlu0.b32.cont [7/16] 0.0, 128
    %7925 = vxpose.xlu0.b32.cont [8/16] 0.0, 128
    %7926 = vxpose.xlu0.b32.cont [9/16] 0.0, 128
    %7927 = vxpose.xlu0.b32.cont [10/16] 0.0, 128
    %7928 = vxpose.xlu0.b32.cont [11/16] 0.0, 128
    %7929 = vxpose.xlu0.b32.cont [12/16] 0.0, 128
    %7930 = vxpose.xlu0.b32.cont [13/16] 0.0, 128
    %7931 = vxpose.xlu0.b32.cont [14/16] 0.0, 128
    %7932 = vxpose.xlu0.b32.cont [15/16] 0.0, 128
    %7933 = vxpose.xlu0.b32.end [16/16] 0.0, 128
    %v7934 = vpop.trf.xlu0
    %v7935 = vpop.trf.xlu0
    %v7936 = vpop.trf.xlu0
    %v7937 = vpop.trf.xlu0
    %v7938 = vpop.trf.xlu0
    %v7939 = vpop.trf.xlu0
    %v7940 = vpop.trf.xlu0
    %v7941 = vpop.trf.xlu0
    %v7942 = vpop.trf.xlu0
    %v7943 = vpop.trf.xlu0
    %v7944 = vpop.trf.xlu0
    %v7945 = vpop.trf.xlu0
    %v7946 = vpop.trf.xlu0
    %v7947 = vpop.trf.xlu0
    %v7948 = vpop.trf.xlu0
    %v7949 = vpop.trf.xlu0
    %7950 = vxpose.xlu0.b32.start [1/16] %v6880, 128
    %7951 = vxpose.xlu0.b32.cont [2/16] %v6885, 128
    %7952 = vxpose.xlu0.b32.cont [3/16] 0.0, 128
    %7953 = vxpose.xlu0.b32.cont [4/16] 0.0, 128
    %7954 = vxpose.xlu0.b32.cont [5/16] 0.0, 128
    %7955 = vxpose.xlu0.b32.cont [6/16] 0.0, 128
    %7956 = vxpose.xlu0.b32.cont [7/16] 0.0, 128
    %7957 = vxpose.xlu0.b32.cont [8/16] 0.0, 128
    %7958 = vxpose.xlu0.b32.cont [9/16] 0.0, 128
    %7959 = vxpose.xlu0.b32.cont [10/16] 0.0, 128
    %7960 = vxpose.xlu0.b32.cont [11/16] 0.0, 128
    %7961 = vxpose.xlu0.b32.cont [12/16] 0.0, 128
    %7962 = vxpose.xlu0.b32.cont [13/16] 0.0, 128
    %7963 = vxpose.xlu0.b32.cont [14/16] 0.0, 128
    %7964 = vxpose.xlu0.b32.cont [15/16] 0.0, 128
    %7965 = vxpose.xlu0.b32.end [16/16] 0.0, 128
    %v7966 = vpop.trf.xlu0
    %v7967 = vpop.trf.xlu0
    %v7968 = vpop.trf.xlu0
    %v7969 = vpop.trf.xlu0
    %v7970 = vpop.trf.xlu0
    %v7971 = vpop.trf.xlu0
    %v7972 = vpop.trf.xlu0
    %v7973 = vpop.trf.xlu0
    %v7974 = vpop.trf.xlu0
    %v7975 = vpop.trf.xlu0
    %v7976 = vpop.trf.xlu0
    %v7977 = vpop.trf.xlu0
    %v7978 = vpop.trf.xlu0
    %v7979 = vpop.trf.xlu0
    %v7980 = vpop.trf.xlu0
    %v7981 = vpop.trf.xlu0
    %7982 = vxpose.xlu0.b32.start [1/16] %v6890, 128
    %7983 = vxpose.xlu0.b32.cont [2/16] %v6895, 128
    %7984 = vxpose.xlu0.b32.cont [3/16] 0.0, 128
    %7985 = vxpose.xlu0.b32.cont [4/16] 0.0, 128
    %7986 = vxpose.xlu0.b32.cont [5/16] 0.0, 128
    %7987 = vxpose.xlu0.b32.cont [6/16] 0.0, 128
    %7988 = vxpose.xlu0.b32.cont [7/16] 0.0, 128
    %7989 = vxpose.xlu0.b32.cont [8/16] 0.0, 128
    %7990 = vxpose.xlu0.b32.cont [9/16] 0.0, 128
    %7991 = vxpose.xlu0.b32.cont [10/16] 0.0, 128
    %7992 = vxpose.xlu0.b32.cont [11/16] 0.0, 128
    %7993 = vxpose.xlu0.b32.cont [12/16] 0.0, 128
    %7994 = vxpose.xlu0.b32.cont [13/16] 0.0, 128
    %7995 = vxpose.xlu0.b32.cont [14/16] 0.0, 128
    %7996 = vxpose.xlu0.b32.cont [15/16] 0.0, 128
    %7997 = vxpose.xlu0.b32.end [16/16] 0.0, 128
    %v7998 = vpop.trf.xlu0
    %v7999 = vpop.trf.xlu0
    %v8000 = vpop.trf.xlu0
    %v8001 = vpop.trf.xlu0
    %v8002 = vpop.trf.xlu0
    %v8003 = vpop.trf.xlu0
    %v8004 = vpop.trf.xlu0
    %v8005 = vpop.trf.xlu0
    %v8006 = vpop.trf.xlu0
    %v8007 = vpop.trf.xlu0
    %v8008 = vpop.trf.xlu0
    %v8009 = vpop.trf.xlu0
    %v8010 = vpop.trf.xlu0
    %v8011 = vpop.trf.xlu0
    %v8012 = vpop.trf.xlu0
    %v8013 = vpop.trf.xlu0
    %8014 = vxpose.xlu0.b32.start [1/16] %v6900, 128
    %8015 = vxpose.xlu0.b32.cont [2/16] %v6905, 128
    %8016 = vxpose.xlu0.b32.cont [3/16] 0.0, 128
    %8017 = vxpose.xlu0.b32.cont [4/16] 0.0, 128
    %8018 = vxpose.xlu0.b32.cont [5/16] 0.0, 128
    %8019 = vxpose.xlu0.b32.cont [6/16] 0.0, 128
    %8020 = vxpose.xlu0.b32.cont [7/16] 0.0, 128
    %8021 = vxpose.xlu0.b32.cont [8/16] 0.0, 128
    %8022 = vxpose.xlu0.b32.cont [9/16] 0.0, 128
    %8023 = vxpose.xlu0.b32.cont [10/16] 0.0, 128
    %8024 = vxpose.xlu0.b32.cont [11/16] 0.0, 128
    %8025 = vxpose.xlu0.b32.cont [12/16] 0.0, 128
    %8026 = vxpose.xlu0.b32.cont [13/16] 0.0, 128
    %8027 = vxpose.xlu0.b32.cont [14/16] 0.0, 128
    %8028 = vxpose.xlu0.b32.cont [15/16] 0.0, 128
    %8029 = vxpose.xlu0.b32.end [16/16] 0.0, 128
    %v8030 = vpop.trf.xlu0
    %v8031 = vpop.trf.xlu0
    %v8032 = vpop.trf.xlu0
    %v8033 = vpop.trf.xlu0
    %v8034 = vpop.trf.xlu0
    %v8035 = vpop.trf.xlu0
    %v8036 = vpop.trf.xlu0
    %v8037 = vpop.trf.xlu0
    %v8038 = vpop.trf.xlu0
    %v8039 = vpop.trf.xlu0
    %v8040 = vpop.trf.xlu0
    %v8041 = vpop.trf.xlu0
    %v8042 = vpop.trf.xlu0
    %v8043 = vpop.trf.xlu0
    %v8044 = vpop.trf.xlu0
    %v8045 = vpop.trf.xlu0
    %8046 = vxpose.xlu0.b32.start [1/16] %v6910, 128
    %8047 = vxpose.xlu0.b32.cont [2/16] %v6915, 128
    %8048 = vxpose.xlu0.b32.cont [3/16] 0.0, 128
    %8049 = vxpose.xlu0.b32.cont [4/16] 0.0, 128
    %8050 = vxpose.xlu0.b32.cont [5/16] 0.0, 128
    %8051 = vxpose.xlu0.b32.cont [6/16] 0.0, 128
    %8052 = vxpose.xlu0.b32.cont [7/16] 0.0, 128
    %8053 = vxpose.xlu0.b32.cont [8/16] 0.0, 128
    %8054 = vxpose.xlu0.b32.cont [9/16] 0.0, 128
    %8055 = vxpose.xlu0.b32.cont [10/16] 0.0, 128
    %8056 = vxpose.xlu0.b32.cont [11/16] 0.0, 128
    %8057 = vxpose.xlu0.b32.cont [12/16] 0.0, 128
    %8058 = vxpose.xlu0.b32.cont [13/16] 0.0, 128
    %8059 = vxpose.xlu0.b32.cont [14/16] 0.0, 128
    %8060 = vxpose.xlu0.b32.cont [15/16] 0.0, 128
    %8061 = vxpose.xlu0.b32.end [16/16] 0.0, 128
    %v8062 = vpop.trf.xlu0
    %v8063 = vpop.trf.xlu0
    %v8064 = vpop.trf.xlu0
    %v8065 = vpop.trf.xlu0
    %v8066 = vpop.trf.xlu0
    %v8067 = vpop.trf.xlu0
    %v8068 = vpop.trf.xlu0
    %v8069 = vpop.trf.xlu0
    %v8070 = vpop.trf.xlu0
    %v8071 = vpop.trf.xlu0
    %v8072 = vpop.trf.xlu0
    %v8073 = vpop.trf.xlu0
    %v8074 = vpop.trf.xlu0
    %v8075 = vpop.trf.xlu0
    %v8076 = vpop.trf.xlu0
    %v8077 = vpop.trf.xlu0
    %8078 = vxpose.xlu0.b32.start [1/16] %v6920, 128
    %8079 = vxpose.xlu0.b32.cont [2/16] %v6925, 128
    %8080 = vxpose.xlu0.b32.cont [3/16] 0.0, 128
    %8081 = vxpose.xlu0.b32.cont [4/16] 0.0, 128
    %8082 = vxpose.xlu0.b32.cont [5/16] 0.0, 128
    %8083 = vxpose.xlu0.b32.cont [6/16] 0.0, 128
    %8084 = vxpose.xlu0.b32.cont [7/16] 0.0, 128
    %8085 = vxpose.xlu0.b32.cont [8/16] 0.0, 128
    %8086 = vxpose.xlu0.b32.cont [9/16] 0.0, 128
    %8087 = vxpose.xlu0.b32.cont [10/16] 0.0, 128
    %8088 = vxpose.xlu0.b32.cont [11/16] 0.0, 128
    %8089 = vxpose.xlu0.b32.cont [12/16] 0.0, 128
    %8090 = vxpose.xlu0.b32.cont [13/16] 0.0, 128
    %8091 = vxpose.xlu0.b32.cont [14/16] 0.0, 128
    %8092 = vxpose.xlu0.b32.cont [15/16] 0.0, 128
    %8093 = vxpose.xlu0.b32.end [16/16] 0.0, 128
    %v8094 = vpop.trf.xlu0
    %v8095 = vpop.trf.xlu0
    %v8096 = vpop.trf.xlu0
    %v8097 = vpop.trf.xlu0
    %v8098 = vpop.trf.xlu0
    %v8099 = vpop.trf.xlu0
    %v8100 = vpop.trf.xlu0
    %v8101 = vpop.trf.xlu0
    %v8102 = vpop.trf.xlu0
    %v8103 = vpop.trf.xlu0
    %v8104 = vpop.trf.xlu0
    %v8105 = vpop.trf.xlu0
    %v8106 = vpop.trf.xlu0
    %v8107 = vpop.trf.xlu0
    %v8108 = vpop.trf.xlu0
    %v8109 = vpop.trf.xlu0
    %8110 = vxpose.xlu0.b32.start [1/16] %v6930, 128
    %8111 = vxpose.xlu0.b32.cont [2/16] %v6935, 128
    %8112 = vxpose.xlu0.b32.cont [3/16] 0.0, 128
    %8113 = vxpose.xlu0.b32.cont [4/16] 0.0, 128
    %8114 = vxpose.xlu0.b32.cont [5/16] 0.0, 128
    %8115 = vxpose.xlu0.b32.cont [6/16] 0.0, 128
    %8116 = vxpose.xlu0.b32.cont [7/16] 0.0, 128
    %8117 = vxpose.xlu0.b32.cont [8/16] 0.0, 128
    %8118 = vxpose.xlu0.b32.cont [9/16] 0.0, 128
    %8119 = vxpose.xlu0.b32.cont [10/16] 0.0, 128
    %8120 = vxpose.xlu0.b32.cont [11/16] 0.0, 128
    %8121 = vxpose.xlu0.b32.cont [12/16] 0.0, 128
    %8122 = vxpose.xlu0.b32.cont [13/16] 0.0, 128
    %8123 = vxpose.xlu0.b32.cont [14/16] 0.0, 128
    %8124 = vxpose.xlu0.b32.cont [15/16] 0.0, 128
    %8125 = vxpose.xlu0.b32.end [16/16] 0.0, 128
    %v8126 = vpop.trf.xlu0
    %v8127 = vpop.trf.xlu0
    %v8128 = vpop.trf.xlu0
    %v8129 = vpop.trf.xlu0
    %v8130 = vpop.trf.xlu0
    %v8131 = vpop.trf.xlu0
    %v8132 = vpop.trf.xlu0
    %v8133 = vpop.trf.xlu0
    %v8134 = vpop.trf.xlu0
    %v8135 = vpop.trf.xlu0
    %v8136 = vpop.trf.xlu0
    %v8137 = vpop.trf.xlu0
    %v8138 = vpop.trf.xlu0
    %v8139 = vpop.trf.xlu0
    %v8140 = vpop.trf.xlu0
    %v8141 = vpop.trf.xlu0
    %8142 = vxpose.xlu0.b32.start [1/16] %v6940, 128
    %8143 = vxpose.xlu0.b32.cont [2/16] %v6945, 128
    %8144 = vxpose.xlu0.b32.cont [3/16] 0.0, 128
    %8145 = vxpose.xlu0.b32.cont [4/16] 0.0, 128
    %8146 = vxpose.xlu0.b32.cont [5/16] 0.0, 128
    %8147 = vxpose.xlu0.b32.cont [6/16] 0.0, 128
    %8148 = vxpose.xlu0.b32.cont [7/16] 0.0, 128
    %8149 = vxpose.xlu0.b32.cont [8/16] 0.0, 128
    %8150 = vxpose.xlu0.b32.cont [9/16] 0.0, 128
    %8151 = vxpose.xlu0.b32.cont [10/16] 0.0, 128
    %8152 = vxpose.xlu0.b32.cont [11/16] 0.0, 128
    %8153 = vxpose.xlu0.b32.cont [12/16] 0.0, 128
    %8154 = vxpose.xlu0.b32.cont [13/16] 0.0, 128
    %8155 = vxpose.xlu0.b32.cont [14/16] 0.0, 128
    %8156 = vxpose.xlu0.b32.cont [15/16] 0.0, 128
    %8157 = vxpose.xlu0.b32.end [16/16] 0.0, 128
    %v8158 = vpop.trf.xlu0
    %v8159 = vpop.trf.xlu0
    %v8160 = vpop.trf.xlu0
    %v8161 = vpop.trf.xlu0
    %v8162 = vpop.trf.xlu0
    %v8163 = vpop.trf.xlu0
    %v8164 = vpop.trf.xlu0
    %v8165 = vpop.trf.xlu0
    %v8166 = vpop.trf.xlu0
    %v8167 = vpop.trf.xlu0
    %v8168 = vpop.trf.xlu0
    %v8169 = vpop.trf.xlu0
    %v8170 = vpop.trf.xlu0
    %v8171 = vpop.trf.xlu0
    %v8172 = vpop.trf.xlu0
    %v8173 = vpop.trf.xlu0
    %8174 = vxpose.xlu0.b32.start [1/16] %v6950, 128
    %8175 = vxpose.xlu0.b32.cont [2/16] %v6955, 128
    %8176 = vxpose.xlu0.b32.cont [3/16] 0.0, 128
    %8177 = vxpose.xlu0.b32.cont [4/16] 0.0, 128
    %8178 = vxpose.xlu0.b32.cont [5/16] 0.0, 128
    %8179 = vxpose.xlu0.b32.cont [6/16] 0.0, 128
    %8180 = vxpose.xlu0.b32.cont [7/16] 0.0, 128
    %8181 = vxpose.xlu0.b32.cont [8/16] 0.0, 128
    %8182 = vxpose.xlu0.b32.cont [9/16] 0.0, 128
    %8183 = vxpose.xlu0.b32.cont [10/16] 0.0, 128
    %8184 = vxpose.xlu0.b32.cont [11/16] 0.0, 128
    %8185 = vxpose.xlu0.b32.cont [12/16] 0.0, 128
    %8186 = vxpose.xlu0.b32.cont [13/16] 0.0, 128
    %8187 = vxpose.xlu0.b32.cont [14/16] 0.0, 128
    %8188 = vxpose.xlu0.b32.cont [15/16] 0.0, 128
    %8189 = vxpose.xlu0.b32.end [16/16] 0.0, 128
    %v8190 = vpop.trf.xlu0
    %v8191 = vpop.trf.xlu0
    %v8192 = vpop.trf.xlu0
    %v8193 = vpop.trf.xlu0
    %v8194 = vpop.trf.xlu0
    %v8195 = vpop.trf.xlu0
    %v8196 = vpop.trf.xlu0
    %v8197 = vpop.trf.xlu0
    %v8198 = vpop.trf.xlu0
    %v8199 = vpop.trf.xlu0
    %v8200 = vpop.trf.xlu0
    %v8201 = vpop.trf.xlu0
    %v8202 = vpop.trf.xlu0
    %v8203 = vpop.trf.xlu0
    %v8204 = vpop.trf.xlu0
    %v8205 = vpop.trf.xlu0
    %8206 = vxpose.xlu0.b32.start [1/16] %v6960, 128
    %8207 = vxpose.xlu0.b32.cont [2/16] %v6965, 128
    %8208 = vxpose.xlu0.b32.cont [3/16] 0.0, 128
    %8209 = vxpose.xlu0.b32.cont [4/16] 0.0, 128
    %8210 = vxpose.xlu0.b32.cont [5/16] 0.0, 128
    %8211 = vxpose.xlu0.b32.cont [6/16] 0.0, 128
    %8212 = vxpose.xlu0.b32.cont [7/16] 0.0, 128
    %8213 = vxpose.xlu0.b32.cont [8/16] 0.0, 128
    %8214 = vxpose.xlu0.b32.cont [9/16] 0.0, 128
    %8215 = vxpose.xlu0.b32.cont [10/16] 0.0, 128
    %8216 = vxpose.xlu0.b32.cont [11/16] 0.0, 128
    %8217 = vxpose.xlu0.b32.cont [12/16] 0.0, 128
    %8218 = vxpose.xlu0.b32.cont [13/16] 0.0, 128
    %8219 = vxpose.xlu0.b32.cont [14/16] 0.0, 128
    %8220 = vxpose.xlu0.b32.cont [15/16] 0.0, 128
    %8221 = vxpose.xlu0.b32.end [16/16] 0.0, 128
    %v8222 = vpop.trf.xlu0
    %v8223 = vpop.trf.xlu0
    %v8224 = vpop.trf.xlu0
    %v8225 = vpop.trf.xlu0
    %v8226 = vpop.trf.xlu0
    %v8227 = vpop.trf.xlu0
    %v8228 = vpop.trf.xlu0
    %v8229 = vpop.trf.xlu0
    %v8230 = vpop.trf.xlu0
    %v8231 = vpop.trf.xlu0
    %v8232 = vpop.trf.xlu0
    %v8233 = vpop.trf.xlu0
    %v8234 = vpop.trf.xlu0
    %v8235 = vpop.trf.xlu0
    %v8236 = vpop.trf.xlu0
    %v8237 = vpop.trf.xlu0
    %8238 = vxpose.xlu0.b32.start [1/16] %v6970, 128
    %8239 = vxpose.xlu0.b32.cont [2/16] %v6975, 128
    %8240 = vxpose.xlu0.b32.cont [3/16] 0.0, 128
    %8241 = vxpose.xlu0.b32.cont [4/16] 0.0, 128
    %8242 = vxpose.xlu0.b32.cont [5/16] 0.0, 128
    %8243 = vxpose.xlu0.b32.cont [6/16] 0.0, 128
    %8244 = vxpose.xlu0.b32.cont [7/16] 0.0, 128
    %8245 = vxpose.xlu0.b32.cont [8/16] 0.0, 128
    %8246 = vxpose.xlu0.b32.cont [9/16] 0.0, 128
    %8247 = vxpose.xlu0.b32.cont [10/16] 0.0, 128
    %8248 = vxpose.xlu0.b32.cont [11/16] 0.0, 128
    %8249 = vxpose.xlu0.b32.cont [12/16] 0.0, 128
    %8250 = vxpose.xlu0.b32.cont [13/16] 0.0, 128
    %8251 = vxpose.xlu0.b32.cont [14/16] 0.0, 128
    %8252 = vxpose.xlu0.b32.cont [15/16] 0.0, 128
    %8253 = vxpose.xlu0.b32.end [16/16] 0.0, 128
    %v8254 = vpop.trf.xlu0
    %v8255 = vpop.trf.xlu0
    %v8256 = vpop.trf.xlu0
    %v8257 = vpop.trf.xlu0
    %v8258 = vpop.trf.xlu0
    %v8259 = vpop.trf.xlu0
    %v8260 = vpop.trf.xlu0
    %v8261 = vpop.trf.xlu0
    %v8262 = vpop.trf.xlu0
    %v8263 = vpop.trf.xlu0
    %v8264 = vpop.trf.xlu0
    %v8265 = vpop.trf.xlu0
    %v8266 = vpop.trf.xlu0
    %v8267 = vpop.trf.xlu0
    %v8268 = vpop.trf.xlu0
    %v8269 = vpop.trf.xlu0
    %8270 = vst.msk [vmem:[#allocation2] sm:$0xff] %vm7106, 0.0
    %8271 = vst.msk [vmem:[#allocation2 + $0x8] sm:$0xff] %vm7106, 0.0
    %8272 = vst.msk [vmem:[#allocation2 + $0x10] sm:$0xff] %vm7106, 0.0
    %8273 = vst.msk [vmem:[#allocation2 + $0x18] sm:$0xff] %vm7106, 0.0
    %8274 = vst.msk [vmem:[#allocation2 + $0x240] sm:$0xff] %vm7106, 0.0
    %8275 = vst.msk [vmem:[#allocation2 + $0x248] sm:$0xff] %vm7106, 0.0
    %8276 = vst.msk [vmem:[#allocation2 + $0x250] sm:$0xff] %vm7106, 0.0
    %8277 = vst.msk [vmem:[#allocation2 + $0x258] sm:$0xff] %vm7106, 0.0
    %s8278 = scalar_lea.vmem [#allocation2], 544
    %8279 = vst.msk [vmem:[%s8278] sm:$0xff] %vm7106, 0.0
    %8280 = vst.msk [vmem:[%s8278 + $0x8] sm:$0xff] %vm7106, 0.0
    %8281 = vst.msk [vmem:[%s8278 + $0x10] sm:$0xff] %vm7106, 0.0
    %8282 = vst.msk [vmem:[%s8278 + $0x18] sm:$0xff] %vm7106, 0.0
    %8283 = vst.msk [vmem:[%s8278 + $0x240] sm:$0xff] %vm7106, 0.0
    %8284 = vst.msk [vmem:[%s8278 + $0x248] sm:$0xff] %vm7106, 0.0
    %8285 = vst.msk [vmem:[%s8278 + $0x250] sm:$0xff] %vm7106, 0.0
    %8286 = vst.msk [vmem:[%s8278 + $0x258] sm:$0xff] %vm7106, 0.0
    %s8287 = scalar_lea.vmem [#allocation2], 32
    %vm8288 = vcmask 122880
    %8289 = vst.msk [vmem:[%s8287 + $0x7] sm:$0x1] %vm8288, 0.0
    %8290 = vst.msk [vmem:[%s8287 + $0x27] sm:$0x1] %vm8288, 0.0
    %8291 = vst.msk [vmem:[%s8287 + $0x47] sm:$0x1] %vm8288, 0.0
    %8292 = vst.msk [vmem:[%s8287 + $0x67] sm:$0x1] %vm8288, 0.0
    %8293 = vst.msk [vmem:[%s8287 + $0x87] sm:$0x1] %vm8288, 0.0
    %8294 = vst.msk [vmem:[%s8287 + $0xa7] sm:$0x1] %vm8288, 0.0
    %8295 = vst.msk [vmem:[%s8287 + $0xc7] sm:$0x1] %vm8288, 0.0
    %8296 = vst.msk [vmem:[%s8287 + $0xe7] sm:$0x1] %vm8288, 0.0
    %8297 = vst.msk [vmem:[%s8287 + $0x107] sm:$0x1] %vm8288, 0.0
    %8298 = vst.msk [vmem:[%s8287 + $0x127] sm:$0x1] %vm8288, 0.0
    %8299 = vst.msk [vmem:[%s8287 + $0x147] sm:$0x1] %vm8288, 0.0
    %8300 = vst.msk [vmem:[%s8287 + $0x167] sm:$0x1] %vm8288, 0.0
    %8301 = vst.msk [vmem:[%s8287 + $0x187] sm:$0x1] %vm8288, 0.0
    %8302 = vst.msk [vmem:[%s8287 + $0x1a7] sm:$0x1] %vm8288, 0.0
    %8303 = vst.msk [vmem:[%s8287 + $0x1c7] sm:$0x1] %vm8288, 0.0
    %8304 = vst.msk [vmem:[%s8287 + $0x1e7] sm:$0x1] %vm8288, 0.0
    %8305 = vst.msk [vmem:[%s8287 + $0x247] sm:$0x1] %vm8288, 0.0
    %8306 = vst.msk [vmem:[%s8287 + $0x267] sm:$0x1] %vm8288, 0.0
    %8307 = vst.msk [vmem:[%s8287 + $0x287] sm:$0x1] %vm8288, 0.0
    %8308 = vst.msk [vmem:[%s8287 + $0x2a7] sm:$0x1] %vm8288, 0.0
    %8309 = vst.msk [vmem:[%s8287 + $0x2c7] sm:$0x1] %vm8288, 0.0
    %8310 = vst.msk [vmem:[%s8287 + $0x2e7] sm:$0x1] %vm8288, 0.0
    %8311 = vst.msk [vmem:[%s8287 + $0x307] sm:$0x1] %vm8288, 0.0
    %8312 = vst.msk [vmem:[%s8287 + $0x327] sm:$0x1] %vm8288, 0.0
    %8313 = vst.msk [vmem:[%s8287 + $0x347] sm:$0x1] %vm8288, 0.0
    %8314 = vst.msk [vmem:[%s8287 + $0x367] sm:$0x1] %vm8288, 0.0
    %8315 = vst.msk [vmem:[%s8287 + $0x387] sm:$0x1] %vm8288, 0.0
    %8316 = vst.msk [vmem:[%s8287 + $0x3a7] sm:$0x1] %vm8288, 0.0
    %8317 = vst.msk [vmem:[%s8287 + $0x3c7] sm:$0x1] %vm8288, 0.0
    %8318 = vst.msk [vmem:[%s8287 + $0x3e7] sm:$0x1] %vm8288, 0.0
    %8319 = vst.msk [vmem:[%s8287 + $0x407] sm:$0x1] %vm8288, 0.0
    %8320 = vst.msk [vmem:[%s8287 + $0x427] sm:$0x1] %vm8288, 0.0
    %8321 = vst.msk [vmem:[%s8287 + $0x18] sm:$0x1] %vm8288, 0.0
    %8322 = vst.msk [vmem:[%s8287 + $0x38] sm:$0x1] %vm8288, 0.0
    %8323 = vst.msk [vmem:[%s8287 + $0x58] sm:$0x1] %vm8288, 0.0
    %8324 = vst.msk [vmem:[%s8287 + $0x78] sm:$0x1] %vm8288, 0.0
    %8325 = vst.msk [vmem:[%s8287 + $0x98] sm:$0x1] %vm8288, 0.0
    %8326 = vst.msk [vmem:[%s8287 + $0xb8] sm:$0x1] %vm8288, 0.0
    %8327 = vst.msk [vmem:[%s8287 + $0xd8] sm:$0x1] %vm8288, 0.0
    %8328 = vst.msk [vmem:[%s8287 + $0xf8] sm:$0x1] %vm8288, 0.0
    %8329 = vst.msk [vmem:[%s8287 + $0x118] sm:$0x1] %vm8288, 0.0
    %8330 = vst.msk [vmem:[%s8287 + $0x138] sm:$0x1] %vm8288, 0.0
    %8331 = vst.msk [vmem:[%s8287 + $0x158] sm:$0x1] %vm8288, 0.0
    %8332 = vst.msk [vmem:[%s8287 + $0x178] sm:$0x1] %vm8288, 0.0
    %8333 = vst.msk [vmem:[%s8287 + $0x198] sm:$0x1] %vm8288, 0.0
    %8334 = vst.msk [vmem:[%s8287 + $0x1b8] sm:$0x1] %vm8288, 0.0
    %8335 = vst.msk [vmem:[%s8287 + $0x1d8] sm:$0x1] %vm8288, 0.0
    %8336 = vst.msk [vmem:[%s8287 + $0x1f8] sm:$0x1] %vm8288, 0.0
    %8337 = vst.msk [vmem:[%s8287 + $0x258] sm:$0x1] %vm8288, 0.0
    %8338 = vst.msk [vmem:[%s8287 + $0x278] sm:$0x1] %vm8288, 0.0
    %8339 = vst.msk [vmem:[%s8287 + $0x298] sm:$0x1] %vm8288, 0.0
    %8340 = vst.msk [vmem:[%s8287 + $0x2b8] sm:$0x1] %vm8288, 0.0
    %8341 = vst.msk [vmem:[%s8287 + $0x2d8] sm:$0x1] %vm8288, 0.0
    %8342 = vst.msk [vmem:[%s8287 + $0x2f8] sm:$0x1] %vm8288, 0.0
    %8343 = vst.msk [vmem:[%s8287 + $0x318] sm:$0x1] %vm8288, 0.0
    %8344 = vst.msk [vmem:[%s8287 + $0x338] sm:$0x1] %vm8288, 0.0
    %8345 = vst.msk [vmem:[%s8287 + $0x358] sm:$0x1] %vm8288, 0.0
    %8346 = vst.msk [vmem:[%s8287 + $0x378] sm:$0x1] %vm8288, 0.0
    %8347 = vst.msk [vmem:[%s8287 + $0x398] sm:$0x1] %vm8288, 0.0
    %8348 = vst.msk [vmem:[%s8287 + $0x3b8] sm:$0x1] %vm8288, 0.0
    %8349 = vst.msk [vmem:[%s8287 + $0x3d8] sm:$0x1] %vm8288, 0.0
    %8350 = vst.msk [vmem:[%s8287 + $0x3f8] sm:$0x1] %vm8288, 0.0
    %8351 = vst.msk [vmem:[%s8287 + $0x418] sm:$0x1] %vm8288, 0.0
    %8352 = vst.msk [vmem:[%s8287 + $0x438] sm:$0x1] %vm8288, 0.0
    %8353 = vst.msk [vmem:[%s8287 + $0x8] sm:$0xff] %vm7106, %v7262
    %8354 = vst.msk [vmem:[%s8287 + $0x10] sm:$0xff] %vm7106, %v7263
    %8355 = vst.msk [vmem:[%s8287 + $0x28] sm:$0xff] %vm7106, %v7294
    %8356 = vst.msk [vmem:[%s8287 + $0x30] sm:$0xff] %vm7106, %v7295
    %8357 = vst.msk [vmem:[%s8287 + $0x48] sm:$0xff] %vm7106, %v7326
    %8358 = vst.msk [vmem:[%s8287 + $0x50] sm:$0xff] %vm7106, %v7327
    %8359 = vst.msk [vmem:[%s8287 + $0x68] sm:$0xff] %vm7106, %v7358
    %8360 = vst.msk [vmem:[%s8287 + $0x70] sm:$0xff] %vm7106, %v7359
    %8361 = vst.msk [vmem:[%s8287 + $0x88] sm:$0xff] %vm7106, %v7390
    %8362 = vst.msk [vmem:[%s8287 + $0x90] sm:$0xff] %vm7106, %v7391
    %8363 = vst.msk [vmem:[%s8287 + $0xa8] sm:$0xff] %vm7106, %v7422
    %8364 = vst.msk [vmem:[%s8287 + $0xb0] sm:$0xff] %vm7106, %v7423
    %8365 = vst.msk [vmem:[%s8287 + $0xc8] sm:$0xff] %vm7106, %v7454
    %8366 = vst.msk [vmem:[%s8287 + $0xd0] sm:$0xff] %vm7106, %v7455
    %8367 = vst.msk [vmem:[%s8287 + $0xe8] sm:$0xff] %vm7106, %v7486
    %8368 = vst.msk [vmem:[%s8287 + $0xf0] sm:$0xff] %vm7106, %v7487
    %8369 = vst.msk [vmem:[%s8287 + $0x108] sm:$0xff] %vm7106, %v7518
    %8370 = vst.msk [vmem:[%s8287 + $0x110] sm:$0xff] %vm7106, %v7519
    %8371 = vst.msk [vmem:[%s8287 + $0x128] sm:$0xff] %vm7106, %v7550
    %8372 = vst.msk [vmem:[%s8287 + $0x130] sm:$0xff] %vm7106, %v7551
    %8373 = vst.msk [vmem:[%s8287 + $0x148] sm:$0xff] %vm7106, %v7582
    %8374 = vst.msk [vmem:[%s8287 + $0x150] sm:$0xff] %vm7106, %v7583
    %8375 = vst.msk [vmem:[%s8287 + $0x168] sm:$0xff] %vm7106, %v7614
    %8376 = vst.msk [vmem:[%s8287 + $0x170] sm:$0xff] %vm7106, %v7615
    %8377 = vst.msk [vmem:[%s8287 + $0x188] sm:$0xff] %vm7106, %v7646
    %8378 = vst.msk [vmem:[%s8287 + $0x190] sm:$0xff] %vm7106, %v7647
    %8379 = vst.msk [vmem:[%s8287 + $0x1a8] sm:$0xff] %vm7106, %v7678
    %8380 = vst.msk [vmem:[%s8287 + $0x1b0] sm:$0xff] %vm7106, %v7679
    %8381 = vst.msk [vmem:[%s8287 + $0x1c8] sm:$0xff] %vm7106, %v7710
    %8382 = vst.msk [vmem:[%s8287 + $0x1d0] sm:$0xff] %vm7106, %v7711
    %8383 = vst.msk [vmem:[%s8287 + $0x1e8] sm:$0xff] %vm7106, %v7742
    %8384 = vst.msk [vmem:[%s8287 + $0x1f0] sm:$0xff] %vm7106, %v7743
    %8385 = vst.msk [vmem:[%s8287 + $0x248] sm:$0xff] %vm7106, %v7774
    %8386 = vst.msk [vmem:[%s8287 + $0x250] sm:$0xff] %vm7106, %v7775
    %8387 = vst.msk [vmem:[%s8287 + $0x268] sm:$0xff] %vm7106, %v7806
    %8388 = vst.msk [vmem:[%s8287 + $0x270] sm:$0xff] %vm7106, %v7807
    %8389 = vst.msk [vmem:[%s8287 + $0x288] sm:$0xff] %vm7106, %v7838
    %8390 = vst.msk [vmem:[%s8287 + $0x290] sm:$0xff] %vm7106, %v7839
    %8391 = vst.msk [vmem:[%s8287 + $0x2a8] sm:$0xff] %vm7106, %v7870
    %8392 = vst.msk [vmem:[%s8287 + $0x2b0] sm:$0xff] %vm7106, %v7871
    %8393 = vst.msk [vmem:[%s8287 + $0x2c8] sm:$0xff] %vm7106, %v7902
    %8394 = vst.msk [vmem:[%s8287 + $0x2d0] sm:$0xff] %vm7106, %v7903
    %8395 = vst.msk [vmem:[%s8287 + $0x2e8] sm:$0xff] %vm7106, %v7934
    %8396 = vst.msk [vmem:[%s8287 + $0x2f0] sm:$0xff] %vm7106, %v7935
    %8397 = vst.msk [vmem:[%s8287 + $0x308] sm:$0xff] %vm7106, %v7966
    %8398 = vst.msk [vmem:[%s8287 + $0x310] sm:$0xff] %vm7106, %v7967
    %8399 = vst.msk [vmem:[%s8287 + $0x328] sm:$0xff] %vm7106, %v7998
    %8400 = vst.msk [vmem:[%s8287 + $0x330] sm:$0xff] %vm7106, %v7999
    %8401 = vst.msk [vmem:[%s8287 + $0x348] sm:$0xff] %vm7106, %v8030
    %8402 = vst.msk [vmem:[%s8287 + $0x350] sm:$0xff] %vm7106, %v8031
    %8403 = vst.msk [vmem:[%s8287 + $0x368] sm:$0xff] %vm7106, %v8062
    %8404 = vst.msk [vmem:[%s8287 + $0x370] sm:$0xff] %vm7106, %v8063
    %8405 = vst.msk [vmem:[%s8287 + $0x388] sm:$0xff] %vm7106, %v8094
    %8406 = vst.msk [vmem:[%s8287 + $0x390] sm:$0xff] %vm7106, %v8095
    %8407 = vst.msk [vmem:[%s8287 + $0x3a8] sm:$0xff] %vm7106, %v8126
    %8408 = vst.msk [vmem:[%s8287 + $0x3b0] sm:$0xff] %vm7106, %v8127
    %8409 = vst.msk [vmem:[%s8287 + $0x3c8] sm:$0xff] %vm7106, %v8158
    %8410 = vst.msk [vmem:[%s8287 + $0x3d0] sm:$0xff] %vm7106, %v8159
    %8411 = vst.msk [vmem:[%s8287 + $0x3e8] sm:$0xff] %vm7106, %v8190
    %8412 = vst.msk [vmem:[%s8287 + $0x3f0] sm:$0xff] %vm7106, %v8191
    %8413 = vst.msk [vmem:[%s8287 + $0x408] sm:$0xff] %vm7106, %v8222
    %8414 = vst.msk [vmem:[%s8287 + $0x410] sm:$0xff] %vm7106, %v8223
    %8415 = vst.msk [vmem:[%s8287 + $0x428] sm:$0xff] %vm7106, %v8254
    %8416 = vst.msk [vmem:[%s8287 + $0x430] sm:$0xff] %vm7106, %v8255
    %v8417 = vld [vmem:[#allocation2 + $0x7] sm:$0xff]
    %v8418 = vld [vmem:[#allocation2 + $0xf] sm:$0xff]
    %v8419 = vld [vmem:[#allocation2 + $0x27] sm:$0xff]
    %v8420 = vld [vmem:[#allocation2 + $0x2f] sm:$0xff]
    %v8421 = vld [vmem:[#allocation2 + $0x47] sm:$0xff]
    %v8422 = vld [vmem:[#allocation2 + $0x4f] sm:$0xff]
    %v8423 = vld [vmem:[#allocation2 + $0x67] sm:$0xff]
    %v8424 = vld [vmem:[#allocation2 + $0x6f] sm:$0xff]
    %v8425 = vld [vmem:[#allocation2 + $0x87] sm:$0xff]
    %v8426 = vld [vmem:[#allocation2 + $0x8f] sm:$0xff]
    %v8427 = vld [vmem:[#allocation2 + $0xa7] sm:$0xff]
    %v8428 = vld [vmem:[#allocation2 + $0xaf] sm:$0xff]
    %v8429 = vld [vmem:[#allocation2 + $0xc7] sm:$0xff]
    %v8430 = vld [vmem:[#allocation2 + $0xcf] sm:$0xff]
    %v8431 = vld [vmem:[#allocation2 + $0xe7] sm:$0xff]
    %v8432 = vld [vmem:[#allocation2 + $0xef] sm:$0xff]
    %v8433 = vld [vmem:[#allocation2 + $0x107] sm:$0xff]
    %v8434 = vld [vmem:[#allocation2 + $0x10f] sm:$0xff]
    %v8435 = vld [vmem:[#allocation2 + $0x127] sm:$0xff]
    %v8436 = vld [vmem:[#allocation2 + $0x12f] sm:$0xff]
    %v8437 = vld [vmem:[#allocation2 + $0x147] sm:$0xff]
    %v8438 = vld [vmem:[#allocation2 + $0x14f] sm:$0xff]
    %v8439 = vld [vmem:[#allocation2 + $0x167] sm:$0xff]
    %v8440 = vld [vmem:[#allocation2 + $0x16f] sm:$0xff]
    %v8441 = vld [vmem:[#allocation2 + $0x187] sm:$0xff]
    %v8442 = vld [vmem:[#allocation2 + $0x18f] sm:$0xff]
    %v8443 = vld [vmem:[#allocation2 + $0x1a7] sm:$0xff]
    %v8444 = vld [vmem:[#allocation2 + $0x1af] sm:$0xff]
    %v8445 = vld [vmem:[#allocation2 + $0x1c7] sm:$0xff]
    %v8446 = vld [vmem:[#allocation2 + $0x1cf] sm:$0xff]
    %v8447 = vld [vmem:[#allocation2 + $0x1e7] sm:$0xff]
    %v8448 = vld [vmem:[#allocation2 + $0x1ef] sm:$0xff]
    %v8449 = vld [vmem:[#allocation2 + $0x247] sm:$0xff]
    %v8450 = vld [vmem:[#allocation2 + $0x24f] sm:$0xff]
    %v8451 = vld [vmem:[#allocation2 + $0x267] sm:$0xff]
    %v8452 = vld [vmem:[#allocation2 + $0x26f] sm:$0xff]
    %v8453 = vld [vmem:[#allocation2 + $0x287] sm:$0xff]
    %v8454 = vld [vmem:[#allocation2 + $0x28f] sm:$0xff]
    %v8455 = vld [vmem:[#allocation2 + $0x2a7] sm:$0xff]
    %v8456 = vld [vmem:[#allocation2 + $0x2af] sm:$0xff]
    %v8457 = vld [vmem:[#allocation2 + $0x2c7] sm:$0xff]
    %v8458 = vld [vmem:[#allocation2 + $0x2cf] sm:$0xff]
    %v8459 = vld [vmem:[#allocation2 + $0x2e7] sm:$0xff]
    %v8460 = vld [vmem:[#allocation2 + $0x2ef] sm:$0xff]
    %v8461 = vld [vmem:[#allocation2 + $0x307] sm:$0xff]
    %v8462 = vld [vmem:[#allocation2 + $0x30f] sm:$0xff]
    %v8463 = vld [vmem:[#allocation2 + $0x327] sm:$0xff]
    %v8464 = vld [vmem:[#allocation2 + $0x32f] sm:$0xff]
    %v8465 = vld [vmem:[#allocation2 + $0x347] sm:$0xff]
    %v8466 = vld [vmem:[#allocation2 + $0x34f] sm:$0xff]
    %v8467 = vld [vmem:[#allocation2 + $0x367] sm:$0xff]
    %v8468 = vld [vmem:[#allocation2 + $0x36f] sm:$0xff]
    %v8469 = vld [vmem:[#allocation2 + $0x387] sm:$0xff]
    %v8470 = vld [vmem:[#allocation2 + $0x38f] sm:$0xff]
    %v8471 = vld [vmem:[#allocation2 + $0x3a7] sm:$0xff]
    %v8472 = vld [vmem:[#allocation2 + $0x3af] sm:$0xff]
    %v8473 = vld [vmem:[#allocation2 + $0x3c7] sm:$0xff]
    %v8474 = vld [vmem:[#allocation2 + $0x3cf] sm:$0xff]
    %v8475 = vld [vmem:[#allocation2 + $0x3e7] sm:$0xff]
    %v8476 = vld [vmem:[#allocation2 + $0x3ef] sm:$0xff]
    %v8477 = vld [vmem:[#allocation2 + $0x407] sm:$0xff]
    %v8478 = vld [vmem:[#allocation2 + $0x40f] sm:$0xff]
    %v8479 = vld [vmem:[#allocation2 + $0x427] sm:$0xff]
    %v8480 = vld [vmem:[#allocation2 + $0x42f] sm:$0xff]
    %8481 = vst.msk [vmem:[#allocation3] sm:$0xff] %vm7106, %v8417
    %8482 = vst.msk [vmem:[#allocation3 + $0x10] sm:$0xff] %vm7106, %v8418
    %8483 = vst.msk [vmem:[#allocation3 + $0x20] sm:$0xff] %vm7106, %v8419
    %8484 = vst.msk [vmem:[#allocation3 + $0x30] sm:$0xff] %vm7106, %v8420
    %8485 = vst.msk [vmem:[#allocation3 + $0x40] sm:$0xff] %vm7106, %v8421
    %8486 = vst.msk [vmem:[#allocation3 + $0x50] sm:$0xff] %vm7106, %v8422
    %8487 = vst.msk [vmem:[#allocation3 + $0x60] sm:$0xff] %vm7106, %v8423
    %8488 = vst.msk [vmem:[#allocation3 + $0x70] sm:$0xff] %vm7106, %v8424
    %8489 = vst.msk [vmem:[#allocation3 + $0x80] sm:$0xff] %vm7106, %v8425
    %8490 = vst.msk [vmem:[#allocation3 + $0x90] sm:$0xff] %vm7106, %v8426
    %8491 = vst.msk [vmem:[#allocation3 + $0xa0] sm:$0xff] %vm7106, %v8427
    %8492 = vst.msk [vmem:[#allocation3 + $0xb0] sm:$0xff] %vm7106, %v8428
    %8493 = vst.msk [vmem:[#allocation3 + $0xc0] sm:$0xff] %vm7106, %v8429
    %8494 = vst.msk [vmem:[#allocation3 + $0xd0] sm:$0xff] %vm7106, %v8430
    %8495 = vst.msk [vmem:[#allocation3 + $0xe0] sm:$0xff] %vm7106, %v8431
    %8496 = vst.msk [vmem:[#allocation3 + $0xf0] sm:$0xff] %vm7106, %v8432
    %8497 = vst.msk [vmem:[#allocation3 + $0x100] sm:$0xff] %vm7106, %v8433
    %8498 = vst.msk [vmem:[#allocation3 + $0x110] sm:$0xff] %vm7106, %v8434
    %8499 = vst.msk [vmem:[#allocation3 + $0x120] sm:$0xff] %vm7106, %v8435
    %8500 = vst.msk [vmem:[#allocation3 + $0x130] sm:$0xff] %vm7106, %v8436
    %8501 = vst.msk [vmem:[#allocation3 + $0x140] sm:$0xff] %vm7106, %v8437
    %8502 = vst.msk [vmem:[#allocation3 + $0x150] sm:$0xff] %vm7106, %v8438
    %8503 = vst.msk [vmem:[#allocation3 + $0x160] sm:$0xff] %vm7106, %v8439
    %8504 = vst.msk [vmem:[#allocation3 + $0x170] sm:$0xff] %vm7106, %v8440
    %8505 = vst.msk [vmem:[#allocation3 + $0x180] sm:$0xff] %vm7106, %v8441
    %8506 = vst.msk [vmem:[#allocation3 + $0x190] sm:$0xff] %vm7106, %v8442
    %8507 = vst.msk [vmem:[#allocation3 + $0x1a0] sm:$0xff] %vm7106, %v8443
    %8508 = vst.msk [vmem:[#allocation3 + $0x1b0] sm:$0xff] %vm7106, %v8444
    %8509 = vst.msk [vmem:[#allocation3 + $0x1c0] sm:$0xff] %vm7106, %v8445
    %8510 = vst.msk [vmem:[#allocation3 + $0x1d0] sm:$0xff] %vm7106, %v8446
    %8511 = vst.msk [vmem:[#allocation3 + $0x1e0] sm:$0xff] %vm7106, %v8447
    %8512 = vst.msk [vmem:[#allocation3 + $0x1f0] sm:$0xff] %vm7106, %v8448
    %8513 = vst.msk [vmem:[#allocation3 + $0x200] sm:$0xff] %vm7106, %v8449
    %8514 = vst.msk [vmem:[#allocation3 + $0x210] sm:$0xff] %vm7106, %v8450
    %8515 = vst.msk [vmem:[#allocation3 + $0x220] sm:$0xff] %vm7106, %v8451
    %8516 = vst.msk [vmem:[#allocation3 + $0x230] sm:$0xff] %vm7106, %v8452
    %8517 = vst.msk [vmem:[#allocation3 + $0x240] sm:$0xff] %vm7106, %v8453
    %8518 = vst.msk [vmem:[#allocation3 + $0x250] sm:$0xff] %vm7106, %v8454
    %8519 = vst.msk [vmem:[#allocation3 + $0x260] sm:$0xff] %vm7106, %v8455
    %8520 = vst.msk [vmem:[#allocation3 + $0x270] sm:$0xff] %vm7106, %v8456
    %8521 = vst.msk [vmem:[#allocation3 + $0x280] sm:$0xff] %vm7106, %v8457
    %8522 = vst.msk [vmem:[#allocation3 + $0x290] sm:$0xff] %vm7106, %v8458
    %8523 = vst.msk [vmem:[#allocation3 + $0x2a0] sm:$0xff] %vm7106, %v8459
    %8524 = vst.msk [vmem:[#allocation3 + $0x2b0] sm:$0xff] %vm7106, %v8460
    %8525 = vst.msk [vmem:[#allocation3 + $0x2c0] sm:$0xff] %vm7106, %v8461
    %8526 = vst.msk [vmem:[#allocation3 + $0x2d0] sm:$0xff] %vm7106, %v8462
    %8527 = vst.msk [vmem:[#allocation3 + $0x2e0] sm:$0xff] %vm7106, %v8463
    %8528 = vst.msk [vmem:[#allocation3 + $0x2f0] sm:$0xff] %vm7106, %v8464
    %8529 = vst.msk [vmem:[#allocation3 + $0x300] sm:$0xff] %vm7106, %v8465
    %8530 = vst.msk [vmem:[#allocation3 + $0x310] sm:$0xff] %vm7106, %v8466
    %8531 = vst.msk [vmem:[#allocation3 + $0x320] sm:$0xff] %vm7106, %v8467
    %8532 = vst.msk [vmem:[#allocation3 + $0x330] sm:$0xff] %vm7106, %v8468
    %8533 = vst.msk [vmem:[#allocation3 + $0x340] sm:$0xff] %vm7106, %v8469
    %8534 = vst.msk [vmem:[#allocation3 + $0x350] sm:$0xff] %vm7106, %v8470
    %8535 = vst.msk [vmem:[#allocation3 + $0x360] sm:$0xff] %vm7106, %v8471
    %8536 = vst.msk [vmem:[#allocation3 + $0x370] sm:$0xff] %vm7106, %v8472
    %8537 = vst.msk [vmem:[#allocation3 + $0x380] sm:$0xff] %vm7106, %v8473
    %8538 = vst.msk [vmem:[#allocation3 + $0x390] sm:$0xff] %vm7106, %v8474
    %8539 = vst.msk [vmem:[#allocation3 + $0x3a0] sm:$0xff] %vm7106, %v8475
    %8540 = vst.msk [vmem:[#allocation3 + $0x3b0] sm:$0xff] %vm7106, %v8476
    %8541 = vst.msk [vmem:[#allocation3 + $0x3c0] sm:$0xff] %vm7106, %v8477
    %8542 = vst.msk [vmem:[#allocation3 + $0x3d0] sm:$0xff] %vm7106, %v8478
    %8543 = vst.msk [vmem:[#allocation3 + $0x3e0] sm:$0xff] %vm7106, %v8479
    %8544 = vst.msk [vmem:[#allocation3 + $0x3f0] sm:$0xff] %vm7106, %v8480
    %v8545 = vld [vmem:[#allocation2 + $0x8] sm:$0xff]
    %v8546 = vld [vmem:[#allocation2 + $0x10] sm:$0xff]
    %v8547 = vld [vmem:[#allocation2 + $0x28] sm:$0xff]
    %v8548 = vld [vmem:[#allocation2 + $0x30] sm:$0xff]
    %v8549 = vld [vmem:[#allocation2 + $0x48] sm:$0xff]
    %v8550 = vld [vmem:[#allocation2 + $0x50] sm:$0xff]
    %v8551 = vld [vmem:[#allocation2 + $0x68] sm:$0xff]
    %v8552 = vld [vmem:[#allocation2 + $0x70] sm:$0xff]
    %v8553 = vld [vmem:[#allocation2 + $0x88] sm:$0xff]
    %v8554 = vld [vmem:[#allocation2 + $0x90] sm:$0xff]
    %v8555 = vld [vmem:[#allocation2 + $0xa8] sm:$0xff]
    %v8556 = vld [vmem:[#allocation2 + $0xb0] sm:$0xff]
    %v8557 = vld [vmem:[#allocation2 + $0xc8] sm:$0xff]
    %v8558 = vld [vmem:[#allocation2 + $0xd0] sm:$0xff]
    %v8559 = vld [vmem:[#allocation2 + $0xe8] sm:$0xff]
    %v8560 = vld [vmem:[#allocation2 + $0xf0] sm:$0xff]
    %v8561 = vld [vmem:[#allocation2 + $0x108] sm:$0xff]
    %v8562 = vld [vmem:[#allocation2 + $0x110] sm:$0xff]
    %v8563 = vld [vmem:[#allocation2 + $0x128] sm:$0xff]
    %v8564 = vld [vmem:[#allocation2 + $0x130] sm:$0xff]
    %v8565 = vld [vmem:[#allocation2 + $0x148] sm:$0xff]
    %v8566 = vld [vmem:[#allocation2 + $0x150] sm:$0xff]
    %v8567 = vld [vmem:[#allocation2 + $0x168] sm:$0xff]
    %v8568 = vld [vmem:[#allocation2 + $0x170] sm:$0xff]
    %v8569 = vld [vmem:[#allocation2 + $0x188] sm:$0xff]
    %v8570 = vld [vmem:[#allocation2 + $0x190] sm:$0xff]
    %v8571 = vld [vmem:[#allocation2 + $0x1a8] sm:$0xff]
    %v8572 = vld [vmem:[#allocation2 + $0x1b0] sm:$0xff]
    %v8573 = vld [vmem:[#allocation2 + $0x1c8] sm:$0xff]
    %v8574 = vld [vmem:[#allocation2 + $0x1d0] sm:$0xff]
    %v8575 = vld [vmem:[#allocation2 + $0x1e8] sm:$0xff]
    %v8576 = vld [vmem:[#allocation2 + $0x1f0] sm:$0xff]
    %v8577 = vld [vmem:[#allocation2 + $0x248] sm:$0xff]
    %v8578 = vld [vmem:[#allocation2 + $0x250] sm:$0xff]
    %v8579 = vld [vmem:[#allocation2 + $0x268] sm:$0xff]
    %v8580 = vld [vmem:[#allocation2 + $0x270] sm:$0xff]
    %v8581 = vld [vmem:[#allocation2 + $0x288] sm:$0xff]
    %v8582 = vld [vmem:[#allocation2 + $0x290] sm:$0xff]
    %v8583 = vld [vmem:[#allocation2 + $0x2a8] sm:$0xff]
    %v8584 = vld [vmem:[#allocation2 + $0x2b0] sm:$0xff]
    %v8585 = vld [vmem:[#allocation2 + $0x2c8] sm:$0xff]
    %v8586 = vld [vmem:[#allocation2 + $0x2d0] sm:$0xff]
    %v8587 = vld [vmem:[#allocation2 + $0x2e8] sm:$0xff]
    %v8588 = vld [vmem:[#allocation2 + $0x2f0] sm:$0xff]
    %v8589 = vld [vmem:[#allocation2 + $0x308] sm:$0xff]
    %v8590 = vld [vmem:[#allocation2 + $0x310] sm:$0xff]
    %v8591 = vld [vmem:[#allocation2 + $0x328] sm:$0xff]
    %v8592 = vld [vmem:[#allocation2 + $0x330] sm:$0xff]
    %v8593 = vld [vmem:[#allocation2 + $0x348] sm:$0xff]
    %v8594 = vld [vmem:[#allocation2 + $0x350] sm:$0xff]
    %v8595 = vld [vmem:[#allocation2 + $0x368] sm:$0xff]
    %v8596 = vld [vmem:[#allocation2 + $0x370] sm:$0xff]
    %v8597 = vld [vmem:[#allocation2 + $0x388] sm:$0xff]
    %v8598 = vld [vmem:[#allocation2 + $0x390] sm:$0xff]
    %v8599 = vld [vmem:[#allocation2 + $0x3a8] sm:$0xff]
    %v8600 = vld [vmem:[#allocation2 + $0x3b0] sm:$0xff]
    %v8601 = vld [vmem:[#allocation2 + $0x3c8] sm:$0xff]
    %v8602 = vld [vmem:[#allocation2 + $0x3d0] sm:$0xff]
    %v8603 = vld [vmem:[#allocation2 + $0x3e8] sm:$0xff]
    %v8604 = vld [vmem:[#allocation2 + $0x3f0] sm:$0xff]
    %v8605 = vld [vmem:[#allocation2 + $0x408] sm:$0xff]
    %v8606 = vld [vmem:[#allocation2 + $0x410] sm:$0xff]
    %v8607 = vld [vmem:[#allocation2 + $0x428] sm:$0xff]
    %v8608 = vld [vmem:[#allocation2 + $0x430] sm:$0xff]
    %8673 = vrot.lane.b32.xlu0 %v8545, 16
    %v8674 = vpop.permute.xlu0 %8673
    %8675 = vrot.lane.b32.xlu0 %v8546, 16
    %v8676 = vpop.permute.xlu0 %8675
    %8677 = vrot.lane.b32.xlu0 %v8547, 16
    %v8678 = vpop.permute.xlu0 %8677
    %8679 = vrot.lane.b32.xlu0 %v8548, 16
    %v8680 = vpop.permute.xlu0 %8679
    %8681 = vrot.lane.b32.xlu0 %v8549, 16
    %v8682 = vpop.permute.xlu0 %8681
    %8683 = vrot.lane.b32.xlu0 %v8550, 16
    %v8684 = vpop.permute.xlu0 %8683
    %8685 = vrot.lane.b32.xlu0 %v8551, 16
    %v8686 = vpop.permute.xlu0 %8685
    %8687 = vrot.lane.b32.xlu0 %v8552, 16
    %v8688 = vpop.permute.xlu0 %8687
    %8689 = vrot.lane.b32.xlu0 %v8553, 16
    %v8690 = vpop.permute.xlu0 %8689
    %8691 = vrot.lane.b32.xlu0 %v8554, 16
    %v8692 = vpop.permute.xlu0 %8691
    %8693 = vrot.lane.b32.xlu0 %v8555, 16
    %v8694 = vpop.permute.xlu0 %8693
    %8695 = vrot.lane.b32.xlu0 %v8556, 16
    %v8696 = vpop.permute.xlu0 %8695
    %8697 = vrot.lane.b32.xlu0 %v8557, 16
    %v8698 = vpop.permute.xlu0 %8697
    %8699 = vrot.lane.b32.xlu0 %v8558, 16
    %v8700 = vpop.permute.xlu0 %8699
    %8701 = vrot.lane.b32.xlu0 %v8559, 16
    %v8702 = vpop.permute.xlu0 %8701
    %8703 = vrot.lane.b32.xlu0 %v8560, 16
    %v8704 = vpop.permute.xlu0 %8703
    %8705 = vrot.lane.b32.xlu0 %v8561, 16
    %v8706 = vpop.permute.xlu0 %8705
    %8707 = vrot.lane.b32.xlu0 %v8562, 16
    %v8708 = vpop.permute.xlu0 %8707
    %8709 = vrot.lane.b32.xlu0 %v8563, 16
    %v8710 = vpop.permute.xlu0 %8709
    %8711 = vrot.lane.b32.xlu0 %v8564, 16
    %v8712 = vpop.permute.xlu0 %8711
    %8713 = vrot.lane.b32.xlu0 %v8565, 16
    %v8714 = vpop.permute.xlu0 %8713
    %8715 = vrot.lane.b32.xlu0 %v8566, 16
    %v8716 = vpop.permute.xlu0 %8715
    %8717 = vrot.lane.b32.xlu0 %v8567, 16
    %v8718 = vpop.permute.xlu0 %8717
    %8719 = vrot.lane.b32.xlu0 %v8568, 16
    %v8720 = vpop.permute.xlu0 %8719
    %8721 = vrot.lane.b32.xlu0 %v8569, 16
    %v8722 = vpop.permute.xlu0 %8721
    %8723 = vrot.lane.b32.xlu0 %v8570, 16
    %v8724 = vpop.permute.xlu0 %8723
    %8725 = vrot.lane.b32.xlu0 %v8571, 16
    %v8726 = vpop.permute.xlu0 %8725
    %8727 = vrot.lane.b32.xlu0 %v8572, 16
    %v8728 = vpop.permute.xlu0 %8727
    %8729 = vrot.lane.b32.xlu0 %v8573, 16
    %v8730 = vpop.permute.xlu0 %8729
    %8731 = vrot.lane.b32.xlu0 %v8574, 16
    %v8732 = vpop.permute.xlu0 %8731
    %8733 = vrot.lane.b32.xlu0 %v8575, 16
    %v8734 = vpop.permute.xlu0 %8733
    %8735 = vrot.lane.b32.xlu0 %v8576, 16
    %v8736 = vpop.permute.xlu0 %8735
    %8737 = vrot.lane.b32.xlu0 %v8577, 16
    %v8738 = vpop.permute.xlu0 %8737
    %8739 = vrot.lane.b32.xlu0 %v8578, 16
    %v8740 = vpop.permute.xlu0 %8739
    %8741 = vrot.lane.b32.xlu0 %v8579, 16
    %v8742 = vpop.permute.xlu0 %8741
    %8743 = vrot.lane.b32.xlu0 %v8580, 16
    %v8744 = vpop.permute.xlu0 %8743
    %8745 = vrot.lane.b32.xlu0 %v8581, 16
    %v8746 = vpop.permute.xlu0 %8745
    %8747 = vrot.lane.b32.xlu0 %v8582, 16
    %v8748 = vpop.permute.xlu0 %8747
    %8749 = vrot.lane.b32.xlu0 %v8583, 16
    %v8750 = vpop.permute.xlu0 %8749
    %8751 = vrot.lane.b32.xlu0 %v8584, 16
    %v8752 = vpop.permute.xlu0 %8751
    %8753 = vrot.lane.b32.xlu0 %v8585, 16
    %v8754 = vpop.permute.xlu0 %8753
    %8755 = vrot.lane.b32.xlu0 %v8586, 16
    %v8756 = vpop.permute.xlu0 %8755
    %8757 = vrot.lane.b32.xlu0 %v8587, 16
    %v8758 = vpop.permute.xlu0 %8757
    %8759 = vrot.lane.b32.xlu0 %v8588, 16
    %v8760 = vpop.permute.xlu0 %8759
    %8761 = vrot.lane.b32.xlu0 %v8589, 16
    %v8762 = vpop.permute.xlu0 %8761
    %8763 = vrot.lane.b32.xlu0 %v8590, 16
    %v8764 = vpop.permute.xlu0 %8763
    %8765 = vrot.lane.b32.xlu0 %v8591, 16
    %v8766 = vpop.permute.xlu0 %8765
    %8767 = vrot.lane.b32.xlu0 %v8592, 16
    %v8768 = vpop.permute.xlu0 %8767
    %8769 = vrot.lane.b32.xlu0 %v8593, 16
    %v8770 = vpop.permute.xlu0 %8769
    %8771 = vrot.lane.b32.xlu0 %v8594, 16
    %v8772 = vpop.permute.xlu0 %8771
    %8773 = vrot.lane.b32.xlu0 %v8595, 16
    %v8774 = vpop.permute.xlu0 %8773
    %8775 = vrot.lane.b32.xlu0 %v8596, 16
    %v8776 = vpop.permute.xlu0 %8775
    %8777 = vrot.lane.b32.xlu0 %v8597, 16
    %v8778 = vpop.permute.xlu0 %8777
    %8779 = vrot.lane.b32.xlu0 %v8598, 16
    %v8780 = vpop.permute.xlu0 %8779
    %8781 = vrot.lane.b32.xlu0 %v8599, 16
    %v8782 = vpop.permute.xlu0 %8781
    %8783 = vrot.lane.b32.xlu0 %v8600, 16
    %v8784 = vpop.permute.xlu0 %8783
    %8785 = vrot.lane.b32.xlu0 %v8601, 16
    %v8786 = vpop.permute.xlu0 %8785
    %8787 = vrot.lane.b32.xlu0 %v8602, 16
    %v8788 = vpop.permute.xlu0 %8787
    %8789 = vrot.lane.b32.xlu0 %v8603, 16
    %v8790 = vpop.permute.xlu0 %8789
    %8791 = vrot.lane.b32.xlu0 %v8604, 16
    %v8792 = vpop.permute.xlu0 %8791
    %8793 = vrot.lane.b32.xlu0 %v8605, 16
    %v8794 = vpop.permute.xlu0 %8793
    %8795 = vrot.lane.b32.xlu0 %v8606, 16
    %v8796 = vpop.permute.xlu0 %8795
    %8797 = vrot.lane.b32.xlu0 %v8607, 16
    %v8798 = vpop.permute.xlu0 %8797
    %8799 = vrot.lane.b32.xlu0 %v8608, 16
    %v8800 = vpop.permute.xlu0 %8799
    %vm8865 = vcmask 261248
    %8866 = vst.msk [vmem:[#allocation3] sm:$0xff] %vm8865, %v8674
    %8867 = vst.msk [vmem:[#allocation3 + $0x10] sm:$0xff] %vm8865, %v8676
    %8868 = vst.msk [vmem:[#allocation3 + $0x20] sm:$0xff] %vm8865, %v8678
    %8869 = vst.msk [vmem:[#allocation3 + $0x30] sm:$0xff] %vm8865, %v8680
    %8870 = vst.msk [vmem:[#allocation3 + $0x40] sm:$0xff] %vm8865, %v8682
    %8871 = vst.msk [vmem:[#allocation3 + $0x50] sm:$0xff] %vm8865, %v8684
    %8872 = vst.msk [vmem:[#allocation3 + $0x60] sm:$0xff] %vm8865, %v8686
    %8873 = vst.msk [vmem:[#allocation3 + $0x70] sm:$0xff] %vm8865, %v8688
    %8874 = vst.msk [vmem:[#allocation3 + $0x80] sm:$0xff] %vm8865, %v8690
    %8875 = vst.msk [vmem:[#allocation3 + $0x90] sm:$0xff] %vm8865, %v8692
    %8876 = vst.msk [vmem:[#allocation3 + $0xa0] sm:$0xff] %vm8865, %v8694
    %8877 = vst.msk [vmem:[#allocation3 + $0xb0] sm:$0xff] %vm8865, %v8696
    %8878 = vst.msk [vmem:[#allocation3 + $0xc0] sm:$0xff] %vm8865, %v8698
    %8879 = vst.msk [vmem:[#allocation3 + $0xd0] sm:$0xff] %vm8865, %v8700
    %8880 = vst.msk [vmem:[#allocation3 + $0xe0] sm:$0xff] %vm8865, %v8702
    %8881 = vst.msk [vmem:[#allocation3 + $0xf0] sm:$0xff] %vm8865, %v8704
    %8882 = vst.msk [vmem:[#allocation3 + $0x100] sm:$0xff] %vm8865, %v8706
    %8883 = vst.msk [vmem:[#allocation3 + $0x110] sm:$0xff] %vm8865, %v8708
    %8884 = vst.msk [vmem:[#allocation3 + $0x120] sm:$0xff] %vm8865, %v8710
    %8885 = vst.msk [vmem:[#allocation3 + $0x130] sm:$0xff] %vm8865, %v8712
    %8886 = vst.msk [vmem:[#allocation3 + $0x140] sm:$0xff] %vm8865, %v8714
    %8887 = vst.msk [vmem:[#allocation3 + $0x150] sm:$0xff] %vm8865, %v8716
    %8888 = vst.msk [vmem:[#allocation3 + $0x160] sm:$0xff] %vm8865, %v8718
    %8889 = vst.msk [vmem:[#allocation3 + $0x170] sm:$0xff] %vm8865, %v8720
    %8890 = vst.msk [vmem:[#allocation3 + $0x180] sm:$0xff] %vm8865, %v8722
    %8891 = vst.msk [vmem:[#allocation3 + $0x190] sm:$0xff] %vm8865, %v8724
    %8892 = vst.msk [vmem:[#allocation3 + $0x1a0] sm:$0xff] %vm8865, %v8726
    %8893 = vst.msk [vmem:[#allocation3 + $0x1b0] sm:$0xff] %vm8865, %v8728
    %8894 = vst.msk [vmem:[#allocation3 + $0x1c0] sm:$0xff] %vm8865, %v8730
    %8895 = vst.msk [vmem:[#allocation3 + $0x1d0] sm:$0xff] %vm8865, %v8732
    %8896 = vst.msk [vmem:[#allocation3 + $0x1e0] sm:$0xff] %vm8865, %v8734
    %8897 = vst.msk [vmem:[#allocation3 + $0x1f0] sm:$0xff] %vm8865, %v8736
    %8898 = vst.msk [vmem:[#allocation3 + $0x200] sm:$0xff] %vm8865, %v8738
    %8899 = vst.msk [vmem:[#allocation3 + $0x210] sm:$0xff] %vm8865, %v8740
    %8900 = vst.msk [vmem:[#allocation3 + $0x220] sm:$0xff] %vm8865, %v8742
    %8901 = vst.msk [vmem:[#allocation3 + $0x230] sm:$0xff] %vm8865, %v8744
    %8902 = vst.msk [vmem:[#allocation3 + $0x240] sm:$0xff] %vm8865, %v8746
    %8903 = vst.msk [vmem:[#allocation3 + $0x250] sm:$0xff] %vm8865, %v8748
    %8904 = vst.msk [vmem:[#allocation3 + $0x260] sm:$0xff] %vm8865, %v8750
    %8905 = vst.msk [vmem:[#allocation3 + $0x270] sm:$0xff] %vm8865, %v8752
    %8906 = vst.msk [vmem:[#allocation3 + $0x280] sm:$0xff] %vm8865, %v8754
    %8907 = vst.msk [vmem:[#allocation3 + $0x290] sm:$0xff] %vm8865, %v8756
    %8908 = vst.msk [vmem:[#allocation3 + $0x2a0] sm:$0xff] %vm8865, %v8758
    %8909 = vst.msk [vmem:[#allocation3 + $0x2b0] sm:$0xff] %vm8865, %v8760
    %8910 = vst.msk [vmem:[#allocation3 + $0x2c0] sm:$0xff] %vm8865, %v8762
    %8911 = vst.msk [vmem:[#allocation3 + $0x2d0] sm:$0xff] %vm8865, %v8764
    %8912 = vst.msk [vmem:[#allocation3 + $0x2e0] sm:$0xff] %vm8865, %v8766
    %8913 = vst.msk [vmem:[#allocation3 + $0x2f0] sm:$0xff] %vm8865, %v8768
    %8914 = vst.msk [vmem:[#allocation3 + $0x300] sm:$0xff] %vm8865, %v8770
    %8915 = vst.msk [vmem:[#allocation3 + $0x310] sm:$0xff] %vm8865, %v8772
    %8916 = vst.msk [vmem:[#allocation3 + $0x320] sm:$0xff] %vm8865, %v8774
    %8917 = vst.msk [vmem:[#allocation3 + $0x330] sm:$0xff] %vm8865, %v8776
    %8918 = vst.msk [vmem:[#allocation3 + $0x340] sm:$0xff] %vm8865, %v8778
    %8919 = vst.msk [vmem:[#allocation3 + $0x350] sm:$0xff] %vm8865, %v8780
    %8920 = vst.msk [vmem:[#allocation3 + $0x360] sm:$0xff] %vm8865, %v8782
    %8921 = vst.msk [vmem:[#allocation3 + $0x370] sm:$0xff] %vm8865, %v8784
    %8922 = vst.msk [vmem:[#allocation3 + $0x380] sm:$0xff] %vm8865, %v8786
    %8923 = vst.msk [vmem:[#allocation3 + $0x390] sm:$0xff] %vm8865, %v8788
    %8924 = vst.msk [vmem:[#allocation3 + $0x3a0] sm:$0xff] %vm8865, %v8790
    %8925 = vst.msk [vmem:[#allocation3 + $0x3b0] sm:$0xff] %vm8865, %v8792
    %8926 = vst.msk [vmem:[#allocation3 + $0x3c0] sm:$0xff] %vm8865, %v8794
    %8927 = vst.msk [vmem:[#allocation3 + $0x3d0] sm:$0xff] %vm8865, %v8796
    %8928 = vst.msk [vmem:[#allocation3 + $0x3e0] sm:$0xff] %vm8865, %v8798
    %8929 = vst.msk [vmem:[#allocation3 + $0x3f0] sm:$0xff] %vm8865, %v8800
    %v8930 = vld [vmem:[#allocation2 + $0x9] sm:$0xff]
    %v8931 = vld [vmem:[#allocation2 + $0x11] sm:$0xff]
    %v8932 = vld [vmem:[#allocation2 + $0x29] sm:$0xff]
    %v8933 = vld [vmem:[#allocation2 + $0x31] sm:$0xff]
    %v8934 = vld [vmem:[#allocation2 + $0x49] sm:$0xff]
    %v8935 = vld [vmem:[#allocation2 + $0x51] sm:$0xff]
    %v8936 = vld [vmem:[#allocation2 + $0x69] sm:$0xff]
    %v8937 = vld [vmem:[#allocation2 + $0x71] sm:$0xff]
    %v8938 = vld [vmem:[#allocation2 + $0x89] sm:$0xff]
    %v8939 = vld [vmem:[#allocation2 + $0x91] sm:$0xff]
    %v8940 = vld [vmem:[#allocation2 + $0xa9] sm:$0xff]
    %v8941 = vld [vmem:[#allocation2 + $0xb1] sm:$0xff]
    %v8942 = vld [vmem:[#allocation2 + $0xc9] sm:$0xff]
    %v8943 = vld [vmem:[#allocation2 + $0xd1] sm:$0xff]
    %v8944 = vld [vmem:[#allocation2 + $0xe9] sm:$0xff]
    %v8945 = vld [vmem:[#allocation2 + $0xf1] sm:$0xff]
    %v8946 = vld [vmem:[#allocation2 + $0x109] sm:$0xff]
    %v8947 = vld [vmem:[#allocation2 + $0x111] sm:$0xff]
    %v8948 = vld [vmem:[#allocation2 + $0x129] sm:$0xff]
    %v8949 = vld [vmem:[#allocation2 + $0x131] sm:$0xff]
    %v8950 = vld [vmem:[#allocation2 + $0x149] sm:$0xff]
    %v8951 = vld [vmem:[#allocation2 + $0x151] sm:$0xff]
    %v8952 = vld [vmem:[#allocation2 + $0x169] sm:$0xff]
    %v8953 = vld [vmem:[#allocation2 + $0x171] sm:$0xff]
    %v8954 = vld [vmem:[#allocation2 + $0x189] sm:$0xff]
    %v8955 = vld [vmem:[#allocation2 + $0x191] sm:$0xff]
    %v8956 = vld [vmem:[#allocation2 + $0x1a9] sm:$0xff]
    %v8957 = vld [vmem:[#allocation2 + $0x1b1] sm:$0xff]
    %v8958 = vld [vmem:[#allocation2 + $0x1c9] sm:$0xff]
    %v8959 = vld [vmem:[#allocation2 + $0x1d1] sm:$0xff]
    %v8960 = vld [vmem:[#allocation2 + $0x1e9] sm:$0xff]
    %v8961 = vld [vmem:[#allocation2 + $0x1f1] sm:$0xff]
    %v8962 = vld [vmem:[#allocation2 + $0x249] sm:$0xff]
    %v8963 = vld [vmem:[#allocation2 + $0x251] sm:$0xff]
    %v8964 = vld [vmem:[#allocation2 + $0x269] sm:$0xff]
    %v8965 = vld [vmem:[#allocation2 + $0x271] sm:$0xff]
    %v8966 = vld [vmem:[#allocation2 + $0x289] sm:$0xff]
    %v8967 = vld [vmem:[#allocation2 + $0x291] sm:$0xff]
    %v8968 = vld [vmem:[#allocation2 + $0x2a9] sm:$0xff]
    %v8969 = vld [vmem:[#allocation2 + $0x2b1] sm:$0xff]
    %v8970 = vld [vmem:[#allocation2 + $0x2c9] sm:$0xff]
    %v8971 = vld [vmem:[#allocation2 + $0x2d1] sm:$0xff]
    %v8972 = vld [vmem:[#allocation2 + $0x2e9] sm:$0xff]
    %v8973 = vld [vmem:[#allocation2 + $0x2f1] sm:$0xff]
    %v8974 = vld [vmem:[#allocation2 + $0x309] sm:$0xff]
    %v8975 = vld [vmem:[#allocation2 + $0x311] sm:$0xff]
    %v8976 = vld [vmem:[#allocation2 + $0x329] sm:$0xff]
    %v8977 = vld [vmem:[#allocation2 + $0x331] sm:$0xff]
    %v8978 = vld [vmem:[#allocation2 + $0x349] sm:$0xff]
    %v8979 = vld [vmem:[#allocation2 + $0x351] sm:$0xff]
    %v8980 = vld [vmem:[#allocation2 + $0x369] sm:$0xff]
    %v8981 = vld [vmem:[#allocation2 + $0x371] sm:$0xff]
    %v8982 = vld [vmem:[#allocation2 + $0x389] sm:$0xff]
    %v8983 = vld [vmem:[#allocation2 + $0x391] sm:$0xff]
    %v8984 = vld [vmem:[#allocation2 + $0x3a9] sm:$0xff]
    %v8985 = vld [vmem:[#allocation2 + $0x3b1] sm:$0xff]
    %v8986 = vld [vmem:[#allocation2 + $0x3c9] sm:$0xff]
    %v8987 = vld [vmem:[#allocation2 + $0x3d1] sm:$0xff]
    %v8988 = vld [vmem:[#allocation2 + $0x3e9] sm:$0xff]
    %v8989 = vld [vmem:[#allocation2 + $0x3f1] sm:$0xff]
    %v8990 = vld [vmem:[#allocation2 + $0x409] sm:$0xff]
    %v8991 = vld [vmem:[#allocation2 + $0x411] sm:$0xff]
    %v8992 = vld [vmem:[#allocation2 + $0x429] sm:$0xff]
    %v8993 = vld [vmem:[#allocation2 + $0x431] sm:$0xff]
    %9058 = vrot.lane.b32.xlu0 %v8930, 32
    %v9059 = vpop.permute.xlu0 %9058
    %9060 = vrot.lane.b32.xlu0 %v8931, 32
    %v9061 = vpop.permute.xlu0 %9060
    %9062 = vrot.lane.b32.xlu0 %v8932, 32
    %v9063 = vpop.permute.xlu0 %9062
    %9064 = vrot.lane.b32.xlu0 %v8933, 32
    %v9065 = vpop.permute.xlu0 %9064
    %9066 = vrot.lane.b32.xlu0 %v8934, 32
    %v9067 = vpop.permute.xlu0 %9066
    %9068 = vrot.lane.b32.xlu0 %v8935, 32
    %v9069 = vpop.permute.xlu0 %9068
    %9070 = vrot.lane.b32.xlu0 %v8936, 32
    %v9071 = vpop.permute.xlu0 %9070
    %9072 = vrot.lane.b32.xlu0 %v8937, 32
    %v9073 = vpop.permute.xlu0 %9072
    %9074 = vrot.lane.b32.xlu0 %v8938, 32
    %v9075 = vpop.permute.xlu0 %9074
    %9076 = vrot.lane.b32.xlu0 %v8939, 32
    %v9077 = vpop.permute.xlu0 %9076
    %9078 = vrot.lane.b32.xlu0 %v8940, 32
    %v9079 = vpop.permute.xlu0 %9078
    %9080 = vrot.lane.b32.xlu0 %v8941, 32
    %v9081 = vpop.permute.xlu0 %9080
    %9082 = vrot.lane.b32.xlu0 %v8942, 32
    %v9083 = vpop.permute.xlu0 %9082
    %9084 = vrot.lane.b32.xlu0 %v8943, 32
    %v9085 = vpop.permute.xlu0 %9084
    %9086 = vrot.lane.b32.xlu0 %v8944, 32
    %v9087 = vpop.permute.xlu0 %9086
    %9088 = vrot.lane.b32.xlu0 %v8945, 32
    %v9089 = vpop.permute.xlu0 %9088
    %9090 = vrot.lane.b32.xlu0 %v8946, 32
    %v9091 = vpop.permute.xlu0 %9090
    %9092 = vrot.lane.b32.xlu0 %v8947, 32
    %v9093 = vpop.permute.xlu0 %9092
    %9094 = vrot.lane.b32.xlu0 %v8948, 32
    %v9095 = vpop.permute.xlu0 %9094
    %9096 = vrot.lane.b32.xlu0 %v8949, 32
    %v9097 = vpop.permute.xlu0 %9096
    %9098 = vrot.lane.b32.xlu0 %v8950, 32
    %v9099 = vpop.permute.xlu0 %9098
    %9100 = vrot.lane.b32.xlu0 %v8951, 32
    %v9101 = vpop.permute.xlu0 %9100
    %9102 = vrot.lane.b32.xlu0 %v8952, 32
    %v9103 = vpop.permute.xlu0 %9102
    %9104 = vrot.lane.b32.xlu0 %v8953, 32
    %v9105 = vpop.permute.xlu0 %9104
    %9106 = vrot.lane.b32.xlu0 %v8954, 32
    %v9107 = vpop.permute.xlu0 %9106
    %9108 = vrot.lane.b32.xlu0 %v8955, 32
    %v9109 = vpop.permute.xlu0 %9108
    %9110 = vrot.lane.b32.xlu0 %v8956, 32
    %v9111 = vpop.permute.xlu0 %9110
    %9112 = vrot.lane.b32.xlu0 %v8957, 32
    %v9113 = vpop.permute.xlu0 %9112
    %9114 = vrot.lane.b32.xlu0 %v8958, 32
    %v9115 = vpop.permute.xlu0 %9114
    %9116 = vrot.lane.b32.xlu0 %v8959, 32
    %v9117 = vpop.permute.xlu0 %9116
    %9118 = vrot.lane.b32.xlu0 %v8960, 32
    %v9119 = vpop.permute.xlu0 %9118
    %9120 = vrot.lane.b32.xlu0 %v8961, 32
    %v9121 = vpop.permute.xlu0 %9120
    %9122 = vrot.lane.b32.xlu0 %v8962, 32
    %v9123 = vpop.permute.xlu0 %9122
    %9124 = vrot.lane.b32.xlu0 %v8963, 32
    %v9125 = vpop.permute.xlu0 %9124
    %9126 = vrot.lane.b32.xlu0 %v8964, 32
    %v9127 = vpop.permute.xlu0 %9126
    %9128 = vrot.lane.b32.xlu0 %v8965, 32
    %v9129 = vpop.permute.xlu0 %9128
    %9130 = vrot.lane.b32.xlu0 %v8966, 32
    %v9131 = vpop.permute.xlu0 %9130
    %9132 = vrot.lane.b32.xlu0 %v8967, 32
    %v9133 = vpop.permute.xlu0 %9132
    %9134 = vrot.lane.b32.xlu0 %v8968, 32
    %v9135 = vpop.permute.xlu0 %9134
    %9136 = vrot.lane.b32.xlu0 %v8969, 32
    %v9137 = vpop.permute.xlu0 %9136
    %9138 = vrot.lane.b32.xlu0 %v8970, 32
    %v9139 = vpop.permute.xlu0 %9138
    %9140 = vrot.lane.b32.xlu0 %v8971, 32
    %v9141 = vpop.permute.xlu0 %9140
    %9142 = vrot.lane.b32.xlu0 %v8972, 32
    %v9143 = vpop.permute.xlu0 %9142
    %9144 = vrot.lane.b32.xlu0 %v8973, 32
    %v9145 = vpop.permute.xlu0 %9144
    %9146 = vrot.lane.b32.xlu0 %v8974, 32
    %v9147 = vpop.permute.xlu0 %9146
    %9148 = vrot.lane.b32.xlu0 %v8975, 32
    %v9149 = vpop.permute.xlu0 %9148
    %9150 = vrot.lane.b32.xlu0 %v8976, 32
    %v9151 = vpop.permute.xlu0 %9150
    %9152 = vrot.lane.b32.xlu0 %v8977, 32
    %v9153 = vpop.permute.xlu0 %9152
    %9154 = vrot.lane.b32.xlu0 %v8978, 32
    %v9155 = vpop.permute.xlu0 %9154
    %9156 = vrot.lane.b32.xlu0 %v8979, 32
    %v9157 = vpop.permute.xlu0 %9156
    %9158 = vrot.lane.b32.xlu0 %v8980, 32
    %v9159 = vpop.permute.xlu0 %9158
    %9160 = vrot.lane.b32.xlu0 %v8981, 32
    %v9161 = vpop.permute.xlu0 %9160
    %9162 = vrot.lane.b32.xlu0 %v8982, 32
    %v9163 = vpop.permute.xlu0 %9162
    %9164 = vrot.lane.b32.xlu0 %v8983, 32
    %v9165 = vpop.permute.xlu0 %9164
    %9166 = vrot.lane.b32.xlu0 %v8984, 32
    %v9167 = vpop.permute.xlu0 %9166
    %9168 = vrot.lane.b32.xlu0 %v8985, 32
    %v9169 = vpop.permute.xlu0 %9168
    %9170 = vrot.lane.b32.xlu0 %v8986, 32
    %v9171 = vpop.permute.xlu0 %9170
    %9172 = vrot.lane.b32.xlu0 %v8987, 32
    %v9173 = vpop.permute.xlu0 %9172
    %9174 = vrot.lane.b32.xlu0 %v8988, 32
    %v9175 = vpop.permute.xlu0 %9174
    %9176 = vrot.lane.b32.xlu0 %v8989, 32
    %v9177 = vpop.permute.xlu0 %9176
    %9178 = vrot.lane.b32.xlu0 %v8990, 32
    %v9179 = vpop.permute.xlu0 %9178
    %9180 = vrot.lane.b32.xlu0 %v8991, 32
    %v9181 = vpop.permute.xlu0 %9180
    %9182 = vrot.lane.b32.xlu0 %v8992, 32
    %v9183 = vpop.permute.xlu0 %9182
    %9184 = vrot.lane.b32.xlu0 %v8993, 32
    %v9185 = vpop.permute.xlu0 %9184
    %vm9250 = vcmask 392448
    %9251 = vst.msk [vmem:[#allocation3] sm:$0xff] %vm9250, %v9059
    %9252 = vst.msk [vmem:[#allocation3 + $0x10] sm:$0xff] %vm9250, %v9061
    %9253 = vst.msk [vmem:[#allocation3 + $0x20] sm:$0xff] %vm9250, %v9063
    %9254 = vst.msk [vmem:[#allocation3 + $0x30] sm:$0xff] %vm9250, %v9065
    %9255 = vst.msk [vmem:[#allocation3 + $0x40] sm:$0xff] %vm9250, %v9067
    %9256 = vst.msk [vmem:[#allocation3 + $0x50] sm:$0xff] %vm9250, %v9069
    %9257 = vst.msk [vmem:[#allocation3 + $0x60] sm:$0xff] %vm9250, %v9071
    %9258 = vst.msk [vmem:[#allocation3 + $0x70] sm:$0xff] %vm9250, %v9073
    %9259 = vst.msk [vmem:[#allocation3 + $0x80] sm:$0xff] %vm9250, %v9075
    %9260 = vst.msk [vmem:[#allocation3 + $0x90] sm:$0xff] %vm9250, %v9077
    %9261 = vst.msk [vmem:[#allocation3 + $0xa0] sm:$0xff] %vm9250, %v9079
    %9262 = vst.msk [vmem:[#allocation3 + $0xb0] sm:$0xff] %vm9250, %v9081
    %9263 = vst.msk [vmem:[#allocation3 + $0xc0] sm:$0xff] %vm9250, %v9083
    %9264 = vst.msk [vmem:[#allocation3 + $0xd0] sm:$0xff] %vm9250, %v9085
    %9265 = vst.msk [vmem:[#allocation3 + $0xe0] sm:$0xff] %vm9250, %v9087
    %9266 = vst.msk [vmem:[#allocation3 + $0xf0] sm:$0xff] %vm9250, %v9089
    %9267 = vst.msk [vmem:[#allocation3 + $0x100] sm:$0xff] %vm9250, %v9091
    %9268 = vst.msk [vmem:[#allocation3 + $0x110] sm:$0xff] %vm9250, %v9093
    %9269 = vst.msk [vmem:[#allocation3 + $0x120] sm:$0xff] %vm9250, %v9095
    %9270 = vst.msk [vmem:[#allocation3 + $0x130] sm:$0xff] %vm9250, %v9097
    %9271 = vst.msk [vmem:[#allocation3 + $0x140] sm:$0xff] %vm9250, %v9099
    %9272 = vst.msk [vmem:[#allocation3 + $0x150] sm:$0xff] %vm9250, %v9101
    %9273 = vst.msk [vmem:[#allocation3 + $0x160] sm:$0xff] %vm9250, %v9103
    %9274 = vst.msk [vmem:[#allocation3 + $0x170] sm:$0xff] %vm9250, %v9105
    %9275 = vst.msk [vmem:[#allocation3 + $0x180] sm:$0xff] %vm9250, %v9107
    %9276 = vst.msk [vmem:[#allocation3 + $0x190] sm:$0xff] %vm9250, %v9109
    %9277 = vst.msk [vmem:[#allocation3 + $0x1a0] sm:$0xff] %vm9250, %v9111
    %9278 = vst.msk [vmem:[#allocation3 + $0x1b0] sm:$0xff] %vm9250, %v9113
    %9279 = vst.msk [vmem:[#allocation3 + $0x1c0] sm:$0xff] %vm9250, %v9115
    %9280 = vst.msk [vmem:[#allocation3 + $0x1d0] sm:$0xff] %vm9250, %v9117
    %9281 = vst.msk [vmem:[#allocation3 + $0x1e0] sm:$0xff] %vm9250, %v9119
    %9282 = vst.msk [vmem:[#allocation3 + $0x1f0] sm:$0xff] %vm9250, %v9121
    %9283 = vst.msk [vmem:[#allocation3 + $0x200] sm:$0xff] %vm9250, %v9123
    %9284 = vst.msk [vmem:[#allocation3 + $0x210] sm:$0xff] %vm9250, %v9125
    %9285 = vst.msk [vmem:[#allocation3 + $0x220] sm:$0xff] %vm9250, %v9127
    %9286 = vst.msk [vmem:[#allocation3 + $0x230] sm:$0xff] %vm9250, %v9129
    %9287 = vst.msk [vmem:[#allocation3 + $0x240] sm:$0xff] %vm9250, %v9131
    %9288 = vst.msk [vmem:[#allocation3 + $0x250] sm:$0xff] %vm9250, %v9133
    %9289 = vst.msk [vmem:[#allocation3 + $0x260] sm:$0xff] %vm9250, %v9135
    %9290 = vst.msk [vmem:[#allocation3 + $0x270] sm:$0xff] %vm9250, %v9137
    %9291 = vst.msk [vmem:[#allocation3 + $0x280] sm:$0xff] %vm9250, %v9139
    %9292 = vst.msk [vmem:[#allocation3 + $0x290] sm:$0xff] %vm9250, %v9141
    %9293 = vst.msk [vmem:[#allocation3 + $0x2a0] sm:$0xff] %vm9250, %v9143
    %9294 = vst.msk [vmem:[#allocation3 + $0x2b0] sm:$0xff] %vm9250, %v9145
    %9295 = vst.msk [vmem:[#allocation3 + $0x2c0] sm:$0xff] %vm9250, %v9147
    %9296 = vst.msk [vmem:[#allocation3 + $0x2d0] sm:$0xff] %vm9250, %v9149
    %9297 = vst.msk [vmem:[#allocation3 + $0x2e0] sm:$0xff] %vm9250, %v9151
    %9298 = vst.msk [vmem:[#allocation3 + $0x2f0] sm:$0xff] %vm9250, %v9153
    %9299 = vst.msk [vmem:[#allocation3 + $0x300] sm:$0xff] %vm9250, %v9155
    %9300 = vst.msk [vmem:[#allocation3 + $0x310] sm:$0xff] %vm9250, %v9157
    %9301 = vst.msk [vmem:[#allocation3 + $0x320] sm:$0xff] %vm9250, %v9159
    %9302 = vst.msk [vmem:[#allocation3 + $0x330] sm:$0xff] %vm9250, %v9161
    %9303 = vst.msk [vmem:[#allocation3 + $0x340] sm:$0xff] %vm9250, %v9163
    %9304 = vst.msk [vmem:[#allocation3 + $0x350] sm:$0xff] %vm9250, %v9165
    %9305 = vst.msk [vmem:[#allocation3 + $0x360] sm:$0xff] %vm9250, %v9167
    %9306 = vst.msk [vmem:[#allocation3 + $0x370] sm:$0xff] %vm9250, %v9169
    %9307 = vst.msk [vmem:[#allocation3 + $0x380] sm:$0xff] %vm9250, %v9171
    %9308 = vst.msk [vmem:[#allocation3 + $0x390] sm:$0xff] %vm9250, %v9173
    %9309 = vst.msk [vmem:[#allocation3 + $0x3a0] sm:$0xff] %vm9250, %v9175
    %9310 = vst.msk [vmem:[#allocation3 + $0x3b0] sm:$0xff] %vm9250, %v9177
    %9311 = vst.msk [vmem:[#allocation3 + $0x3c0] sm:$0xff] %vm9250, %v9179
    %9312 = vst.msk [vmem:[#allocation3 + $0x3d0] sm:$0xff] %vm9250, %v9181
    %9313 = vst.msk [vmem:[#allocation3 + $0x3e0] sm:$0xff] %vm9250, %v9183
    %9314 = vst.msk [vmem:[#allocation3 + $0x3f0] sm:$0xff] %vm9250, %v9185
    %v9315 = vld [vmem:[%s8287 + $0x7] sm:$0xff]
    %v9316 = vld [vmem:[%s8287 + $0xf] sm:$0xff]
    %v9317 = vld [vmem:[%s8287 + $0x27] sm:$0xff]
    %v9318 = vld [vmem:[%s8287 + $0x2f] sm:$0xff]
    %v9319 = vld [vmem:[%s8287 + $0x47] sm:$0xff]
    %v9320 = vld [vmem:[%s8287 + $0x4f] sm:$0xff]
    %v9321 = vld [vmem:[%s8287 + $0x67] sm:$0xff]
    %v9322 = vld [vmem:[%s8287 + $0x6f] sm:$0xff]
    %v9323 = vld [vmem:[%s8287 + $0x87] sm:$0xff]
    %v9324 = vld [vmem:[%s8287 + $0x8f] sm:$0xff]
    %v9325 = vld [vmem:[%s8287 + $0xa7] sm:$0xff]
    %v9326 = vld [vmem:[%s8287 + $0xaf] sm:$0xff]
    %v9327 = vld [vmem:[%s8287 + $0xc7] sm:$0xff]
    %v9328 = vld [vmem:[%s8287 + $0xcf] sm:$0xff]
    %v9329 = vld [vmem:[%s8287 + $0xe7] sm:$0xff]
    %v9330 = vld [vmem:[%s8287 + $0xef] sm:$0xff]
    %v9331 = vld [vmem:[%s8287 + $0x107] sm:$0xff]
    %v9332 = vld [vmem:[%s8287 + $0x10f] sm:$0xff]
    %v9333 = vld [vmem:[%s8287 + $0x127] sm:$0xff]
    %v9334 = vld [vmem:[%s8287 + $0x12f] sm:$0xff]
    %v9335 = vld [vmem:[%s8287 + $0x147] sm:$0xff]
    %v9336 = vld [vmem:[%s8287 + $0x14f] sm:$0xff]
    %v9337 = vld [vmem:[%s8287 + $0x167] sm:$0xff]
    %v9338 = vld [vmem:[%s8287 + $0x16f] sm:$0xff]
    %v9339 = vld [vmem:[%s8287 + $0x187] sm:$0xff]
    %v9340 = vld [vmem:[%s8287 + $0x18f] sm:$0xff]
    %v9341 = vld [vmem:[%s8287 + $0x1a7] sm:$0xff]
    %v9342 = vld [vmem:[%s8287 + $0x1af] sm:$0xff]
    %v9343 = vld [vmem:[%s8287 + $0x1c7] sm:$0xff]
    %v9344 = vld [vmem:[%s8287 + $0x1cf] sm:$0xff]
    %v9345 = vld [vmem:[%s8287 + $0x1e7] sm:$0xff]
    %v9346 = vld [vmem:[%s8287 + $0x1ef] sm:$0xff]
    %v9347 = vld [vmem:[%s8287 + $0x247] sm:$0xff]
    %v9348 = vld [vmem:[%s8287 + $0x24f] sm:$0xff]
    %v9349 = vld [vmem:[%s8287 + $0x267] sm:$0xff]
    %v9350 = vld [vmem:[%s8287 + $0x26f] sm:$0xff]
    %v9351 = vld [vmem:[%s8287 + $0x287] sm:$0xff]
    %v9352 = vld [vmem:[%s8287 + $0x28f] sm:$0xff]
    %v9353 = vld [vmem:[%s8287 + $0x2a7] sm:$0xff]
    %v9354 = vld [vmem:[%s8287 + $0x2af] sm:$0xff]
    %v9355 = vld [vmem:[%s8287 + $0x2c7] sm:$0xff]
    %v9356 = vld [vmem:[%s8287 + $0x2cf] sm:$0xff]
    %v9357 = vld [vmem:[%s8287 + $0x2e7] sm:$0xff]
    %v9358 = vld [vmem:[%s8287 + $0x2ef] sm:$0xff]
    %v9359 = vld [vmem:[%s8287 + $0x307] sm:$0xff]
    %v9360 = vld [vmem:[%s8287 + $0x30f] sm:$0xff]
    %v9361 = vld [vmem:[%s8287 + $0x327] sm:$0xff]
    %v9362 = vld [vmem:[%s8287 + $0x32f] sm:$0xff]
    %v9363 = vld [vmem:[%s8287 + $0x347] sm:$0xff]
    %v9364 = vld [vmem:[%s8287 + $0x34f] sm:$0xff]
    %v9365 = vld [vmem:[%s8287 + $0x367] sm:$0xff]
    %v9366 = vld [vmem:[%s8287 + $0x36f] sm:$0xff]
    %v9367 = vld [vmem:[%s8287 + $0x387] sm:$0xff]
    %v9368 = vld [vmem:[%s8287 + $0x38f] sm:$0xff]
    %v9369 = vld [vmem:[%s8287 + $0x3a7] sm:$0xff]
    %v9370 = vld [vmem:[%s8287 + $0x3af] sm:$0xff]
    %v9371 = vld [vmem:[%s8287 + $0x3c7] sm:$0xff]
    %v9372 = vld [vmem:[%s8287 + $0x3cf] sm:$0xff]
    %v9373 = vld [vmem:[%s8287 + $0x3e7] sm:$0xff]
    %v9374 = vld [vmem:[%s8287 + $0x3ef] sm:$0xff]
    %v9375 = vld [vmem:[%s8287 + $0x407] sm:$0xff]
    %v9376 = vld [vmem:[%s8287 + $0x40f] sm:$0xff]
    %v9377 = vld [vmem:[%s8287 + $0x427] sm:$0xff]
    %v9378 = vld [vmem:[%s8287 + $0x42f] sm:$0xff]
    %9443 = vrot.lane.b32.xlu0 %v9315, 48
    %v9444 = vpop.permute.xlu0 %9443
    %9445 = vrot.lane.b32.xlu0 %v9316, 48
    %v9446 = vpop.permute.xlu0 %9445
    %9447 = vrot.lane.b32.xlu0 %v9317, 48
    %v9448 = vpop.permute.xlu0 %9447
    %9449 = vrot.lane.b32.xlu0 %v9318, 48
    %v9450 = vpop.permute.xlu0 %9449
    %9451 = vrot.lane.b32.xlu0 %v9319, 48
    %v9452 = vpop.permute.xlu0 %9451
    %9453 = vrot.lane.b32.xlu0 %v9320, 48
    %v9454 = vpop.permute.xlu0 %9453
    %9455 = vrot.lane.b32.xlu0 %v9321, 48
    %v9456 = vpop.permute.xlu0 %9455
    %9457 = vrot.lane.b32.xlu0 %v9322, 48
    %v9458 = vpop.permute.xlu0 %9457
    %9459 = vrot.lane.b32.xlu0 %v9323, 48
    %v9460 = vpop.permute.xlu0 %9459
    %9461 = vrot.lane.b32.xlu0 %v9324, 48
    %v9462 = vpop.permute.xlu0 %9461
    %9463 = vrot.lane.b32.xlu0 %v9325, 48
    %v9464 = vpop.permute.xlu0 %9463
    %9465 = vrot.lane.b32.xlu0 %v9326, 48
    %v9466 = vpop.permute.xlu0 %9465
    %9467 = vrot.lane.b32.xlu0 %v9327, 48
    %v9468 = vpop.permute.xlu0 %9467
    %9469 = vrot.lane.b32.xlu0 %v9328, 48
    %v9470 = vpop.permute.xlu0 %9469
    %9471 = vrot.lane.b32.xlu0 %v9329, 48
    %v9472 = vpop.permute.xlu0 %9471
    %9473 = vrot.lane.b32.xlu0 %v9330, 48
    %v9474 = vpop.permute.xlu0 %9473
    %9475 = vrot.lane.b32.xlu0 %v9331, 48
    %v9476 = vpop.permute.xlu0 %9475
    %9477 = vrot.lane.b32.xlu0 %v9332, 48
    %v9478 = vpop.permute.xlu0 %9477
    %9479 = vrot.lane.b32.xlu0 %v9333, 48
    %v9480 = vpop.permute.xlu0 %9479
    %9481 = vrot.lane.b32.xlu0 %v9334, 48
    %v9482 = vpop.permute.xlu0 %9481
    %9483 = vrot.lane.b32.xlu0 %v9335, 48
    %v9484 = vpop.permute.xlu0 %9483
    %9485 = vrot.lane.b32.xlu0 %v9336, 48
    %v9486 = vpop.permute.xlu0 %9485
    %9487 = vrot.lane.b32.xlu0 %v9337, 48
    %v9488 = vpop.permute.xlu0 %9487
    %9489 = vrot.lane.b32.xlu0 %v9338, 48
    %v9490 = vpop.permute.xlu0 %9489
    %9491 = vrot.lane.b32.xlu0 %v9339, 48
    %v9492 = vpop.permute.xlu0 %9491
    %9493 = vrot.lane.b32.xlu0 %v9340, 48
    %v9494 = vpop.permute.xlu0 %9493
    %9495 = vrot.lane.b32.xlu0 %v9341, 48
    %v9496 = vpop.permute.xlu0 %9495
    %9497 = vrot.lane.b32.xlu0 %v9342, 48
    %v9498 = vpop.permute.xlu0 %9497
    %9499 = vrot.lane.b32.xlu0 %v9343, 48
    %v9500 = vpop.permute.xlu0 %9499
    %9501 = vrot.lane.b32.xlu0 %v9344, 48
    %v9502 = vpop.permute.xlu0 %9501
    %9503 = vrot.lane.b32.xlu0 %v9345, 48
    %v9504 = vpop.permute.xlu0 %9503
    %9505 = vrot.lane.b32.xlu0 %v9346, 48
    %v9506 = vpop.permute.xlu0 %9505
    %9507 = vrot.lane.b32.xlu0 %v9347, 48
    %v9508 = vpop.permute.xlu0 %9507
    %9509 = vrot.lane.b32.xlu0 %v9348, 48
    %v9510 = vpop.permute.xlu0 %9509
    %9511 = vrot.lane.b32.xlu0 %v9349, 48
    %v9512 = vpop.permute.xlu0 %9511
    %9513 = vrot.lane.b32.xlu0 %v9350, 48
    %v9514 = vpop.permute.xlu0 %9513
    %9515 = vrot.lane.b32.xlu0 %v9351, 48
    %v9516 = vpop.permute.xlu0 %9515
    %9517 = vrot.lane.b32.xlu0 %v9352, 48
    %v9518 = vpop.permute.xlu0 %9517
    %9519 = vrot.lane.b32.xlu0 %v9353, 48
    %v9520 = vpop.permute.xlu0 %9519
    %9521 = vrot.lane.b32.xlu0 %v9354, 48
    %v9522 = vpop.permute.xlu0 %9521
    %9523 = vrot.lane.b32.xlu0 %v9355, 48
    %v9524 = vpop.permute.xlu0 %9523
    %9525 = vrot.lane.b32.xlu0 %v9356, 48
    %v9526 = vpop.permute.xlu0 %9525
    %9527 = vrot.lane.b32.xlu0 %v9357, 48
    %v9528 = vpop.permute.xlu0 %9527
    %9529 = vrot.lane.b32.xlu0 %v9358, 48
    %v9530 = vpop.permute.xlu0 %9529
    %9531 = vrot.lane.b32.xlu0 %v9359, 48
    %v9532 = vpop.permute.xlu0 %9531
    %9533 = vrot.lane.b32.xlu0 %v9360, 48
    %v9534 = vpop.permute.xlu0 %9533
    %9535 = vrot.lane.b32.xlu0 %v9361, 48
    %v9536 = vpop.permute.xlu0 %9535
    %9537 = vrot.lane.b32.xlu0 %v9362, 48
    %v9538 = vpop.permute.xlu0 %9537
    %9539 = vrot.lane.b32.xlu0 %v9363, 48
    %v9540 = vpop.permute.xlu0 %9539
    %9541 = vrot.lane.b32.xlu0 %v9364, 48
    %v9542 = vpop.permute.xlu0 %9541
    %9543 = vrot.lane.b32.xlu0 %v9365, 48
    %v9544 = vpop.permute.xlu0 %9543
    %9545 = vrot.lane.b32.xlu0 %v9366, 48
    %v9546 = vpop.permute.xlu0 %9545
    %9547 = vrot.lane.b32.xlu0 %v9367, 48
    %v9548 = vpop.permute.xlu0 %9547
    %9549 = vrot.lane.b32.xlu0 %v9368, 48
    %v9550 = vpop.permute.xlu0 %9549
    %9551 = vrot.lane.b32.xlu0 %v9369, 48
    %v9552 = vpop.permute.xlu0 %9551
    %9553 = vrot.lane.b32.xlu0 %v9370, 48
    %v9554 = vpop.permute.xlu0 %9553
    %9555 = vrot.lane.b32.xlu0 %v9371, 48
    %v9556 = vpop.permute.xlu0 %9555
    %9557 = vrot.lane.b32.xlu0 %v9372, 48
    %v9558 = vpop.permute.xlu0 %9557
    %9559 = vrot.lane.b32.xlu0 %v9373, 48
    %v9560 = vpop.permute.xlu0 %9559
    %9561 = vrot.lane.b32.xlu0 %v9374, 48
    %v9562 = vpop.permute.xlu0 %9561
    %9563 = vrot.lane.b32.xlu0 %v9375, 48
    %v9564 = vpop.permute.xlu0 %9563
    %9565 = vrot.lane.b32.xlu0 %v9376, 48
    %v9566 = vpop.permute.xlu0 %9565
    %9567 = vrot.lane.b32.xlu0 %v9377, 48
    %v9568 = vpop.permute.xlu0 %9567
    %9569 = vrot.lane.b32.xlu0 %v9378, 48
    %v9570 = vpop.permute.xlu0 %9569
    %vm9635 = vcmask 523648
    %9636 = vst.msk [vmem:[#allocation3] sm:$0xff] %vm9635, %v9444
    %9637 = vst.msk [vmem:[#allocation3 + $0x10] sm:$0xff] %vm9635, %v9446
    %9638 = vst.msk [vmem:[#allocation3 + $0x20] sm:$0xff] %vm9635, %v9448
    %9639 = vst.msk [vmem:[#allocation3 + $0x30] sm:$0xff] %vm9635, %v9450
    %9640 = vst.msk [vmem:[#allocation3 + $0x40] sm:$0xff] %vm9635, %v9452
    %9641 = vst.msk [vmem:[#allocation3 + $0x50] sm:$0xff] %vm9635, %v9454
    %9642 = vst.msk [vmem:[#allocation3 + $0x60] sm:$0xff] %vm9635, %v9456
    %9643 = vst.msk [vmem:[#allocation3 + $0x70] sm:$0xff] %vm9635, %v9458
    %9644 = vst.msk [vmem:[#allocation3 + $0x80] sm:$0xff] %vm9635, %v9460
    %9645 = vst.msk [vmem:[#allocation3 + $0x90] sm:$0xff] %vm9635, %v9462
    %9646 = vst.msk [vmem:[#allocation3 + $0xa0] sm:$0xff] %vm9635, %v9464
    %9647 = vst.msk [vmem:[#allocation3 + $0xb0] sm:$0xff] %vm9635, %v9466
    %9648 = vst.msk [vmem:[#allocation3 + $0xc0] sm:$0xff] %vm9635, %v9468
    %9649 = vst.msk [vmem:[#allocation3 + $0xd0] sm:$0xff] %vm9635, %v9470
    %9650 = vst.msk [vmem:[#allocation3 + $0xe0] sm:$0xff] %vm9635, %v9472
    %9651 = vst.msk [vmem:[#allocation3 + $0xf0] sm:$0xff] %vm9635, %v9474
    %9652 = vst.msk [vmem:[#allocation3 + $0x100] sm:$0xff] %vm9635, %v9476
    %9653 = vst.msk [vmem:[#allocation3 + $0x110] sm:$0xff] %vm9635, %v9478
    %9654 = vst.msk [vmem:[#allocation3 + $0x120] sm:$0xff] %vm9635, %v9480
    %9655 = vst.msk [vmem:[#allocation3 + $0x130] sm:$0xff] %vm9635, %v9482
    %9656 = vst.msk [vmem:[#allocation3 + $0x140] sm:$0xff] %vm9635, %v9484
    %9657 = vst.msk [vmem:[#allocation3 + $0x150] sm:$0xff] %vm9635, %v9486
    %9658 = vst.msk [vmem:[#allocation3 + $0x160] sm:$0xff] %vm9635, %v9488
    %9659 = vst.msk [vmem:[#allocation3 + $0x170] sm:$0xff] %vm9635, %v9490
    %9660 = vst.msk [vmem:[#allocation3 + $0x180] sm:$0xff] %vm9635, %v9492
    %9661 = vst.msk [vmem:[#allocation3 + $0x190] sm:$0xff] %vm9635, %v9494
    %9662 = vst.msk [vmem:[#allocation3 + $0x1a0] sm:$0xff] %vm9635, %v9496
    %9663 = vst.msk [vmem:[#allocation3 + $0x1b0] sm:$0xff] %vm9635, %v9498
    %9664 = vst.msk [vmem:[#allocation3 + $0x1c0] sm:$0xff] %vm9635, %v9500
    %9665 = vst.msk [vmem:[#allocation3 + $0x1d0] sm:$0xff] %vm9635, %v9502
    %9666 = vst.msk [vmem:[#allocation3 + $0x1e0] sm:$0xff] %vm9635, %v9504
    %9667 = vst.msk [vmem:[#allocation3 + $0x1f0] sm:$0xff] %vm9635, %v9506
    %9668 = vst.msk [vmem:[#allocation3 + $0x200] sm:$0xff] %vm9635, %v9508
    %9669 = vst.msk [vmem:[#allocation3 + $0x210] sm:$0xff] %vm9635, %v9510
    %9670 = vst.msk [vmem:[#allocation3 + $0x220] sm:$0xff] %vm9635, %v9512
    %9671 = vst.msk [vmem:[#allocation3 + $0x230] sm:$0xff] %vm9635, %v9514
    %9672 = vst.msk [vmem:[#allocation3 + $0x240] sm:$0xff] %vm9635, %v9516
    %9673 = vst.msk [vmem:[#allocation3 + $0x250] sm:$0xff] %vm9635, %v9518
    %9674 = vst.msk [vmem:[#allocation3 + $0x260] sm:$0xff] %vm9635, %v9520
    %9675 = vst.msk [vmem:[#allocation3 + $0x270] sm:$0xff] %vm9635, %v9522
    %9676 = vst.msk [vmem:[#allocation3 + $0x280] sm:$0xff] %vm9635, %v9524
    %9677 = vst.msk [vmem:[#allocation3 + $0x290] sm:$0xff] %vm9635, %v9526
    %9678 = vst.msk [vmem:[#allocation3 + $0x2a0] sm:$0xff] %vm9635, %v9528
    %9679 = vst.msk [vmem:[#allocation3 + $0x2b0] sm:$0xff] %vm9635, %v9530
    %9680 = vst.msk [vmem:[#allocation3 + $0x2c0] sm:$0xff] %vm9635, %v9532
    %9681 = vst.msk [vmem:[#allocation3 + $0x2d0] sm:$0xff] %vm9635, %v9534
    %9682 = vst.msk [vmem:[#allocation3 + $0x2e0] sm:$0xff] %vm9635, %v9536
    %9683 = vst.msk [vmem:[#allocation3 + $0x2f0] sm:$0xff] %vm9635, %v9538
    %9684 = vst.msk [vmem:[#allocation3 + $0x300] sm:$0xff] %vm9635, %v9540
    %9685 = vst.msk [vmem:[#allocation3 + $0x310] sm:$0xff] %vm9635, %v9542
    %9686 = vst.msk [vmem:[#allocation3 + $0x320] sm:$0xff] %vm9635, %v9544
    %9687 = vst.msk [vmem:[#allocation3 + $0x330] sm:$0xff] %vm9635, %v9546
    %9688 = vst.msk [vmem:[#allocation3 + $0x340] sm:$0xff] %vm9635, %v9548
    %9689 = vst.msk [vmem:[#allocation3 + $0x350] sm:$0xff] %vm9635, %v9550
    %9690 = vst.msk [vmem:[#allocation3 + $0x360] sm:$0xff] %vm9635, %v9552
    %9691 = vst.msk [vmem:[#allocation3 + $0x370] sm:$0xff] %vm9635, %v9554
    %9692 = vst.msk [vmem:[#allocation3 + $0x380] sm:$0xff] %vm9635, %v9556
    %9693 = vst.msk [vmem:[#allocation3 + $0x390] sm:$0xff] %vm9635, %v9558
    %9694 = vst.msk [vmem:[#allocation3 + $0x3a0] sm:$0xff] %vm9635, %v9560
    %9695 = vst.msk [vmem:[#allocation3 + $0x3b0] sm:$0xff] %vm9635, %v9562
    %9696 = vst.msk [vmem:[#allocation3 + $0x3c0] sm:$0xff] %vm9635, %v9564
    %9697 = vst.msk [vmem:[#allocation3 + $0x3d0] sm:$0xff] %vm9635, %v9566
    %9698 = vst.msk [vmem:[#allocation3 + $0x3e0] sm:$0xff] %vm9635, %v9568
    %9699 = vst.msk [vmem:[#allocation3 + $0x3f0] sm:$0xff] %vm9635, %v9570
    %v9700 = vld [vmem:[%s8287 + $0x8] sm:$0xff]
    %v9701 = vld [vmem:[%s8287 + $0x10] sm:$0xff]
    %v9702 = vld [vmem:[%s8287 + $0x28] sm:$0xff]
    %v9703 = vld [vmem:[%s8287 + $0x30] sm:$0xff]
    %v9704 = vld [vmem:[%s8287 + $0x48] sm:$0xff]
    %v9705 = vld [vmem:[%s8287 + $0x50] sm:$0xff]
    %v9706 = vld [vmem:[%s8287 + $0x68] sm:$0xff]
    %v9707 = vld [vmem:[%s8287 + $0x70] sm:$0xff]
    %v9708 = vld [vmem:[%s8287 + $0x88] sm:$0xff]
    %v9709 = vld [vmem:[%s8287 + $0x90] sm:$0xff]
    %v9710 = vld [vmem:[%s8287 + $0xa8] sm:$0xff]
    %v9711 = vld [vmem:[%s8287 + $0xb0] sm:$0xff]
    %v9712 = vld [vmem:[%s8287 + $0xc8] sm:$0xff]
    %v9713 = vld [vmem:[%s8287 + $0xd0] sm:$0xff]
    %v9714 = vld [vmem:[%s8287 + $0xe8] sm:$0xff]
    %v9715 = vld [vmem:[%s8287 + $0xf0] sm:$0xff]
    %v9716 = vld [vmem:[%s8287 + $0x108] sm:$0xff]
    %v9717 = vld [vmem:[%s8287 + $0x110] sm:$0xff]
    %v9718 = vld [vmem:[%s8287 + $0x128] sm:$0xff]
    %v9719 = vld [vmem:[%s8287 + $0x130] sm:$0xff]
    %v9720 = vld [vmem:[%s8287 + $0x148] sm:$0xff]
    %v9721 = vld [vmem:[%s8287 + $0x150] sm:$0xff]
    %v9722 = vld [vmem:[%s8287 + $0x168] sm:$0xff]
    %v9723 = vld [vmem:[%s8287 + $0x170] sm:$0xff]
    %v9724 = vld [vmem:[%s8287 + $0x188] sm:$0xff]
    %v9725 = vld [vmem:[%s8287 + $0x190] sm:$0xff]
    %v9726 = vld [vmem:[%s8287 + $0x1a8] sm:$0xff]
    %v9727 = vld [vmem:[%s8287 + $0x1b0] sm:$0xff]
    %v9728 = vld [vmem:[%s8287 + $0x1c8] sm:$0xff]
    %v9729 = vld [vmem:[%s8287 + $0x1d0] sm:$0xff]
    %v9730 = vld [vmem:[%s8287 + $0x1e8] sm:$0xff]
    %v9731 = vld [vmem:[%s8287 + $0x1f0] sm:$0xff]
    %v9732 = vld [vmem:[%s8287 + $0x248] sm:$0xff]
    %v9733 = vld [vmem:[%s8287 + $0x250] sm:$0xff]
    %v9734 = vld [vmem:[%s8287 + $0x268] sm:$0xff]
    %v9735 = vld [vmem:[%s8287 + $0x270] sm:$0xff]
    %v9736 = vld [vmem:[%s8287 + $0x288] sm:$0xff]
    %v9737 = vld [vmem:[%s8287 + $0x290] sm:$0xff]
    %v9738 = vld [vmem:[%s8287 + $0x2a8] sm:$0xff]
    %v9739 = vld [vmem:[%s8287 + $0x2b0] sm:$0xff]
    %v9740 = vld [vmem:[%s8287 + $0x2c8] sm:$0xff]
    %v9741 = vld [vmem:[%s8287 + $0x2d0] sm:$0xff]
    %v9742 = vld [vmem:[%s8287 + $0x2e8] sm:$0xff]
    %v9743 = vld [vmem:[%s8287 + $0x2f0] sm:$0xff]
    %v9744 = vld [vmem:[%s8287 + $0x308] sm:$0xff]
    %v9745 = vld [vmem:[%s8287 + $0x310] sm:$0xff]
    %v9746 = vld [vmem:[%s8287 + $0x328] sm:$0xff]
    %v9747 = vld [vmem:[%s8287 + $0x330] sm:$0xff]
    %v9748 = vld [vmem:[%s8287 + $0x348] sm:$0xff]
    %v9749 = vld [vmem:[%s8287 + $0x350] sm:$0xff]
    %v9750 = vld [vmem:[%s8287 + $0x368] sm:$0xff]
    %v9751 = vld [vmem:[%s8287 + $0x370] sm:$0xff]
    %v9752 = vld [vmem:[%s8287 + $0x388] sm:$0xff]
    %v9753 = vld [vmem:[%s8287 + $0x390] sm:$0xff]
    %v9754 = vld [vmem:[%s8287 + $0x3a8] sm:$0xff]
    %v9755 = vld [vmem:[%s8287 + $0x3b0] sm:$0xff]
    %v9756 = vld [vmem:[%s8287 + $0x3c8] sm:$0xff]
    %v9757 = vld [vmem:[%s8287 + $0x3d0] sm:$0xff]
    %v9758 = vld [vmem:[%s8287 + $0x3e8] sm:$0xff]
    %v9759 = vld [vmem:[%s8287 + $0x3f0] sm:$0xff]
    %v9760 = vld [vmem:[%s8287 + $0x408] sm:$0xff]
    %v9761 = vld [vmem:[%s8287 + $0x410] sm:$0xff]
    %v9762 = vld [vmem:[%s8287 + $0x428] sm:$0xff]
    %v9763 = vld [vmem:[%s8287 + $0x430] sm:$0xff]
    %9828 = vrot.lane.b32.xlu0 %v9700, 64
    %v9829 = vpop.permute.xlu0 %9828
    %9830 = vrot.lane.b32.xlu0 %v9701, 64
    %v9831 = vpop.permute.xlu0 %9830
    %9832 = vrot.lane.b32.xlu0 %v9702, 64
    %v9833 = vpop.permute.xlu0 %9832
    %9834 = vrot.lane.b32.xlu0 %v9703, 64
    %v9835 = vpop.permute.xlu0 %9834
    %9836 = vrot.lane.b32.xlu0 %v9704, 64
    %v9837 = vpop.permute.xlu0 %9836
    %9838 = vrot.lane.b32.xlu0 %v9705, 64
    %v9839 = vpop.permute.xlu0 %9838
    %9840 = vrot.lane.b32.xlu0 %v9706, 64
    %v9841 = vpop.permute.xlu0 %9840
    %9842 = vrot.lane.b32.xlu0 %v9707, 64
    %v9843 = vpop.permute.xlu0 %9842
    %9844 = vrot.lane.b32.xlu0 %v9708, 64
    %v9845 = vpop.permute.xlu0 %9844
    %9846 = vrot.lane.b32.xlu0 %v9709, 64
    %v9847 = vpop.permute.xlu0 %9846
    %9848 = vrot.lane.b32.xlu0 %v9710, 64
    %v9849 = vpop.permute.xlu0 %9848
    %9850 = vrot.lane.b32.xlu0 %v9711, 64
    %v9851 = vpop.permute.xlu0 %9850
    %9852 = vrot.lane.b32.xlu0 %v9712, 64
    %v9853 = vpop.permute.xlu0 %9852
    %9854 = vrot.lane.b32.xlu0 %v9713, 64
    %v9855 = vpop.permute.xlu0 %9854
    %9856 = vrot.lane.b32.xlu0 %v9714, 64
    %v9857 = vpop.permute.xlu0 %9856
    %9858 = vrot.lane.b32.xlu0 %v9715, 64
    %v9859 = vpop.permute.xlu0 %9858
    %9860 = vrot.lane.b32.xlu0 %v9716, 64
    %v9861 = vpop.permute.xlu0 %9860
    %9862 = vrot.lane.b32.xlu0 %v9717, 64
    %v9863 = vpop.permute.xlu0 %9862
    %9864 = vrot.lane.b32.xlu0 %v9718, 64
    %v9865 = vpop.permute.xlu0 %9864
    %9866 = vrot.lane.b32.xlu0 %v9719, 64
    %v9867 = vpop.permute.xlu0 %9866
    %9868 = vrot.lane.b32.xlu0 %v9720, 64
    %v9869 = vpop.permute.xlu0 %9868
    %9870 = vrot.lane.b32.xlu0 %v9721, 64
    %v9871 = vpop.permute.xlu0 %9870
    %9872 = vrot.lane.b32.xlu0 %v9722, 64
    %v9873 = vpop.permute.xlu0 %9872
    %9874 = vrot.lane.b32.xlu0 %v9723, 64
    %v9875 = vpop.permute.xlu0 %9874
    %9876 = vrot.lane.b32.xlu0 %v9724, 64
    %v9877 = vpop.permute.xlu0 %9876
    %9878 = vrot.lane.b32.xlu0 %v9725, 64
    %v9879 = vpop.permute.xlu0 %9878
    %9880 = vrot.lane.b32.xlu0 %v9726, 64
    %v9881 = vpop.permute.xlu0 %9880
    %9882 = vrot.lane.b32.xlu0 %v9727, 64
    %v9883 = vpop.permute.xlu0 %9882
    %9884 = vrot.lane.b32.xlu0 %v9728, 64
    %v9885 = vpop.permute.xlu0 %9884
    %9886 = vrot.lane.b32.xlu0 %v9729, 64
    %v9887 = vpop.permute.xlu0 %9886
    %9888 = vrot.lane.b32.xlu0 %v9730, 64
    %v9889 = vpop.permute.xlu0 %9888
    %9890 = vrot.lane.b32.xlu0 %v9731, 64
    %v9891 = vpop.permute.xlu0 %9890
    %9892 = vrot.lane.b32.xlu0 %v9732, 64
    %v9893 = vpop.permute.xlu0 %9892
    %9894 = vrot.lane.b32.xlu0 %v9733, 64
    %v9895 = vpop.permute.xlu0 %9894
    %9896 = vrot.lane.b32.xlu0 %v9734, 64
    %v9897 = vpop.permute.xlu0 %9896
    %9898 = vrot.lane.b32.xlu0 %v9735, 64
    %v9899 = vpop.permute.xlu0 %9898
    %9900 = vrot.lane.b32.xlu0 %v9736, 64
    %v9901 = vpop.permute.xlu0 %9900
    %9902 = vrot.lane.b32.xlu0 %v9737, 64
    %v9903 = vpop.permute.xlu0 %9902
    %9904 = vrot.lane.b32.xlu0 %v9738, 64
    %v9905 = vpop.permute.xlu0 %9904
    %9906 = vrot.lane.b32.xlu0 %v9739, 64
    %v9907 = vpop.permute.xlu0 %9906
    %9908 = vrot.lane.b32.xlu0 %v9740, 64
    %v9909 = vpop.permute.xlu0 %9908
    %9910 = vrot.lane.b32.xlu0 %v9741, 64
    %v9911 = vpop.permute.xlu0 %9910
    %9912 = vrot.lane.b32.xlu0 %v9742, 64
    %v9913 = vpop.permute.xlu0 %9912
    %9914 = vrot.lane.b32.xlu0 %v9743, 64
    %v9915 = vpop.permute.xlu0 %9914
    %9916 = vrot.lane.b32.xlu0 %v9744, 64
    %v9917 = vpop.permute.xlu0 %9916
    %9918 = vrot.lane.b32.xlu0 %v9745, 64
    %v9919 = vpop.permute.xlu0 %9918
    %9920 = vrot.lane.b32.xlu0 %v9746, 64
    %v9921 = vpop.permute.xlu0 %9920
    %9922 = vrot.lane.b32.xlu0 %v9747, 64
    %v9923 = vpop.permute.xlu0 %9922
    %9924 = vrot.lane.b32.xlu0 %v9748, 64
    %v9925 = vpop.permute.xlu0 %9924
    %9926 = vrot.lane.b32.xlu0 %v9749, 64
    %v9927 = vpop.permute.xlu0 %9926
    %9928 = vrot.lane.b32.xlu0 %v9750, 64
    %v9929 = vpop.permute.xlu0 %9928
    %9930 = vrot.lane.b32.xlu0 %v9751, 64
    %v9931 = vpop.permute.xlu0 %9930
    %9932 = vrot.lane.b32.xlu0 %v9752, 64
    %v9933 = vpop.permute.xlu0 %9932
    %9934 = vrot.lane.b32.xlu0 %v9753, 64
    %v9935 = vpop.permute.xlu0 %9934
    %9936 = vrot.lane.b32.xlu0 %v9754, 64
    %v9937 = vpop.permute.xlu0 %9936
    %9938 = vrot.lane.b32.xlu0 %v9755, 64
    %v9939 = vpop.permute.xlu0 %9938
    %9940 = vrot.lane.b32.xlu0 %v9756, 64
    %v9941 = vpop.permute.xlu0 %9940
    %9942 = vrot.lane.b32.xlu0 %v9757, 64
    %v9943 = vpop.permute.xlu0 %9942
    %9944 = vrot.lane.b32.xlu0 %v9758, 64
    %v9945 = vpop.permute.xlu0 %9944
    %9946 = vrot.lane.b32.xlu0 %v9759, 64
    %v9947 = vpop.permute.xlu0 %9946
    %9948 = vrot.lane.b32.xlu0 %v9760, 64
    %v9949 = vpop.permute.xlu0 %9948
    %9950 = vrot.lane.b32.xlu0 %v9761, 64
    %v9951 = vpop.permute.xlu0 %9950
    %9952 = vrot.lane.b32.xlu0 %v9762, 64
    %v9953 = vpop.permute.xlu0 %9952
    %9954 = vrot.lane.b32.xlu0 %v9763, 64
    %v9955 = vpop.permute.xlu0 %9954
    %vm10020 = vcmask 654848
    %10021 = vst.msk [vmem:[#allocation3] sm:$0xff] %vm10020, %v9829
    %10022 = vst.msk [vmem:[#allocation3 + $0x10] sm:$0xff] %vm10020, %v9831
    %10023 = vst.msk [vmem:[#allocation3 + $0x20] sm:$0xff] %vm10020, %v9833
    %10024 = vst.msk [vmem:[#allocation3 + $0x30] sm:$0xff] %vm10020, %v9835
    %10025 = vst.msk [vmem:[#allocation3 + $0x40] sm:$0xff] %vm10020, %v9837
    %10026 = vst.msk [vmem:[#allocation3 + $0x50] sm:$0xff] %vm10020, %v9839
    %10027 = vst.msk [vmem:[#allocation3 + $0x60] sm:$0xff] %vm10020, %v9841
    %10028 = vst.msk [vmem:[#allocation3 + $0x70] sm:$0xff] %vm10020, %v9843
    %10029 = vst.msk [vmem:[#allocation3 + $0x80] sm:$0xff] %vm10020, %v9845
    %10030 = vst.msk [vmem:[#allocation3 + $0x90] sm:$0xff] %vm10020, %v9847
    %10031 = vst.msk [vmem:[#allocation3 + $0xa0] sm:$0xff] %vm10020, %v9849
    %10032 = vst.msk [vmem:[#allocation3 + $0xb0] sm:$0xff] %vm10020, %v9851
    %10033 = vst.msk [vmem:[#allocation3 + $0xc0] sm:$0xff] %vm10020, %v9853
    %10034 = vst.msk [vmem:[#allocation3 + $0xd0] sm:$0xff] %vm10020, %v9855
    %10035 = vst.msk [vmem:[#allocation3 + $0xe0] sm:$0xff] %vm10020, %v9857
    %10036 = vst.msk [vmem:[#allocation3 + $0xf0] sm:$0xff] %vm10020, %v9859
    %10037 = vst.msk [vmem:[#allocation3 + $0x100] sm:$0xff] %vm10020, %v9861
    %10038 = vst.msk [vmem:[#allocation3 + $0x110] sm:$0xff] %vm10020, %v9863
    %10039 = vst.msk [vmem:[#allocation3 + $0x120] sm:$0xff] %vm10020, %v9865
    %10040 = vst.msk [vmem:[#allocation3 + $0x130] sm:$0xff] %vm10020, %v9867
    %10041 = vst.msk [vmem:[#allocation3 + $0x140] sm:$0xff] %vm10020, %v9869
    %10042 = vst.msk [vmem:[#allocation3 + $0x150] sm:$0xff] %vm10020, %v9871
    %10043 = vst.msk [vmem:[#allocation3 + $0x160] sm:$0xff] %vm10020, %v9873
    %10044 = vst.msk [vmem:[#allocation3 + $0x170] sm:$0xff] %vm10020, %v9875
    %10045 = vst.msk [vmem:[#allocation3 + $0x180] sm:$0xff] %vm10020, %v9877
    %10046 = vst.msk [vmem:[#allocation3 + $0x190] sm:$0xff] %vm10020, %v9879
    %10047 = vst.msk [vmem:[#allocation3 + $0x1a0] sm:$0xff] %vm10020, %v9881
    %10048 = vst.msk [vmem:[#allocation3 + $0x1b0] sm:$0xff] %vm10020, %v9883
    %10049 = vst.msk [vmem:[#allocation3 + $0x1c0] sm:$0xff] %vm10020, %v9885
    %10050 = vst.msk [vmem:[#allocation3 + $0x1d0] sm:$0xff] %vm10020, %v9887
    %10051 = vst.msk [vmem:[#allocation3 + $0x1e0] sm:$0xff] %vm10020, %v9889
    %10052 = vst.msk [vmem:[#allocation3 + $0x1f0] sm:$0xff] %vm10020, %v9891
    %10053 = vst.msk [vmem:[#allocation3 + $0x200] sm:$0xff] %vm10020, %v9893
    %10054 = vst.msk [vmem:[#allocation3 + $0x210] sm:$0xff] %vm10020, %v9895
    %10055 = vst.msk [vmem:[#allocation3 + $0x220] sm:$0xff] %vm10020, %v9897
    %10056 = vst.msk [vmem:[#allocation3 + $0x230] sm:$0xff] %vm10020, %v9899
    %10057 = vst.msk [vmem:[#allocation3 + $0x240] sm:$0xff] %vm10020, %v9901
    %10058 = vst.msk [vmem:[#allocation3 + $0x250] sm:$0xff] %vm10020, %v9903
    %10059 = vst.msk [vmem:[#allocation3 + $0x260] sm:$0xff] %vm10020, %v9905
    %10060 = vst.msk [vmem:[#allocation3 + $0x270] sm:$0xff] %vm10020, %v9907
    %10061 = vst.msk [vmem:[#allocation3 + $0x280] sm:$0xff] %vm10020, %v9909
    %10062 = vst.msk [vmem:[#allocation3 + $0x290] sm:$0xff] %vm10020, %v9911
    %10063 = vst.msk [vmem:[#allocation3 + $0x2a0] sm:$0xff] %vm10020, %v9913
    %10064 = vst.msk [vmem:[#allocation3 + $0x2b0] sm:$0xff] %vm10020, %v9915
    %10065 = vst.msk [vmem:[#allocation3 + $0x2c0] sm:$0xff] %vm10020, %v9917
    %10066 = vst.msk [vmem:[#allocation3 + $0x2d0] sm:$0xff] %vm10020, %v9919
    %10067 = vst.msk [vmem:[#allocation3 + $0x2e0] sm:$0xff] %vm10020, %v9921
    %10068 = vst.msk [vmem:[#allocation3 + $0x2f0] sm:$0xff] %vm10020, %v9923
    %10069 = vst.msk [vmem:[#allocation3 + $0x300] sm:$0xff] %vm10020, %v9925
    %10070 = vst.msk [vmem:[#allocation3 + $0x310] sm:$0xff] %vm10020, %v9927
    %10071 = vst.msk [vmem:[#allocation3 + $0x320] sm:$0xff] %vm10020, %v9929
    %10072 = vst.msk [vmem:[#allocation3 + $0x330] sm:$0xff] %vm10020, %v9931
    %10073 = vst.msk [vmem:[#allocation3 + $0x340] sm:$0xff] %vm10020, %v9933
    %10074 = vst.msk [vmem:[#allocation3 + $0x350] sm:$0xff] %vm10020, %v9935
    %10075 = vst.msk [vmem:[#allocation3 + $0x360] sm:$0xff] %vm10020, %v9937
    %10076 = vst.msk [vmem:[#allocation3 + $0x370] sm:$0xff] %vm10020, %v9939
    %10077 = vst.msk [vmem:[#allocation3 + $0x380] sm:$0xff] %vm10020, %v9941
    %10078 = vst.msk [vmem:[#allocation3 + $0x390] sm:$0xff] %vm10020, %v9943
    %10079 = vst.msk [vmem:[#allocation3 + $0x3a0] sm:$0xff] %vm10020, %v9945
    %10080 = vst.msk [vmem:[#allocation3 + $0x3b0] sm:$0xff] %vm10020, %v9947
    %10081 = vst.msk [vmem:[#allocation3 + $0x3c0] sm:$0xff] %vm10020, %v9949
    %10082 = vst.msk [vmem:[#allocation3 + $0x3d0] sm:$0xff] %vm10020, %v9951
    %10083 = vst.msk [vmem:[#allocation3 + $0x3e0] sm:$0xff] %vm10020, %v9953
    %10084 = vst.msk [vmem:[#allocation3 + $0x3f0] sm:$0xff] %vm10020, %v9955
    %v10085 = vld [vmem:[%s8287 + $0x9] sm:$0xff]
    %v10086 = vld [vmem:[%s8287 + $0x11] sm:$0xff]
    %v10087 = vld [vmem:[%s8287 + $0x29] sm:$0xff]
    %v10088 = vld [vmem:[%s8287 + $0x31] sm:$0xff]
    %v10089 = vld [vmem:[%s8287 + $0x49] sm:$0xff]
    %v10090 = vld [vmem:[%s8287 + $0x51] sm:$0xff]
    %v10091 = vld [vmem:[%s8287 + $0x69] sm:$0xff]
    %v10092 = vld [vmem:[%s8287 + $0x71] sm:$0xff]
    %v10093 = vld [vmem:[%s8287 + $0x89] sm:$0xff]
    %v10094 = vld [vmem:[%s8287 + $0x91] sm:$0xff]
    %v10095 = vld [vmem:[%s8287 + $0xa9] sm:$0xff]
    %v10096 = vld [vmem:[%s8287 + $0xb1] sm:$0xff]
    %v10097 = vld [vmem:[%s8287 + $0xc9] sm:$0xff]
    %v10098 = vld [vmem:[%s8287 + $0xd1] sm:$0xff]
    %v10099 = vld [vmem:[%s8287 + $0xe9] sm:$0xff]
    %v10100 = vld [vmem:[%s8287 + $0xf1] sm:$0xff]
    %v10101 = vld [vmem:[%s8287 + $0x109] sm:$0xff]
    %v10102 = vld [vmem:[%s8287 + $0x111] sm:$0xff]
    %v10103 = vld [vmem:[%s8287 + $0x129] sm:$0xff]
    %v10104 = vld [vmem:[%s8287 + $0x131] sm:$0xff]
    %v10105 = vld [vmem:[%s8287 + $0x149] sm:$0xff]
    %v10106 = vld [vmem:[%s8287 + $0x151] sm:$0xff]
    %v10107 = vld [vmem:[%s8287 + $0x169] sm:$0xff]
    %v10108 = vld [vmem:[%s8287 + $0x171] sm:$0xff]
    %v10109 = vld [vmem:[%s8287 + $0x189] sm:$0xff]
    %v10110 = vld [vmem:[%s8287 + $0x191] sm:$0xff]
    %v10111 = vld [vmem:[%s8287 + $0x1a9] sm:$0xff]
    %v10112 = vld [vmem:[%s8287 + $0x1b1] sm:$0xff]
    %v10113 = vld [vmem:[%s8287 + $0x1c9] sm:$0xff]
    %v10114 = vld [vmem:[%s8287 + $0x1d1] sm:$0xff]
    %v10115 = vld [vmem:[%s8287 + $0x1e9] sm:$0xff]
    %v10116 = vld [vmem:[%s8287 + $0x1f1] sm:$0xff]
    %v10117 = vld [vmem:[%s8287 + $0x249] sm:$0xff]
    %v10118 = vld [vmem:[%s8287 + $0x251] sm:$0xff]
    %v10119 = vld [vmem:[%s8287 + $0x269] sm:$0xff]
    %v10120 = vld [vmem:[%s8287 + $0x271] sm:$0xff]
    %v10121 = vld [vmem:[%s8287 + $0x289] sm:$0xff]
    %v10122 = vld [vmem:[%s8287 + $0x291] sm:$0xff]
    %v10123 = vld [vmem:[%s8287 + $0x2a9] sm:$0xff]
    %v10124 = vld [vmem:[%s8287 + $0x2b1] sm:$0xff]
    %v10125 = vld [vmem:[%s8287 + $0x2c9] sm:$0xff]
    %v10126 = vld [vmem:[%s8287 + $0x2d1] sm:$0xff]
    %v10127 = vld [vmem:[%s8287 + $0x2e9] sm:$0xff]
    %v10128 = vld [vmem:[%s8287 + $0x2f1] sm:$0xff]
    %v10129 = vld [vmem:[%s8287 + $0x309] sm:$0xff]
    %v10130 = vld [vmem:[%s8287 + $0x311] sm:$0xff]
    %v10131 = vld [vmem:[%s8287 + $0x329] sm:$0xff]
    %v10132 = vld [vmem:[%s8287 + $0x331] sm:$0xff]
    %v10133 = vld [vmem:[%s8287 + $0x349] sm:$0xff]
    %v10134 = vld [vmem:[%s8287 + $0x351] sm:$0xff]
    %v10135 = vld [vmem:[%s8287 + $0x369] sm:$0xff]
    %v10136 = vld [vmem:[%s8287 + $0x371] sm:$0xff]
    %v10137 = vld [vmem:[%s8287 + $0x389] sm:$0xff]
    %v10138 = vld [vmem:[%s8287 + $0x391] sm:$0xff]
    %v10139 = vld [vmem:[%s8287 + $0x3a9] sm:$0xff]
    %v10140 = vld [vmem:[%s8287 + $0x3b1] sm:$0xff]
    %v10141 = vld [vmem:[%s8287 + $0x3c9] sm:$0xff]
    %v10142 = vld [vmem:[%s8287 + $0x3d1] sm:$0xff]
    %v10143 = vld [vmem:[%s8287 + $0x3e9] sm:$0xff]
    %v10144 = vld [vmem:[%s8287 + $0x3f1] sm:$0xff]
    %v10145 = vld [vmem:[%s8287 + $0x409] sm:$0xff]
    %v10146 = vld [vmem:[%s8287 + $0x411] sm:$0xff]
    %v10147 = vld [vmem:[%s8287 + $0x429] sm:$0xff]
    %v10148 = vld [vmem:[%s8287 + $0x431] sm:$0xff]
    %10213 = vrot.lane.b32.xlu0 %v10085, 80
    %v10214 = vpop.permute.xlu0 %10213
    %10215 = vrot.lane.b32.xlu0 %v10086, 80
    %v10216 = vpop.permute.xlu0 %10215
    %10217 = vrot.lane.b32.xlu0 %v10087, 80
    %v10218 = vpop.permute.xlu0 %10217
    %10219 = vrot.lane.b32.xlu0 %v10088, 80
    %v10220 = vpop.permute.xlu0 %10219
    %10221 = vrot.lane.b32.xlu0 %v10089, 80
    %v10222 = vpop.permute.xlu0 %10221
    %10223 = vrot.lane.b32.xlu0 %v10090, 80
    %v10224 = vpop.permute.xlu0 %10223
    %10225 = vrot.lane.b32.xlu0 %v10091, 80
    %v10226 = vpop.permute.xlu0 %10225
    %10227 = vrot.lane.b32.xlu0 %v10092, 80
    %v10228 = vpop.permute.xlu0 %10227
    %10229 = vrot.lane.b32.xlu0 %v10093, 80
    %v10230 = vpop.permute.xlu0 %10229
    %10231 = vrot.lane.b32.xlu0 %v10094, 80
    %v10232 = vpop.permute.xlu0 %10231
    %10233 = vrot.lane.b32.xlu0 %v10095, 80
    %v10234 = vpop.permute.xlu0 %10233
    %10235 = vrot.lane.b32.xlu0 %v10096, 80
    %v10236 = vpop.permute.xlu0 %10235
    %10237 = vrot.lane.b32.xlu0 %v10097, 80
    %v10238 = vpop.permute.xlu0 %10237
    %10239 = vrot.lane.b32.xlu0 %v10098, 80
    %v10240 = vpop.permute.xlu0 %10239
    %10241 = vrot.lane.b32.xlu0 %v10099, 80
    %v10242 = vpop.permute.xlu0 %10241
    %10243 = vrot.lane.b32.xlu0 %v10100, 80
    %v10244 = vpop.permute.xlu0 %10243
    %10245 = vrot.lane.b32.xlu0 %v10101, 80
    %v10246 = vpop.permute.xlu0 %10245
    %10247 = vrot.lane.b32.xlu0 %v10102, 80
    %v10248 = vpop.permute.xlu0 %10247
    %10249 = vrot.lane.b32.xlu0 %v10103, 80
    %v10250 = vpop.permute.xlu0 %10249
    %10251 = vrot.lane.b32.xlu0 %v10104, 80
    %v10252 = vpop.permute.xlu0 %10251
    %10253 = vrot.lane.b32.xlu0 %v10105, 80
    %v10254 = vpop.permute.xlu0 %10253
    %10255 = vrot.lane.b32.xlu0 %v10106, 80
    %v10256 = vpop.permute.xlu0 %10255
    %10257 = vrot.lane.b32.xlu0 %v10107, 80
    %v10258 = vpop.permute.xlu0 %10257
    %10259 = vrot.lane.b32.xlu0 %v10108, 80
    %v10260 = vpop.permute.xlu0 %10259
    %10261 = vrot.lane.b32.xlu0 %v10109, 80
    %v10262 = vpop.permute.xlu0 %10261
    %10263 = vrot.lane.b32.xlu0 %v10110, 80
    %v10264 = vpop.permute.xlu0 %10263
    %10265 = vrot.lane.b32.xlu0 %v10111, 80
    %v10266 = vpop.permute.xlu0 %10265
    %10267 = vrot.lane.b32.xlu0 %v10112, 80
    %v10268 = vpop.permute.xlu0 %10267
    %10269 = vrot.lane.b32.xlu0 %v10113, 80
    %v10270 = vpop.permute.xlu0 %10269
    %10271 = vrot.lane.b32.xlu0 %v10114, 80
    %v10272 = vpop.permute.xlu0 %10271
    %10273 = vrot.lane.b32.xlu0 %v10115, 80
    %v10274 = vpop.permute.xlu0 %10273
    %10275 = vrot.lane.b32.xlu0 %v10116, 80
    %v10276 = vpop.permute.xlu0 %10275
    %10277 = vrot.lane.b32.xlu0 %v10117, 80
    %v10278 = vpop.permute.xlu0 %10277
    %10279 = vrot.lane.b32.xlu0 %v10118, 80
    %v10280 = vpop.permute.xlu0 %10279
    %10281 = vrot.lane.b32.xlu0 %v10119, 80
    %v10282 = vpop.permute.xlu0 %10281
    %10283 = vrot.lane.b32.xlu0 %v10120, 80
    %v10284 = vpop.permute.xlu0 %10283
    %10285 = vrot.lane.b32.xlu0 %v10121, 80
    %v10286 = vpop.permute.xlu0 %10285
    %10287 = vrot.lane.b32.xlu0 %v10122, 80
    %v10288 = vpop.permute.xlu0 %10287
    %10289 = vrot.lane.b32.xlu0 %v10123, 80
    %v10290 = vpop.permute.xlu0 %10289
    %10291 = vrot.lane.b32.xlu0 %v10124, 80
    %v10292 = vpop.permute.xlu0 %10291
    %10293 = vrot.lane.b32.xlu0 %v10125, 80
    %v10294 = vpop.permute.xlu0 %10293
    %10295 = vrot.lane.b32.xlu0 %v10126, 80
    %v10296 = vpop.permute.xlu0 %10295
    %10297 = vrot.lane.b32.xlu0 %v10127, 80
    %v10298 = vpop.permute.xlu0 %10297
    %10299 = vrot.lane.b32.xlu0 %v10128, 80
    %v10300 = vpop.permute.xlu0 %10299
    %10301 = vrot.lane.b32.xlu0 %v10129, 80
    %v10302 = vpop.permute.xlu0 %10301
    %10303 = vrot.lane.b32.xlu0 %v10130, 80
    %v10304 = vpop.permute.xlu0 %10303
    %10305 = vrot.lane.b32.xlu0 %v10131, 80
    %v10306 = vpop.permute.xlu0 %10305
    %10307 = vrot.lane.b32.xlu0 %v10132, 80
    %v10308 = vpop.permute.xlu0 %10307
    %10309 = vrot.lane.b32.xlu0 %v10133, 80
    %v10310 = vpop.permute.xlu0 %10309
    %10311 = vrot.lane.b32.xlu0 %v10134, 80
    %v10312 = vpop.permute.xlu0 %10311
    %10313 = vrot.lane.b32.xlu0 %v10135, 80
    %v10314 = vpop.permute.xlu0 %10313
    %10315 = vrot.lane.b32.xlu0 %v10136, 80
    %v10316 = vpop.permute.xlu0 %10315
    %10317 = vrot.lane.b32.xlu0 %v10137, 80
    %v10318 = vpop.permute.xlu0 %10317
    %10319 = vrot.lane.b32.xlu0 %v10138, 80
    %v10320 = vpop.permute.xlu0 %10319
    %10321 = vrot.lane.b32.xlu0 %v10139, 80
    %v10322 = vpop.permute.xlu0 %10321
    %10323 = vrot.lane.b32.xlu0 %v10140, 80
    %v10324 = vpop.permute.xlu0 %10323
    %10325 = vrot.lane.b32.xlu0 %v10141, 80
    %v10326 = vpop.permute.xlu0 %10325
    %10327 = vrot.lane.b32.xlu0 %v10142, 80
    %v10328 = vpop.permute.xlu0 %10327
    %10329 = vrot.lane.b32.xlu0 %v10143, 80
    %v10330 = vpop.permute.xlu0 %10329
    %10331 = vrot.lane.b32.xlu0 %v10144, 80
    %v10332 = vpop.permute.xlu0 %10331
    %10333 = vrot.lane.b32.xlu0 %v10145, 80
    %v10334 = vpop.permute.xlu0 %10333
    %10335 = vrot.lane.b32.xlu0 %v10146, 80
    %v10336 = vpop.permute.xlu0 %10335
    %10337 = vrot.lane.b32.xlu0 %v10147, 80
    %v10338 = vpop.permute.xlu0 %10337
    %10339 = vrot.lane.b32.xlu0 %v10148, 80
    %v10340 = vpop.permute.xlu0 %10339
    %vm10405 = vcmask 786048
    %10406 = vst.msk [vmem:[#allocation3] sm:$0xff] %vm10405, %v10214
    %10407 = vst.msk [vmem:[#allocation3 + $0x10] sm:$0xff] %vm10405, %v10216
    %10408 = vst.msk [vmem:[#allocation3 + $0x20] sm:$0xff] %vm10405, %v10218
    %10409 = vst.msk [vmem:[#allocation3 + $0x30] sm:$0xff] %vm10405, %v10220
    %10410 = vst.msk [vmem:[#allocation3 + $0x40] sm:$0xff] %vm10405, %v10222
    %10411 = vst.msk [vmem:[#allocation3 + $0x50] sm:$0xff] %vm10405, %v10224
    %10412 = vst.msk [vmem:[#allocation3 + $0x60] sm:$0xff] %vm10405, %v10226
    %10413 = vst.msk [vmem:[#allocation3 + $0x70] sm:$0xff] %vm10405, %v10228
    %10414 = vst.msk [vmem:[#allocation3 + $0x80] sm:$0xff] %vm10405, %v10230
    %10415 = vst.msk [vmem:[#allocation3 + $0x90] sm:$0xff] %vm10405, %v10232
    %10416 = vst.msk [vmem:[#allocation3 + $0xa0] sm:$0xff] %vm10405, %v10234
    %10417 = vst.msk [vmem:[#allocation3 + $0xb0] sm:$0xff] %vm10405, %v10236
    %10418 = vst.msk [vmem:[#allocation3 + $0xc0] sm:$0xff] %vm10405, %v10238
    %10419 = vst.msk [vmem:[#allocation3 + $0xd0] sm:$0xff] %vm10405, %v10240
    %10420 = vst.msk [vmem:[#allocation3 + $0xe0] sm:$0xff] %vm10405, %v10242
    %10421 = vst.msk [vmem:[#allocation3 + $0xf0] sm:$0xff] %vm10405, %v10244
    %10422 = vst.msk [vmem:[#allocation3 + $0x100] sm:$0xff] %vm10405, %v10246
    %10423 = vst.msk [vmem:[#allocation3 + $0x110] sm:$0xff] %vm10405, %v10248
    %10424 = vst.msk [vmem:[#allocation3 + $0x120] sm:$0xff] %vm10405, %v10250
    %10425 = vst.msk [vmem:[#allocation3 + $0x130] sm:$0xff] %vm10405, %v10252
    %10426 = vst.msk [vmem:[#allocation3 + $0x140] sm:$0xff] %vm10405, %v10254
    %10427 = vst.msk [vmem:[#allocation3 + $0x150] sm:$0xff] %vm10405, %v10256
    %10428 = vst.msk [vmem:[#allocation3 + $0x160] sm:$0xff] %vm10405, %v10258
    %10429 = vst.msk [vmem:[#allocation3 + $0x170] sm:$0xff] %vm10405, %v10260
    %10430 = vst.msk [vmem:[#allocation3 + $0x180] sm:$0xff] %vm10405, %v10262
    %10431 = vst.msk [vmem:[#allocation3 + $0x190] sm:$0xff] %vm10405, %v10264
    %10432 = vst.msk [vmem:[#allocation3 + $0x1a0] sm:$0xff] %vm10405, %v10266
    %10433 = vst.msk [vmem:[#allocation3 + $0x1b0] sm:$0xff] %vm10405, %v10268
    %10434 = vst.msk [vmem:[#allocation3 + $0x1c0] sm:$0xff] %vm10405, %v10270
    %10435 = vst.msk [vmem:[#allocation3 + $0x1d0] sm:$0xff] %vm10405, %v10272
    %10436 = vst.msk [vmem:[#allocation3 + $0x1e0] sm:$0xff] %vm10405, %v10274
    %10437 = vst.msk [vmem:[#allocation3 + $0x1f0] sm:$0xff] %vm10405, %v10276
    %10438 = vst.msk [vmem:[#allocation3 + $0x200] sm:$0xff] %vm10405, %v10278
    %10439 = vst.msk [vmem:[#allocation3 + $0x210] sm:$0xff] %vm10405, %v10280
    %10440 = vst.msk [vmem:[#allocation3 + $0x220] sm:$0xff] %vm10405, %v10282
    %10441 = vst.msk [vmem:[#allocation3 + $0x230] sm:$0xff] %vm10405, %v10284
    %10442 = vst.msk [vmem:[#allocation3 + $0x240] sm:$0xff] %vm10405, %v10286
    %10443 = vst.msk [vmem:[#allocation3 + $0x250] sm:$0xff] %vm10405, %v10288
    %10444 = vst.msk [vmem:[#allocation3 + $0x260] sm:$0xff] %vm10405, %v10290
    %10445 = vst.msk [vmem:[#allocation3 + $0x270] sm:$0xff] %vm10405, %v10292
    %10446 = vst.msk [vmem:[#allocation3 + $0x280] sm:$0xff] %vm10405, %v10294
    %10447 = vst.msk [vmem:[#allocation3 + $0x290] sm:$0xff] %vm10405, %v10296
    %10448 = vst.msk [vmem:[#allocation3 + $0x2a0] sm:$0xff] %vm10405, %v10298
    %10449 = vst.msk [vmem:[#allocation3 + $0x2b0] sm:$0xff] %vm10405, %v10300
    %10450 = vst.msk [vmem:[#allocation3 + $0x2c0] sm:$0xff] %vm10405, %v10302
    %10451 = vst.msk [vmem:[#allocation3 + $0x2d0] sm:$0xff] %vm10405, %v10304
    %10452 = vst.msk [vmem:[#allocation3 + $0x2e0] sm:$0xff] %vm10405, %v10306
    %10453 = vst.msk [vmem:[#allocation3 + $0x2f0] sm:$0xff] %vm10405, %v10308
    %10454 = vst.msk [vmem:[#allocation3 + $0x300] sm:$0xff] %vm10405, %v10310
    %10455 = vst.msk [vmem:[#allocation3 + $0x310] sm:$0xff] %vm10405, %v10312
    %10456 = vst.msk [vmem:[#allocation3 + $0x320] sm:$0xff] %vm10405, %v10314
    %10457 = vst.msk [vmem:[#allocation3 + $0x330] sm:$0xff] %vm10405, %v10316
    %10458 = vst.msk [vmem:[#allocation3 + $0x340] sm:$0xff] %vm10405, %v10318
    %10459 = vst.msk [vmem:[#allocation3 + $0x350] sm:$0xff] %vm10405, %v10320
    %10460 = vst.msk [vmem:[#allocation3 + $0x360] sm:$0xff] %vm10405, %v10322
    %10461 = vst.msk [vmem:[#allocation3 + $0x370] sm:$0xff] %vm10405, %v10324
    %10462 = vst.msk [vmem:[#allocation3 + $0x380] sm:$0xff] %vm10405, %v10326
    %10463 = vst.msk [vmem:[#allocation3 + $0x390] sm:$0xff] %vm10405, %v10328
    %10464 = vst.msk [vmem:[#allocation3 + $0x3a0] sm:$0xff] %vm10405, %v10330
    %10465 = vst.msk [vmem:[#allocation3 + $0x3b0] sm:$0xff] %vm10405, %v10332
    %10466 = vst.msk [vmem:[#allocation3 + $0x3c0] sm:$0xff] %vm10405, %v10334
    %10467 = vst.msk [vmem:[#allocation3 + $0x3d0] sm:$0xff] %vm10405, %v10336
    %10468 = vst.msk [vmem:[#allocation3 + $0x3e0] sm:$0xff] %vm10405, %v10338
    %10469 = vst.msk [vmem:[#allocation3 + $0x3f0] sm:$0xff] %vm10405, %v10340
    %s10470 = scalar_lea.vmem [#allocation2], 64
    %v10471 = vld [vmem:[%s10470 + $0x7] sm:$0xff]
    %v10472 = vld [vmem:[%s10470 + $0xf] sm:$0xff]
    %v10473 = vld [vmem:[%s10470 + $0x27] sm:$0xff]
    %v10474 = vld [vmem:[%s10470 + $0x2f] sm:$0xff]
    %v10475 = vld [vmem:[%s10470 + $0x47] sm:$0xff]
    %v10476 = vld [vmem:[%s10470 + $0x4f] sm:$0xff]
    %v10477 = vld [vmem:[%s10470 + $0x67] sm:$0xff]
    %v10478 = vld [vmem:[%s10470 + $0x6f] sm:$0xff]
    %v10479 = vld [vmem:[%s10470 + $0x87] sm:$0xff]
    %v10480 = vld [vmem:[%s10470 + $0x8f] sm:$0xff]
    %v10481 = vld [vmem:[%s10470 + $0xa7] sm:$0xff]
    %v10482 = vld [vmem:[%s10470 + $0xaf] sm:$0xff]
    %v10483 = vld [vmem:[%s10470 + $0xc7] sm:$0xff]
    %v10484 = vld [vmem:[%s10470 + $0xcf] sm:$0xff]
    %v10485 = vld [vmem:[%s10470 + $0xe7] sm:$0xff]
    %v10486 = vld [vmem:[%s10470 + $0xef] sm:$0xff]
    %v10487 = vld [vmem:[%s10470 + $0x107] sm:$0xff]
    %v10488 = vld [vmem:[%s10470 + $0x10f] sm:$0xff]
    %v10489 = vld [vmem:[%s10470 + $0x127] sm:$0xff]
    %v10490 = vld [vmem:[%s10470 + $0x12f] sm:$0xff]
    %v10491 = vld [vmem:[%s10470 + $0x147] sm:$0xff]
    %v10492 = vld [vmem:[%s10470 + $0x14f] sm:$0xff]
    %v10493 = vld [vmem:[%s10470 + $0x167] sm:$0xff]
    %v10494 = vld [vmem:[%s10470 + $0x16f] sm:$0xff]
    %v10495 = vld [vmem:[%s10470 + $0x187] sm:$0xff]
    %v10496 = vld [vmem:[%s10470 + $0x18f] sm:$0xff]
    %v10497 = vld [vmem:[%s10470 + $0x1a7] sm:$0xff]
    %v10498 = vld [vmem:[%s10470 + $0x1af] sm:$0xff]
    %v10499 = vld [vmem:[%s10470 + $0x1c7] sm:$0xff]
    %v10500 = vld [vmem:[%s10470 + $0x1cf] sm:$0xff]
    %v10501 = vld [vmem:[%s10470 + $0x1e7] sm:$0xff]
    %v10502 = vld [vmem:[%s10470 + $0x1ef] sm:$0xff]
    %v10503 = vld [vmem:[%s10470 + $0x247] sm:$0xff]
    %v10504 = vld [vmem:[%s10470 + $0x24f] sm:$0xff]
    %v10505 = vld [vmem:[%s10470 + $0x267] sm:$0xff]
    %v10506 = vld [vmem:[%s10470 + $0x26f] sm:$0xff]
    %v10507 = vld [vmem:[%s10470 + $0x287] sm:$0xff]
    %v10508 = vld [vmem:[%s10470 + $0x28f] sm:$0xff]
    %v10509 = vld [vmem:[%s10470 + $0x2a7] sm:$0xff]
    %v10510 = vld [vmem:[%s10470 + $0x2af] sm:$0xff]
    %v10511 = vld [vmem:[%s10470 + $0x2c7] sm:$0xff]
    %v10512 = vld [vmem:[%s10470 + $0x2cf] sm:$0xff]
    %v10513 = vld [vmem:[%s10470 + $0x2e7] sm:$0xff]
    %v10514 = vld [vmem:[%s10470 + $0x2ef] sm:$0xff]
    %v10515 = vld [vmem:[%s10470 + $0x307] sm:$0xff]
    %v10516 = vld [vmem:[%s10470 + $0x30f] sm:$0xff]
    %v10517 = vld [vmem:[%s10470 + $0x327] sm:$0xff]
    %v10518 = vld [vmem:[%s10470 + $0x32f] sm:$0xff]
    %v10519 = vld [vmem:[%s10470 + $0x347] sm:$0xff]
    %v10520 = vld [vmem:[%s10470 + $0x34f] sm:$0xff]
    %v10521 = vld [vmem:[%s10470 + $0x367] sm:$0xff]
    %v10522 = vld [vmem:[%s10470 + $0x36f] sm:$0xff]
    %v10523 = vld [vmem:[%s10470 + $0x387] sm:$0xff]
    %v10524 = vld [vmem:[%s10470 + $0x38f] sm:$0xff]
    %v10525 = vld [vmem:[%s10470 + $0x3a7] sm:$0xff]
    %v10526 = vld [vmem:[%s10470 + $0x3af] sm:$0xff]
    %v10527 = vld [vmem:[%s10470 + $0x3c7] sm:$0xff]
    %v10528 = vld [vmem:[%s10470 + $0x3cf] sm:$0xff]
    %v10529 = vld [vmem:[%s10470 + $0x3e7] sm:$0xff]
    %v10530 = vld [vmem:[%s10470 + $0x3ef] sm:$0xff]
    %v10531 = vld [vmem:[%s10470 + $0x407] sm:$0xff]
    %v10532 = vld [vmem:[%s10470 + $0x40f] sm:$0xff]
    %v10533 = vld [vmem:[%s10470 + $0x427] sm:$0xff]
    %v10534 = vld [vmem:[%s10470 + $0x42f] sm:$0xff]
    %10599 = vrot.lane.b32.xlu0 %v10471, 96
    %v10600 = vpop.permute.xlu0 %10599
    %10601 = vrot.lane.b32.xlu0 %v10472, 96
    %v10602 = vpop.permute.xlu0 %10601
    %10603 = vrot.lane.b32.xlu0 %v10473, 96
    %v10604 = vpop.permute.xlu0 %10603
    %10605 = vrot.lane.b32.xlu0 %v10474, 96
    %v10606 = vpop.permute.xlu0 %10605
    %10607 = vrot.lane.b32.xlu0 %v10475, 96
    %v10608 = vpop.permute.xlu0 %10607
    %10609 = vrot.lane.b32.xlu0 %v10476, 96
    %v10610 = vpop.permute.xlu0 %10609
    %10611 = vrot.lane.b32.xlu0 %v10477, 96
    %v10612 = vpop.permute.xlu0 %10611
    %10613 = vrot.lane.b32.xlu0 %v10478, 96
    %v10614 = vpop.permute.xlu0 %10613
    %10615 = vrot.lane.b32.xlu0 %v10479, 96
    %v10616 = vpop.permute.xlu0 %10615
    %10617 = vrot.lane.b32.xlu0 %v10480, 96
    %v10618 = vpop.permute.xlu0 %10617
    %10619 = vrot.lane.b32.xlu0 %v10481, 96
    %v10620 = vpop.permute.xlu0 %10619
    %10621 = vrot.lane.b32.xlu0 %v10482, 96
    %v10622 = vpop.permute.xlu0 %10621
    %10623 = vrot.lane.b32.xlu0 %v10483, 96
    %v10624 = vpop.permute.xlu0 %10623
    %10625 = vrot.lane.b32.xlu0 %v10484, 96
    %v10626 = vpop.permute.xlu0 %10625
    %10627 = vrot.lane.b32.xlu0 %v10485, 96
    %v10628 = vpop.permute.xlu0 %10627
    %10629 = vrot.lane.b32.xlu0 %v10486, 96
    %v10630 = vpop.permute.xlu0 %10629
    %10631 = vrot.lane.b32.xlu0 %v10487, 96
    %v10632 = vpop.permute.xlu0 %10631
    %10633 = vrot.lane.b32.xlu0 %v10488, 96
    %v10634 = vpop.permute.xlu0 %10633
    %10635 = vrot.lane.b32.xlu0 %v10489, 96
    %v10636 = vpop.permute.xlu0 %10635
    %10637 = vrot.lane.b32.xlu0 %v10490, 96
    %v10638 = vpop.permute.xlu0 %10637
    %10639 = vrot.lane.b32.xlu0 %v10491, 96
    %v10640 = vpop.permute.xlu0 %10639
    %10641 = vrot.lane.b32.xlu0 %v10492, 96
    %v10642 = vpop.permute.xlu0 %10641
    %10643 = vrot.lane.b32.xlu0 %v10493, 96
    %v10644 = vpop.permute.xlu0 %10643
    %10645 = vrot.lane.b32.xlu0 %v10494, 96
    %v10646 = vpop.permute.xlu0 %10645
    %10647 = vrot.lane.b32.xlu0 %v10495, 96
    %v10648 = vpop.permute.xlu0 %10647
    %10649 = vrot.lane.b32.xlu0 %v10496, 96
    %v10650 = vpop.permute.xlu0 %10649
    %10651 = vrot.lane.b32.xlu0 %v10497, 96
    %v10652 = vpop.permute.xlu0 %10651
    %10653 = vrot.lane.b32.xlu0 %v10498, 96
    %v10654 = vpop.permute.xlu0 %10653
    %10655 = vrot.lane.b32.xlu0 %v10499, 96
    %v10656 = vpop.permute.xlu0 %10655
    %10657 = vrot.lane.b32.xlu0 %v10500, 96
    %v10658 = vpop.permute.xlu0 %10657
    %10659 = vrot.lane.b32.xlu0 %v10501, 96
    %v10660 = vpop.permute.xlu0 %10659
    %10661 = vrot.lane.b32.xlu0 %v10502, 96
    %v10662 = vpop.permute.xlu0 %10661
    %10663 = vrot.lane.b32.xlu0 %v10503, 96
    %v10664 = vpop.permute.xlu0 %10663
    %10665 = vrot.lane.b32.xlu0 %v10504, 96
    %v10666 = vpop.permute.xlu0 %10665
    %10667 = vrot.lane.b32.xlu0 %v10505, 96
    %v10668 = vpop.permute.xlu0 %10667
    %10669 = vrot.lane.b32.xlu0 %v10506, 96
    %v10670 = vpop.permute.xlu0 %10669
    %10671 = vrot.lane.b32.xlu0 %v10507, 96
    %v10672 = vpop.permute.xlu0 %10671
    %10673 = vrot.lane.b32.xlu0 %v10508, 96
    %v10674 = vpop.permute.xlu0 %10673
    %10675 = vrot.lane.b32.xlu0 %v10509, 96
    %v10676 = vpop.permute.xlu0 %10675
    %10677 = vrot.lane.b32.xlu0 %v10510, 96
    %v10678 = vpop.permute.xlu0 %10677
    %10679 = vrot.lane.b32.xlu0 %v10511, 96
    %v10680 = vpop.permute.xlu0 %10679
    %10681 = vrot.lane.b32.xlu0 %v10512, 96
    %v10682 = vpop.permute.xlu0 %10681
    %10683 = vrot.lane.b32.xlu0 %v10513, 96
    %v10684 = vpop.permute.xlu0 %10683
    %10685 = vrot.lane.b32.xlu0 %v10514, 96
    %v10686 = vpop.permute.xlu0 %10685
    %10687 = vrot.lane.b32.xlu0 %v10515, 96
    %v10688 = vpop.permute.xlu0 %10687
    %10689 = vrot.lane.b32.xlu0 %v10516, 96
    %v10690 = vpop.permute.xlu0 %10689
    %10691 = vrot.lane.b32.xlu0 %v10517, 96
    %v10692 = vpop.permute.xlu0 %10691
    %10693 = vrot.lane.b32.xlu0 %v10518, 96
    %v10694 = vpop.permute.xlu0 %10693
    %10695 = vrot.lane.b32.xlu0 %v10519, 96
    %v10696 = vpop.permute.xlu0 %10695
    %10697 = vrot.lane.b32.xlu0 %v10520, 96
    %v10698 = vpop.permute.xlu0 %10697
    %10699 = vrot.lane.b32.xlu0 %v10521, 96
    %v10700 = vpop.permute.xlu0 %10699
    %10701 = vrot.lane.b32.xlu0 %v10522, 96
    %v10702 = vpop.permute.xlu0 %10701
    %10703 = vrot.lane.b32.xlu0 %v10523, 96
    %v10704 = vpop.permute.xlu0 %10703
    %10705 = vrot.lane.b32.xlu0 %v10524, 96
    %v10706 = vpop.permute.xlu0 %10705
    %10707 = vrot.lane.b32.xlu0 %v10525, 96
    %v10708 = vpop.permute.xlu0 %10707
    %10709 = vrot.lane.b32.xlu0 %v10526, 96
    %v10710 = vpop.permute.xlu0 %10709
    %10711 = vrot.lane.b32.xlu0 %v10527, 96
    %v10712 = vpop.permute.xlu0 %10711
    %10713 = vrot.lane.b32.xlu0 %v10528, 96
    %v10714 = vpop.permute.xlu0 %10713
    %10715 = vrot.lane.b32.xlu0 %v10529, 96
    %v10716 = vpop.permute.xlu0 %10715
    %10717 = vrot.lane.b32.xlu0 %v10530, 96
    %v10718 = vpop.permute.xlu0 %10717
    %10719 = vrot.lane.b32.xlu0 %v10531, 96
    %v10720 = vpop.permute.xlu0 %10719
    %10721 = vrot.lane.b32.xlu0 %v10532, 96
    %v10722 = vpop.permute.xlu0 %10721
    %10723 = vrot.lane.b32.xlu0 %v10533, 96
    %v10724 = vpop.permute.xlu0 %10723
    %10725 = vrot.lane.b32.xlu0 %v10534, 96
    %v10726 = vpop.permute.xlu0 %10725
    %vm10791 = vcmask 917248
    %10792 = vst.msk [vmem:[#allocation3] sm:$0xff] %vm10791, %v10600
    %10793 = vst.msk [vmem:[#allocation3 + $0x10] sm:$0xff] %vm10791, %v10602
    %10794 = vst.msk [vmem:[#allocation3 + $0x20] sm:$0xff] %vm10791, %v10604
    %10795 = vst.msk [vmem:[#allocation3 + $0x30] sm:$0xff] %vm10791, %v10606
    %10796 = vst.msk [vmem:[#allocation3 + $0x40] sm:$0xff] %vm10791, %v10608
    %10797 = vst.msk [vmem:[#allocation3 + $0x50] sm:$0xff] %vm10791, %v10610
    %10798 = vst.msk [vmem:[#allocation3 + $0x60] sm:$0xff] %vm10791, %v10612
    %10799 = vst.msk [vmem:[#allocation3 + $0x70] sm:$0xff] %vm10791, %v10614
    %10800 = vst.msk [vmem:[#allocation3 + $0x80] sm:$0xff] %vm10791, %v10616
    %10801 = vst.msk [vmem:[#allocation3 + $0x90] sm:$0xff] %vm10791, %v10618
    %10802 = vst.msk [vmem:[#allocation3 + $0xa0] sm:$0xff] %vm10791, %v10620
    %10803 = vst.msk [vmem:[#allocation3 + $0xb0] sm:$0xff] %vm10791, %v10622
    %10804 = vst.msk [vmem:[#allocation3 + $0xc0] sm:$0xff] %vm10791, %v10624
    %10805 = vst.msk [vmem:[#allocation3 + $0xd0] sm:$0xff] %vm10791, %v10626
    %10806 = vst.msk [vmem:[#allocation3 + $0xe0] sm:$0xff] %vm10791, %v10628
    %10807 = vst.msk [vmem:[#allocation3 + $0xf0] sm:$0xff] %vm10791, %v10630
    %10808 = vst.msk [vmem:[#allocation3 + $0x100] sm:$0xff] %vm10791, %v10632
    %10809 = vst.msk [vmem:[#allocation3 + $0x110] sm:$0xff] %vm10791, %v10634
    %10810 = vst.msk [vmem:[#allocation3 + $0x120] sm:$0xff] %vm10791, %v10636
    %10811 = vst.msk [vmem:[#allocation3 + $0x130] sm:$0xff] %vm10791, %v10638
    %10812 = vst.msk [vmem:[#allocation3 + $0x140] sm:$0xff] %vm10791, %v10640
    %10813 = vst.msk [vmem:[#allocation3 + $0x150] sm:$0xff] %vm10791, %v10642
    %10814 = vst.msk [vmem:[#allocation3 + $0x160] sm:$0xff] %vm10791, %v10644
    %10815 = vst.msk [vmem:[#allocation3 + $0x170] sm:$0xff] %vm10791, %v10646
    %10816 = vst.msk [vmem:[#allocation3 + $0x180] sm:$0xff] %vm10791, %v10648
    %10817 = vst.msk [vmem:[#allocation3 + $0x190] sm:$0xff] %vm10791, %v10650
    %10818 = vst.msk [vmem:[#allocation3 + $0x1a0] sm:$0xff] %vm10791, %v10652
    %10819 = vst.msk [vmem:[#allocation3 + $0x1b0] sm:$0xff] %vm10791, %v10654
    %10820 = vst.msk [vmem:[#allocation3 + $0x1c0] sm:$0xff] %vm10791, %v10656
    %10821 = vst.msk [vmem:[#allocation3 + $0x1d0] sm:$0xff] %vm10791, %v10658
    %10822 = vst.msk [vmem:[#allocation3 + $0x1e0] sm:$0xff] %vm10791, %v10660
    %10823 = vst.msk [vmem:[#allocation3 + $0x1f0] sm:$0xff] %vm10791, %v10662
    %10824 = vst.msk [vmem:[#allocation3 + $0x200] sm:$0xff] %vm10791, %v10664
    %10825 = vst.msk [vmem:[#allocation3 + $0x210] sm:$0xff] %vm10791, %v10666
    %10826 = vst.msk [vmem:[#allocation3 + $0x220] sm:$0xff] %vm10791, %v10668
    %10827 = vst.msk [vmem:[#allocation3 + $0x230] sm:$0xff] %vm10791, %v10670
    %10828 = vst.msk [vmem:[#allocation3 + $0x240] sm:$0xff] %vm10791, %v10672
    %10829 = vst.msk [vmem:[#allocation3 + $0x250] sm:$0xff] %vm10791, %v10674
    %10830 = vst.msk [vmem:[#allocation3 + $0x260] sm:$0xff] %vm10791, %v10676
    %10831 = vst.msk [vmem:[#allocation3 + $0x270] sm:$0xff] %vm10791, %v10678
    %10832 = vst.msk [vmem:[#allocation3 + $0x280] sm:$0xff] %vm10791, %v10680
    %10833 = vst.msk [vmem:[#allocation3 + $0x290] sm:$0xff] %vm10791, %v10682
    %10834 = vst.msk [vmem:[#allocation3 + $0x2a0] sm:$0xff] %vm10791, %v10684
    %10835 = vst.msk [vmem:[#allocation3 + $0x2b0] sm:$0xff] %vm10791, %v10686
    %10836 = vst.msk [vmem:[#allocation3 + $0x2c0] sm:$0xff] %vm10791, %v10688
    %10837 = vst.msk [vmem:[#allocation3 + $0x2d0] sm:$0xff] %vm10791, %v10690
    %10838 = vst.msk [vmem:[#allocation3 + $0x2e0] sm:$0xff] %vm10791, %v10692
    %10839 = vst.msk [vmem:[#allocation3 + $0x2f0] sm:$0xff] %vm10791, %v10694
    %10840 = vst.msk [vmem:[#allocation3 + $0x300] sm:$0xff] %vm10791, %v10696
    %10841 = vst.msk [vmem:[#allocation3 + $0x310] sm:$0xff] %vm10791, %v10698
    %10842 = vst.msk [vmem:[#allocation3 + $0x320] sm:$0xff] %vm10791, %v10700
    %10843 = vst.msk [vmem:[#allocation3 + $0x330] sm:$0xff] %vm10791, %v10702
    %10844 = vst.msk [vmem:[#allocation3 + $0x340] sm:$0xff] %vm10791, %v10704
    %10845 = vst.msk [vmem:[#allocation3 + $0x350] sm:$0xff] %vm10791, %v10706
    %10846 = vst.msk [vmem:[#allocation3 + $0x360] sm:$0xff] %vm10791, %v10708
    %10847 = vst.msk [vmem:[#allocation3 + $0x370] sm:$0xff] %vm10791, %v10710
    %10848 = vst.msk [vmem:[#allocation3 + $0x380] sm:$0xff] %vm10791, %v10712
    %10849 = vst.msk [vmem:[#allocation3 + $0x390] sm:$0xff] %vm10791, %v10714
    %10850 = vst.msk [vmem:[#allocation3 + $0x3a0] sm:$0xff] %vm10791, %v10716
    %10851 = vst.msk [vmem:[#allocation3 + $0x3b0] sm:$0xff] %vm10791, %v10718
    %10852 = vst.msk [vmem:[#allocation3 + $0x3c0] sm:$0xff] %vm10791, %v10720
    %10853 = vst.msk [vmem:[#allocation3 + $0x3d0] sm:$0xff] %vm10791, %v10722
    %10854 = vst.msk [vmem:[#allocation3 + $0x3e0] sm:$0xff] %vm10791, %v10724
    %10855 = vst.msk [vmem:[#allocation3 + $0x3f0] sm:$0xff] %vm10791, %v10726
    %v10856 = vld [vmem:[%s10470 + $0x8] sm:$0xff]
    %v10857 = vld [vmem:[%s10470 + $0x10] sm:$0xff]
    %v10858 = vld [vmem:[%s10470 + $0x28] sm:$0xff]
    %v10859 = vld [vmem:[%s10470 + $0x30] sm:$0xff]
    %v10860 = vld [vmem:[%s10470 + $0x48] sm:$0xff]
    %v10861 = vld [vmem:[%s10470 + $0x50] sm:$0xff]
    %v10862 = vld [vmem:[%s10470 + $0x68] sm:$0xff]
    %v10863 = vld [vmem:[%s10470 + $0x70] sm:$0xff]
    %v10864 = vld [vmem:[%s10470 + $0x88] sm:$0xff]
    %v10865 = vld [vmem:[%s10470 + $0x90] sm:$0xff]
    %v10866 = vld [vmem:[%s10470 + $0xa8] sm:$0xff]
    %v10867 = vld [vmem:[%s10470 + $0xb0] sm:$0xff]
    %v10868 = vld [vmem:[%s10470 + $0xc8] sm:$0xff]
    %v10869 = vld [vmem:[%s10470 + $0xd0] sm:$0xff]
    %v10870 = vld [vmem:[%s10470 + $0xe8] sm:$0xff]
    %v10871 = vld [vmem:[%s10470 + $0xf0] sm:$0xff]
    %v10872 = vld [vmem:[%s10470 + $0x108] sm:$0xff]
    %v10873 = vld [vmem:[%s10470 + $0x110] sm:$0xff]
    %v10874 = vld [vmem:[%s10470 + $0x128] sm:$0xff]
    %v10875 = vld [vmem:[%s10470 + $0x130] sm:$0xff]
    %v10876 = vld [vmem:[%s10470 + $0x148] sm:$0xff]
    %v10877 = vld [vmem:[%s10470 + $0x150] sm:$0xff]
    %v10878 = vld [vmem:[%s10470 + $0x168] sm:$0xff]
    %v10879 = vld [vmem:[%s10470 + $0x170] sm:$0xff]
    %v10880 = vld [vmem:[%s10470 + $0x188] sm:$0xff]
    %v10881 = vld [vmem:[%s10470 + $0x190] sm:$0xff]
    %v10882 = vld [vmem:[%s10470 + $0x1a8] sm:$0xff]
    %v10883 = vld [vmem:[%s10470 + $0x1b0] sm:$0xff]
    %v10884 = vld [vmem:[%s10470 + $0x1c8] sm:$0xff]
    %v10885 = vld [vmem:[%s10470 + $0x1d0] sm:$0xff]
    %v10886 = vld [vmem:[%s10470 + $0x1e8] sm:$0xff]
    %v10887 = vld [vmem:[%s10470 + $0x1f0] sm:$0xff]
    %v10888 = vld [vmem:[%s10470 + $0x248] sm:$0xff]
    %v10889 = vld [vmem:[%s10470 + $0x250] sm:$0xff]
    %v10890 = vld [vmem:[%s10470 + $0x268] sm:$0xff]
    %v10891 = vld [vmem:[%s10470 + $0x270] sm:$0xff]
    %v10892 = vld [vmem:[%s10470 + $0x288] sm:$0xff]
    %v10893 = vld [vmem:[%s10470 + $0x290] sm:$0xff]
    %v10894 = vld [vmem:[%s10470 + $0x2a8] sm:$0xff]
    %v10895 = vld [vmem:[%s10470 + $0x2b0] sm:$0xff]
    %v10896 = vld [vmem:[%s10470 + $0x2c8] sm:$0xff]
    %v10897 = vld [vmem:[%s10470 + $0x2d0] sm:$0xff]
    %v10898 = vld [vmem:[%s10470 + $0x2e8] sm:$0xff]
    %v10899 = vld [vmem:[%s10470 + $0x2f0] sm:$0xff]
    %v10900 = vld [vmem:[%s10470 + $0x308] sm:$0xff]
    %v10901 = vld [vmem:[%s10470 + $0x310] sm:$0xff]
    %v10902 = vld [vmem:[%s10470 + $0x328] sm:$0xff]
    %v10903 = vld [vmem:[%s10470 + $0x330] sm:$0xff]
    %v10904 = vld [vmem:[%s10470 + $0x348] sm:$0xff]
    %v10905 = vld [vmem:[%s10470 + $0x350] sm:$0xff]
    %v10906 = vld [vmem:[%s10470 + $0x368] sm:$0xff]
    %v10907 = vld [vmem:[%s10470 + $0x370] sm:$0xff]
    %v10908 = vld [vmem:[%s10470 + $0x388] sm:$0xff]
    %v10909 = vld [vmem:[%s10470 + $0x390] sm:$0xff]
    %v10910 = vld [vmem:[%s10470 + $0x3a8] sm:$0xff]
    %v10911 = vld [vmem:[%s10470 + $0x3b0] sm:$0xff]
    %v10912 = vld [vmem:[%s10470 + $0x3c8] sm:$0xff]
    %v10913 = vld [vmem:[%s10470 + $0x3d0] sm:$0xff]
    %v10914 = vld [vmem:[%s10470 + $0x3e8] sm:$0xff]
    %v10915 = vld [vmem:[%s10470 + $0x3f0] sm:$0xff]
    %v10916 = vld [vmem:[%s10470 + $0x408] sm:$0xff]
    %v10917 = vld [vmem:[%s10470 + $0x410] sm:$0xff]
    %v10918 = vld [vmem:[%s10470 + $0x428] sm:$0xff]
    %v10919 = vld [vmem:[%s10470 + $0x430] sm:$0xff]
    %10984 = vrot.lane.b32.xlu0 %v10856, 112
    %v10985 = vpop.permute.xlu0 %10984
    %10986 = vrot.lane.b32.xlu0 %v10857, 112
    %v10987 = vpop.permute.xlu0 %10986
    %10988 = vrot.lane.b32.xlu0 %v10858, 112
    %v10989 = vpop.permute.xlu0 %10988
    %10990 = vrot.lane.b32.xlu0 %v10859, 112
    %v10991 = vpop.permute.xlu0 %10990
    %10992 = vrot.lane.b32.xlu0 %v10860, 112
    %v10993 = vpop.permute.xlu0 %10992
    %10994 = vrot.lane.b32.xlu0 %v10861, 112
    %v10995 = vpop.permute.xlu0 %10994
    %10996 = vrot.lane.b32.xlu0 %v10862, 112
    %v10997 = vpop.permute.xlu0 %10996
    %10998 = vrot.lane.b32.xlu0 %v10863, 112
    %v10999 = vpop.permute.xlu0 %10998
    %11000 = vrot.lane.b32.xlu0 %v10864, 112
    %v11001 = vpop.permute.xlu0 %11000
    %11002 = vrot.lane.b32.xlu0 %v10865, 112
    %v11003 = vpop.permute.xlu0 %11002
    %11004 = vrot.lane.b32.xlu0 %v10866, 112
    %v11005 = vpop.permute.xlu0 %11004
    %11006 = vrot.lane.b32.xlu0 %v10867, 112
    %v11007 = vpop.permute.xlu0 %11006
    %11008 = vrot.lane.b32.xlu0 %v10868, 112
    %v11009 = vpop.permute.xlu0 %11008
    %11010 = vrot.lane.b32.xlu0 %v10869, 112
    %v11011 = vpop.permute.xlu0 %11010
    %11012 = vrot.lane.b32.xlu0 %v10870, 112
    %v11013 = vpop.permute.xlu0 %11012
    %11014 = vrot.lane.b32.xlu0 %v10871, 112
    %v11015 = vpop.permute.xlu0 %11014
    %11016 = vrot.lane.b32.xlu0 %v10872, 112
    %v11017 = vpop.permute.xlu0 %11016
    %11018 = vrot.lane.b32.xlu0 %v10873, 112
    %v11019 = vpop.permute.xlu0 %11018
    %11020 = vrot.lane.b32.xlu0 %v10874, 112
    %v11021 = vpop.permute.xlu0 %11020
    %11022 = vrot.lane.b32.xlu0 %v10875, 112
    %v11023 = vpop.permute.xlu0 %11022
    %11024 = vrot.lane.b32.xlu0 %v10876, 112
    %v11025 = vpop.permute.xlu0 %11024
    %11026 = vrot.lane.b32.xlu0 %v10877, 112
    %v11027 = vpop.permute.xlu0 %11026
    %11028 = vrot.lane.b32.xlu0 %v10878, 112
    %v11029 = vpop.permute.xlu0 %11028
    %11030 = vrot.lane.b32.xlu0 %v10879, 112
    %v11031 = vpop.permute.xlu0 %11030
    %11032 = vrot.lane.b32.xlu0 %v10880, 112
    %v11033 = vpop.permute.xlu0 %11032
    %11034 = vrot.lane.b32.xlu0 %v10881, 112
    %v11035 = vpop.permute.xlu0 %11034
    %11036 = vrot.lane.b32.xlu0 %v10882, 112
    %v11037 = vpop.permute.xlu0 %11036
    %11038 = vrot.lane.b32.xlu0 %v10883, 112
    %v11039 = vpop.permute.xlu0 %11038
    %11040 = vrot.lane.b32.xlu0 %v10884, 112
    %v11041 = vpop.permute.xlu0 %11040
    %11042 = vrot.lane.b32.xlu0 %v10885, 112
    %v11043 = vpop.permute.xlu0 %11042
    %11044 = vrot.lane.b32.xlu0 %v10886, 112
    %v11045 = vpop.permute.xlu0 %11044
    %11046 = vrot.lane.b32.xlu0 %v10887, 112
    %v11047 = vpop.permute.xlu0 %11046
    %11048 = vrot.lane.b32.xlu0 %v10888, 112
    %v11049 = vpop.permute.xlu0 %11048
    %11050 = vrot.lane.b32.xlu0 %v10889, 112
    %v11051 = vpop.permute.xlu0 %11050
    %11052 = vrot.lane.b32.xlu0 %v10890, 112
    %v11053 = vpop.permute.xlu0 %11052
    %11054 = vrot.lane.b32.xlu0 %v10891, 112
    %v11055 = vpop.permute.xlu0 %11054
    %11056 = vrot.lane.b32.xlu0 %v10892, 112
    %v11057 = vpop.permute.xlu0 %11056
    %11058 = vrot.lane.b32.xlu0 %v10893, 112
    %v11059 = vpop.permute.xlu0 %11058
    %11060 = vrot.lane.b32.xlu0 %v10894, 112
    %v11061 = vpop.permute.xlu0 %11060
    %11062 = vrot.lane.b32.xlu0 %v10895, 112
    %v11063 = vpop.permute.xlu0 %11062
    %11064 = vrot.lane.b32.xlu0 %v10896, 112
    %v11065 = vpop.permute.xlu0 %11064
    %11066 = vrot.lane.b32.xlu0 %v10897, 112
    %v11067 = vpop.permute.xlu0 %11066
    %11068 = vrot.lane.b32.xlu0 %v10898, 112
    %v11069 = vpop.permute.xlu0 %11068
    %11070 = vrot.lane.b32.xlu0 %v10899, 112
    %v11071 = vpop.permute.xlu0 %11070
    %11072 = vrot.lane.b32.xlu0 %v10900, 112
    %v11073 = vpop.permute.xlu0 %11072
    %11074 = vrot.lane.b32.xlu0 %v10901, 112
    %v11075 = vpop.permute.xlu0 %11074
    %11076 = vrot.lane.b32.xlu0 %v10902, 112
    %v11077 = vpop.permute.xlu0 %11076
    %11078 = vrot.lane.b32.xlu0 %v10903, 112
    %v11079 = vpop.permute.xlu0 %11078
    %11080 = vrot.lane.b32.xlu0 %v10904, 112
    %v11081 = vpop.permute.xlu0 %11080
    %11082 = vrot.lane.b32.xlu0 %v10905, 112
    %v11083 = vpop.permute.xlu0 %11082
    %11084 = vrot.lane.b32.xlu0 %v10906, 112
    %v11085 = vpop.permute.xlu0 %11084
    %11086 = vrot.lane.b32.xlu0 %v10907, 112
    %v11087 = vpop.permute.xlu0 %11086
    %11088 = vrot.lane.b32.xlu0 %v10908, 112
    %v11089 = vpop.permute.xlu0 %11088
    %11090 = vrot.lane.b32.xlu0 %v10909, 112
    %v11091 = vpop.permute.xlu0 %11090
    %11092 = vrot.lane.b32.xlu0 %v10910, 112
    %v11093 = vpop.permute.xlu0 %11092
    %11094 = vrot.lane.b32.xlu0 %v10911, 112
    %v11095 = vpop.permute.xlu0 %11094
    %11096 = vrot.lane.b32.xlu0 %v10912, 112
    %v11097 = vpop.permute.xlu0 %11096
    %11098 = vrot.lane.b32.xlu0 %v10913, 112
    %v11099 = vpop.permute.xlu0 %11098
    %11100 = vrot.lane.b32.xlu0 %v10914, 112
    %v11101 = vpop.permute.xlu0 %11100
    %11102 = vrot.lane.b32.xlu0 %v10915, 112
    %v11103 = vpop.permute.xlu0 %11102
    %11104 = vrot.lane.b32.xlu0 %v10916, 112
    %v11105 = vpop.permute.xlu0 %11104
    %11106 = vrot.lane.b32.xlu0 %v10917, 112
    %v11107 = vpop.permute.xlu0 %11106
    %11108 = vrot.lane.b32.xlu0 %v10918, 112
    %v11109 = vpop.permute.xlu0 %11108
    %11110 = vrot.lane.b32.xlu0 %v10919, 112
    %v11111 = vpop.permute.xlu0 %11110
    %vm11176 = vcmask 1048448
    %11177 = vst.msk [vmem:[#allocation3] sm:$0xff] %vm11176, %v10985
    %11178 = vst.msk [vmem:[#allocation3 + $0x10] sm:$0xff] %vm11176, %v10987
    %11179 = vst.msk [vmem:[#allocation3 + $0x20] sm:$0xff] %vm11176, %v10989
    %11180 = vst.msk [vmem:[#allocation3 + $0x30] sm:$0xff] %vm11176, %v10991
    %11181 = vst.msk [vmem:[#allocation3 + $0x40] sm:$0xff] %vm11176, %v10993
    %11182 = vst.msk [vmem:[#allocation3 + $0x50] sm:$0xff] %vm11176, %v10995
    %11183 = vst.msk [vmem:[#allocation3 + $0x60] sm:$0xff] %vm11176, %v10997
    %11184 = vst.msk [vmem:[#allocation3 + $0x70] sm:$0xff] %vm11176, %v10999
    %11185 = vst.msk [vmem:[#allocation3 + $0x80] sm:$0xff] %vm11176, %v11001
    %11186 = vst.msk [vmem:[#allocation3 + $0x90] sm:$0xff] %vm11176, %v11003
    %11187 = vst.msk [vmem:[#allocation3 + $0xa0] sm:$0xff] %vm11176, %v11005
    %11188 = vst.msk [vmem:[#allocation3 + $0xb0] sm:$0xff] %vm11176, %v11007
    %11189 = vst.msk [vmem:[#allocation3 + $0xc0] sm:$0xff] %vm11176, %v11009
    %11190 = vst.msk [vmem:[#allocation3 + $0xd0] sm:$0xff] %vm11176, %v11011
    %11191 = vst.msk [vmem:[#allocation3 + $0xe0] sm:$0xff] %vm11176, %v11013
    %11192 = vst.msk [vmem:[#allocation3 + $0xf0] sm:$0xff] %vm11176, %v11015
    %11193 = vst.msk [vmem:[#allocation3 + $0x100] sm:$0xff] %vm11176, %v11017
    %11194 = vst.msk [vmem:[#allocation3 + $0x110] sm:$0xff] %vm11176, %v11019
    %11195 = vst.msk [vmem:[#allocation3 + $0x120] sm:$0xff] %vm11176, %v11021
    %11196 = vst.msk [vmem:[#allocation3 + $0x130] sm:$0xff] %vm11176, %v11023
    %11197 = vst.msk [vmem:[#allocation3 + $0x140] sm:$0xff] %vm11176, %v11025
    %11198 = vst.msk [vmem:[#allocation3 + $0x150] sm:$0xff] %vm11176, %v11027
    %11199 = vst.msk [vmem:[#allocation3 + $0x160] sm:$0xff] %vm11176, %v11029
    %11200 = vst.msk [vmem:[#allocation3 + $0x170] sm:$0xff] %vm11176, %v11031
    %11201 = vst.msk [vmem:[#allocation3 + $0x180] sm:$0xff] %vm11176, %v11033
    %11202 = vst.msk [vmem:[#allocation3 + $0x190] sm:$0xff] %vm11176, %v11035
    %11203 = vst.msk [vmem:[#allocation3 + $0x1a0] sm:$0xff] %vm11176, %v11037
    %11204 = vst.msk [vmem:[#allocation3 + $0x1b0] sm:$0xff] %vm11176, %v11039
    %11205 = vst.msk [vmem:[#allocation3 + $0x1c0] sm:$0xff] %vm11176, %v11041
    %11206 = vst.msk [vmem:[#allocation3 + $0x1d0] sm:$0xff] %vm11176, %v11043
    %11207 = vst.msk [vmem:[#allocation3 + $0x1e0] sm:$0xff] %vm11176, %v11045
    %11208 = vst.msk [vmem:[#allocation3 + $0x1f0] sm:$0xff] %vm11176, %v11047
    %11209 = vst.msk [vmem:[#allocation3 + $0x200] sm:$0xff] %vm11176, %v11049
    %11210 = vst.msk [vmem:[#allocation3 + $0x210] sm:$0xff] %vm11176, %v11051
    %11211 = vst.msk [vmem:[#allocation3 + $0x220] sm:$0xff] %vm11176, %v11053
    %11212 = vst.msk [vmem:[#allocation3 + $0x230] sm:$0xff] %vm11176, %v11055
    %11213 = vst.msk [vmem:[#allocation3 + $0x240] sm:$0xff] %vm11176, %v11057
    %11214 = vst.msk [vmem:[#allocation3 + $0x250] sm:$0xff] %vm11176, %v11059
    %11215 = vst.msk [vmem:[#allocation3 + $0x260] sm:$0xff] %vm11176, %v11061
    %11216 = vst.msk [vmem:[#allocation3 + $0x270] sm:$0xff] %vm11176, %v11063
    %11217 = vst.msk [vmem:[#allocation3 + $0x280] sm:$0xff] %vm11176, %v11065
    %11218 = vst.msk [vmem:[#allocation3 + $0x290] sm:$0xff] %vm11176, %v11067
    %11219 = vst.msk [vmem:[#allocation3 + $0x2a0] sm:$0xff] %vm11176, %v11069
    %11220 = vst.msk [vmem:[#allocation3 + $0x2b0] sm:$0xff] %vm11176, %v11071
    %11221 = vst.msk [vmem:[#allocation3 + $0x2c0] sm:$0xff] %vm11176, %v11073
    %11222 = vst.msk [vmem:[#allocation3 + $0x2d0] sm:$0xff] %vm11176, %v11075
    %11223 = vst.msk [vmem:[#allocation3 + $0x2e0] sm:$0xff] %vm11176, %v11077
    %11224 = vst.msk [vmem:[#allocation3 + $0x2f0] sm:$0xff] %vm11176, %v11079
    %11225 = vst.msk [vmem:[#allocation3 + $0x300] sm:$0xff] %vm11176, %v11081
    %11226 = vst.msk [vmem:[#allocation3 + $0x310] sm:$0xff] %vm11176, %v11083
    %11227 = vst.msk [vmem:[#allocation3 + $0x320] sm:$0xff] %vm11176, %v11085
    %11228 = vst.msk [vmem:[#allocation3 + $0x330] sm:$0xff] %vm11176, %v11087
    %11229 = vst.msk [vmem:[#allocation3 + $0x340] sm:$0xff] %vm11176, %v11089
    %11230 = vst.msk [vmem:[#allocation3 + $0x350] sm:$0xff] %vm11176, %v11091
    %11231 = vst.msk [vmem:[#allocation3 + $0x360] sm:$0xff] %vm11176, %v11093
    %11232 = vst.msk [vmem:[#allocation3 + $0x370] sm:$0xff] %vm11176, %v11095
    %11233 = vst.msk [vmem:[#allocation3 + $0x380] sm:$0xff] %vm11176, %v11097
    %11234 = vst.msk [vmem:[#allocation3 + $0x390] sm:$0xff] %vm11176, %v11099
    %11235 = vst.msk [vmem:[#allocation3 + $0x3a0] sm:$0xff] %vm11176, %v11101
    %11236 = vst.msk [vmem:[#allocation3 + $0x3b0] sm:$0xff] %vm11176, %v11103
    %11237 = vst.msk [vmem:[#allocation3 + $0x3c0] sm:$0xff] %vm11176, %v11105
    %11238 = vst.msk [vmem:[#allocation3 + $0x3d0] sm:$0xff] %vm11176, %v11107
    %11239 = vst.msk [vmem:[#allocation3 + $0x3e0] sm:$0xff] %vm11176, %v11109
    %11240 = vst.msk [vmem:[#allocation3 + $0x3f0] sm:$0xff] %vm11176, %v11111
    %v11241 = vld [vmem:[%s10470 + $0x9] sm:$0xff]
    %v11242 = vld [vmem:[%s10470 + $0x11] sm:$0xff]
    %v11243 = vld [vmem:[%s10470 + $0x29] sm:$0xff]
    %v11244 = vld [vmem:[%s10470 + $0x31] sm:$0xff]
    %v11245 = vld [vmem:[%s10470 + $0x49] sm:$0xff]
    %v11246 = vld [vmem:[%s10470 + $0x51] sm:$0xff]
    %v11247 = vld [vmem:[%s10470 + $0x69] sm:$0xff]
    %v11248 = vld [vmem:[%s10470 + $0x71] sm:$0xff]
    %v11249 = vld [vmem:[%s10470 + $0x89] sm:$0xff]
    %v11250 = vld [vmem:[%s10470 + $0x91] sm:$0xff]
    %v11251 = vld [vmem:[%s10470 + $0xa9] sm:$0xff]
    %v11252 = vld [vmem:[%s10470 + $0xb1] sm:$0xff]
    %v11253 = vld [vmem:[%s10470 + $0xc9] sm:$0xff]
    %v11254 = vld [vmem:[%s10470 + $0xd1] sm:$0xff]
    %v11255 = vld [vmem:[%s10470 + $0xe9] sm:$0xff]
    %v11256 = vld [vmem:[%s10470 + $0xf1] sm:$0xff]
    %v11257 = vld [vmem:[%s10470 + $0x109] sm:$0xff]
    %v11258 = vld [vmem:[%s10470 + $0x111] sm:$0xff]
    %v11259 = vld [vmem:[%s10470 + $0x129] sm:$0xff]
    %v11260 = vld [vmem:[%s10470 + $0x131] sm:$0xff]
    %v11261 = vld [vmem:[%s10470 + $0x149] sm:$0xff]
    %v11262 = vld [vmem:[%s10470 + $0x151] sm:$0xff]
    %v11263 = vld [vmem:[%s10470 + $0x169] sm:$0xff]
    %v11264 = vld [vmem:[%s10470 + $0x171] sm:$0xff]
    %v11265 = vld [vmem:[%s10470 + $0x189] sm:$0xff]
    %v11266 = vld [vmem:[%s10470 + $0x191] sm:$0xff]
    %v11267 = vld [vmem:[%s10470 + $0x1a9] sm:$0xff]
    %v11268 = vld [vmem:[%s10470 + $0x1b1] sm:$0xff]
    %v11269 = vld [vmem:[%s10470 + $0x1c9] sm:$0xff]
    %v11270 = vld [vmem:[%s10470 + $0x1d1] sm:$0xff]
    %v11271 = vld [vmem:[%s10470 + $0x1e9] sm:$0xff]
    %v11272 = vld [vmem:[%s10470 + $0x1f1] sm:$0xff]
    %v11273 = vld [vmem:[%s10470 + $0x249] sm:$0xff]
    %v11274 = vld [vmem:[%s10470 + $0x251] sm:$0xff]
    %v11275 = vld [vmem:[%s10470 + $0x269] sm:$0xff]
    %v11276 = vld [vmem:[%s10470 + $0x271] sm:$0xff]
    %v11277 = vld [vmem:[%s10470 + $0x289] sm:$0xff]
    %v11278 = vld [vmem:[%s10470 + $0x291] sm:$0xff]
    %v11279 = vld [vmem:[%s10470 + $0x2a9] sm:$0xff]
    %v11280 = vld [vmem:[%s10470 + $0x2b1] sm:$0xff]
    %v11281 = vld [vmem:[%s10470 + $0x2c9] sm:$0xff]
    %v11282 = vld [vmem:[%s10470 + $0x2d1] sm:$0xff]
    %v11283 = vld [vmem:[%s10470 + $0x2e9] sm:$0xff]
    %v11284 = vld [vmem:[%s10470 + $0x2f1] sm:$0xff]
    %v11285 = vld [vmem:[%s10470 + $0x309] sm:$0xff]
    %v11286 = vld [vmem:[%s10470 + $0x311] sm:$0xff]
    %v11287 = vld [vmem:[%s10470 + $0x329] sm:$0xff]
    %v11288 = vld [vmem:[%s10470 + $0x331] sm:$0xff]
    %v11289 = vld [vmem:[%s10470 + $0x349] sm:$0xff]
    %v11290 = vld [vmem:[%s10470 + $0x351] sm:$0xff]
    %v11291 = vld [vmem:[%s10470 + $0x369] sm:$0xff]
    %v11292 = vld [vmem:[%s10470 + $0x371] sm:$0xff]
    %v11293 = vld [vmem:[%s10470 + $0x389] sm:$0xff]
    %v11294 = vld [vmem:[%s10470 + $0x391] sm:$0xff]
    %v11295 = vld [vmem:[%s10470 + $0x3a9] sm:$0xff]
    %v11296 = vld [vmem:[%s10470 + $0x3b1] sm:$0xff]
    %v11297 = vld [vmem:[%s10470 + $0x3c9] sm:$0xff]
    %v11298 = vld [vmem:[%s10470 + $0x3d1] sm:$0xff]
    %v11299 = vld [vmem:[%s10470 + $0x3e9] sm:$0xff]
    %v11300 = vld [vmem:[%s10470 + $0x3f1] sm:$0xff]
    %v11301 = vld [vmem:[%s10470 + $0x409] sm:$0xff]
    %v11302 = vld [vmem:[%s10470 + $0x411] sm:$0xff]
    %v11303 = vld [vmem:[%s10470 + $0x429] sm:$0xff]
    %v11304 = vld [vmem:[%s10470 + $0x431] sm:$0xff]
    %11305 = vst.msk [vmem:[#allocation3 + $0x8] sm:$0xff] %vm7106, %v11241
    %11306 = vst.msk [vmem:[#allocation3 + $0x18] sm:$0xff] %vm7106, %v11242
    %11307 = vst.msk [vmem:[#allocation3 + $0x28] sm:$0xff] %vm7106, %v11243
    %11308 = vst.msk [vmem:[#allocation3 + $0x38] sm:$0xff] %vm7106, %v11244
    %11309 = vst.msk [vmem:[#allocation3 + $0x48] sm:$0xff] %vm7106, %v11245
    %11310 = vst.msk [vmem:[#allocation3 + $0x58] sm:$0xff] %vm7106, %v11246
    %11311 = vst.msk [vmem:[#allocation3 + $0x68] sm:$0xff] %vm7106, %v11247
    %11312 = vst.msk [vmem:[#allocation3 + $0x78] sm:$0xff] %vm7106, %v11248
    %11313 = vst.msk [vmem:[#allocation3 + $0x88] sm:$0xff] %vm7106, %v11249
    %11314 = vst.msk [vmem:[#allocation3 + $0x98] sm:$0xff] %vm7106, %v11250
    %11315 = vst.msk [vmem:[#allocation3 + $0xa8] sm:$0xff] %vm7106, %v11251
    %11316 = vst.msk [vmem:[#allocation3 + $0xb8] sm:$0xff] %vm7106, %v11252
    %11317 = vst.msk [vmem:[#allocation3 + $0xc8] sm:$0xff] %vm7106, %v11253
    %11318 = vst.msk [vmem:[#allocation3 + $0xd8] sm:$0xff] %vm7106, %v11254
    %11319 = vst.msk [vmem:[#allocation3 + $0xe8] sm:$0xff] %vm7106, %v11255
    %11320 = vst.msk [vmem:[#allocation3 + $0xf8] sm:$0xff] %vm7106, %v11256
    %11321 = vst.msk [vmem:[#allocation3 + $0x108] sm:$0xff] %vm7106, %v11257
    %11322 = vst.msk [vmem:[#allocation3 + $0x118] sm:$0xff] %vm7106, %v11258
    %11323 = vst.msk [vmem:[#allocation3 + $0x128] sm:$0xff] %vm7106, %v11259
    %11324 = vst.msk [vmem:[#allocation3 + $0x138] sm:$0xff] %vm7106, %v11260
    %11325 = vst.msk [vmem:[#allocation3 + $0x148] sm:$0xff] %vm7106, %v11261
    %11326 = vst.msk [vmem:[#allocation3 + $0x158] sm:$0xff] %vm7106, %v11262
    %11327 = vst.msk [vmem:[#allocation3 + $0x168] sm:$0xff] %vm7106, %v11263
    %11328 = vst.msk [vmem:[#allocation3 + $0x178] sm:$0xff] %vm7106, %v11264
    %11329 = vst.msk [vmem:[#allocation3 + $0x188] sm:$0xff] %vm7106, %v11265
    %11330 = vst.msk [vmem:[#allocation3 + $0x198] sm:$0xff] %vm7106, %v11266
    %11331 = vst.msk [vmem:[#allocation3 + $0x1a8] sm:$0xff] %vm7106, %v11267
    %11332 = vst.msk [vmem:[#allocation3 + $0x1b8] sm:$0xff] %vm7106, %v11268
    %11333 = vst.msk [vmem:[#allocation3 + $0x1c8] sm:$0xff] %vm7106, %v11269
    %11334 = vst.msk [vmem:[#allocation3 + $0x1d8] sm:$0xff] %vm7106, %v11270
    %11335 = vst.msk [vmem:[#allocation3 + $0x1e8] sm:$0xff] %vm7106, %v11271
    %11336 = vst.msk [vmem:[#allocation3 + $0x1f8] sm:$0xff] %vm7106, %v11272
    %11337 = vst.msk [vmem:[#allocation3 + $0x208] sm:$0xff] %vm7106, %v11273
    %11338 = vst.msk [vmem:[#allocation3 + $0x218] sm:$0xff] %vm7106, %v11274
    %11339 = vst.msk [vmem:[#allocation3 + $0x228] sm:$0xff] %vm7106, %v11275
    %11340 = vst.msk [vmem:[#allocation3 + $0x238] sm:$0xff] %vm7106, %v11276
    %11341 = vst.msk [vmem:[#allocation3 + $0x248] sm:$0xff] %vm7106, %v11277
    %11342 = vst.msk [vmem:[#allocation3 + $0x258] sm:$0xff] %vm7106, %v11278
    %11343 = vst.msk [vmem:[#allocation3 + $0x268] sm:$0xff] %vm7106, %v11279
    %11344 = vst.msk [vmem:[#allocation3 + $0x278] sm:$0xff] %vm7106, %v11280
    %11345 = vst.msk [vmem:[#allocation3 + $0x288] sm:$0xff] %vm7106, %v11281
    %11346 = vst.msk [vmem:[#allocation3 + $0x298] sm:$0xff] %vm7106, %v11282
    %11347 = vst.msk [vmem:[#allocation3 + $0x2a8] sm:$0xff] %vm7106, %v11283
    %11348 = vst.msk [vmem:[#allocation3 + $0x2b8] sm:$0xff] %vm7106, %v11284
    %11349 = vst.msk [vmem:[#allocation3 + $0x2c8] sm:$0xff] %vm7106, %v11285
    %11350 = vst.msk [vmem:[#allocation3 + $0x2d8] sm:$0xff] %vm7106, %v11286
    %11351 = vst.msk [vmem:[#allocation3 + $0x2e8] sm:$0xff] %vm7106, %v11287
    %11352 = vst.msk [vmem:[#allocation3 + $0x2f8] sm:$0xff] %vm7106, %v11288
    %11353 = vst.msk [vmem:[#allocation3 + $0x308] sm:$0xff] %vm7106, %v11289
    %11354 = vst.msk [vmem:[#allocation3 + $0x318] sm:$0xff] %vm7106, %v11290
    %11355 = vst.msk [vmem:[#allocation3 + $0x328] sm:$0xff] %vm7106, %v11291
    %11356 = vst.msk [vmem:[#allocation3 + $0x338] sm:$0xff] %vm7106, %v11292
    %11357 = vst.msk [vmem:[#allocation3 + $0x348] sm:$0xff] %vm7106, %v11293
    %11358 = vst.msk [vmem:[#allocation3 + $0x358] sm:$0xff] %vm7106, %v11294
    %11359 = vst.msk [vmem:[#allocation3 + $0x368] sm:$0xff] %vm7106, %v11295
    %11360 = vst.msk [vmem:[#allocation3 + $0x378] sm:$0xff] %vm7106, %v11296
    %11361 = vst.msk [vmem:[#allocation3 + $0x388] sm:$0xff] %vm7106, %v11297
    %11362 = vst.msk [vmem:[#allocation3 + $0x398] sm:$0xff] %vm7106, %v11298
    %11363 = vst.msk [vmem:[#allocation3 + $0x3a8] sm:$0xff] %vm7106, %v11299
    %11364 = vst.msk [vmem:[#allocation3 + $0x3b8] sm:$0xff] %vm7106, %v11300
    %11365 = vst.msk [vmem:[#allocation3 + $0x3c8] sm:$0xff] %vm7106, %v11301
    %11366 = vst.msk [vmem:[#allocation3 + $0x3d8] sm:$0xff] %vm7106, %v11302
    %11367 = vst.msk [vmem:[#allocation3 + $0x3e8] sm:$0xff] %vm7106, %v11303
    %11368 = vst.msk [vmem:[#allocation3 + $0x3f8] sm:$0xff] %vm7106, %v11304
    %v11369 = vld [vmem:[#allocation3] sm:$0xff]
    %v11370 = vld [vmem:[#allocation3 + $0x8] sm:$0xff]
    %v11371 = vld [vmem:[#allocation3 + $0x10] sm:$0xff]
    %v11372 = vld [vmem:[#allocation3 + $0x18] sm:$0xff]
    %v11373 = vld [vmem:[#allocation3 + $0x20] sm:$0xff]
    %v11374 = vld [vmem:[#allocation3 + $0x28] sm:$0xff]
    %v11375 = vld [vmem:[#allocation3 + $0x30] sm:$0xff]
    %v11376 = vld [vmem:[#allocation3 + $0x38] sm:$0xff]
    %v11377 = vld [vmem:[#allocation3 + $0x40] sm:$0xff]
    %v11378 = vld [vmem:[#allocation3 + $0x48] sm:$0xff]
    %v11379 = vld [vmem:[#allocation3 + $0x50] sm:$0xff]
    %v11380 = vld [vmem:[#allocation3 + $0x58] sm:$0xff]
    %v11381 = vld [vmem:[#allocation3 + $0x60] sm:$0xff]
    %v11382 = vld [vmem:[#allocation3 + $0x68] sm:$0xff]
    %v11383 = vld [vmem:[#allocation3 + $0x70] sm:$0xff]
    %v11384 = vld [vmem:[#allocation3 + $0x78] sm:$0xff]
    %v11385 = vld [vmem:[#allocation3 + $0x80] sm:$0xff]
    %v11386 = vld [vmem:[#allocation3 + $0x88] sm:$0xff]
    %v11387 = vld [vmem:[#allocation3 + $0x90] sm:$0xff]
    %v11388 = vld [vmem:[#allocation3 + $0x98] sm:$0xff]
    %v11389 = vld [vmem:[#allocation3 + $0xa0] sm:$0xff]
    %v11390 = vld [vmem:[#allocation3 + $0xa8] sm:$0xff]
    %v11391 = vld [vmem:[#allocation3 + $0xb0] sm:$0xff]
    %v11392 = vld [vmem:[#allocation3 + $0xb8] sm:$0xff]
    %v11393 = vld [vmem:[#allocation3 + $0xc0] sm:$0xff]
    %v11394 = vld [vmem:[#allocation3 + $0xc8] sm:$0xff]
    %v11395 = vld [vmem:[#allocation3 + $0xd0] sm:$0xff]
    %v11396 = vld [vmem:[#allocation3 + $0xd8] sm:$0xff]
    %v11397 = vld [vmem:[#allocation3 + $0xe0] sm:$0xff]
    %v11398 = vld [vmem:[#allocation3 + $0xe8] sm:$0xff]
    %v11399 = vld [vmem:[#allocation3 + $0xf0] sm:$0xff]
    %v11400 = vld [vmem:[#allocation3 + $0xf8] sm:$0xff]
    %v11401 = vld [vmem:[#allocation3 + $0x100] sm:$0xff]
    %v11402 = vld [vmem:[#allocation3 + $0x108] sm:$0xff]
    %v11403 = vld [vmem:[#allocation3 + $0x110] sm:$0xff]
    %v11404 = vld [vmem:[#allocation3 + $0x118] sm:$0xff]
    %v11405 = vld [vmem:[#allocation3 + $0x120] sm:$0xff]
    %v11406 = vld [vmem:[#allocation3 + $0x128] sm:$0xff]
    %v11407 = vld [vmem:[#allocation3 + $0x130] sm:$0xff]
    %v11408 = vld [vmem:[#allocation3 + $0x138] sm:$0xff]
    %v11409 = vld [vmem:[#allocation3 + $0x140] sm:$0xff]
    %v11410 = vld [vmem:[#allocation3 + $0x148] sm:$0xff]
    %v11411 = vld [vmem:[#allocation3 + $0x150] sm:$0xff]
    %v11412 = vld [vmem:[#allocation3 + $0x158] sm:$0xff]
    %v11413 = vld [vmem:[#allocation3 + $0x160] sm:$0xff]
    %v11414 = vld [vmem:[#allocation3 + $0x168] sm:$0xff]
    %v11415 = vld [vmem:[#allocation3 + $0x170] sm:$0xff]
    %v11416 = vld [vmem:[#allocation3 + $0x178] sm:$0xff]
    %v11417 = vld [vmem:[#allocation3 + $0x180] sm:$0xff]
    %v11418 = vld [vmem:[#allocation3 + $0x188] sm:$0xff]
    %v11419 = vld [vmem:[#allocation3 + $0x190] sm:$0xff]
    %v11420 = vld [vmem:[#allocation3 + $0x198] sm:$0xff]
    %v11421 = vld [vmem:[#allocation3 + $0x1a0] sm:$0xff]
    %v11422 = vld [vmem:[#allocation3 + $0x1a8] sm:$0xff]
    %v11423 = vld [vmem:[#allocation3 + $0x1b0] sm:$0xff]
    %v11424 = vld [vmem:[#allocation3 + $0x1b8] sm:$0xff]
    %v11425 = vld [vmem:[#allocation3 + $0x1c0] sm:$0xff]
    %v11426 = vld [vmem:[#allocation3 + $0x1c8] sm:$0xff]
    %v11427 = vld [vmem:[#allocation3 + $0x1d0] sm:$0xff]
    %v11428 = vld [vmem:[#allocation3 + $0x1d8] sm:$0xff]
    %v11429 = vld [vmem:[#allocation3 + $0x1e0] sm:$0xff]
    %v11430 = vld [vmem:[#allocation3 + $0x1e8] sm:$0xff]
    %v11431 = vld [vmem:[#allocation3 + $0x1f0] sm:$0xff]
    %v11432 = vld [vmem:[#allocation3 + $0x1f8] sm:$0xff]
    %v11433 = vld [vmem:[#allocation3 + $0x200] sm:$0xff]
    %v11434 = vld [vmem:[#allocation3 + $0x208] sm:$0xff]
    %v11435 = vld [vmem:[#allocation3 + $0x210] sm:$0xff]
    %v11436 = vld [vmem:[#allocation3 + $0x218] sm:$0xff]
    %v11437 = vld [vmem:[#allocation3 + $0x220] sm:$0xff]
    %v11438 = vld [vmem:[#allocation3 + $0x228] sm:$0xff]
    %v11439 = vld [vmem:[#allocation3 + $0x230] sm:$0xff]
    %v11440 = vld [vmem:[#allocation3 + $0x238] sm:$0xff]
    %v11441 = vld [vmem:[#allocation3 + $0x240] sm:$0xff]
    %v11442 = vld [vmem:[#allocation3 + $0x248] sm:$0xff]
    %v11443 = vld [vmem:[#allocation3 + $0x250] sm:$0xff]
    %v11444 = vld [vmem:[#allocation3 + $0x258] sm:$0xff]
    %v11445 = vld [vmem:[#allocation3 + $0x260] sm:$0xff]
    %v11446 = vld [vmem:[#allocation3 + $0x268] sm:$0xff]
    %v11447 = vld [vmem:[#allocation3 + $0x270] sm:$0xff]
    %v11448 = vld [vmem:[#allocation3 + $0x278] sm:$0xff]
    %v11449 = vld [vmem:[#allocation3 + $0x280] sm:$0xff]
    %v11450 = vld [vmem:[#allocation3 + $0x288] sm:$0xff]
    %v11451 = vld [vmem:[#allocation3 + $0x290] sm:$0xff]
    %v11452 = vld [vmem:[#allocation3 + $0x298] sm:$0xff]
    %v11453 = vld [vmem:[#allocation3 + $0x2a0] sm:$0xff]
    %v11454 = vld [vmem:[#allocation3 + $0x2a8] sm:$0xff]
    %v11455 = vld [vmem:[#allocation3 + $0x2b0] sm:$0xff]
    %v11456 = vld [vmem:[#allocation3 + $0x2b8] sm:$0xff]
    %v11457 = vld [vmem:[#allocation3 + $0x2c0] sm:$0xff]
    %v11458 = vld [vmem:[#allocation3 + $0x2c8] sm:$0xff]
    %v11459 = vld [vmem:[#allocation3 + $0x2d0] sm:$0xff]
    %v11460 = vld [vmem:[#allocation3 + $0x2d8] sm:$0xff]
    %v11461 = vld [vmem:[#allocation3 + $0x2e0] sm:$0xff]
    %v11462 = vld [vmem:[#allocation3 + $0x2e8] sm:$0xff]
    %v11463 = vld [vmem:[#allocation3 + $0x2f0] sm:$0xff]
    %v11464 = vld [vmem:[#allocation3 + $0x2f8] sm:$0xff]
    %v11465 = vld [vmem:[#allocation3 + $0x300] sm:$0xff]
    %v11466 = vld [vmem:[#allocation3 + $0x308] sm:$0xff]
    %v11467 = vld [vmem:[#allocation3 + $0x310] sm:$0xff]
    %v11468 = vld [vmem:[#allocation3 + $0x318] sm:$0xff]
    %v11469 = vld [vmem:[#allocation3 + $0x320] sm:$0xff]
    %v11470 = vld [vmem:[#allocation3 + $0x328] sm:$0xff]
    %v11471 = vld [vmem:[#allocation3 + $0x330] sm:$0xff]
    %v11472 = vld [vmem:[#allocation3 + $0x338] sm:$0xff]
    %v11473 = vld [vmem:[#allocation3 + $0x340] sm:$0xff]
    %v11474 = vld [vmem:[#allocation3 + $0x348] sm:$0xff]
    %v11475 = vld [vmem:[#allocation3 + $0x350] sm:$0xff]
    %v11476 = vld [vmem:[#allocation3 + $0x358] sm:$0xff]
    %v11477 = vld [vmem:[#allocation3 + $0x360] sm:$0xff]
    %v11478 = vld [vmem:[#allocation3 + $0x368] sm:$0xff]
    %v11479 = vld [vmem:[#allocation3 + $0x370] sm:$0xff]
    %v11480 = vld [vmem:[#allocation3 + $0x378] sm:$0xff]
    %v11481 = vld [vmem:[#allocation3 + $0x380] sm:$0xff]
    %v11482 = vld [vmem:[#allocation3 + $0x388] sm:$0xff]
    %v11483 = vld [vmem:[#allocation3 + $0x390] sm:$0xff]
    %v11484 = vld [vmem:[#allocation3 + $0x398] sm:$0xff]
    %v11485 = vld [vmem:[#allocation3 + $0x3a0] sm:$0xff]
    %v11486 = vld [vmem:[#allocation3 + $0x3a8] sm:$0xff]
    %v11487 = vld [vmem:[#allocation3 + $0x3b0] sm:$0xff]
    %v11488 = vld [vmem:[#allocation3 + $0x3b8] sm:$0xff]
    %v11489 = vld [vmem:[#allocation3 + $0x3c0] sm:$0xff]
    %v11490 = vld [vmem:[#allocation3 + $0x3c8] sm:$0xff]
    %v11491 = vld [vmem:[#allocation3 + $0x3d0] sm:$0xff]
    %v11492 = vld [vmem:[#allocation3 + $0x3d8] sm:$0xff]
    %v11493 = vld [vmem:[#allocation3 + $0x3e0] sm:$0xff]
    %v11494 = vld [vmem:[#allocation3 + $0x3e8] sm:$0xff]
    %v11495 = vld [vmem:[#allocation3 + $0x3f0] sm:$0xff]
    %v11496 = vld [vmem:[#allocation3 + $0x3f8] sm:$0xff]
    %v11497 = vpack.c.bf16 %v11371, %v11369
    %v11498 = vpack.c.bf16 %v11372, %v11370
    %v11499 = vpack.c.bf16 %v11375, %v11373
    %v11500 = vpack.c.bf16 %v11376, %v11374
    %v11501 = vpack.c.bf16 %v11379, %v11377
    %v11502 = vpack.c.bf16 %v11380, %v11378
    %v11503 = vpack.c.bf16 %v11383, %v11381
    %v11504 = vpack.c.bf16 %v11384, %v11382
    %v11505 = vpack.c.bf16 %v11387, %v11385
    %v11506 = vpack.c.bf16 %v11388, %v11386
    %v11507 = vpack.c.bf16 %v11391, %v11389
    %v11508 = vpack.c.bf16 %v11392, %v11390
    %v11509 = vpack.c.bf16 %v11395, %v11393
    %v11510 = vpack.c.bf16 %v11396, %v11394
    %v11511 = vpack.c.bf16 %v11399, %v11397
    %v11512 = vpack.c.bf16 %v11400, %v11398
    %v11513 = vpack.c.bf16 %v11403, %v11401
    %v11514 = vpack.c.bf16 %v11404, %v11402
    %v11515 = vpack.c.bf16 %v11407, %v11405
    %v11516 = vpack.c.bf16 %v11408, %v11406
    %v11517 = vpack.c.bf16 %v11411, %v11409
    %v11518 = vpack.c.bf16 %v11412, %v11410
    %v11519 = vpack.c.bf16 %v11415, %v11413
    %v11520 = vpack.c.bf16 %v11416, %v11414
    %v11521 = vpack.c.bf16 %v11419, %v11417
    %v11522 = vpack.c.bf16 %v11420, %v11418
    %v11523 = vpack.c.bf16 %v11423, %v11421
    %v11524 = vpack.c.bf16 %v11424, %v11422
    %v11525 = vpack.c.bf16 %v11427, %v11425
    %v11526 = vpack.c.bf16 %v11428, %v11426
    %v11527 = vpack.c.bf16 %v11431, %v11429
    %v11528 = vpack.c.bf16 %v11432, %v11430
    %v11529 = vpack.c.bf16 %v11435, %v11433
    %v11530 = vpack.c.bf16 %v11436, %v11434
    %v11531 = vpack.c.bf16 %v11439, %v11437
    %v11532 = vpack.c.bf16 %v11440, %v11438
    %v11533 = vpack.c.bf16 %v11443, %v11441
    %v11534 = vpack.c.bf16 %v11444, %v11442
    %v11535 = vpack.c.bf16 %v11447, %v11445
    %v11536 = vpack.c.bf16 %v11448, %v11446
    %v11537 = vpack.c.bf16 %v11451, %v11449
    %v11538 = vpack.c.bf16 %v11452, %v11450
    %v11539 = vpack.c.bf16 %v11455, %v11453
    %v11540 = vpack.c.bf16 %v11456, %v11454
    %v11541 = vpack.c.bf16 %v11459, %v11457
    %v11542 = vpack.c.bf16 %v11460, %v11458
    %v11543 = vpack.c.bf16 %v11463, %v11461
    %v11544 = vpack.c.bf16 %v11464, %v11462
    %v11545 = vpack.c.bf16 %v11467, %v11465
    %v11546 = vpack.c.bf16 %v11468, %v11466
    %v11547 = vpack.c.bf16 %v11471, %v11469
    %v11548 = vpack.c.bf16 %v11472, %v11470
    %v11549 = vpack.c.bf16 %v11475, %v11473
    %v11550 = vpack.c.bf16 %v11476, %v11474
    %v11551 = vpack.c.bf16 %v11479, %v11477
    %v11552 = vpack.c.bf16 %v11480, %v11478
    %v11553 = vpack.c.bf16 %v11483, %v11481
    %v11554 = vpack.c.bf16 %v11484, %v11482
    %v11555 = vpack.c.bf16 %v11487, %v11485
    %v11556 = vpack.c.bf16 %v11488, %v11486
    %v11557 = vpack.c.bf16 %v11491, %v11489
    %v11558 = vpack.c.bf16 %v11492, %v11490
    %v11559 = vpack.c.bf16 %v11495, %v11493
    %v11560 = vpack.c.bf16 %v11496, %v11494
    %v11561 = vld [vmem:[%s6] sm:$0xff]
    %v11562 = vld [vmem:[%s6 + $0x8] sm:$0xff]
    %v11563 = vld [vmem:[%s6 + $0x10] sm:$0xff]
    %v11564 = vld [vmem:[%s6 + $0x18] sm:$0xff]
    %v11565 = vld [vmem:[%s6 + $0x20] sm:$0xff]
    %v11566 = vld [vmem:[%s6 + $0x28] sm:$0xff]
    %v11567 = vld [vmem:[%s6 + $0x30] sm:$0xff]
    %v11568 = vld [vmem:[%s6 + $0x38] sm:$0xff]
    %v11569 = vld [vmem:[%s6 + $0x40] sm:$0xff]
    %v11570 = vld [vmem:[%s6 + $0x48] sm:$0xff]
    %v11571 = vld [vmem:[%s6 + $0x50] sm:$0xff]
    %v11572 = vld [vmem:[%s6 + $0x58] sm:$0xff]
    %v11573 = vld [vmem:[%s6 + $0x60] sm:$0xff]
    %v11574 = vld [vmem:[%s6 + $0x68] sm:$0xff]
    %v11575 = vld [vmem:[%s6 + $0x70] sm:$0xff]
    %v11576 = vld [vmem:[%s6 + $0x78] sm:$0xff]
    %v11577 = vld [vmem:[%s6 + $0x80] sm:$0xff]
    %v11578 = vld [vmem:[%s6 + $0x88] sm:$0xff]
    %v11579 = vpack.c.bf16 %v11562, %v11561
    %v11580 = vpack.c.bf16 %v11564, %v11563
    %v11581 = vpack.c.bf16 %v11566, %v11565
    %v11582 = vpack.c.bf16 %v11568, %v11567
    %v11583 = vpack.c.bf16 %v11570, %v11569
    %v11584 = vpack.c.bf16 %v11572, %v11571
    %v11585 = vpack.c.bf16 %v11574, %v11573
    %v11586 = vpack.c.bf16 %v11576, %v11575
    %v11587 = vpack.c.bf16 %v11578, %v11577
    %v11588 = vld [vmem:[%s7] sm:$0x1]
    %v11590 = vlaneseq
    %v11591 = vshrl.u32 %v11590, 7
    %v11592 = vsub.s32 0, %v11591
    %v11593 = vrot.slane %v11588, %v11592
    %v11596 = vsel %vm7106, %v11498, 0
    %v11599 = vsel %vm7106, %v11500, 0
    %v11602 = vsel %vm7106, %v11502, 0
    %v11605 = vsel %vm7106, %v11504, 0
    %v11608 = vsel %vm7106, %v11506, 0
    %v11611 = vsel %vm7106, %v11508, 0
    %v11614 = vsel %vm7106, %v11510, 0
    %v11617 = vsel %vm7106, %v11512, 0
    %v11620 = vsel %vm7106, %v11514, 0
    %v11623 = vsel %vm7106, %v11516, 0
    %v11626 = vsel %vm7106, %v11518, 0
    %v11629 = vsel %vm7106, %v11520, 0
    %v11632 = vsel %vm7106, %v11522, 0
    %v11635 = vsel %vm7106, %v11524, 0
    %v11638 = vsel %vm7106, %v11526, 0
    %v11641 = vsel %vm7106, %v11528, 0
    %v11644 = vsel %vm7106, %v11530, 0
    %v11647 = vsel %vm7106, %v11532, 0
    %v11650 = vsel %vm7106, %v11534, 0
    %v11653 = vsel %vm7106, %v11536, 0
    %v11656 = vsel %vm7106, %v11538, 0
    %v11659 = vsel %vm7106, %v11540, 0
    %v11662 = vsel %vm7106, %v11542, 0
    %v11665 = vsel %vm7106, %v11544, 0
    %v11668 = vsel %vm7106, %v11546, 0
    %v11671 = vsel %vm7106, %v11548, 0
    %v11674 = vsel %vm7106, %v11550, 0
    %v11677 = vsel %vm7106, %v11552, 0
    %v11680 = vsel %vm7106, %v11554, 0
    %v11683 = vsel %vm7106, %v11556, 0
    %v11686 = vsel %vm7106, %v11558, 0
    %v11689 = vsel %vm7106, %v11560, 0
    %11691 = vmatprep.subr.bf16.mxu0 0
    %11692 = vmatpush1.bf16.msra.mxu0 %v11586
    %11693 = vmatprep.subr.bf16.mxu0 0
    %11694 = vmatpush1.bf16.msra.mxu0 %v11585
    %11695 = vmatprep.subr.bf16.mxu0 0
    %11696 = vmatpush1.bf16.msra.mxu0 %v11584
    %11697 = vmatprep.subr.bf16.mxu0 0
    %11698 = vmatpush1.bf16.msra.mxu0 %v11583
    %11699 = vmatprep.subr.bf16.mxu0 0
    %11700 = vmatpush1.bf16.msra.mxu0 %v11582
    %11701 = vmatprep.subr.bf16.mxu0 0
    %11702 = vmatpush1.bf16.msra.mxu0 %v11581
    %11703 = vmatprep.subr.bf16.mxu0 0
    %11704 = vmatpush1.bf16.msra.mxu0 %v11580
    %11705 = vmatprep.subr.bf16.mxu0 0
    %11706 = vmatpush1.bf16.msra.mxu0 %v11579
    %11707 = vmatprep.subr.bf16.mxu0 0
    %11708 = vmatpush2.bf16.msra.mxu0 0
    %11709 = vmatprep.subr.bf16.mxu0 0
    %11710 = vmatpush2.bf16.msra.mxu0 0
    %11711 = vmatprep.subr.bf16.mxu0 0
    %11712 = vmatpush2.bf16.msra.mxu0 0
    %11713 = vmatprep.subr.bf16.mxu0 0
    %11714 = vmatpush2.bf16.msra.mxu0 0
    %11715 = vmatprep.subr.bf16.mxu0 0
    %11716 = vmatpush2.bf16.msra.mxu0 0
    %11717 = vmatprep.subr.bf16.mxu0 0
    %11718 = vmatpush2.bf16.msra.mxu0 0
    %11719 = vmatprep.subr.bf16.mxu0 0
    %11720 = vmatpush2.bf16.msra.mxu0 0
    %11721 = vmatprep.subr.bf16.mxu0 0
    %11722 = vmatpush2.bf16.msra.mxu0 %v11587
    %11723 = vmatprep.mubr.bf16.mxu0 %v11596
    %11724 = vmatmul.mubr.bf16.gmra.mxu0 %v11497
    %v11725 = vpop.f32.mrf.mxu0
    %v11726 = vadd.f32 %v11593, %v11725
    %v11727 = vpop.f32.mrf.mxu0
    %v11728 = vpop.f32.mrf.mxu0
    %v11729 = vadd.f32 %v11593, %v11728
    %v11730 = vpop.f32.mrf.mxu0
    %11731 = vmatprep.mubr.bf16.mxu0 %v11599
    %11732 = vmatmul.mubr.bf16.gmra.mxu0 %v11499
    %v11733 = vpop.f32.mrf.mxu0
    %v11734 = vadd.f32 %v11593, %v11733
    %v11735 = vpop.f32.mrf.mxu0
    %v11736 = vpop.f32.mrf.mxu0
    %v11737 = vadd.f32 %v11593, %v11736
    %v11738 = vpop.f32.mrf.mxu0
    %11739 = vmatprep.mubr.bf16.mxu0 %v11602
    %11740 = vmatmul.mubr.bf16.gmra.mxu0 %v11501
    %v11741 = vpop.f32.mrf.mxu0
    %v11742 = vadd.f32 %v11593, %v11741
    %v11743 = vpop.f32.mrf.mxu0
    %v11744 = vpop.f32.mrf.mxu0
    %v11745 = vadd.f32 %v11593, %v11744
    %v11746 = vpop.f32.mrf.mxu0
    %11747 = vmatprep.mubr.bf16.mxu0 %v11605
    %11748 = vmatmul.mubr.bf16.gmra.mxu0 %v11503
    %v11749 = vpop.f32.mrf.mxu0
    %v11750 = vadd.f32 %v11593, %v11749
    %v11751 = vpop.f32.mrf.mxu0
    %v11752 = vpop.f32.mrf.mxu0
    %v11753 = vadd.f32 %v11593, %v11752
    %v11754 = vpop.f32.mrf.mxu0
    %11755 = vmatprep.mubr.bf16.mxu0 %v11608
    %11756 = vmatmul.mubr.bf16.gmra.mxu0 %v11505
    %v11757 = vpop.f32.mrf.mxu0
    %v11758 = vadd.f32 %v11593, %v11757
    %v11759 = vpop.f32.mrf.mxu0
    %v11760 = vpop.f32.mrf.mxu0
    %v11761 = vadd.f32 %v11593, %v11760
    %v11762 = vpop.f32.mrf.mxu0
    %11763 = vmatprep.mubr.bf16.mxu0 %v11611
    %11764 = vmatmul.mubr.bf16.gmra.mxu0 %v11507
    %v11765 = vpop.f32.mrf.mxu0
    %v11766 = vadd.f32 %v11593, %v11765
    %v11767 = vpop.f32.mrf.mxu0
    %v11768 = vpop.f32.mrf.mxu0
    %v11769 = vadd.f32 %v11593, %v11768
    %v11770 = vpop.f32.mrf.mxu0
    %11771 = vmatprep.mubr.bf16.mxu0 %v11614
    %11772 = vmatmul.mubr.bf16.gmra.mxu0 %v11509
    %v11773 = vpop.f32.mrf.mxu0
    %v11774 = vadd.f32 %v11593, %v11773
    %v11775 = vpop.f32.mrf.mxu0
    %v11776 = vpop.f32.mrf.mxu0
    %v11777 = vadd.f32 %v11593, %v11776
    %v11778 = vpop.f32.mrf.mxu0
    %11779 = vmatprep.mubr.bf16.mxu0 %v11617
    %11780 = vmatmul.mubr.bf16.gmra.mxu0 %v11511
    %v11781 = vpop.f32.mrf.mxu0
    %v11782 = vadd.f32 %v11593, %v11781
    %v11783 = vpop.f32.mrf.mxu0
    %v11784 = vpop.f32.mrf.mxu0
    %v11785 = vadd.f32 %v11593, %v11784
    %v11786 = vpop.f32.mrf.mxu0
    %11787 = vmatprep.mubr.bf16.mxu0 %v11620
    %11788 = vmatmul.mubr.bf16.gmra.mxu0 %v11513
    %v11789 = vpop.f32.mrf.mxu0
    %v11790 = vadd.f32 %v11593, %v11789
    %v11791 = vpop.f32.mrf.mxu0
    %v11792 = vpop.f32.mrf.mxu0
    %v11793 = vadd.f32 %v11593, %v11792
    %v11794 = vpop.f32.mrf.mxu0
    %11795 = vmatprep.mubr.bf16.mxu0 %v11623
    %11796 = vmatmul.mubr.bf16.gmra.mxu0 %v11515
    %v11797 = vpop.f32.mrf.mxu0
    %v11798 = vadd.f32 %v11593, %v11797
    %v11799 = vpop.f32.mrf.mxu0
    %v11800 = vpop.f32.mrf.mxu0
    %v11801 = vadd.f32 %v11593, %v11800
    %v11802 = vpop.f32.mrf.mxu0
    %11803 = vmatprep.mubr.bf16.mxu0 %v11626
    %11804 = vmatmul.mubr.bf16.gmra.mxu0 %v11517
    %v11805 = vpop.f32.mrf.mxu0
    %v11806 = vadd.f32 %v11593, %v11805
    %v11807 = vpop.f32.mrf.mxu0
    %v11808 = vpop.f32.mrf.mxu0
    %v11809 = vadd.f32 %v11593, %v11808
    %v11810 = vpop.f32.mrf.mxu0
    %11811 = vmatprep.mubr.bf16.mxu0 %v11629
    %11812 = vmatmul.mubr.bf16.gmra.mxu0 %v11519
    %v11813 = vpop.f32.mrf.mxu0
    %v11814 = vadd.f32 %v11593, %v11813
    %v11815 = vpop.f32.mrf.mxu0
    %v11816 = vpop.f32.mrf.mxu0
    %v11817 = vadd.f32 %v11593, %v11816
    %v11818 = vpop.f32.mrf.mxu0
    %11819 = vmatprep.mubr.bf16.mxu0 %v11632
    %11820 = vmatmul.mubr.bf16.gmra.mxu0 %v11521
    %v11821 = vpop.f32.mrf.mxu0
    %v11822 = vadd.f32 %v11593, %v11821
    %v11823 = vpop.f32.mrf.mxu0
    %v11824 = vpop.f32.mrf.mxu0
    %v11825 = vadd.f32 %v11593, %v11824
    %v11826 = vpop.f32.mrf.mxu0
    %11827 = vmatprep.mubr.bf16.mxu0 %v11635
    %11828 = vmatmul.mubr.bf16.gmra.mxu0 %v11523
    %v11829 = vpop.f32.mrf.mxu0
    %v11830 = vadd.f32 %v11593, %v11829
    %v11831 = vpop.f32.mrf.mxu0
    %v11832 = vpop.f32.mrf.mxu0
    %v11833 = vadd.f32 %v11593, %v11832
    %v11834 = vpop.f32.mrf.mxu0
    %11835 = vmatprep.mubr.bf16.mxu0 %v11638
    %11836 = vmatmul.mubr.bf16.gmra.mxu0 %v11525
    %v11837 = vpop.f32.mrf.mxu0
    %v11838 = vadd.f32 %v11593, %v11837
    %v11839 = vpop.f32.mrf.mxu0
    %v11840 = vpop.f32.mrf.mxu0
    %v11841 = vadd.f32 %v11593, %v11840
    %v11842 = vpop.f32.mrf.mxu0
    %11843 = vmatprep.mubr.bf16.mxu0 %v11641
    %11844 = vmatmul.mubr.bf16.gmra.mxu0 %v11527
    %v11845 = vpop.f32.mrf.mxu0
    %v11846 = vadd.f32 %v11593, %v11845
    %v11847 = vpop.f32.mrf.mxu0
    %v11848 = vpop.f32.mrf.mxu0
    %v11849 = vadd.f32 %v11593, %v11848
    %v11850 = vpop.f32.mrf.mxu0
    %11851 = vmatprep.mubr.bf16.mxu0 %v11644
    %11852 = vmatmul.mubr.bf16.gmra.mxu0 %v11529
    %v11853 = vpop.f32.mrf.mxu0
    %v11854 = vadd.f32 %v11593, %v11853
    %v11855 = vpop.f32.mrf.mxu0
    %v11856 = vpop.f32.mrf.mxu0
    %v11857 = vadd.f32 %v11593, %v11856
    %v11858 = vpop.f32.mrf.mxu0
    %11859 = vmatprep.mubr.bf16.mxu0 %v11647
    %11860 = vmatmul.mubr.bf16.gmra.mxu0 %v11531
    %v11861 = vpop.f32.mrf.mxu0
    %v11862 = vadd.f32 %v11593, %v11861
    %v11863 = vpop.f32.mrf.mxu0
    %v11864 = vpop.f32.mrf.mxu0
    %v11865 = vadd.f32 %v11593, %v11864
    %v11866 = vpop.f32.mrf.mxu0
    %11867 = vmatprep.mubr.bf16.mxu0 %v11650
    %11868 = vmatmul.mubr.bf16.gmra.mxu0 %v11533
    %v11869 = vpop.f32.mrf.mxu0
    %v11870 = vadd.f32 %v11593, %v11869
    %v11871 = vpop.f32.mrf.mxu0
    %v11872 = vpop.f32.mrf.mxu0
    %v11873 = vadd.f32 %v11593, %v11872
    %v11874 = vpop.f32.mrf.mxu0
    %11875 = vmatprep.mubr.bf16.mxu0 %v11653
    %11876 = vmatmul.mubr.bf16.gmra.mxu0 %v11535
    %v11877 = vpop.f32.mrf.mxu0
    %v11878 = vadd.f32 %v11593, %v11877
    %v11879 = vpop.f32.mrf.mxu0
    %v11880 = vpop.f32.mrf.mxu0
    %v11881 = vadd.f32 %v11593, %v11880
    %v11882 = vpop.f32.mrf.mxu0
    %11883 = vmatprep.mubr.bf16.mxu0 %v11656
    %11884 = vmatmul.mubr.bf16.gmra.mxu0 %v11537
    %v11885 = vpop.f32.mrf.mxu0
    %v11886 = vadd.f32 %v11593, %v11885
    %v11887 = vpop.f32.mrf.mxu0
    %v11888 = vpop.f32.mrf.mxu0
    %v11889 = vadd.f32 %v11593, %v11888
    %v11890 = vpop.f32.mrf.mxu0
    %11891 = vmatprep.mubr.bf16.mxu0 %v11659
    %11892 = vmatmul.mubr.bf16.gmra.mxu0 %v11539
    %v11893 = vpop.f32.mrf.mxu0
    %v11894 = vadd.f32 %v11593, %v11893
    %v11895 = vpop.f32.mrf.mxu0
    %v11896 = vpop.f32.mrf.mxu0
    %v11897 = vadd.f32 %v11593, %v11896
    %v11898 = vpop.f32.mrf.mxu0
    %11899 = vmatprep.mubr.bf16.mxu0 %v11662
    %11900 = vmatmul.mubr.bf16.gmra.mxu0 %v11541
    %v11901 = vpop.f32.mrf.mxu0
    %v11902 = vadd.f32 %v11593, %v11901
    %v11903 = vpop.f32.mrf.mxu0
    %v11904 = vpop.f32.mrf.mxu0
    %v11905 = vadd.f32 %v11593, %v11904
    %v11906 = vpop.f32.mrf.mxu0
    %11907 = vmatprep.mubr.bf16.mxu0 %v11665
    %11908 = vmatmul.mubr.bf16.gmra.mxu0 %v11543
    %v11909 = vpop.f32.mrf.mxu0
    %v11910 = vadd.f32 %v11593, %v11909
    %v11911 = vpop.f32.mrf.mxu0
    %v11912 = vpop.f32.mrf.mxu0
    %v11913 = vadd.f32 %v11593, %v11912
    %v11914 = vpop.f32.mrf.mxu0
    %11915 = vmatprep.mubr.bf16.mxu0 %v11668
    %11916 = vmatmul.mubr.bf16.gmra.mxu0 %v11545
    %v11917 = vpop.f32.mrf.mxu0
    %v11918 = vadd.f32 %v11593, %v11917
    %v11919 = vpop.f32.mrf.mxu0
    %v11920 = vpop.f32.mrf.mxu0
    %v11921 = vadd.f32 %v11593, %v11920
    %v11922 = vpop.f32.mrf.mxu0
    %11923 = vmatprep.mubr.bf16.mxu0 %v11671
    %11924 = vmatmul.mubr.bf16.gmra.mxu0 %v11547
    %v11925 = vpop.f32.mrf.mxu0
    %v11926 = vadd.f32 %v11593, %v11925
    %v11927 = vpop.f32.mrf.mxu0
    %v11928 = vpop.f32.mrf.mxu0
    %v11929 = vadd.f32 %v11593, %v11928
    %v11930 = vpop.f32.mrf.mxu0
    %11931 = vmatprep.mubr.bf16.mxu0 %v11674
    %11932 = vmatmul.mubr.bf16.gmra.mxu0 %v11549
    %v11933 = vpop.f32.mrf.mxu0
    %v11934 = vadd.f32 %v11593, %v11933
    %v11935 = vpop.f32.mrf.mxu0
    %v11936 = vpop.f32.mrf.mxu0
    %v11937 = vadd.f32 %v11593, %v11936
    %v11938 = vpop.f32.mrf.mxu0
    %11939 = vmatprep.mubr.bf16.mxu0 %v11677
    %11940 = vmatmul.mubr.bf16.gmra.mxu0 %v11551
    %v11941 = vpop.f32.mrf.mxu0
    %v11942 = vadd.f32 %v11593, %v11941
    %v11943 = vpop.f32.mrf.mxu0
    %v11944 = vpop.f32.mrf.mxu0
    %v11945 = vadd.f32 %v11593, %v11944
    %v11946 = vpop.f32.mrf.mxu0
    %11947 = vmatprep.mubr.bf16.mxu0 %v11680
    %11948 = vmatmul.mubr.bf16.gmra.mxu0 %v11553
    %v11949 = vpop.f32.mrf.mxu0
    %v11950 = vadd.f32 %v11593, %v11949
    %v11951 = vpop.f32.mrf.mxu0
    %v11952 = vpop.f32.mrf.mxu0
    %v11953 = vadd.f32 %v11593, %v11952
    %v11954 = vpop.f32.mrf.mxu0
    %11955 = vmatprep.mubr.bf16.mxu0 %v11683
    %11956 = vmatmul.mubr.bf16.gmra.mxu0 %v11555
    %v11957 = vpop.f32.mrf.mxu0
    %v11958 = vadd.f32 %v11593, %v11957
    %v11959 = vpop.f32.mrf.mxu0
    %v11960 = vpop.f32.mrf.mxu0
    %v11961 = vadd.f32 %v11593, %v11960
    %v11962 = vpop.f32.mrf.mxu0
    %11963 = vmatprep.mubr.bf16.mxu0 %v11686
    %11964 = vmatmul.mubr.bf16.gmra.mxu0 %v11557
    %v11965 = vpop.f32.mrf.mxu0
    %v11966 = vadd.f32 %v11593, %v11965
    %v11967 = vpop.f32.mrf.mxu0
    %v11968 = vpop.f32.mrf.mxu0
    %v11969 = vadd.f32 %v11593, %v11968
    %v11970 = vpop.f32.mrf.mxu0
    %11971 = vmatprep.mubr.bf16.mxu0 %v11689
    %11972 = vmatmul.mubr.bf16.gmra.mxu0 %v11559
    %v11973 = vpop.f32.mrf.mxu0
    %v11974 = vadd.f32 %v11593, %v11973
    %v11975 = vpop.f32.mrf.mxu0
    %v11976 = vpop.f32.mrf.mxu0
    %v11977 = vadd.f32 %v11593, %v11976
    %v11978 = vpop.f32.mrf.mxu0
    %11979 = vdwg.mxu0
    %v11980 = vmax.f32 %v11726, 0.0
    %v11981 = vmax.f32 %v11729, 0.0
    %v11982 = vmax.f32 %v11734, 0.0
    %v11983 = vmax.f32 %v11737, 0.0
    %v11984 = vmax.f32 %v11742, 0.0
    %v11985 = vmax.f32 %v11745, 0.0
    %v11986 = vmax.f32 %v11750, 0.0
    %v11987 = vmax.f32 %v11753, 0.0
    %v11988 = vmax.f32 %v11758, 0.0
    %v11989 = vmax.f32 %v11761, 0.0
    %v11990 = vmax.f32 %v11766, 0.0
    %v11991 = vmax.f32 %v11769, 0.0
    %v11992 = vmax.f32 %v11774, 0.0
    %v11993 = vmax.f32 %v11777, 0.0
    %v11994 = vmax.f32 %v11782, 0.0
    %v11995 = vmax.f32 %v11785, 0.0
    %v11996 = vmax.f32 %v11790, 0.0
    %v11997 = vmax.f32 %v11793, 0.0
    %v11998 = vmax.f32 %v11798, 0.0
    %v11999 = vmax.f32 %v11801, 0.0
    %v12000 = vmax.f32 %v11806, 0.0
    %v12001 = vmax.f32 %v11809, 0.0
    %v12002 = vmax.f32 %v11814, 0.0
    %v12003 = vmax.f32 %v11817, 0.0
    %v12004 = vmax.f32 %v11822, 0.0
    %v12005 = vmax.f32 %v11825, 0.0
    %v12006 = vmax.f32 %v11830, 0.0
    %v12007 = vmax.f32 %v11833, 0.0
    %v12008 = vmax.f32 %v11838, 0.0
    %v12009 = vmax.f32 %v11841, 0.0
    %v12010 = vmax.f32 %v11846, 0.0
    %v12011 = vmax.f32 %v11849, 0.0
    %v12012 = vmax.f32 %v11854, 0.0
    %v12013 = vmax.f32 %v11857, 0.0
    %v12014 = vmax.f32 %v11862, 0.0
    %v12015 = vmax.f32 %v11865, 0.0
    %v12016 = vmax.f32 %v11870, 0.0
    %v12017 = vmax.f32 %v11873, 0.0
    %v12018 = vmax.f32 %v11878, 0.0
    %v12019 = vmax.f32 %v11881, 0.0
    %v12020 = vmax.f32 %v11886, 0.0
    %v12021 = vmax.f32 %v11889, 0.0
    %v12022 = vmax.f32 %v11894, 0.0
    %v12023 = vmax.f32 %v11897, 0.0
    %v12024 = vmax.f32 %v11902, 0.0
    %v12025 = vmax.f32 %v11905, 0.0
    %v12026 = vmax.f32 %v11910, 0.0
    %v12027 = vmax.f32 %v11913, 0.0
    %v12028 = vmax.f32 %v11918, 0.0
    %v12029 = vmax.f32 %v11921, 0.0
    %v12030 = vmax.f32 %v11926, 0.0
    %v12031 = vmax.f32 %v11929, 0.0
    %v12032 = vmax.f32 %v11934, 0.0
    %v12033 = vmax.f32 %v11937, 0.0
    %v12034 = vmax.f32 %v11942, 0.0
    %v12035 = vmax.f32 %v11945, 0.0
    %v12036 = vmax.f32 %v11950, 0.0
    %v12037 = vmax.f32 %v11953, 0.0
    %v12038 = vmax.f32 %v11958, 0.0
    %v12039 = vmax.f32 %v11961, 0.0
    %v12040 = vmax.f32 %v11966, 0.0
    %v12041 = vmax.f32 %v11969, 0.0
    %v12042 = vmax.f32 %v11974, 0.0
    %v12043 = vmax.f32 %v11977, 0.0
    %v12044 = vld [vmem:[%s8] sm:$0xff]
    %v12046 = vcombine.high %v12044, %v12044
    %v12048 = vunpack.c.l.s4 1983009808
    %v12049 = vunpack.c.0.s8 %v12048
    %v12050 = vlaneseq
    %v12051 = vshrl.u32 %v12050, 7
    %v12052 = vsub.s32 %v12049, %v12051
    %v12053 = vrot.slane %v12044, %v12052
    %v12055 = vunpack.c.l.s4 1983009808
    %v12056 = vunpack.c.0.s8 %v12055
    %v12057 = vlaneseq
    %v12058 = vshrl.u32 %v12057, 7
    %v12059 = vsub.s32 %v12056, %v12058
    %v12060 = vrot.slane %v12046, %v12059
    %v12061 = vcombine.high %v12053, %v12053
    %v12062 = vcombine.high %v12060, %v12060
    %v12067 = vpack.c.bf16 %v12053, %v12053
    %v12068 = vpack.c.bf16 %v12061, %v12061
    %v12069 = vpack.c.bf16 %v12060, %v12060
    %v12070 = vpack.c.bf16 %v12062, %v12062
    %v12071 = vpack.c.bf16 %v11981, %v11980
    %v12072 = vpack.c.bf16 %v11983, %v11982
    %v12073 = vpack.c.bf16 %v11985, %v11984
    %v12074 = vpack.c.bf16 %v11987, %v11986
    %v12075 = vpack.c.bf16 %v11989, %v11988
    %v12076 = vpack.c.bf16 %v11991, %v11990
    %v12077 = vpack.c.bf16 %v11993, %v11992
    %v12078 = vpack.c.bf16 %v11995, %v11994
    %v12079 = vpack.c.bf16 %v11997, %v11996
    %v12080 = vpack.c.bf16 %v11999, %v11998
    %v12081 = vpack.c.bf16 %v12001, %v12000
    %v12082 = vpack.c.bf16 %v12003, %v12002
    %v12083 = vpack.c.bf16 %v12005, %v12004
    %v12084 = vpack.c.bf16 %v12007, %v12006
    %v12085 = vpack.c.bf16 %v12009, %v12008
    %v12086 = vpack.c.bf16 %v12011, %v12010
    %v12087 = vpack.c.bf16 %v12013, %v12012
    %v12088 = vpack.c.bf16 %v12015, %v12014
    %v12089 = vpack.c.bf16 %v12017, %v12016
    %v12090 = vpack.c.bf16 %v12019, %v12018
    %v12091 = vpack.c.bf16 %v12021, %v12020
    %v12092 = vpack.c.bf16 %v12023, %v12022
    %v12093 = vpack.c.bf16 %v12025, %v12024
    %v12094 = vpack.c.bf16 %v12027, %v12026
    %v12095 = vpack.c.bf16 %v12029, %v12028
    %v12096 = vpack.c.bf16 %v12031, %v12030
    %v12097 = vpack.c.bf16 %v12033, %v12032
    %v12098 = vpack.c.bf16 %v12035, %v12034
    %v12099 = vpack.c.bf16 %v12037, %v12036
    %v12100 = vpack.c.bf16 %v12039, %v12038
    %v12101 = vpack.c.bf16 %v12041, %v12040
    %v12102 = vpack.c.bf16 %v12043, %v12042
    %12103 = vmatprep.subr.bf16.mxu0 0
    %12104 = vmatpush1.bf16.msra.mxu0 %v12078
    %12105 = vmatprep.subr.bf16.mxu0 0
    %12106 = vmatpush1.bf16.msra.mxu0 %v12077
    %12107 = vmatprep.subr.bf16.mxu0 0
    %12108 = vmatpush1.bf16.msra.mxu0 %v12076
    %12109 = vmatprep.subr.bf16.mxu0 0
    %12110 = vmatpush1.bf16.msra.mxu0 %v12075
    %12111 = vmatprep.subr.bf16.mxu0 0
    %12112 = vmatpush1.bf16.msra.mxu0 %v12074
    %12113 = vmatprep.subr.bf16.mxu0 0
    %12114 = vmatpush1.bf16.msra.mxu0 %v12073
    %12115 = vmatprep.subr.bf16.mxu0 0
    %12116 = vmatpush1.bf16.msra.mxu0 %v12072
    %12117 = vmatprep.subr.bf16.mxu0 0
    %12118 = vmatpush1.bf16.msra.mxu0 %v12071
    %12119 = vmatprep.subr.bf16.mxu0 0
    %12120 = vmatpush2.bf16.msra.mxu0 %v12086
    %12121 = vmatprep.subr.bf16.mxu0 0
    %12122 = vmatpush2.bf16.msra.mxu0 %v12085
    %12123 = vmatprep.subr.bf16.mxu0 0
    %12124 = vmatpush2.bf16.msra.mxu0 %v12084
    %12125 = vmatprep.subr.bf16.mxu0 0
    %12126 = vmatpush2.bf16.msra.mxu0 %v12083
    %12127 = vmatprep.subr.bf16.mxu0 0
    %12128 = vmatpush2.bf16.msra.mxu0 %v12082
    %12129 = vmatprep.subr.bf16.mxu0 0
    %12130 = vmatpush2.bf16.msra.mxu0 %v12081
    %12131 = vmatprep.subr.bf16.mxu0 0
    %12132 = vmatpush2.bf16.msra.mxu0 %v12080
    %12133 = vmatprep.subr.bf16.mxu0 0
    %12134 = vmatpush2.bf16.msra.mxu0 %v12079
    %12135 = vmatprep.mubr.bf16.mxu0 %v12068
    %12136 = vmatmul.mubr.bf16.gmra.mxu0 %v12067
    %v12137 = vpop.f32.mrf.mxu0
    %v12138 = vadd.f32 0.0, %v12137
    %v12139 = vpop.f32.mrf.mxu0
    %v12140 = vpop.f32.mrf.mxu0
    %v12141 = vpop.f32.mrf.mxu0
    %12142 = vdwg.mxu0
    %12143 = vmatprep.subr.bf16.mxu0 0
    %12144 = vmatpush1.bf16.msra.mxu0 %v12094
    %12145 = vmatprep.subr.bf16.mxu0 0
    %12146 = vmatpush1.bf16.msra.mxu0 %v12093
    %12147 = vmatprep.subr.bf16.mxu0 0
    %12148 = vmatpush1.bf16.msra.mxu0 %v12092
    %12149 = vmatprep.subr.bf16.mxu0 0
    %12150 = vmatpush1.bf16.msra.mxu0 %v12091
    %12151 = vmatprep.subr.bf16.mxu0 0
    %12152 = vmatpush1.bf16.msra.mxu0 %v12090
    %12153 = vmatprep.subr.bf16.mxu0 0
    %12154 = vmatpush1.bf16.msra.mxu0 %v12089
    %12155 = vmatprep.subr.bf16.mxu0 0
    %12156 = vmatpush1.bf16.msra.mxu0 %v12088
    %12157 = vmatprep.subr.bf16.mxu0 0
    %12158 = vmatpush1.bf16.msra.mxu0 %v12087
    %12159 = vmatprep.subr.bf16.mxu0 0
    %12160 = vmatpush2.bf16.msra.mxu0 %v12102
    %12161 = vmatprep.subr.bf16.mxu0 0
    %12162 = vmatpush2.bf16.msra.mxu0 %v12101
    %12163 = vmatprep.subr.bf16.mxu0 0
    %12164 = vmatpush2.bf16.msra.mxu0 %v12100
    %12165 = vmatprep.subr.bf16.mxu0 0
    %12166 = vmatpush2.bf16.msra.mxu0 %v12099
    %12167 = vmatprep.subr.bf16.mxu0 0
    %12168 = vmatpush2.bf16.msra.mxu0 %v12098
    %12169 = vmatprep.subr.bf16.mxu0 0
    %12170 = vmatpush2.bf16.msra.mxu0 %v12097
    %12171 = vmatprep.subr.bf16.mxu0 0
    %12172 = vmatpush2.bf16.msra.mxu0 %v12096
    %12173 = vmatprep.subr.bf16.mxu0 0
    %12174 = vmatpush2.bf16.msra.mxu0 %v12095
    %12175 = vmatprep.mubr.bf16.mxu0 %v12070
    %12176 = vmatmul.mubr.bf16.gmra.mxu0 %v12069
    %v12177 = vpop.f32.mrf.mxu0
    %v12178 = vadd.f32 %v12138, %v12177
    %v12179 = vpop.f32.mrf.mxu0
    %v12180 = vpop.f32.mrf.mxu0
    %v12181 = vpop.f32.mrf.mxu0
    %12182 = vdwg.mxu0
    %v12183 = vpack.c.bf16 %v12178, %v12178
    %v12184 = vld [vmem:[%s9] sm:$0xff]
    %v12185 = vld [vmem:[%s9 + $0x8] sm:$0xff]
    %v12186 = vld [vmem:[%s9 + $0x10] sm:$0xff]
    %v12187 = vld [vmem:[%s9 + $0x18] sm:$0xff]
    %v12188 = vpack.c.bf16 %v12185, %v12184
    %v12189 = vpack.c.bf16 %v12187, %v12186
    %v12190 = vld [vmem:[%s10] sm:$0x1]
    %v12192 = vlaneseq
    %v12193 = vshrl.u32 %v12192, 7
    %v12194 = vsub.s32 0, %v12193
    %v12195 = vrot.slane %v12190, %v12194
    %vm12197 = vcmask 261120
    %v12199 = vsel %vm12197, %v12183, 0
    %12201 = vmatprep.subr.bf16.mxu0 0
    %12202 = vmatpush1.bf16.msra.mxu0 0
    %12203 = vmatprep.subr.bf16.mxu0 0
    %12204 = vmatpush1.bf16.msra.mxu0 0
    %12205 = vmatprep.subr.bf16.mxu0 0
    %12206 = vmatpush1.bf16.msra.mxu0 0
    %12207 = vmatprep.subr.bf16.mxu0 0
    %12208 = vmatpush1.bf16.msra.mxu0 0
    %12209 = vmatprep.subr.bf16.mxu0 0
    %12210 = vmatpush1.bf16.msra.mxu0 0
    %12211 = vmatprep.subr.bf16.mxu0 0
    %12212 = vmatpush1.bf16.msra.mxu0 0
    %12213 = vmatprep.subr.bf16.mxu0 0
    %12214 = vmatpush1.bf16.msra.mxu0 %v12189
    %12215 = vmatprep.subr.bf16.mxu0 0
    %12216 = vmatpush1.bf16.msra.mxu0 %v12188
    %12217 = vmatprep.subr.bf16.mxu0 0
    %12218 = vmatpush2.bf16.msra.mxu0 0
    %12219 = vmatprep.subr.bf16.mxu0 0
    %12220 = vmatpush2.bf16.msra.mxu0 0
    %12221 = vmatprep.subr.bf16.mxu0 0
    %12222 = vmatpush2.bf16.msra.mxu0 0
    %12223 = vmatprep.subr.bf16.mxu0 0
    %12224 = vmatpush2.bf16.msra.mxu0 0
    %12225 = vmatprep.subr.bf16.mxu0 0
    %12226 = vmatpush2.bf16.msra.mxu0 0
    %12227 = vmatprep.subr.bf16.mxu0 0
    %12228 = vmatpush2.bf16.msra.mxu0 0
    %12229 = vmatprep.subr.bf16.mxu0 0
    %12230 = vmatpush2.bf16.msra.mxu0 0
    %12231 = vmatprep.subr.bf16.mxu0 0
    %12232 = vmatpush2.bf16.msra.mxu0 0
    %12233 = vmatprep.mubr.bf16.mxu0 0
    %12234 = vmatmul.mubr.bf16.gmra.mxu0 %v12199
    %v12235 = vpop.f32.mrf.mxu0
    %v12236 = vadd.f32 %v12195, %v12235
    %v12237 = vpop.f32.mrf.mxu0
    %v12238 = vpop.f32.mrf.mxu0
    %v12239 = vpop.f32.mrf.mxu0
    %12240 = vdwg.mxu0
    %vm12241 = vcmask 74752
    %12242 = vst.msk [vmem:[#allocation4] sm:$0x3] %vm12241, %v12236
    // Predicated region
    $region46: #{mobilenet_xx_forward.1} parent=1 // pred_check
      _
    $region47: #{mobilenet_xx_forward.1} parent=1 // pred_check_branch
      %12244 = sbr.rel (0) target = $region49
    $region48: #{mobilenet_xx_forward.1} parent=1 // pred_region
      %s12246 = ssub.s32 32, 32
      %12247 = vsyncadd [#allocation5], %s12246
      %s12249 = sshll.u32 [#allocation4], 4
      %s12250 = int_to_ptr.vmem [resolvable:$true] %s12249
      %12252 = dma.vmem_to_hbm [thread:$0]  %s12250, 32, %s11, [#allocation5]
    $region49: #{mobilenet_xx_forward.1} parent=1 // pred_fallthru
      _
    // Predicated region
    $region50: #{mobilenet_xx_forward.1} parent=1 // pred_check
      _
    $region51: #{mobilenet_xx_forward.1} parent=1 // pred_check_branch
      %12254 = sbr.rel (0) target = $region53
    $region52: #{mobilenet_xx_forward.1} parent=1 // pred_region
      %s12256 = ssub.s32 16, 16
      %12257 = vsyncadd [#allocation6], %s12256
      %12260 = dma.smem_to_hbm [#allocation7], 16, %s12, [#allocation6]
    $region53: #{mobilenet_xx_forward.1} parent=1 // pred_fallthru
      _
    // Predicated region
    $region54: #{mobilenet_xx_forward.1} parent=1 // pred_check
      _
    $region55: #{mobilenet_xx_forward.1} parent=1 // pred_check_branch
      %12262 = sbr.rel (0) target = $region57
    $region56: #{mobilenet_xx_forward.1} parent=1 // pred_region
      %12263 = dma.done [#allocation5], 32
    $region57: #{mobilenet_xx_forward.1} parent=1 // pred_fallthru
      _
    // Predicated region
    $region58: #{mobilenet_xx_forward.1} parent=1 // pred_check
      _
    $region59: #{mobilenet_xx_forward.1} parent=1 // pred_check_branch
      %12265 = sbr.rel (0) target = $region61
    $region60: #{mobilenet_xx_forward.1} parent=1 // pred_region
      %12266 = dma.done [#allocation6], 16
    $region61: #{mobilenet_xx_forward.1} parent=1 // pred_fallthru
      _
    %12267 = sfence
    %12268 = vsyncpa [#allocation5], 1
    %12269 = vsyncpa [#allocation6], 1

</llo_original>
